<compile_context>
chip_gen: v6e
topology: v6e:2x2x1
jax: 0.10.0
libtpu: 0.0.40
codegen_flags: <defaults>
</compile_context>

<pallas_src>
import functools
import math

import jax
import jax.numpy as jnp
from jax.experimental import pallas as pl
from jax.experimental.pallas import tpu as pltpu

C_IN = 144
C_OUT = 144
KH = KW = 3
STRIDE = 3
KC = KW * C_IN            # 432: contraction size per kh slab
C_PAD = 256               # output channels padded so the in-kernel transpose is (8,128)-aligned

_TARGET_ROWS = 1024       # output rows (M) per grid step; <=1024 keeps v7x (64 MiB VMEM) happy
_VMEM_LIMIT_BYTES = 48 * 1024 * 1024


def _round_up(x, m):
    return ((x + m - 1) // m) * m


def _choose_row_tile(ho_p, wo_p, n_batch):
    """Patch-rows per grid step.  tile_m = t_r*wo_p is kept a multiple of 128
    (lane-dense store + aligned in-kernel transpose); total grid steps are
    nudged to an even count when possible (v7x has 2 TensorCores)."""
    base = 128 // math.gcd(wo_p, 128)        # smallest t_r with (t_r*wo_p) % 128 == 0
    u_max = max(1, ho_p // base)
    u = max(1, min(u_max, _TARGET_ROWS // (base * wo_p)))
    t_r = base * u
    n_tiles = pl.cdiv(ho_p, t_r)
    while (n_batch * n_tiles) % 2 == 1 and u > 1:
        u -= 1
        t_r = base * u
        n_tiles = pl.cdiv(ho_p, t_r)
    return t_r, n_tiles


def _make_conv1_kernel(t_r, wo, nchw_out, precision):
    m = t_r * wo

    def kernel(x_ref, w_ref, b_ref, o_ref):
        # x_ref: (t_r, KH*wo, KC)   activations, one contiguous DMA per step
        # w_ref: (KH, KC, C_PAD)    resident (constant index map)
        # b_ref: (1, C_PAD) f32     resident
        # o_ref: (C_OUT, m) f32 if nchw_out else (m, C_OUT) f32
        acc = None
        for kh in range(KH):                                  # unrolled K accumulation
            lhs = x_ref[:, kh * wo:(kh + 1) * wo, :].reshape(m, KC)
            part = jnp.dot(lhs, w_ref[kh],
                           preferred_element_type=jnp.float32,
                           precision=precision)
            acc = part if acc is None else acc + part         # no zero-init
        acc = acc + b_ref[...]                                # bias folded in once
        if nchw_out:
            # (m, C_PAD) -> (C_PAD, m) in-kernel (XLU; kernel is HBM bound), drop
            # the pad channels.  Store is lane-dense (m % 128 == 0): unmasked vst.
            o_ref[...] = jnp.transpose(acc)[:C_OUT, :].astype(o_ref.dtype)
        else:
            o_ref[...] = acc[:, :C_OUT].astype(o_ref.dtype)

    return kernel


def _conv1_impl(x_nchw, weight, bias, *, act_dtype, precision, nchw_out):
    n, c, h, w = x_nchw.shape
    if c != C_IN:
        raise ValueError(f"conv1 expects {C_IN} input channels, got {c}")
    ho, wo = h // STRIDE, w // STRIDE
    if ho < 1 or wo < 1:
        raise ValueError("input spatially smaller than the 3x3/stride-3 kernel")

    # Crop the stride remainder (nn.Conv2d VALID semantics), then zero-pad so
    # Wo % 8 == 0 and at least one 128-aligned row tile fits.  Crop/pad/cast
    # all fold into the single NCHW->NHWC boundary pass below.
    x = x_nchw[:, :, : ho * STRIDE, : wo * STRIDE]
    wo_p = _round_up(wo, 8)
    base = 128 // math.gcd(wo_p, 128)
    ho_p = max(ho, base)
    pad_h = (ho_p - ho) * STRIDE
    pad_w = (wo_p - wo) * STRIDE

    x_nhwc = jnp.transpose(x, (0, 2, 3, 1)).astype(act_dtype)
    if pad_h or pad_w:
        x_nhwc = jnp.pad(x_nhwc, ((0, 0), (0, pad_h), (0, pad_w), (0, 0)))
    # Free (metadata-only) view of contiguous NHWC:
    #   x_view[n, r, kh*wo_p + wo, kw*C_IN + ci] == x[n, ci, 3r+kh, 3wo+kw]
    x_view = x_nhwc.reshape(n, ho_p, KH * wo_p, KC)

    # weight OIHW -> (kh, kw*ci, co), channel-padded; bias -> (1, C_PAD) f32.
    w_r = jnp.transpose(weight, (2, 3, 1, 0)).reshape(KH, KC, C_OUT).astype(act_dtype)
    w_r = jnp.pad(w_r, ((0, 0), (0, 0), (0, C_PAD - C_OUT)))
    b_r = jnp.pad(bias.astype(jnp.float32).reshape(1, C_OUT),
                  ((0, 0), (0, C_PAD - C_OUT)))

    t_r, n_tiles = _choose_row_tile(ho_p, wo_p, n)
    tile_m = t_r * wo_p
    grid = (n, n_tiles)

    kernel = _make_conv1_kernel(t_r, wo_p, nchw_out, precision)

    cost = pl.CostEstimate(
        flops=2 * n * ho_p * wo_p * KH * KC * C_PAD,
        transcendentals=0,
        bytes_accessed=(x_view.size * x_view.dtype.itemsize
                        + w_r.size * w_r.dtype.itemsize
                        + 4 * (C_PAD + n * C_OUT * ho_p * wo_p)),
    )

    in_specs = [
        # one contiguous DMA per step: all three kh slabs of t_r patch-rows
        pl.BlockSpec((None, t_r, KH * wo_p, KC), lambda nb, i: (nb, i, 0, 0)),
        # constant index maps -> fetched once, resident across all grid steps.
        # TODO(synk): pipeline_mode=pl.Buffered(1) would drop their second
        # buffer (~0.7 MB); skipped, VMEM headroom is ample at these tile sizes.
        pl.BlockSpec((KH, KC, C_PAD), lambda nb, i: (0, 0, 0)),
        pl.BlockSpec((1, C_PAD), lambda nb, i: (0, 0)),
    ]
    if nchw_out:
        out_shape = jax.ShapeDtypeStruct((n, C_OUT, ho_p * wo_p), jnp.float32)
        out_spec = pl.BlockSpec((None, C_OUT, tile_m), lambda nb, i: (nb, 0, i))
    else:
        out_shape = jax.ShapeDtypeStruct((n, ho_p * wo_p, C_OUT), jnp.float32)
        out_spec = pl.BlockSpec((None, tile_m, C_OUT), lambda nb, i: (nb, i, 0))

    out = pl.pallas_call(
        kernel,
        out_shape=out_shape,
        grid_spec=pltpu.PrefetchScalarGridSpec(
            num_scalar_prefetch=0,
            grid=grid,
            in_specs=in_specs,
            out_specs=out_spec,
        ),
        compiler_params=pltpu.CompilerParams(
            dimension_semantics=("parallel", "parallel"),
            vmem_limit_bytes=_VMEM_LIMIT_BYTES,
        ),
        cost_estimate=cost,
    )(x_view, w_r, b_r)

    if nchw_out:
        y = out.reshape(n, C_OUT, ho_p, wo_p)[:, :, :ho, :wo]
    else:
        y = out.reshape(n, ho_p, wo_p, C_OUT)[:, :ho, :wo, :]
        y = jnp.transpose(y, (0, 3, 1, 2))
    return y


_NCHW_STORE_OK = None


def _nchw_store_supported():
    """One-time probe: does the in-kernel (m, C)->(C, m) transposed store lower
    on this toolchain?  Falls back to an NHWC store + XLA transpose if not."""
    global _NCHW_STORE_OK
    if _NCHW_STORE_OK is None:
        try:
            xp = jnp.zeros((1, C_IN, 24, 24), jnp.float32)
            wp = jnp.zeros((C_OUT, C_IN, KH, KW), jnp.float32)
            bp = jnp.zeros((C_OUT,), jnp.float32)
            jax.block_until_ready(
                _conv1_impl(xp, wp, bp, act_dtype=jnp.bfloat16,
                            precision=None, nchw_out=True))
            _NCHW_STORE_OK = True
        except Exception:
            _NCHW_STORE_OK = False
    return _NCHW_STORE_OK


def conv1_pallas(x_nchw, weight, bias, *, act_dtype=jnp.bfloat16, precision=None):
    """nn.Conv2d(144, 144, kernel_size=3, stride=3) forward as a Pallas TPU kernel.

    x_nchw: [N,144,H,W] f32; weight: [144,144,3,3] OIHW; bias: [144].
    Returns [N,144,H//3,W//3] f32 (NCHW), matching the PyTorch conv.

    act_dtype=jnp.bfloat16 (default) halves the HBM-bound kernel's read bytes.
    Note even act_dtype=float32 multiplies in bf16 on the MXU under DEFAULT
    precision; pass precision=jax.lax.Precision.HIGHEST for near-f32 parity.
    """
    return _conv1_impl(x_nchw, weight, bias, act_dtype=act_dtype,
                       precision=precision, nchw_out=_nchw_store_supported())


@functools.partial(jax.jit, static_argnames=("act_dtype", "precision"))
def _conv1_jit(x, w, b, *, act_dtype=jnp.bfloat16, precision=None):
    return conv1_pallas(x, w, b, act_dtype=act_dtype, precision=precision)


def detector1stage_forward(x_nchw, params, act_dtype=jnp.bfloat16, precision=None):
    """Stand-in for Detector1stage.forward: runs the module's concretely
    defined conv1.  # TODO(synk): pcencoder / backbone / heads / losses and the
    numpy lane-map post-processing require an external cfg + module registry
    that is not provided (forward() itself never even calls conv1)."""
    fea = _conv1_jit(x_nchw, params["conv1_w"], params["conv1_b"],
                     act_dtype=act_dtype, precision=precision)
    return {"fea": fea}


def _reference_conv(x_nchw, weight, bias, act_dtype=jnp.float32):
    """Pure-JAX reference for nn.Conv2d(144,144,3,stride=3) with inputs rounded
    to act_dtype (mirrors the kernel's storage dtype)."""
    xq = x_nchw.astype(act_dtype).astype(jnp.float32)
    wq = weight.astype(act_dtype).astype(jnp.float32)
    y = jax.lax.conv_general_dilated(
        xq, wq, window_strides=(STRIDE, STRIDE), padding="VALID",
        dimension_numbers=("NCHW", "OIHW", "NCHW"))
    return y + bias.reshape(1, C_OUT, 1, 1)


if __name__ == "__main__":
    key = jax.random.PRNGKey(0)
    k_w, k_b, k_a, k_bb, k_c = jax.random.split(key, 5)

    fan_in = C_IN * KH * KW
    conv1_w = jax.random.normal(k_w, (C_OUT, C_IN, KH, KW), jnp.float32) / jnp.sqrt(fan_in)
    conv1_b = 0.02 * jax.random.normal(k_b, (C_OUT,), jnp.float32)
    params = {"conv1_w": conv1_w, "conv1_b": conv1_b}

    # resolve the one-time store-layout probe before the jitted calls
    _nchw_store_supported()

    # Case A: bf16 activations (default), multi-tile grid with a ragged tail.
    xa = jax.random.normal(k_a, (2, C_IN, 168, 24), jnp.float32)
    ya = jax.block_until_ready(detector1stage_forward(xa, params)["fea"])
    ya_ref = _reference_conv(xa, conv1_w, conv1_b, act_dtype=jnp.bfloat16)
    assert ya.shape == (2, C_OUT, 56, 8)
    assert jnp.allclose(ya, ya_ref, atol=5e-3, rtol=5e-3)

    # Case B: f32-stored activations.  Agreement with the XLA conv is limited
    # by DEFAULT MXU precision (bf16 multiplies) on both sides; pass
    # precision=jax.lax.Precision.HIGHEST for tighter parity if required.
    xb = jax.random.normal(k_bb, (1, C_IN, 48, 48), jnp.float32)
    yb = jax.block_until_ready(
        detector1stage_forward(xb, params, act_dtype=jnp.float32)["fea"])
    yb_ref = _reference_conv(xb, conv1_w, conv1_b, act_dtype=jnp.float32)
    assert yb.shape == (1, C_OUT, 16, 16)
    assert jnp.allclose(yb, yb_ref, atol=2e-2, rtol=2e-2)

    # Case C: ragged spatial dims (H, W not multiples of 3; Wo % 8 != 0)
    #         -> crop + pad folded into the boundary pass, output sliced.
    xc = jax.random.normal(k_c, (2, C_IN, 17, 22), jnp.float32)
    yc = jax.block_until_ready(detector1stage_forward(xc, params)["fea"])
    yc_ref = _reference_conv(xc, conv1_w, conv1_b, act_dtype=jnp.bfloat16)
    assert yc.shape == (2, C_OUT, 5, 7)
    assert jnp.allclose(yc, yc_ref, atol=5e-3, rtol=5e-3)

    print("KERNEL_OK")
</pallas_src>

<mosaic_0001>
module attributes {stable_mosaic.version = 11 : i64} {
  func.func @kernel(%arg0: i32, %arg1: i32, %arg2: memref<1x16x24x432xbf16, #tpu.memory_space<vmem>>, %arg3: memref<3x432x256xbf16, #tpu.memory_space<vmem>>, %arg4: memref<1x256xf32, #tpu.memory_space<vmem>>, %arg5: memref<1x144x128xf32, #tpu.memory_space<vmem>>) attributes {dimension_semantics = [#tpu.dimension_semantics<parallel>, #tpu.dimension_semantics<parallel>], iteration_bounds = array<i64: 1, 1>, scalar_prefetch = 0 : i64, scratch_operands = 0 : i64, tpu.core_type = #tpu.core_type<tc>, window_params = [{transform_indices = @transform_0, window_bounds = array<i64: 1, 16, 24, 432>}, {pipeline_mode = #tpu.pipeline_mode<synchronous>, transform_indices = @transform_1, window_bounds = array<i64: 3, 432, 256>}, {pipeline_mode = #tpu.pipeline_mode<synchronous>, transform_indices = @transform_2, window_bounds = array<i64: 1, 256>}, {transform_indices = @transform_3, window_bounds = array<i64: 1, 144, 128>}]} {
    %c0 = arith.constant 0 : index
    %c0_0 = arith.constant 0 : index
    %c0_1 = arith.constant 0 : index
    %c0_2 = arith.constant 0 : index
    %0 = vector.load %arg2[%c0, %c0_0, %c0_1, %c0_2] : memref<1x16x24x432xbf16, #tpu.memory_space<vmem>>, vector<1x16x8x432xbf16>
    %1 = vector.shape_cast %0 : vector<1x16x8x432xbf16> to vector<16x8x432xbf16>
    %2 = vector.shape_cast %1 : vector<16x8x432xbf16> to vector<128x432xbf16>
    %c0_3 = arith.constant 0 : index
    %c0_4 = arith.constant 0 : index
    %c0_5 = arith.constant 0 : index
    %3 = vector.load %arg3[%c0_3, %c0_4, %c0_5] : memref<3x432x256xbf16, #tpu.memory_space<vmem>>, vector<1x432x256xbf16>
    %4 = vector.shape_cast %3 : vector<1x432x256xbf16> to vector<432x256xbf16>
    %cst = arith.constant dense<0.000000e+00> : vector<128x256xf32>
    %5 = tpu.matmul %2, %4, %cst {dimension_numbers = #tpu.dot_dimension_numbers<[1], [0], [0], [1], [0, 0, 1, 1], [], []>} : vector<128x432xbf16>, vector<432x256xbf16>, vector<128x256xf32> -> vector<128x256xf32>
    %c0_6 = arith.constant 0 : index
    %c0_7 = arith.constant 0 : index
    %c8 = arith.constant 8 : index
    %c0_8 = arith.constant 0 : index
    %6 = vector.load %arg2[%c0_6, %c0_7, %c8, %c0_8] : memref<1x16x24x432xbf16, #tpu.memory_space<vmem>>, vector<1x16x8x432xbf16>
    %7 = vector.shape_cast %6 : vector<1x16x8x432xbf16> to vector<16x8x432xbf16>
    %8 = vector.shape_cast %7 : vector<16x8x432xbf16> to vector<128x432xbf16>
    %c1 = arith.constant 1 : index
    %c0_9 = arith.constant 0 : index
    %c0_10 = arith.constant 0 : index
    %9 = vector.load %arg3[%c1, %c0_9, %c0_10] : memref<3x432x256xbf16, #tpu.memory_space<vmem>>, vector<1x432x256xbf16>
    %10 = vector.shape_cast %9 : vector<1x432x256xbf16> to vector<432x256xbf16>
    %cst_11 = arith.constant dense<0.000000e+00> : vector<128x256xf32>
    %11 = tpu.matmul %8, %10, %cst_11 {dimension_numbers = #tpu.dot_dimension_numbers<[1], [0], [0], [1], [0, 0, 1, 1], [], []>} : vector<128x432xbf16>, vector<432x256xbf16>, vector<128x256xf32> -> vector<128x256xf32>
    %12 = arith.addf %5, %11 : vector<128x256xf32>
    %c0_12 = arith.constant 0 : index
    %c0_13 = arith.constant 0 : index
    %c16 = arith.constant 16 : index
    %c0_14 = arith.constant 0 : index
    %13 = vector.load %arg2[%c0_12, %c0_13, %c16, %c0_14] : memref<1x16x24x432xbf16, #tpu.memory_space<vmem>>, vector<1x16x8x432xbf16>
    %14 = vector.shape_cast %13 : vector<1x16x8x432xbf16> to vector<16x8x432xbf16>
    %15 = vector.shape_cast %14 : vector<16x8x432xbf16> to vector<128x432xbf16>
    %c2 = arith.constant 2 : index
    %c0_15 = arith.constant 0 : index
    %c0_16 = arith.constant 0 : index
    %16 = vector.load %arg3[%c2, %c0_15, %c0_16] : memref<3x432x256xbf16, #tpu.memory_space<vmem>>, vector<1x432x256xbf16>
    %17 = vector.shape_cast %16 : vector<1x432x256xbf16> to vector<432x256xbf16>
    %cst_17 = arith.constant dense<0.000000e+00> : vector<128x256xf32>
    %18 = tpu.matmul %15, %17, %cst_17 {dimension_numbers = #tpu.dot_dimension_numbers<[1], [0], [0], [1], [0, 0, 1, 1], [], []>} : vector<128x432xbf16>, vector<432x256xbf16>, vector<128x256xf32> -> vector<128x256xf32>
    %19 = arith.addf %12, %18 : vector<128x256xf32>
    %c0_18 = arith.constant 0 : index
    %c0_19 = arith.constant 0 : index
    %20 = vector.load %arg4[%c0_18, %c0_19] : memref<1x256xf32, #tpu.memory_space<vmem>>, vector<1x256xf32>
    %21 = vector.broadcast %20 : vector<1x256xf32> to vector<128x256xf32>
    %22 = arith.addf %19, %21 : vector<128x256xf32>
    %23 = tpu.transpose %22, [1, 0] : vector<128x256xf32> -> vector<256x128xf32>
    %24 = vector.extract_strided_slice %23 {offsets = [0, 0], sizes = [144, 128], strides = [1, 1]} : vector<256x128xf32> to vector<144x128xf32>
    %c0_20 = arith.constant 0 : index
    %c0_21 = arith.constant 0 : index
    %c0_22 = arith.constant 0 : index
    %25 = vector.load %arg5[%c0_20, %c0_21, %c0_22] : memref<1x144x128xf32, #tpu.memory_space<vmem>>, vector<1x144x128xf32>
    %26 = vector.shape_cast %25 : vector<1x144x128xf32> to vector<144x128xf32>
    %27 = vector.shape_cast %24 : vector<144x128xf32> to vector<1x144x128xf32>
    tpu.vector_store %arg5[%c0_20, %c0_21, %c0_22], %27 {strides = array<i32>} : memref<1x144x128xf32, #tpu.memory_space<vmem>>, vector<1x144x128xf32>,
    return
  }
  func.func @transform_0(%arg0: i32, %arg1: i32) -> (i32, i32, i32, i32) {
    %c0_i32 = arith.constant 0 : i32
    %c0_i32_0 = arith.constant 0 : i32
    %c0_i32_1 = arith.constant 0 : i32
    return %arg0, %arg1, %c0_i32, %c0_i32_0 : i32, i32, i32, i32
  }
  func.func @transform_1(%arg0: i32, %arg1: i32) -> (i32, i32, i32) {
    %c0_i32 = arith.constant 0 : i32
    %c0_i32_0 = arith.constant 0 : i32
    %c0_i32_1 = arith.constant 0 : i32
    %c0_i32_2 = arith.constant 0 : i32
    return %c0_i32, %c0_i32_0, %c0_i32_1 : i32, i32, i32
  }
  func.func @transform_2(%arg0: i32, %arg1: i32) -> (i32, i32) {
    %c0_i32 = arith.constant 0 : i32
    %c0_i32_0 = arith.constant 0 : i32
    %c0_i32_1 = arith.constant 0 : i32
    return %c0_i32, %c0_i32_0 : i32, i32
  }
  func.func @transform_3(%arg0: i32, %arg1: i32) -> (i32, i32, i32) {
    %c0_i32 = arith.constant 0 : i32
    %c0_i32_0 = arith.constant 0 : i32
    return %arg0, %c0_i32, %arg1 : i32, i32, i32
  }
}

module attributes {stable_mosaic.version = 11 : i64} {
  func.func @kernel(%arg0: i32, %arg1: i32, %arg2: memref<1x48x24x432xbf16, #tpu.memory_space<vmem>>, %arg3: memref<3x432x256xbf16, #tpu.memory_space<vmem>>, %arg4: memref<1x256xf32, #tpu.memory_space<vmem>>, %arg5: memref<1x384x144xf32, #tpu.memory_space<vmem>>) attributes {dimension_semantics = [#tpu.dimension_semantics<parallel>, #tpu.dimension_semantics<parallel>], iteration_bounds = array<i64: 2, 2>, scalar_prefetch = 0 : i64, scratch_operands = 0 : i64, tpu.core_type = #tpu.core_type<tc>, window_params = [{transform_indices = @transform_0, window_bounds = array<i64: 1, 48, 24, 432>}, {pipeline_mode = #tpu.pipeline_mode<synchronous>, transform_indices = @transform_1, window_bounds = array<i64: 3, 432, 256>}, {pipeline_mode = #tpu.pipeline_mode<synchronous>, transform_indices = @transform_2, window_bounds = array<i64: 1, 256>}, {transform_indices = @transform_3, window_bounds = array<i64: 1, 384, 144>}]} {
    %c0 = arith.constant 0 : index
    %c0_0 = arith.constant 0 : index
    %c0_1 = arith.constant 0 : index
    %c0_2 = arith.constant 0 : index
    %0 = vector.load %arg2[%c0, %c0_0, %c0_1, %c0_2] : memref<1x48x24x432xbf16, #tpu.memory_space<vmem>>, vector<1x48x8x432xbf16>
    %1 = vector.shape_cast %0 : vector<1x48x8x432xbf16> to vector<48x8x432xbf16>
    %2 = vector.shape_cast %1 : vector<48x8x432xbf16> to vector<384x432xbf16>
    %c0_3 = arith.constant 0 : index
    %c0_4 = arith.constant 0 : index
    %c0_5 = arith.constant 0 : index
    %3 = vector.load %arg3[%c0_3, %c0_4, %c0_5] : memref<3x432x256xbf16, #tpu.memory_space<vmem>>, vector<1x432x256xbf16>
    %4 = vector.shape_cast %3 : vector<1x432x256xbf16> to vector<432x256xbf16>
    %cst = arith.constant dense<0.000000e+00> : vector<384x256xf32>
    %5 = tpu.matmul %2, %4, %cst {dimension_numbers = #tpu.dot_dimension_numbers<[1], [0], [0], [1], [0, 0, 1, 1], [], []>} : vector<384x432xbf16>, vector<432x256xbf16>, vector<384x256xf32> -> vector<384x256xf32>
    %c0_6 = arith.constant 0 : index
    %c0_7 = arith.constant 0 : index
    %c8 = arith.constant 8 : index
    %c0_8 = arith.constant 0 : index
    %6 = vector.load %arg2[%c0_6, %c0_7, %c8, %c0_8] : memref<1x48x24x432xbf16, #tpu.memory_space<vmem>>, vector<1x48x8x432xbf16>
    %7 = vector.shape_cast %6 : vector<1x48x8x432xbf16> to vector<48x8x432xbf16>
    %8 = vector.shape_cast %7 : vector<48x8x432xbf16> to vector<384x432xbf16>
    %c1 = arith.constant 1 : index
    %c0_9 = arith.constant 0 : index
    %c0_10 = arith.constant 0 : index
    %9 = vector.load %arg3[%c1, %c0_9, %c0_10] : memref<3x432x256xbf16, #tpu.memory_space<vmem>>, vector<1x432x256xbf16>
    %10 = vector.shape_cast %9 : vector<1x432x256xbf16> to vector<432x256xbf16>
    %cst_11 = arith.constant dense<0.000000e+00> : vector<384x256xf32>
    %11 = tpu.matmul %8, %10, %cst_11 {dimension_numbers = #tpu.dot_dimension_numbers<[1], [0], [0], [1], [0, 0, 1, 1], [], []>} : vector<384x432xbf16>, vector<432x256xbf16>, vector<384x256xf32> -> vector<384x256xf32>
    %12 = arith.addf %5, %11 : vector<384x256xf32>
    %c0_12 = arith.constant 0 : index
    %c0_13 = arith.constant 0 : index
    %c16 = arith.constant 16 : index
    %c0_14 = arith.constant 0 : index
    %13 = vector.load %arg2[%c0_12, %c0_13, %c16, %c0_14] : memref<1x48x24x432xbf16, #tpu.memory_space<vmem>>, vector<1x48x8x432xbf16>
    %14 = vector.shape_cast %13 : vector<1x48x8x432xbf16> to vector<48x8x432xbf16>
    %15 = vector.shape_cast %14 : vector<48x8x432xbf16> to vector<384x432xbf16>
    %c2 = arith.constant 2 : index
    %c0_15 = arith.constant 0 : index
    %c0_16 = arith.constant 0 : index
    %16 = vector.load %arg3[%c2, %c0_15, %c0_16] : memref<3x432x256xbf16, #tpu.memory_space<vmem>>, vector<1x432x256xbf16>
    %17 = vector.shape_cast %16 : vector<1x432x256xbf16> to vector<432x256xbf16>
    %cst_17 = arith.constant dense<0.000000e+00> : vector<384x256xf32>
    %18 = tpu.matmul %15, %17, %cst_17 {dimension_numbers = #tpu.dot_dimension_numbers<[1], [0], [0], [1], [0, 0, 1, 1], [], []>} : vector<384x432xbf16>, vector<432x256xbf16>, vector<384x256xf32> -> vector<384x256xf32>
    %19 = arith.addf %12, %18 : vector<384x256xf32>
    %c0_18 = arith.constant 0 : index
    %c0_19 = arith.constant 0 : index
    %20 = vector.load %arg4[%c0_18, %c0_19] : memref<1x256xf32, #tpu.memory_space<vmem>>, vector<1x256xf32>
    %21 = vector.broadcast %20 : vector<1x256xf32> to vector<384x256xf32>
    %22 = arith.addf %19, %21 : vector<384x256xf32>
    %23 = vector.extract_strided_slice %22 {offsets = [0, 0], sizes = [384, 144], strides = [1, 1]} : vector<384x256xf32> to vector<384x144xf32>
    %c0_20 = arith.constant 0 : index
    %c0_21 = arith.constant 0 : index
    %c0_22 = arith.constant 0 : index
    %24 = vector.load %arg5[%c0_20, %c0_21, %c0_22] : memref<1x384x144xf32, #tpu.memory_space<vmem>>, vector<1x384x144xf32>
    %25 = vector.shape_cast %24 : vector<1x384x144xf32> to vector<384x144xf32>
    %26 = vector.shape_cast %23 : vector<384x144xf32> to vector<1x384x144xf32>
    tpu.vector_store %arg5[%c0_20, %c0_21, %c0_22], %26 {strides = array<i32>} : memref<1x384x144xf32, #tpu.memory_space<vmem>>, vector<1x384x144xf32>,
    return
  }
  func.func @transform_0(%arg0: i32, %arg1: i32) -> (i32, i32, i32, i32) {
    %c0_i32 = arith.constant 0 : i32
    %c0_i32_0 = arith.constant 0 : i32
    %c0_i32_1 = arith.constant 0 : i32
    return %arg0, %arg1, %c0_i32, %c0_i32_0 : i32, i32, i32, i32
  }
  func.func @transform_1(%arg0: i32, %arg1: i32) -> (i32, i32, i32) {
    %c0_i32 = arith.constant 0 : i32
    %c0_i32_0 = arith.constant 0 : i32
    %c0_i32_1 = arith.constant 0 : i32
    %c0_i32_2 = arith.constant 0 : i32
    return %c0_i32, %c0_i32_0, %c0_i32_1 : i32, i32, i32
  }
  func.func @transform_2(%arg0: i32, %arg1: i32) -> (i32, i32) {
    %c0_i32 = arith.constant 0 : i32
    %c0_i32_0 = arith.constant 0 : i32
    %c0_i32_1 = arith.constant 0 : i32
    return %c0_i32, %c0_i32_0 : i32, i32
  }
  func.func @transform_3(%arg0: i32, %arg1: i32) -> (i32, i32, i32) {
    %c0_i32 = arith.constant 0 : i32
    %c0_i32_0 = arith.constant 0 : i32
    return %arg0, %arg1, %c0_i32 : i32, i32, i32
  }
}

</mosaic_0001>

<llo_original>
// kernel: tpu_custom_call.1
$region0: #{tpu_custom_call.1}
  #allocation0 [shape = 'u32[]', space=smem, size = 0x4, offset = 0x4, fixed_abs, tag = 'smem constant byte address 0x4 - core index']
  #allocation1 [shape = 'u32[144,128]{1,0:T(1,128)}', space=vmem, size = 0x12000, scoped, tag = 'internal scratch']
  %s0 = inlined_call_operand.hbm [shape: bf16[1,16,24,432], index: 0, kind: input, shape index: {}]
  %s1 = inlined_call_operand.hbm [shape: bf16[3,432,256], index: 1, kind: input, shape index: {}]
  %s2 = inlined_call_operand.vmem [shape: f32[1,256], index: 2, kind: input, shape index: {}]
  %s3 = inlined_call_operand.hbm [shape: f32[1,144,128], index: 3, kind: output, shape index: {}]
  %s4 = sld [smem:[#allocation0]]
  $region30: #{tpu_custom_call.1} parent=0
    _
  %s6 = ssub.s32 1, %s4
  %s7 = scalar_select 0, %s6, %s4
  $region1: #{tpu_custom_call.1} parent=0
    #allocation2 [shape = 'u8[393216]{0}', space=vmem, size = 0x60000, scoped, tag = 'input window, operand 0, single buffered']
    #allocation3 [shape = 's32[1]{0}', space=sflag, size = 0x4, scoped, tag = 'scoped memory for tpu_custom_call.1']
    #allocation4 [shape = 's32[1]{0}', space=sflag, size = 0x4, scoped, tag = 'scoped memory for tpu_custom_call.1']
    #allocation5 [shape = 'u8[663552]{0}', space=vmem, size = 0xa2000, scoped, tag = 'input window, operand 1, single buffered']
    #allocation6 [shape = 's32[1]{0}', space=sflag, size = 0x4, scoped, tag = 'scoped memory for tpu_custom_call.1']
    #allocation7 [shape = 'u8[73728]{0}', space=vmem, size = 0x12000, scoped, tag = 'output window, operand 0, single buffered']
    %8 = vsyncpa [#allocation3], 0
    %9 = vsyncpa [#allocation6], 0
    %10 = vsyncpa [#allocation4], 0
    // Predicated region
    $region2: #{tpu_custom_call.1} parent=1 // pred_check
      _
    $region3: #{tpu_custom_call.1} parent=1 // pred_check_branch
      %12 = sbr.rel (0) target = $region5
    $region4: #{tpu_custom_call.1} parent=1 // pred_region
      %s14 = ssub.s32 12288, 12288
      %15 = vsyncadd [#allocation3], %s14
      %s16 = sshll.u32 [#allocation2], 4
      %s17 = int_to_ptr.vmem [resolvable:$true] %s16
      %22 = dma.hbm_to_vmem [thread:$0]  %s0, 12288, %s17, [#allocation3], 256, 256, 16
    $region5: #{tpu_custom_call.1} parent=1 // pred_fallthru
      _
    // Predicated region
    $region6: #{tpu_custom_call.1} parent=1 // pred_check
      _
    $region7: #{tpu_custom_call.1} parent=1 // pred_check_branch
      %24 = sbr.rel (0) target = $region9
    $region8: #{tpu_custom_call.1} parent=1 // pred_region
      %s26 = ssub.s32 20736, 20736
      %27 = vsyncadd [#allocation6], %s26
      %s28 = sshll.u32 [#allocation5], 4
      %s29 = int_to_ptr.vmem [resolvable:$true] %s28
      %34 = dma.hbm_to_vmem [thread:$0]  %s1, 20736, %s29, [#allocation6], 128, 128, 8
    $region9: #{tpu_custom_call.1} parent=1 // pred_fallthru
      _
    // Predicated region
    $region10: #{tpu_custom_call.1} parent=1 // pred_check
      _
    $region11: #{tpu_custom_call.1} parent=1 // pred_check_branch
      %36 = sbr.rel (0) target = $region13
    $region12: #{tpu_custom_call.1} parent=1 // pred_region
      _
    $region13: #{tpu_custom_call.1} parent=1 // pred_fallthru
      _
    // Predicated region
    $region14: #{tpu_custom_call.1} parent=1 // pred_check
      _
    $region15: #{tpu_custom_call.1} parent=1 // pred_check_branch
      %38 = sbr.rel (0) target = $region17
    $region16: #{tpu_custom_call.1} parent=1 // pred_region
      %39 = dma.done [#allocation3], 12288
    $region17: #{tpu_custom_call.1} parent=1 // pred_fallthru
      _
    // Predicated region
    $region18: #{tpu_custom_call.1} parent=1 // pred_check
      _
    $region19: #{tpu_custom_call.1} parent=1 // pred_check_branch
      %41 = sbr.rel (0) target = $region21
    $region20: #{tpu_custom_call.1} parent=1 // pred_region
      %42 = dma.done [#allocation6], 20736
    $region21: #{tpu_custom_call.1} parent=1 // pred_fallthru
      _
    %v44 = vld [vmem:[#allocation2] sm:$0xff]
    %v45 = vld [vmem:[#allocation2 + $0x8] sm:$0xff]
    %v46 = vld [vmem:[#allocation2 + $0x30] sm:$0xff]
    %v47 = vld [vmem:[#allocation2 + $0x38] sm:$0xff]
    %v48 = vld [vmem:[#allocation2 + $0x60] sm:$0xff]
    %v49 = vld [vmem:[#allocation2 + $0x68] sm:$0xff]
    %v50 = vld [vmem:[#allocation2 + $0x90] sm:$0xff]
    %v51 = vld [vmem:[#allocation2 + $0x98] sm:$0xff]
    %v52 = vld [vmem:[#allocation2 + $0xc0] sm:$0xff]
    %v53 = vld [vmem:[#allocation2 + $0xc8] sm:$0xff]
    %v54 = vld [vmem:[#allocation2 + $0xf0] sm:$0xff]
    %v55 = vld [vmem:[#allocation2 + $0xf8] sm:$0xff]
    %v56 = vld [vmem:[#allocation2 + $0x120] sm:$0xff]
    %v57 = vld [vmem:[#allocation2 + $0x128] sm:$0xff]
    %v58 = vld [vmem:[#allocation2 + $0x150] sm:$0xff]
    %v59 = vld [vmem:[#allocation2 + $0x158] sm:$0xff]
    %v60 = vld [vmem:[#allocation2 + $0x180] sm:$0xff]
    %v61 = vld [vmem:[#allocation2 + $0x188] sm:$0xff]
    %v62 = vld [vmem:[#allocation2 + $0x1b0] sm:$0xff]
    %v63 = vld [vmem:[#allocation2 + $0x1b8] sm:$0xff]
    %v64 = vld [vmem:[#allocation2 + $0x1e0] sm:$0xff]
    %v65 = vld [vmem:[#allocation2 + $0x1e8] sm:$0xff]
    %v66 = vld [vmem:[#allocation2 + $0x210] sm:$0xff]
    %v67 = vld [vmem:[#allocation2 + $0x218] sm:$0xff]
    %v68 = vld [vmem:[#allocation2 + $0x240] sm:$0xff]
    %v69 = vld [vmem:[#allocation2 + $0x248] sm:$0xff]
    %v70 = vld [vmem:[#allocation2 + $0x270] sm:$0xff]
    %v71 = vld [vmem:[#allocation2 + $0x278] sm:$0xff]
    %v72 = vld [vmem:[#allocation2 + $0x2a0] sm:$0xff]
    %v73 = vld [vmem:[#allocation2 + $0x2a8] sm:$0xff]
    %v74 = vld [vmem:[#allocation2 + $0x2d0] sm:$0xff]
    %v75 = vld [vmem:[#allocation2 + $0x2d8] sm:$0xff]
    %v76 = vld [vmem:[#allocation5] sm:$0xff]
    %v77 = vld [vmem:[#allocation5 + $0x8] sm:$0xff]
    %v78 = vld [vmem:[#allocation5 + $0x10] sm:$0xff]
    %v79 = vld [vmem:[#allocation5 + $0x18] sm:$0xff]
    %v80 = vld [vmem:[#allocation5 + $0x20] sm:$0xff]
    %v81 = vld [vmem:[#allocation5 + $0x28] sm:$0xff]
    %v82 = vld [vmem:[#allocation5 + $0x30] sm:$0xff]
    %v83 = vld [vmem:[#allocation5 + $0x38] sm:$0xff]
    %v84 = vld [vmem:[#allocation5 + $0x40] sm:$0xff]
    %v85 = vld [vmem:[#allocation5 + $0x48] sm:$0xff]
    %v86 = vld [vmem:[#allocation5 + $0x50] sm:$0xff]
    %v87 = vld [vmem:[#allocation5 + $0x58] sm:$0xff]
    %v88 = vld [vmem:[#allocation5 + $0x60] sm:$0xff]
    %v89 = vld [vmem:[#allocation5 + $0x68] sm:$0xff]
    %v90 = vld [vmem:[#allocation5 + $0x70] sm:$0xff]
    %v91 = vld [vmem:[#allocation5 + $0x78] sm:$0xff]
    %v92 = vld [vmem:[#allocation5 + $0x80] sm:$0xff]
    %v93 = vld [vmem:[#allocation5 + $0x88] sm:$0xff]
    %v94 = vld [vmem:[#allocation5 + $0x90] sm:$0xff]
    %v95 = vld [vmem:[#allocation5 + $0x98] sm:$0xff]
    %v96 = vld [vmem:[#allocation5 + $0xa0] sm:$0xff]
    %v97 = vld [vmem:[#allocation5 + $0xa8] sm:$0xff]
    %v98 = vld [vmem:[#allocation5 + $0xb0] sm:$0xff]
    %v99 = vld [vmem:[#allocation5 + $0xb8] sm:$0xff]
    %v100 = vld [vmem:[#allocation5 + $0xc0] sm:$0xff]
    %v101 = vld [vmem:[#allocation5 + $0xc8] sm:$0xff]
    %v102 = vld [vmem:[#allocation5 + $0xd0] sm:$0xff]
    %v103 = vld [vmem:[#allocation5 + $0xd8] sm:$0xff]
    %v104 = vld [vmem:[#allocation5 + $0xe0] sm:$0xff]
    %v105 = vld [vmem:[#allocation5 + $0xe8] sm:$0xff]
    %v106 = vld [vmem:[#allocation5 + $0xf0] sm:$0xff]
    %v107 = vld [vmem:[#allocation5 + $0xf8] sm:$0xff]
    %v108 = vld [vmem:[#allocation5 + $0x100] sm:$0xff]
    %v109 = vld [vmem:[#allocation5 + $0x108] sm:$0xff]
    %v110 = vld [vmem:[#allocation5 + $0x110] sm:$0xff]
    %v111 = vld [vmem:[#allocation5 + $0x118] sm:$0xff]
    %v112 = vld [vmem:[#allocation5 + $0x120] sm:$0xff]
    %v113 = vld [vmem:[#allocation5 + $0x128] sm:$0xff]
    %v114 = vld [vmem:[#allocation5 + $0x130] sm:$0xff]
    %v115 = vld [vmem:[#allocation5 + $0x138] sm:$0xff]
    %v116 = vld [vmem:[#allocation5 + $0x140] sm:$0xff]
    %v117 = vld [vmem:[#allocation5 + $0x148] sm:$0xff]
    %v118 = vld [vmem:[#allocation5 + $0x150] sm:$0xff]
    %v119 = vld [vmem:[#allocation5 + $0x158] sm:$0xff]
    %v120 = vld [vmem:[#allocation5 + $0x160] sm:$0xff]
    %v121 = vld [vmem:[#allocation5 + $0x168] sm:$0xff]
    %v122 = vld [vmem:[#allocation5 + $0x170] sm:$0xff]
    %v123 = vld [vmem:[#allocation5 + $0x178] sm:$0xff]
    %v124 = vld [vmem:[#allocation5 + $0x180] sm:$0xff]
    %v125 = vld [vmem:[#allocation5 + $0x188] sm:$0xff]
    %v126 = vld [vmem:[#allocation5 + $0x190] sm:$0xff]
    %v127 = vld [vmem:[#allocation5 + $0x198] sm:$0xff]
    %v128 = vld [vmem:[#allocation5 + $0x1a0] sm:$0xff]
    %v129 = vld [vmem:[#allocation5 + $0x1a8] sm:$0xff]
    %v130 = vld [vmem:[#allocation2 + $0x10] sm:$0xff]
    %v131 = vld [vmem:[#allocation2 + $0x18] sm:$0xff]
    %v132 = vld [vmem:[#allocation2 + $0x40] sm:$0xff]
    %v133 = vld [vmem:[#allocation2 + $0x48] sm:$0xff]
    %v134 = vld [vmem:[#allocation2 + $0x70] sm:$0xff]
    %v135 = vld [vmem:[#allocation2 + $0x78] sm:$0xff]
    %v136 = vld [vmem:[#allocation2 + $0xa0] sm:$0xff]
    %v137 = vld [vmem:[#allocation2 + $0xa8] sm:$0xff]
    %v138 = vld [vmem:[#allocation2 + $0xd0] sm:$0xff]
    %v139 = vld [vmem:[#allocation2 + $0xd8] sm:$0xff]
    %v140 = vld [vmem:[#allocation2 + $0x100] sm:$0xff]
    %v141 = vld [vmem:[#allocation2 + $0x108] sm:$0xff]
    %v142 = vld [vmem:[#allocation2 + $0x130] sm:$0xff]
    %v143 = vld [vmem:[#allocation2 + $0x138] sm:$0xff]
    %v144 = vld [vmem:[#allocation2 + $0x160] sm:$0xff]
    %v145 = vld [vmem:[#allocation2 + $0x168] sm:$0xff]
    %v146 = vld [vmem:[#allocation2 + $0x190] sm:$0xff]
    %v147 = vld [vmem:[#allocation2 + $0x198] sm:$0xff]
    %v148 = vld [vmem:[#allocation2 + $0x1c0] sm:$0xff]
    %v149 = vld [vmem:[#allocation2 + $0x1c8] sm:$0xff]
    %v150 = vld [vmem:[#allocation2 + $0x1f0] sm:$0xff]
    %v151 = vld [vmem:[#allocation2 + $0x1f8] sm:$0xff]
    %v152 = vld [vmem:[#allocation2 + $0x220] sm:$0xff]
    %v153 = vld [vmem:[#allocation2 + $0x228] sm:$0xff]
    %v154 = vld [vmem:[#allocation2 + $0x250] sm:$0xff]
    %v155 = vld [vmem:[#allocation2 + $0x258] sm:$0xff]
    %v156 = vld [vmem:[#allocation2 + $0x280] sm:$0xff]
    %v157 = vld [vmem:[#allocation2 + $0x288] sm:$0xff]
    %v158 = vld [vmem:[#allocation2 + $0x2b0] sm:$0xff]
    %v159 = vld [vmem:[#allocation2 + $0x2b8] sm:$0xff]
    %v160 = vld [vmem:[#allocation2 + $0x2e0] sm:$0xff]
    %v161 = vld [vmem:[#allocation2 + $0x2e8] sm:$0xff]
    %s162 = scalar_lea.vmem [#allocation5], 432
    %v163 = vld [vmem:[%s162] sm:$0xff]
    %v164 = vld [vmem:[%s162 + $0x8] sm:$0xff]
    %v165 = vld [vmem:[%s162 + $0x10] sm:$0xff]
    %v166 = vld [vmem:[%s162 + $0x18] sm:$0xff]
    %v167 = vld [vmem:[%s162 + $0x20] sm:$0xff]
    %v168 = vld [vmem:[%s162 + $0x28] sm:$0xff]
    %v169 = vld [vmem:[%s162 + $0x30] sm:$0xff]
    %v170 = vld [vmem:[%s162 + $0x38] sm:$0xff]
    %v171 = vld [vmem:[%s162 + $0x40] sm:$0xff]
    %v172 = vld [vmem:[%s162 + $0x48] sm:$0xff]
    %v173 = vld [vmem:[%s162 + $0x50] sm:$0xff]
    %v174 = vld [vmem:[%s162 + $0x58] sm:$0xff]
    %v175 = vld [vmem:[%s162 + $0x60] sm:$0xff]
    %v176 = vld [vmem:[%s162 + $0x68] sm:$0xff]
    %v177 = vld [vmem:[%s162 + $0x70] sm:$0xff]
    %v178 = vld [vmem:[%s162 + $0x78] sm:$0xff]
    %v179 = vld [vmem:[%s162 + $0x80] sm:$0xff]
    %v180 = vld [vmem:[%s162 + $0x88] sm:$0xff]
    %v181 = vld [vmem:[%s162 + $0x90] sm:$0xff]
    %v182 = vld [vmem:[%s162 + $0x98] sm:$0xff]
    %v183 = vld [vmem:[%s162 + $0xa0] sm:$0xff]
    %v184 = vld [vmem:[%s162 + $0xa8] sm:$0xff]
    %v185 = vld [vmem:[%s162 + $0xb0] sm:$0xff]
    %v186 = vld [vmem:[%s162 + $0xb8] sm:$0xff]
    %v187 = vld [vmem:[%s162 + $0xc0] sm:$0xff]
    %v188 = vld [vmem:[%s162 + $0xc8] sm:$0xff]
    %v189 = vld [vmem:[%s162 + $0xd0] sm:$0xff]
    %v190 = vld [vmem:[%s162 + $0xd8] sm:$0xff]
    %v191 = vld [vmem:[%s162 + $0xe0] sm:$0xff]
    %v192 = vld [vmem:[%s162 + $0xe8] sm:$0xff]
    %v193 = vld [vmem:[%s162 + $0xf0] sm:$0xff]
    %v194 = vld [vmem:[%s162 + $0xf8] sm:$0xff]
    %v195 = vld [vmem:[%s162 + $0x100] sm:$0xff]
    %v196 = vld [vmem:[%s162 + $0x108] sm:$0xff]
    %v197 = vld [vmem:[%s162 + $0x110] sm:$0xff]
    %v198 = vld [vmem:[%s162 + $0x118] sm:$0xff]
    %v199 = vld [vmem:[%s162 + $0x120] sm:$0xff]
    %v200 = vld [vmem:[%s162 + $0x128] sm:$0xff]
    %v201 = vld [vmem:[%s162 + $0x130] sm:$0xff]
    %v202 = vld [vmem:[%s162 + $0x138] sm:$0xff]
    %v203 = vld [vmem:[%s162 + $0x140] sm:$0xff]
    %v204 = vld [vmem:[%s162 + $0x148] sm:$0xff]
    %v205 = vld [vmem:[%s162 + $0x150] sm:$0xff]
    %v206 = vld [vmem:[%s162 + $0x158] sm:$0xff]
    %v207 = vld [vmem:[%s162 + $0x160] sm:$0xff]
    %v208 = vld [vmem:[%s162 + $0x168] sm:$0xff]
    %v209 = vld [vmem:[%s162 + $0x170] sm:$0xff]
    %v210 = vld [vmem:[%s162 + $0x178] sm:$0xff]
    %v211 = vld [vmem:[%s162 + $0x180] sm:$0xff]
    %v212 = vld [vmem:[%s162 + $0x188] sm:$0xff]
    %v213 = vld [vmem:[%s162 + $0x190] sm:$0xff]
    %v214 = vld [vmem:[%s162 + $0x198] sm:$0xff]
    %v215 = vld [vmem:[%s162 + $0x1a0] sm:$0xff]
    %v216 = vld [vmem:[%s162 + $0x1a8] sm:$0xff]
    %v249 = vunpack.c.l.b16 %v130
    %v250 = vunpack.c.h.b16 %v130
    %v251 = vunpack.c.l.b16 %v131
    %v252 = vunpack.c.h.b16 %v131
    %v253 = vunpack.c.l.b16 %v132
    %v254 = vunpack.c.h.b16 %v132
    %v255 = vunpack.c.l.b16 %v133
    %v256 = vunpack.c.h.b16 %v133
    %v257 = vunpack.c.l.b16 %v134
    %v258 = vunpack.c.h.b16 %v134
    %v259 = vunpack.c.l.b16 %v135
    %v260 = vunpack.c.h.b16 %v135
    %v261 = vunpack.c.l.b16 %v136
    %v262 = vunpack.c.h.b16 %v136
    %v263 = vunpack.c.l.b16 %v137
    %v264 = vunpack.c.h.b16 %v137
    %v265 = vunpack.c.l.b16 %v138
    %v266 = vunpack.c.h.b16 %v138
    %v267 = vunpack.c.l.b16 %v139
    %v268 = vunpack.c.h.b16 %v139
    %v269 = vunpack.c.l.b16 %v140
    %v270 = vunpack.c.h.b16 %v140
    %v271 = vunpack.c.l.b16 %v141
    %v272 = vunpack.c.h.b16 %v141
    %v273 = vunpack.c.l.b16 %v142
    %v274 = vunpack.c.h.b16 %v142
    %v275 = vunpack.c.l.b16 %v143
    %v276 = vunpack.c.h.b16 %v143
    %v277 = vunpack.c.l.b16 %v144
    %v278 = vunpack.c.h.b16 %v144
    %v279 = vunpack.c.l.b16 %v145
    %v280 = vunpack.c.h.b16 %v145
    %v281 = vunpack.c.l.b16 %v146
    %v282 = vunpack.c.h.b16 %v146
    %v283 = vunpack.c.l.b16 %v147
    %v284 = vunpack.c.h.b16 %v147
    %v285 = vunpack.c.l.b16 %v148
    %v286 = vunpack.c.h.b16 %v148
    %v287 = vunpack.c.l.b16 %v149
    %v288 = vunpack.c.h.b16 %v149
    %v289 = vunpack.c.l.b16 %v150
    %v290 = vunpack.c.h.b16 %v150
    %v291 = vunpack.c.l.b16 %v151
    %v292 = vunpack.c.h.b16 %v151
    %v293 = vunpack.c.l.b16 %v152
    %v294 = vunpack.c.h.b16 %v152
    %v295 = vunpack.c.l.b16 %v153
    %v296 = vunpack.c.h.b16 %v153
    %v297 = vunpack.c.l.b16 %v154
    %v298 = vunpack.c.h.b16 %v154
    %v299 = vunpack.c.l.b16 %v155
    %v300 = vunpack.c.h.b16 %v155
    %v301 = vunpack.c.l.b16 %v156
    %v302 = vunpack.c.h.b16 %v156
    %v303 = vunpack.c.l.b16 %v157
    %v304 = vunpack.c.h.b16 %v157
    %v305 = vunpack.c.l.b16 %v158
    %v306 = vunpack.c.h.b16 %v158
    %v307 = vunpack.c.l.b16 %v159
    %v308 = vunpack.c.h.b16 %v159
    %v309 = vunpack.c.l.b16 %v160
    %v310 = vunpack.c.h.b16 %v160
    %v311 = vunpack.c.l.b16 %v161
    %v312 = vunpack.c.h.b16 %v161
    %v313 = vpack.c.b16 %v253, %v249
    %v314 = vpack.c.b16 %v254, %v250
    %v315 = vpack.c.b16 %v255, %v251
    %v316 = vpack.c.b16 %v256, %v252
    %v317 = vpack.c.b16 %v261, %v257
    %v318 = vpack.c.b16 %v262, %v258
    %v319 = vpack.c.b16 %v263, %v259
    %v320 = vpack.c.b16 %v264, %v260
    %v321 = vpack.c.b16 %v269, %v265
    %v322 = vpack.c.b16 %v270, %v266
    %v323 = vpack.c.b16 %v271, %v267
    %v324 = vpack.c.b16 %v272, %v268
    %v325 = vpack.c.b16 %v277, %v273
    %v326 = vpack.c.b16 %v278, %v274
    %v327 = vpack.c.b16 %v279, %v275
    %v328 = vpack.c.b16 %v280, %v276
    %v329 = vpack.c.b16 %v285, %v281
    %v330 = vpack.c.b16 %v286, %v282
    %v331 = vpack.c.b16 %v287, %v283
    %v332 = vpack.c.b16 %v288, %v284
    %v333 = vpack.c.b16 %v293, %v289
    %v334 = vpack.c.b16 %v294, %v290
    %v335 = vpack.c.b16 %v295, %v291
    %v336 = vpack.c.b16 %v296, %v292
    %v337 = vpack.c.b16 %v301, %v297
    %v338 = vpack.c.b16 %v302, %v298
    %v339 = vpack.c.b16 %v303, %v299
    %v340 = vpack.c.b16 %v304, %v300
    %v341 = vpack.c.b16 %v309, %v305
    %v342 = vpack.c.b16 %v310, %v306
    %v343 = vpack.c.b16 %v311, %v307
    %v344 = vpack.c.b16 %v312, %v308
    %v423 = vunpack.c.l.b16 %v163
    %v424 = vunpack.c.h.b16 %v163
    %v425 = vunpack.c.l.b16 %v164
    %v426 = vunpack.c.h.b16 %v164
    %v427 = vunpack.c.l.b16 %v165
    %v428 = vunpack.c.h.b16 %v165
    %v429 = vunpack.c.l.b16 %v166
    %v430 = vunpack.c.h.b16 %v166
    %v431 = vunpack.c.l.b16 %v167
    %v432 = vunpack.c.h.b16 %v167
    %v433 = vunpack.c.l.b16 %v168
    %v434 = vunpack.c.h.b16 %v168
    %v435 = vunpack.c.l.b16 %v169
    %v436 = vunpack.c.h.b16 %v169
    %v437 = vunpack.c.l.b16 %v170
    %v438 = vunpack.c.h.b16 %v170
    %v439 = vunpack.c.l.b16 %v171
    %v440 = vunpack.c.h.b16 %v171
    %v441 = vunpack.c.l.b16 %v172
    %v442 = vunpack.c.h.b16 %v172
    %v443 = vunpack.c.l.b16 %v173
    %v444 = vunpack.c.h.b16 %v173
    %v445 = vunpack.c.l.b16 %v174
    %v446 = vunpack.c.h.b16 %v174
    %v447 = vunpack.c.l.b16 %v175
    %v448 = vunpack.c.h.b16 %v175
    %v449 = vunpack.c.l.b16 %v176
    %v450 = vunpack.c.h.b16 %v176
    %v451 = vunpack.c.l.b16 %v177
    %v452 = vunpack.c.h.b16 %v177
    %v453 = vunpack.c.l.b16 %v178
    %v454 = vunpack.c.h.b16 %v178
    %v455 = vunpack.c.l.b16 %v179
    %v456 = vunpack.c.h.b16 %v179
    %v457 = vunpack.c.l.b16 %v180
    %v458 = vunpack.c.h.b16 %v180
    %v459 = vunpack.c.l.b16 %v181
    %v460 = vunpack.c.h.b16 %v181
    %v461 = vunpack.c.l.b16 %v182
    %v462 = vunpack.c.h.b16 %v182
    %v463 = vunpack.c.l.b16 %v183
    %v464 = vunpack.c.h.b16 %v183
    %v465 = vunpack.c.l.b16 %v184
    %v466 = vunpack.c.h.b16 %v184
    %v467 = vunpack.c.l.b16 %v185
    %v468 = vunpack.c.h.b16 %v185
    %v469 = vunpack.c.l.b16 %v186
    %v470 = vunpack.c.h.b16 %v186
    %v471 = vunpack.c.l.b16 %v187
    %v472 = vunpack.c.h.b16 %v187
    %v473 = vunpack.c.l.b16 %v188
    %v474 = vunpack.c.h.b16 %v188
    %v475 = vunpack.c.l.b16 %v189
    %v476 = vunpack.c.h.b16 %v189
    %v477 = vunpack.c.l.b16 %v190
    %v478 = vunpack.c.h.b16 %v190
    %v479 = vunpack.c.l.b16 %v191
    %v480 = vunpack.c.h.b16 %v191
    %v481 = vunpack.c.l.b16 %v192
    %v482 = vunpack.c.h.b16 %v192
    %v483 = vunpack.c.l.b16 %v193
    %v484 = vunpack.c.h.b16 %v193
    %v485 = vunpack.c.l.b16 %v194
    %v486 = vunpack.c.h.b16 %v194
    %v487 = vunpack.c.l.b16 %v195
    %v488 = vunpack.c.h.b16 %v195
    %v489 = vunpack.c.l.b16 %v196
    %v490 = vunpack.c.h.b16 %v196
    %v491 = vunpack.c.l.b16 %v197
    %v492 = vunpack.c.h.b16 %v197
    %v493 = vunpack.c.l.b16 %v198
    %v494 = vunpack.c.h.b16 %v198
    %v495 = vunpack.c.l.b16 %v199
    %v496 = vunpack.c.h.b16 %v199
    %v497 = vunpack.c.l.b16 %v200
    %v498 = vunpack.c.h.b16 %v200
    %v499 = vunpack.c.l.b16 %v201
    %v500 = vunpack.c.h.b16 %v201
    %v501 = vunpack.c.l.b16 %v202
    %v502 = vunpack.c.h.b16 %v202
    %v503 = vunpack.c.l.b16 %v203
    %v504 = vunpack.c.h.b16 %v203
    %v505 = vunpack.c.l.b16 %v204
    %v506 = vunpack.c.h.b16 %v204
    %v507 = vunpack.c.l.b16 %v205
    %v508 = vunpack.c.h.b16 %v205
    %v509 = vunpack.c.l.b16 %v206
    %v510 = vunpack.c.h.b16 %v206
    %v511 = vunpack.c.l.b16 %v207
    %v512 = vunpack.c.h.b16 %v207
    %v513 = vunpack.c.l.b16 %v208
    %v514 = vunpack.c.h.b16 %v208
    %v515 = vunpack.c.l.b16 %v209
    %v516 = vunpack.c.h.b16 %v209
    %v517 = vunpack.c.l.b16 %v210
    %v518 = vunpack.c.h.b16 %v210
    %v519 = vunpack.c.l.b16 %v211
    %v520 = vunpack.c.h.b16 %v211
    %v521 = vunpack.c.l.b16 %v212
    %v522 = vunpack.c.h.b16 %v212
    %v523 = vunpack.c.l.b16 %v213
    %v524 = vunpack.c.h.b16 %v213
    %v525 = vunpack.c.l.b16 %v214
    %v526 = vunpack.c.h.b16 %v214
    %v527 = vunpack.c.l.b16 %v215
    %v528 = vunpack.c.h.b16 %v215
    %v529 = vunpack.c.l.b16 %v216
    %v530 = vunpack.c.h.b16 %v216
    %v531 = vpack.c.b16 %v425, %v423
    %v532 = vpack.c.b16 %v426, %v424
    %v533 = vpack.c.b16 %v429, %v427
    %v534 = vpack.c.b16 %v430, %v428
    %v535 = vpack.c.b16 %v433, %v431
    %v536 = vpack.c.b16 %v434, %v432
    %v537 = vpack.c.b16 %v437, %v435
    %v538 = vpack.c.b16 %v438, %v436
    %v539 = vpack.c.b16 %v441, %v439
    %v540 = vpack.c.b16 %v442, %v440
    %v541 = vpack.c.b16 %v445, %v443
    %v542 = vpack.c.b16 %v446, %v444
    %v543 = vpack.c.b16 %v449, %v447
    %v544 = vpack.c.b16 %v450, %v448
    %v545 = vpack.c.b16 %v453, %v451
    %v546 = vpack.c.b16 %v454, %v452
    %v547 = vpack.c.b16 %v457, %v455
    %v548 = vpack.c.b16 %v458, %v456
    %v549 = vpack.c.b16 %v461, %v459
    %v550 = vpack.c.b16 %v462, %v460
    %v551 = vpack.c.b16 %v465, %v463
    %v552 = vpack.c.b16 %v466, %v464
    %v553 = vpack.c.b16 %v469, %v467
    %v554 = vpack.c.b16 %v470, %v468
    %v555 = vpack.c.b16 %v473, %v471
    %v556 = vpack.c.b16 %v474, %v472
    %v557 = vpack.c.b16 %v477, %v475
    %v558 = vpack.c.b16 %v478, %v476
    %v559 = vpack.c.b16 %v481, %v479
    %v560 = vpack.c.b16 %v482, %v480
    %v561 = vpack.c.b16 %v485, %v483
    %v562 = vpack.c.b16 %v486, %v484
    %v563 = vpack.c.b16 %v489, %v487
    %v564 = vpack.c.b16 %v490, %v488
    %v565 = vpack.c.b16 %v493, %v491
    %v566 = vpack.c.b16 %v494, %v492
    %v567 = vpack.c.b16 %v497, %v495
    %v568 = vpack.c.b16 %v498, %v496
    %v569 = vpack.c.b16 %v501, %v499
    %v570 = vpack.c.b16 %v502, %v500
    %v571 = vpack.c.b16 %v505, %v503
    %v572 = vpack.c.b16 %v506, %v504
    %v573 = vpack.c.b16 %v509, %v507
    %v574 = vpack.c.b16 %v510, %v508
    %v575 = vpack.c.b16 %v513, %v511
    %v576 = vpack.c.b16 %v514, %v512
    %v577 = vpack.c.b16 %v517, %v515
    %v578 = vpack.c.b16 %v518, %v516
    %v579 = vpack.c.b16 %v521, %v519
    %v580 = vpack.c.b16 %v522, %v520
    %v581 = vpack.c.b16 %v525, %v523
    %v582 = vpack.c.b16 %v526, %v524
    %v583 = vpack.c.b16 %v529, %v527
    %v584 = vpack.c.b16 %v530, %v528
    %vm639 = vcmask 392192
    %v641 = vsel %vm639, %v316, 0
    %v644 = vsel %vm639, %v320, 0
    %v647 = vsel %vm639, %v324, 0
    %v650 = vsel %vm639, %v328, 0
    %v653 = vsel %vm639, %v332, 0
    %v656 = vsel %vm639, %v336, 0
    %v659 = vsel %vm639, %v340, 0
    %v662 = vsel %vm639, %v344, 0
    %664 = vmatprep.subr.bf16.mxu0 %v546
    %665 = vmatpush1.bf16.msra.mxu0 %v545
    %666 = vmatprep.subr.bf16.mxu0 %v544
    %667 = vmatpush1.bf16.msra.mxu0 %v543
    %668 = vmatprep.subr.bf16.mxu0 %v542
    %669 = vmatpush1.bf16.msra.mxu0 %v541
    %670 = vmatprep.subr.bf16.mxu0 %v540
    %671 = vmatpush1.bf16.msra.mxu0 %v539
    %672 = vmatprep.subr.bf16.mxu0 %v538
    %673 = vmatpush1.bf16.msra.mxu0 %v537
    %674 = vmatprep.subr.bf16.mxu0 %v536
    %675 = vmatpush1.bf16.msra.mxu0 %v535
    %676 = vmatprep.subr.bf16.mxu0 %v534
    %677 = vmatpush1.bf16.msra.mxu0 %v533
    %678 = vmatprep.subr.bf16.mxu0 %v532
    %679 = vmatpush1.bf16.msra.mxu0 %v531
    %680 = vmatprep.subr.bf16.mxu0 %v562
    %681 = vmatpush2.bf16.msra.mxu0 %v561
    %682 = vmatprep.subr.bf16.mxu0 %v560
    %683 = vmatpush2.bf16.msra.mxu0 %v559
    %684 = vmatprep.subr.bf16.mxu0 %v558
    %685 = vmatpush2.bf16.msra.mxu0 %v557
    %686 = vmatprep.subr.bf16.mxu0 %v556
    %687 = vmatpush2.bf16.msra.mxu0 %v555
    %688 = vmatprep.subr.bf16.mxu0 %v554
    %689 = vmatpush2.bf16.msra.mxu0 %v553
    %690 = vmatprep.subr.bf16.mxu0 %v552
    %691 = vmatpush2.bf16.msra.mxu0 %v551
    %692 = vmatprep.subr.bf16.mxu0 %v550
    %693 = vmatpush2.bf16.msra.mxu0 %v549
    %694 = vmatprep.subr.bf16.mxu0 %v548
    %695 = vmatpush2.bf16.msra.mxu0 %v547
    %696 = vmatprep.mubr.bf16.mxu0 %v314
    %697 = vmatmul.mubr.bf16.gmra.mxu0 %v313
    %v698 = vpop.f32.mrf.mxu0
    %v699 = vadd.f32 0.0, %v698
    %v700 = vpop.f32.mrf.mxu0
    %v701 = vadd.f32 0.0, %v700
    %v702 = vpop.f32.mrf.mxu0
    %v703 = vadd.f32 0.0, %v702
    %v704 = vpop.f32.mrf.mxu0
    %v705 = vadd.f32 0.0, %v704
    %706 = vmatprep.mubr.bf16.mxu0 %v318
    %707 = vmatmul.mubr.bf16.gmra.mxu0 %v317
    %v708 = vpop.f32.mrf.mxu0
    %v709 = vadd.f32 0.0, %v708
    %v710 = vpop.f32.mrf.mxu0
    %v711 = vadd.f32 0.0, %v710
    %v712 = vpop.f32.mrf.mxu0
    %v713 = vadd.f32 0.0, %v712
    %v714 = vpop.f32.mrf.mxu0
    %v715 = vadd.f32 0.0, %v714
    %716 = vmatprep.mubr.bf16.mxu0 %v322
    %717 = vmatmul.mubr.bf16.gmra.mxu0 %v321
    %v718 = vpop.f32.mrf.mxu0
    %v719 = vadd.f32 0.0, %v718
    %v720 = vpop.f32.mrf.mxu0
    %v721 = vadd.f32 0.0, %v720
    %v722 = vpop.f32.mrf.mxu0
    %v723 = vadd.f32 0.0, %v722
    %v724 = vpop.f32.mrf.mxu0
    %v725 = vadd.f32 0.0, %v724
    %726 = vmatprep.mubr.bf16.mxu0 %v326
    %727 = vmatmul.mubr.bf16.gmra.mxu0 %v325
    %v728 = vpop.f32.mrf.mxu0
    %v729 = vadd.f32 0.0, %v728
    %v730 = vpop.f32.mrf.mxu0
    %v731 = vadd.f32 0.0, %v730
    %v732 = vpop.f32.mrf.mxu0
    %v733 = vadd.f32 0.0, %v732
    %v734 = vpop.f32.mrf.mxu0
    %v735 = vadd.f32 0.0, %v734
    %736 = vmatprep.mubr.bf16.mxu0 %v330
    %737 = vmatmul.mubr.bf16.gmra.mxu0 %v329
    %v738 = vpop.f32.mrf.mxu0
    %v739 = vadd.f32 0.0, %v738
    %v740 = vpop.f32.mrf.mxu0
    %v741 = vadd.f32 0.0, %v740
    %v742 = vpop.f32.mrf.mxu0
    %v743 = vadd.f32 0.0, %v742
    %v744 = vpop.f32.mrf.mxu0
    %v745 = vadd.f32 0.0, %v744
    %746 = vmatprep.mubr.bf16.mxu0 %v334
    %747 = vmatmul.mubr.bf16.gmra.mxu0 %v333
    %v748 = vpop.f32.mrf.mxu0
    %v749 = vadd.f32 0.0, %v748
    %v750 = vpop.f32.mrf.mxu0
    %v751 = vadd.f32 0.0, %v750
    %v752 = vpop.f32.mrf.mxu0
    %v753 = vadd.f32 0.0, %v752
    %v754 = vpop.f32.mrf.mxu0
    %v755 = vadd.f32 0.0, %v754
    %756 = vmatprep.mubr.bf16.mxu0 %v338
    %757 = vmatmul.mubr.bf16.gmra.mxu0 %v337
    %v758 = vpop.f32.mrf.mxu0
    %v759 = vadd.f32 0.0, %v758
    %v760 = vpop.f32.mrf.mxu0
    %v761 = vadd.f32 0.0, %v760
    %v762 = vpop.f32.mrf.mxu0
    %v763 = vadd.f32 0.0, %v762
    %v764 = vpop.f32.mrf.mxu0
    %v765 = vadd.f32 0.0, %v764
    %766 = vmatprep.mubr.bf16.mxu0 %v342
    %767 = vmatmul.mubr.bf16.gmra.mxu0 %v341
    %v768 = vpop.f32.mrf.mxu0
    %v769 = vadd.f32 0.0, %v768
    %v770 = vpop.f32.mrf.mxu0
    %v771 = vadd.f32 0.0, %v770
    %v772 = vpop.f32.mrf.mxu0
    %v773 = vadd.f32 0.0, %v772
    %v774 = vpop.f32.mrf.mxu0
    %v775 = vadd.f32 0.0, %v774
    %776 = vdwg.mxu0
    %777 = vmatprep.subr.bf16.mxu0 %v578
    %778 = vmatpush1.bf16.msra.mxu0 %v577
    %779 = vmatprep.subr.bf16.mxu0 %v576
    %780 = vmatpush1.bf16.msra.mxu0 %v575
    %781 = vmatprep.subr.bf16.mxu0 %v574
    %782 = vmatpush1.bf16.msra.mxu0 %v573
    %783 = vmatprep.subr.bf16.mxu0 %v572
    %784 = vmatpush1.bf16.msra.mxu0 %v571
    %785 = vmatprep.subr.bf16.mxu0 %v570
    %786 = vmatpush1.bf16.msra.mxu0 %v569
    %787 = vmatprep.subr.bf16.mxu0 %v568
    %788 = vmatpush1.bf16.msra.mxu0 %v567
    %789 = vmatprep.subr.bf16.mxu0 %v566
    %790 = vmatpush1.bf16.msra.mxu0 %v565
    %791 = vmatprep.subr.bf16.mxu0 %v564
    %792 = vmatpush1.bf16.msra.mxu0 %v563
    %793 = vmatprep.subr.bf16.mxu0 0
    %794 = vmatpush2.bf16.msra.mxu0 0
    %795 = vmatprep.subr.bf16.mxu0 0
    %796 = vmatpush2.bf16.msra.mxu0 0
    %797 = vmatprep.subr.bf16.mxu0 0
    %798 = vmatpush2.bf16.msra.mxu0 0
    %799 = vmatprep.subr.bf16.mxu0 0
    %800 = vmatpush2.bf16.msra.mxu0 0
    %801 = vmatprep.subr.bf16.mxu0 0
    %802 = vmatpush2.bf16.msra.mxu0 0
    %803 = vmatprep.subr.bf16.mxu0 %v584
    %804 = vmatpush2.bf16.msra.mxu0 %v583
    %805 = vmatprep.subr.bf16.mxu0 %v582
    %806 = vmatpush2.bf16.msra.mxu0 %v581
    %807 = vmatprep.subr.bf16.mxu0 %v580
    %808 = vmatpush2.bf16.msra.mxu0 %v579
    %809 = vmatprep.mubr.bf16.mxu0 %v641
    %810 = vmatmul.mubr.bf16.gmra.mxu0 %v315
    %v811 = vpop.f32.mrf.mxu0
    %v812 = vadd.f32 %v699, %v811
    %v813 = vpop.f32.mrf.mxu0
    %v814 = vadd.f32 %v701, %v813
    %v815 = vpop.f32.mrf.mxu0
    %v816 = vadd.f32 %v703, %v815
    %v817 = vpop.f32.mrf.mxu0
    %v818 = vadd.f32 %v705, %v817
    %819 = vmatprep.mubr.bf16.mxu0 %v644
    %820 = vmatmul.mubr.bf16.gmra.mxu0 %v319
    %v821 = vpop.f32.mrf.mxu0
    %v822 = vadd.f32 %v709, %v821
    %v823 = vpop.f32.mrf.mxu0
    %v824 = vadd.f32 %v711, %v823
    %v825 = vpop.f32.mrf.mxu0
    %v826 = vadd.f32 %v713, %v825
    %v827 = vpop.f32.mrf.mxu0
    %v828 = vadd.f32 %v715, %v827
    %829 = vmatprep.mubr.bf16.mxu0 %v647
    %830 = vmatmul.mubr.bf16.gmra.mxu0 %v323
    %v831 = vpop.f32.mrf.mxu0
    %v832 = vadd.f32 %v719, %v831
    %v833 = vpop.f32.mrf.mxu0
    %v834 = vadd.f32 %v721, %v833
    %v835 = vpop.f32.mrf.mxu0
    %v836 = vadd.f32 %v723, %v835
    %v837 = vpop.f32.mrf.mxu0
    %v838 = vadd.f32 %v725, %v837
    %839 = vmatprep.mubr.bf16.mxu0 %v650
    %840 = vmatmul.mubr.bf16.gmra.mxu0 %v327
    %v841 = vpop.f32.mrf.mxu0
    %v842 = vadd.f32 %v729, %v841
    %v843 = vpop.f32.mrf.mxu0
    %v844 = vadd.f32 %v731, %v843
    %v845 = vpop.f32.mrf.mxu0
    %v846 = vadd.f32 %v733, %v845
    %v847 = vpop.f32.mrf.mxu0
    %v848 = vadd.f32 %v735, %v847
    %849 = vmatprep.mubr.bf16.mxu0 %v653
    %850 = vmatmul.mubr.bf16.gmra.mxu0 %v331
    %v851 = vpop.f32.mrf.mxu0
    %v852 = vadd.f32 %v739, %v851
    %v853 = vpop.f32.mrf.mxu0
    %v854 = vadd.f32 %v741, %v853
    %v855 = vpop.f32.mrf.mxu0
    %v856 = vadd.f32 %v743, %v855
    %v857 = vpop.f32.mrf.mxu0
    %v858 = vadd.f32 %v745, %v857
    %859 = vmatprep.mubr.bf16.mxu0 %v656
    %860 = vmatmul.mubr.bf16.gmra.mxu0 %v335
    %v861 = vpop.f32.mrf.mxu0
    %v862 = vadd.f32 %v749, %v861
    %v863 = vpop.f32.mrf.mxu0
    %v864 = vadd.f32 %v751, %v863
    %v865 = vpop.f32.mrf.mxu0
    %v866 = vadd.f32 %v753, %v865
    %v867 = vpop.f32.mrf.mxu0
    %v868 = vadd.f32 %v755, %v867
    %869 = vmatprep.mubr.bf16.mxu0 %v659
    %870 = vmatmul.mubr.bf16.gmra.mxu0 %v339
    %v871 = vpop.f32.mrf.mxu0
    %v872 = vadd.f32 %v759, %v871
    %v873 = vpop.f32.mrf.mxu0
    %v874 = vadd.f32 %v761, %v873
    %v875 = vpop.f32.mrf.mxu0
    %v876 = vadd.f32 %v763, %v875
    %v877 = vpop.f32.mrf.mxu0
    %v878 = vadd.f32 %v765, %v877
    %879 = vmatprep.mubr.bf16.mxu0 %v662
    %880 = vmatmul.mubr.bf16.gmra.mxu0 %v343
    %v881 = vpop.f32.mrf.mxu0
    %v882 = vadd.f32 %v769, %v881
    %v883 = vpop.f32.mrf.mxu0
    %v884 = vadd.f32 %v771, %v883
    %v885 = vpop.f32.mrf.mxu0
    %v886 = vadd.f32 %v773, %v885
    %v887 = vpop.f32.mrf.mxu0
    %v888 = vadd.f32 %v775, %v887
    %889 = vdwg.mxu0
    %v922 = vunpack.c.l.b16 %v44
    %v923 = vunpack.c.h.b16 %v44
    %v924 = vunpack.c.l.b16 %v45
    %v925 = vunpack.c.h.b16 %v45
    %v926 = vunpack.c.l.b16 %v46
    %v927 = vunpack.c.h.b16 %v46
    %v928 = vunpack.c.l.b16 %v47
    %v929 = vunpack.c.h.b16 %v47
    %v930 = vunpack.c.l.b16 %v48
    %v931 = vunpack.c.h.b16 %v48
    %v932 = vunpack.c.l.b16 %v49
    %v933 = vunpack.c.h.b16 %v49
    %v934 = vunpack.c.l.b16 %v50
    %v935 = vunpack.c.h.b16 %v50
    %v936 = vunpack.c.l.b16 %v51
    %v937 = vunpack.c.h.b16 %v51
    %v938 = vunpack.c.l.b16 %v52
    %v939 = vunpack.c.h.b16 %v52
    %v940 = vunpack.c.l.b16 %v53
    %v941 = vunpack.c.h.b16 %v53
    %v942 = vunpack.c.l.b16 %v54
    %v943 = vunpack.c.h.b16 %v54
    %v944 = vunpack.c.l.b16 %v55
    %v945 = vunpack.c.h.b16 %v55
    %v946 = vunpack.c.l.b16 %v56
    %v947 = vunpack.c.h.b16 %v56
    %v948 = vunpack.c.l.b16 %v57
    %v949 = vunpack.c.h.b16 %v57
    %v950 = vunpack.c.l.b16 %v58
    %v951 = vunpack.c.h.b16 %v58
    %v952 = vunpack.c.l.b16 %v59
    %v953 = vunpack.c.h.b16 %v59
    %v954 = vunpack.c.l.b16 %v60
    %v955 = vunpack.c.h.b16 %v60
    %v956 = vunpack.c.l.b16 %v61
    %v957 = vunpack.c.h.b16 %v61
    %v958 = vunpack.c.l.b16 %v62
    %v959 = vunpack.c.h.b16 %v62
    %v960 = vunpack.c.l.b16 %v63
    %v961 = vunpack.c.h.b16 %v63
    %v962 = vunpack.c.l.b16 %v64
    %v963 = vunpack.c.h.b16 %v64
    %v964 = vunpack.c.l.b16 %v65
    %v965 = vunpack.c.h.b16 %v65
    %v966 = vunpack.c.l.b16 %v66
    %v967 = vunpack.c.h.b16 %v66
    %v968 = vunpack.c.l.b16 %v67
    %v969 = vunpack.c.h.b16 %v67
    %v970 = vunpack.c.l.b16 %v68
    %v971 = vunpack.c.h.b16 %v68
    %v972 = vunpack.c.l.b16 %v69
    %v973 = vunpack.c.h.b16 %v69
    %v974 = vunpack.c.l.b16 %v70
    %v975 = vunpack.c.h.b16 %v70
    %v976 = vunpack.c.l.b16 %v71
    %v977 = vunpack.c.h.b16 %v71
    %v978 = vunpack.c.l.b16 %v72
    %v979 = vunpack.c.h.b16 %v72
    %v980 = vunpack.c.l.b16 %v73
    %v981 = vunpack.c.h.b16 %v73
    %v982 = vunpack.c.l.b16 %v74
    %v983 = vunpack.c.h.b16 %v74
    %v984 = vunpack.c.l.b16 %v75
    %v985 = vunpack.c.h.b16 %v75
    %v986 = vpack.c.b16 %v926, %v922
    %v987 = vpack.c.b16 %v927, %v923
    %v988 = vpack.c.b16 %v928, %v924
    %v989 = vpack.c.b16 %v929, %v925
    %v990 = vpack.c.b16 %v934, %v930
    %v991 = vpack.c.b16 %v935, %v931
    %v992 = vpack.c.b16 %v936, %v932
    %v993 = vpack.c.b16 %v937, %v933
    %v994 = vpack.c.b16 %v942, %v938
    %v995 = vpack.c.b16 %v943, %v939
    %v996 = vpack.c.b16 %v944, %v940
    %v997 = vpack.c.b16 %v945, %v941
    %v998 = vpack.c.b16 %v950, %v946
    %v999 = vpack.c.b16 %v951, %v947
    %v1000 = vpack.c.b16 %v952, %v948
    %v1001 = vpack.c.b16 %v953, %v949
    %v1002 = vpack.c.b16 %v958, %v954
    %v1003 = vpack.c.b16 %v959, %v955
    %v1004 = vpack.c.b16 %v960, %v956
    %v1005 = vpack.c.b16 %v961, %v957
    %v1006 = vpack.c.b16 %v966, %v962
    %v1007 = vpack.c.b16 %v967, %v963
    %v1008 = vpack.c.b16 %v968, %v964
    %v1009 = vpack.c.b16 %v969, %v965
    %v1010 = vpack.c.b16 %v974, %v970
    %v1011 = vpack.c.b16 %v975, %v971
    %v1012 = vpack.c.b16 %v976, %v972
    %v1013 = vpack.c.b16 %v977, %v973
    %v1014 = vpack.c.b16 %v982, %v978
    %v1015 = vpack.c.b16 %v983, %v979
    %v1016 = vpack.c.b16 %v984, %v980
    %v1017 = vpack.c.b16 %v985, %v981
    %v1096 = vunpack.c.l.b16 %v76
    %v1097 = vunpack.c.h.b16 %v76
    %v1098 = vunpack.c.l.b16 %v77
    %v1099 = vunpack.c.h.b16 %v77
    %v1100 = vunpack.c.l.b16 %v78
    %v1101 = vunpack.c.h.b16 %v78
    %v1102 = vunpack.c.l.b16 %v79
    %v1103 = vunpack.c.h.b16 %v79
    %v1104 = vunpack.c.l.b16 %v80
    %v1105 = vunpack.c.h.b16 %v80
    %v1106 = vunpack.c.l.b16 %v81
    %v1107 = vunpack.c.h.b16 %v81
    %v1108 = vunpack.c.l.b16 %v82
    %v1109 = vunpack.c.h.b16 %v82
    %v1110 = vunpack.c.l.b16 %v83
    %v1111 = vunpack.c.h.b16 %v83
    %v1112 = vunpack.c.l.b16 %v84
    %v1113 = vunpack.c.h.b16 %v84
    %v1114 = vunpack.c.l.b16 %v85
    %v1115 = vunpack.c.h.b16 %v85
    %v1116 = vunpack.c.l.b16 %v86
    %v1117 = vunpack.c.h.b16 %v86
    %v1118 = vunpack.c.l.b16 %v87
    %v1119 = vunpack.c.h.b16 %v87
    %v1120 = vunpack.c.l.b16 %v88
    %v1121 = vunpack.c.h.b16 %v88
    %v1122 = vunpack.c.l.b16 %v89
    %v1123 = vunpack.c.h.b16 %v89
    %v1124 = vunpack.c.l.b16 %v90
    %v1125 = vunpack.c.h.b16 %v90
    %v1126 = vunpack.c.l.b16 %v91
    %v1127 = vunpack.c.h.b16 %v91
    %v1128 = vunpack.c.l.b16 %v92
    %v1129 = vunpack.c.h.b16 %v92
    %v1130 = vunpack.c.l.b16 %v93
    %v1131 = vunpack.c.h.b16 %v93
    %v1132 = vunpack.c.l.b16 %v94
    %v1133 = vunpack.c.h.b16 %v94
    %v1134 = vunpack.c.l.b16 %v95
    %v1135 = vunpack.c.h.b16 %v95
    %v1136 = vunpack.c.l.b16 %v96
    %v1137 = vunpack.c.h.b16 %v96
    %v1138 = vunpack.c.l.b16 %v97
    %v1139 = vunpack.c.h.b16 %v97
    %v1140 = vunpack.c.l.b16 %v98
    %v1141 = vunpack.c.h.b16 %v98
    %v1142 = vunpack.c.l.b16 %v99
    %v1143 = vunpack.c.h.b16 %v99
    %v1144 = vunpack.c.l.b16 %v100
    %v1145 = vunpack.c.h.b16 %v100
    %v1146 = vunpack.c.l.b16 %v101
    %v1147 = vunpack.c.h.b16 %v101
    %v1148 = vunpack.c.l.b16 %v102
    %v1149 = vunpack.c.h.b16 %v102
    %v1150 = vunpack.c.l.b16 %v103
    %v1151 = vunpack.c.h.b16 %v103
    %v1152 = vunpack.c.l.b16 %v104
    %v1153 = vunpack.c.h.b16 %v104
    %v1154 = vunpack.c.l.b16 %v105
    %v1155 = vunpack.c.h.b16 %v105
    %v1156 = vunpack.c.l.b16 %v106
    %v1157 = vunpack.c.h.b16 %v106
    %v1158 = vunpack.c.l.b16 %v107
    %v1159 = vunpack.c.h.b16 %v107
    %v1160 = vunpack.c.l.b16 %v108
    %v1161 = vunpack.c.h.b16 %v108
    %v1162 = vunpack.c.l.b16 %v109
    %v1163 = vunpack.c.h.b16 %v109
    %v1164 = vunpack.c.l.b16 %v110
    %v1165 = vunpack.c.h.b16 %v110
    %v1166 = vunpack.c.l.b16 %v111
    %v1167 = vunpack.c.h.b16 %v111
    %v1168 = vunpack.c.l.b16 %v112
    %v1169 = vunpack.c.h.b16 %v112
    %v1170 = vunpack.c.l.b16 %v113
    %v1171 = vunpack.c.h.b16 %v113
    %v1172 = vunpack.c.l.b16 %v114
    %v1173 = vunpack.c.h.b16 %v114
    %v1174 = vunpack.c.l.b16 %v115
    %v1175 = vunpack.c.h.b16 %v115
    %v1176 = vunpack.c.l.b16 %v116
    %v1177 = vunpack.c.h.b16 %v116
    %v1178 = vunpack.c.l.b16 %v117
    %v1179 = vunpack.c.h.b16 %v117
    %v1180 = vunpack.c.l.b16 %v118
    %v1181 = vunpack.c.h.b16 %v118
    %v1182 = vunpack.c.l.b16 %v119
    %v1183 = vunpack.c.h.b16 %v119
    %v1184 = vunpack.c.l.b16 %v120
    %v1185 = vunpack.c.h.b16 %v120
    %v1186 = vunpack.c.l.b16 %v121
    %v1187 = vunpack.c.h.b16 %v121
    %v1188 = vunpack.c.l.b16 %v122
    %v1189 = vunpack.c.h.b16 %v122
    %v1190 = vunpack.c.l.b16 %v123
    %v1191 = vunpack.c.h.b16 %v123
    %v1192 = vunpack.c.l.b16 %v124
    %v1193 = vunpack.c.h.b16 %v124
    %v1194 = vunpack.c.l.b16 %v125
    %v1195 = vunpack.c.h.b16 %v125
    %v1196 = vunpack.c.l.b16 %v126
    %v1197 = vunpack.c.h.b16 %v126
    %v1198 = vunpack.c.l.b16 %v127
    %v1199 = vunpack.c.h.b16 %v127
    %v1200 = vunpack.c.l.b16 %v128
    %v1201 = vunpack.c.h.b16 %v128
    %v1202 = vunpack.c.l.b16 %v129
    %v1203 = vunpack.c.h.b16 %v129
    %v1204 = vpack.c.b16 %v1098, %v1096
    %v1205 = vpack.c.b16 %v1099, %v1097
    %v1206 = vpack.c.b16 %v1102, %v1100
    %v1207 = vpack.c.b16 %v1103, %v1101
    %v1208 = vpack.c.b16 %v1106, %v1104
    %v1209 = vpack.c.b16 %v1107, %v1105
    %v1210 = vpack.c.b16 %v1110, %v1108
    %v1211 = vpack.c.b16 %v1111, %v1109
    %v1212 = vpack.c.b16 %v1114, %v1112
    %v1213 = vpack.c.b16 %v1115, %v1113
    %v1214 = vpack.c.b16 %v1118, %v1116
    %v1215 = vpack.c.b16 %v1119, %v1117
    %v1216 = vpack.c.b16 %v1122, %v1120
    %v1217 = vpack.c.b16 %v1123, %v1121
    %v1218 = vpack.c.b16 %v1126, %v1124
    %v1219 = vpack.c.b16 %v1127, %v1125
    %v1220 = vpack.c.b16 %v1130, %v1128
    %v1221 = vpack.c.b16 %v1131, %v1129
    %v1222 = vpack.c.b16 %v1134, %v1132
    %v1223 = vpack.c.b16 %v1135, %v1133
    %v1224 = vpack.c.b16 %v1138, %v1136
    %v1225 = vpack.c.b16 %v1139, %v1137
    %v1226 = vpack.c.b16 %v1142, %v1140
    %v1227 = vpack.c.b16 %v1143, %v1141
    %v1228 = vpack.c.b16 %v1146, %v1144
    %v1229 = vpack.c.b16 %v1147, %v1145
    %v1230 = vpack.c.b16 %v1150, %v1148
    %v1231 = vpack.c.b16 %v1151, %v1149
    %v1232 = vpack.c.b16 %v1154, %v1152
    %v1233 = vpack.c.b16 %v1155, %v1153
    %v1234 = vpack.c.b16 %v1158, %v1156
    %v1235 = vpack.c.b16 %v1159, %v1157
    %v1236 = vpack.c.b16 %v1162, %v1160
    %v1237 = vpack.c.b16 %v1163, %v1161
    %v1238 = vpack.c.b16 %v1166, %v1164
    %v1239 = vpack.c.b16 %v1167, %v1165
    %v1240 = vpack.c.b16 %v1170, %v1168
    %v1241 = vpack.c.b16 %v1171, %v1169
    %v1242 = vpack.c.b16 %v1174, %v1172
    %v1243 = vpack.c.b16 %v1175, %v1173
    %v1244 = vpack.c.b16 %v1178, %v1176
    %v1245 = vpack.c.b16 %v1179, %v1177
    %v1246 = vpack.c.b16 %v1182, %v1180
    %v1247 = vpack.c.b16 %v1183, %v1181
    %v1248 = vpack.c.b16 %v1186, %v1184
    %v1249 = vpack.c.b16 %v1187, %v1185
    %v1250 = vpack.c.b16 %v1190, %v1188
    %v1251 = vpack.c.b16 %v1191, %v1189
    %v1252 = vpack.c.b16 %v1194, %v1192
    %v1253 = vpack.c.b16 %v1195, %v1193
    %v1254 = vpack.c.b16 %v1198, %v1196
    %v1255 = vpack.c.b16 %v1199, %v1197
    %v1256 = vpack.c.b16 %v1202, %v1200
    %v1257 = vpack.c.b16 %v1203, %v1201
    %v1313 = vsel %vm639, %v989, 0
    %v1316 = vsel %vm639, %v993, 0
    %v1319 = vsel %vm639, %v997, 0
    %v1322 = vsel %vm639, %v1001, 0
    %v1325 = vsel %vm639, %v1005, 0
    %v1328 = vsel %vm639, %v1009, 0
    %v1331 = vsel %vm639, %v1013, 0
    %v1334 = vsel %vm639, %v1017, 0
    %1336 = vmatprep.subr.bf16.mxu0 %v1219
    %1337 = vmatpush1.bf16.msra.mxu0 %v1218
    %1338 = vmatprep.subr.bf16.mxu0 %v1217
    %1339 = vmatpush1.bf16.msra.mxu0 %v1216
    %1340 = vmatprep.subr.bf16.mxu0 %v1215
    %1341 = vmatpush1.bf16.msra.mxu0 %v1214
    %1342 = vmatprep.subr.bf16.mxu0 %v1213
    %1343 = vmatpush1.bf16.msra.mxu0 %v1212
    %1344 = vmatprep.subr.bf16.mxu0 %v1211
    %1345 = vmatpush1.bf16.msra.mxu0 %v1210
    %1346 = vmatprep.subr.bf16.mxu0 %v1209
    %1347 = vmatpush1.bf16.msra.mxu0 %v1208
    %1348 = vmatprep.subr.bf16.mxu0 %v1207
    %1349 = vmatpush1.bf16.msra.mxu0 %v1206
    %1350 = vmatprep.subr.bf16.mxu0 %v1205
    %1351 = vmatpush1.bf16.msra.mxu0 %v1204
    %1352 = vmatprep.subr.bf16.mxu0 %v1235
    %1353 = vmatpush2.bf16.msra.mxu0 %v1234
    %1354 = vmatprep.subr.bf16.mxu0 %v1233
    %1355 = vmatpush2.bf16.msra.mxu0 %v1232
    %1356 = vmatprep.subr.bf16.mxu0 %v1231
    %1357 = vmatpush2.bf16.msra.mxu0 %v1230
    %1358 = vmatprep.subr.bf16.mxu0 %v1229
    %1359 = vmatpush2.bf16.msra.mxu0 %v1228
    %1360 = vmatprep.subr.bf16.mxu0 %v1227
    %1361 = vmatpush2.bf16.msra.mxu0 %v1226
    %1362 = vmatprep.subr.bf16.mxu0 %v1225
    %1363 = vmatpush2.bf16.msra.mxu0 %v1224
    %1364 = vmatprep.subr.bf16.mxu0 %v1223
    %1365 = vmatpush2.bf16.msra.mxu0 %v1222
    %1366 = vmatprep.subr.bf16.mxu0 %v1221
    %1367 = vmatpush2.bf16.msra.mxu0 %v1220
    %1368 = vmatprep.mubr.bf16.mxu0 %v987
    %1369 = vmatmul.mubr.bf16.gmra.mxu0 %v986
    %v1370 = vpop.f32.mrf.mxu0
    %v1371 = vadd.f32 %v812, %v1370
    %v1372 = vpop.f32.mrf.mxu0
    %v1373 = vadd.f32 %v814, %v1372
    %v1374 = vpop.f32.mrf.mxu0
    %v1375 = vadd.f32 %v816, %v1374
    %v1376 = vpop.f32.mrf.mxu0
    %v1377 = vadd.f32 %v818, %v1376
    %1378 = vmatprep.mubr.bf16.mxu0 %v991
    %1379 = vmatmul.mubr.bf16.gmra.mxu0 %v990
    %v1380 = vpop.f32.mrf.mxu0
    %v1381 = vadd.f32 %v822, %v1380
    %v1382 = vpop.f32.mrf.mxu0
    %v1383 = vadd.f32 %v824, %v1382
    %v1384 = vpop.f32.mrf.mxu0
    %v1385 = vadd.f32 %v826, %v1384
    %v1386 = vpop.f32.mrf.mxu0
    %v1387 = vadd.f32 %v828, %v1386
    %1388 = vmatprep.mubr.bf16.mxu0 %v995
    %1389 = vmatmul.mubr.bf16.gmra.mxu0 %v994
    %v1390 = vpop.f32.mrf.mxu0
    %v1391 = vadd.f32 %v832, %v1390
    %v1392 = vpop.f32.mrf.mxu0
    %v1393 = vadd.f32 %v834, %v1392
    %v1394 = vpop.f32.mrf.mxu0
    %v1395 = vadd.f32 %v836, %v1394
    %v1396 = vpop.f32.mrf.mxu0
    %v1397 = vadd.f32 %v838, %v1396
    %1398 = vmatprep.mubr.bf16.mxu0 %v999
    %1399 = vmatmul.mubr.bf16.gmra.mxu0 %v998
    %v1400 = vpop.f32.mrf.mxu0
    %v1401 = vadd.f32 %v842, %v1400
    %v1402 = vpop.f32.mrf.mxu0
    %v1403 = vadd.f32 %v844, %v1402
    %v1404 = vpop.f32.mrf.mxu0
    %v1405 = vadd.f32 %v846, %v1404
    %v1406 = vpop.f32.mrf.mxu0
    %v1407 = vadd.f32 %v848, %v1406
    %1408 = vmatprep.mubr.bf16.mxu0 %v1003
    %1409 = vmatmul.mubr.bf16.gmra.mxu0 %v1002
    %v1410 = vpop.f32.mrf.mxu0
    %v1411 = vadd.f32 %v852, %v1410
    %v1412 = vpop.f32.mrf.mxu0
    %v1413 = vadd.f32 %v854, %v1412
    %v1414 = vpop.f32.mrf.mxu0
    %v1415 = vadd.f32 %v856, %v1414
    %v1416 = vpop.f32.mrf.mxu0
    %v1417 = vadd.f32 %v858, %v1416
    %1418 = vmatprep.mubr.bf16.mxu0 %v1007
    %1419 = vmatmul.mubr.bf16.gmra.mxu0 %v1006
    %v1420 = vpop.f32.mrf.mxu0
    %v1421 = vadd.f32 %v862, %v1420
    %v1422 = vpop.f32.mrf.mxu0
    %v1423 = vadd.f32 %v864, %v1422
    %v1424 = vpop.f32.mrf.mxu0
    %v1425 = vadd.f32 %v866, %v1424
    %v1426 = vpop.f32.mrf.mxu0
    %v1427 = vadd.f32 %v868, %v1426
    %1428 = vmatprep.mubr.bf16.mxu0 %v1011
    %1429 = vmatmul.mubr.bf16.gmra.mxu0 %v1010
    %v1430 = vpop.f32.mrf.mxu0
    %v1431 = vadd.f32 %v872, %v1430
    %v1432 = vpop.f32.mrf.mxu0
    %v1433 = vadd.f32 %v874, %v1432
    %v1434 = vpop.f32.mrf.mxu0
    %v1435 = vadd.f32 %v876, %v1434
    %v1436 = vpop.f32.mrf.mxu0
    %v1437 = vadd.f32 %v878, %v1436
    %1438 = vmatprep.mubr.bf16.mxu0 %v1015
    %1439 = vmatmul.mubr.bf16.gmra.mxu0 %v1014
    %v1440 = vpop.f32.mrf.mxu0
    %v1441 = vadd.f32 %v882, %v1440
    %v1442 = vpop.f32.mrf.mxu0
    %v1443 = vadd.f32 %v884, %v1442
    %v1444 = vpop.f32.mrf.mxu0
    %v1445 = vadd.f32 %v886, %v1444
    %v1446 = vpop.f32.mrf.mxu0
    %v1447 = vadd.f32 %v888, %v1446
    %1448 = vdwg.mxu0
    %1449 = vmatprep.subr.bf16.mxu0 %v1251
    %1450 = vmatpush1.bf16.msra.mxu0 %v1250
    %1451 = vmatprep.subr.bf16.mxu0 %v1249
    %1452 = vmatpush1.bf16.msra.mxu0 %v1248
    %1453 = vmatprep.subr.bf16.mxu0 %v1247
    %1454 = vmatpush1.bf16.msra.mxu0 %v1246
    %1455 = vmatprep.subr.bf16.mxu0 %v1245
    %1456 = vmatpush1.bf16.msra.mxu0 %v1244
    %1457 = vmatprep.subr.bf16.mxu0 %v1243
    %1458 = vmatpush1.bf16.msra.mxu0 %v1242
    %1459 = vmatprep.subr.bf16.mxu0 %v1241
    %1460 = vmatpush1.bf16.msra.mxu0 %v1240
    %1461 = vmatprep.subr.bf16.mxu0 %v1239
    %1462 = vmatpush1.bf16.msra.mxu0 %v1238
    %1463 = vmatprep.subr.bf16.mxu0 %v1237
    %1464 = vmatpush1.bf16.msra.mxu0 %v1236
    %1465 = vmatprep.subr.bf16.mxu0 0
    %1466 = vmatpush2.bf16.msra.mxu0 0
    %1467 = vmatprep.subr.bf16.mxu0 0
    %1468 = vmatpush2.bf16.msra.mxu0 0
    %1469 = vmatprep.subr.bf16.mxu0 0
    %1470 = vmatpush2.bf16.msra.mxu0 0
    %1471 = vmatprep.subr.bf16.mxu0 0
    %1472 = vmatpush2.bf16.msra.mxu0 0
    %1473 = vmatprep.subr.bf16.mxu0 0
    %1474 = vmatpush2.bf16.msra.mxu0 0
    %1475 = vmatprep.subr.bf16.mxu0 %v1257
    %1476 = vmatpush2.bf16.msra.mxu0 %v1256
    %1477 = vmatprep.subr.bf16.mxu0 %v1255
    %1478 = vmatpush2.bf16.msra.mxu0 %v1254
    %1479 = vmatprep.subr.bf16.mxu0 %v1253
    %1480 = vmatpush2.bf16.msra.mxu0 %v1252
    %1481 = vmatprep.mubr.bf16.mxu0 %v1313
    %1482 = vmatmul.mubr.bf16.gmra.mxu0 %v988
    %v1483 = vpop.f32.mrf.mxu0
    %v1484 = vadd.f32 %v1371, %v1483
    %v1485 = vpop.f32.mrf.mxu0
    %v1486 = vadd.f32 %v1373, %v1485
    %v1487 = vpop.f32.mrf.mxu0
    %v1488 = vadd.f32 %v1375, %v1487
    %v1489 = vpop.f32.mrf.mxu0
    %v1490 = vadd.f32 %v1377, %v1489
    %1491 = vmatprep.mubr.bf16.mxu0 %v1316
    %1492 = vmatmul.mubr.bf16.gmra.mxu0 %v992
    %v1493 = vpop.f32.mrf.mxu0
    %v1494 = vadd.f32 %v1381, %v1493
    %v1495 = vpop.f32.mrf.mxu0
    %v1496 = vadd.f32 %v1383, %v1495
    %v1497 = vpop.f32.mrf.mxu0
    %v1498 = vadd.f32 %v1385, %v1497
    %v1499 = vpop.f32.mrf.mxu0
    %v1500 = vadd.f32 %v1387, %v1499
    %1501 = vmatprep.mubr.bf16.mxu0 %v1319
    %1502 = vmatmul.mubr.bf16.gmra.mxu0 %v996
    %v1503 = vpop.f32.mrf.mxu0
    %v1504 = vadd.f32 %v1391, %v1503
    %v1505 = vpop.f32.mrf.mxu0
    %v1506 = vadd.f32 %v1393, %v1505
    %v1507 = vpop.f32.mrf.mxu0
    %v1508 = vadd.f32 %v1395, %v1507
    %v1509 = vpop.f32.mrf.mxu0
    %v1510 = vadd.f32 %v1397, %v1509
    %1511 = vmatprep.mubr.bf16.mxu0 %v1322
    %1512 = vmatmul.mubr.bf16.gmra.mxu0 %v1000
    %v1513 = vpop.f32.mrf.mxu0
    %v1514 = vadd.f32 %v1401, %v1513
    %v1515 = vpop.f32.mrf.mxu0
    %v1516 = vadd.f32 %v1403, %v1515
    %v1517 = vpop.f32.mrf.mxu0
    %v1518 = vadd.f32 %v1405, %v1517
    %v1519 = vpop.f32.mrf.mxu0
    %v1520 = vadd.f32 %v1407, %v1519
    %1521 = vmatprep.mubr.bf16.mxu0 %v1325
    %1522 = vmatmul.mubr.bf16.gmra.mxu0 %v1004
    %v1523 = vpop.f32.mrf.mxu0
    %v1524 = vadd.f32 %v1411, %v1523
    %v1525 = vpop.f32.mrf.mxu0
    %v1526 = vadd.f32 %v1413, %v1525
    %v1527 = vpop.f32.mrf.mxu0
    %v1528 = vadd.f32 %v1415, %v1527
    %v1529 = vpop.f32.mrf.mxu0
    %v1530 = vadd.f32 %v1417, %v1529
    %1531 = vmatprep.mubr.bf16.mxu0 %v1328
    %1532 = vmatmul.mubr.bf16.gmra.mxu0 %v1008
    %v1533 = vpop.f32.mrf.mxu0
    %v1534 = vadd.f32 %v1421, %v1533
    %v1535 = vpop.f32.mrf.mxu0
    %v1536 = vadd.f32 %v1423, %v1535
    %v1537 = vpop.f32.mrf.mxu0
    %v1538 = vadd.f32 %v1425, %v1537
    %v1539 = vpop.f32.mrf.mxu0
    %v1540 = vadd.f32 %v1427, %v1539
    %1541 = vmatprep.mubr.bf16.mxu0 %v1331
    %1542 = vmatmul.mubr.bf16.gmra.mxu0 %v1012
    %v1543 = vpop.f32.mrf.mxu0
    %v1544 = vadd.f32 %v1431, %v1543
    %v1545 = vpop.f32.mrf.mxu0
    %v1546 = vadd.f32 %v1433, %v1545
    %v1547 = vpop.f32.mrf.mxu0
    %v1548 = vadd.f32 %v1435, %v1547
    %v1549 = vpop.f32.mrf.mxu0
    %v1550 = vadd.f32 %v1437, %v1549
    %1551 = vmatprep.mubr.bf16.mxu0 %v1334
    %1552 = vmatmul.mubr.bf16.gmra.mxu0 %v1016
    %v1553 = vpop.f32.mrf.mxu0
    %v1554 = vadd.f32 %v1441, %v1553
    %v1555 = vpop.f32.mrf.mxu0
    %v1556 = vadd.f32 %v1443, %v1555
    %v1557 = vpop.f32.mrf.mxu0
    %v1558 = vadd.f32 %v1445, %v1557
    %v1559 = vpop.f32.mrf.mxu0
    %v1560 = vadd.f32 %v1447, %v1559
    %1561 = vdwg.mxu0
    %v1562 = vld [vmem:[#allocation2 + $0x20] sm:$0xff]
    %v1563 = vld [vmem:[#allocation2 + $0x28] sm:$0xff]
    %v1564 = vld [vmem:[#allocation2 + $0x50] sm:$0xff]
    %v1565 = vld [vmem:[#allocation2 + $0x58] sm:$0xff]
    %v1566 = vld [vmem:[#allocation2 + $0x80] sm:$0xff]
    %v1567 = vld [vmem:[#allocation2 + $0x88] sm:$0xff]
    %v1568 = vld [vmem:[#allocation2 + $0xb0] sm:$0xff]
    %v1569 = vld [vmem:[#allocation2 + $0xb8] sm:$0xff]
    %v1570 = vld [vmem:[#allocation2 + $0xe0] sm:$0xff]
    %v1571 = vld [vmem:[#allocation2 + $0xe8] sm:$0xff]
    %v1572 = vld [vmem:[#allocation2 + $0x110] sm:$0xff]
    %v1573 = vld [vmem:[#allocation2 + $0x118] sm:$0xff]
    %v1574 = vld [vmem:[#allocation2 + $0x140] sm:$0xff]
    %v1575 = vld [vmem:[#allocation2 + $0x148] sm:$0xff]
    %v1576 = vld [vmem:[#allocation2 + $0x170] sm:$0xff]
    %v1577 = vld [vmem:[#allocation2 + $0x178] sm:$0xff]
    %v1578 = vld [vmem:[#allocation2 + $0x1a0] sm:$0xff]
    %v1579 = vld [vmem:[#allocation2 + $0x1a8] sm:$0xff]
    %v1580 = vld [vmem:[#allocation2 + $0x1d0] sm:$0xff]
    %v1581 = vld [vmem:[#allocation2 + $0x1d8] sm:$0xff]
    %v1582 = vld [vmem:[#allocation2 + $0x200] sm:$0xff]
    %v1583 = vld [vmem:[#allocation2 + $0x208] sm:$0xff]
    %v1584 = vld [vmem:[#allocation2 + $0x230] sm:$0xff]
    %v1585 = vld [vmem:[#allocation2 + $0x238] sm:$0xff]
    %v1586 = vld [vmem:[#allocation2 + $0x260] sm:$0xff]
    %v1587 = vld [vmem:[#allocation2 + $0x268] sm:$0xff]
    %v1588 = vld [vmem:[#allocation2 + $0x290] sm:$0xff]
    %v1589 = vld [vmem:[#allocation2 + $0x298] sm:$0xff]
    %v1590 = vld [vmem:[#allocation2 + $0x2c0] sm:$0xff]
    %v1591 = vld [vmem:[#allocation2 + $0x2c8] sm:$0xff]
    %v1592 = vld [vmem:[#allocation2 + $0x2f0] sm:$0xff]
    %v1593 = vld [vmem:[#allocation2 + $0x2f8] sm:$0xff]
    %s1594 = scalar_lea.vmem [#allocation5], 864
    %v1595 = vld [vmem:[%s1594] sm:$0xff]
    %v1596 = vld [vmem:[%s1594 + $0x8] sm:$0xff]
    %v1597 = vld [vmem:[%s1594 + $0x10] sm:$0xff]
    %v1598 = vld [vmem:[%s1594 + $0x18] sm:$0xff]
    %v1599 = vld [vmem:[%s1594 + $0x20] sm:$0xff]
    %v1600 = vld [vmem:[%s1594 + $0x28] sm:$0xff]
    %v1601 = vld [vmem:[%s1594 + $0x30] sm:$0xff]
    %v1602 = vld [vmem:[%s1594 + $0x38] sm:$0xff]
    %v1603 = vld [vmem:[%s1594 + $0x40] sm:$0xff]
    %v1604 = vld [vmem:[%s1594 + $0x48] sm:$0xff]
    %v1605 = vld [vmem:[%s1594 + $0x50] sm:$0xff]
    %v1606 = vld [vmem:[%s1594 + $0x58] sm:$0xff]
    %v1607 = vld [vmem:[%s1594 + $0x60] sm:$0xff]
    %v1608 = vld [vmem:[%s1594 + $0x68] sm:$0xff]
    %v1609 = vld [vmem:[%s1594 + $0x70] sm:$0xff]
    %v1610 = vld [vmem:[%s1594 + $0x78] sm:$0xff]
    %v1611 = vld [vmem:[%s1594 + $0x80] sm:$0xff]
    %v1612 = vld [vmem:[%s1594 + $0x88] sm:$0xff]
    %v1613 = vld [vmem:[%s1594 + $0x90] sm:$0xff]
    %v1614 = vld [vmem:[%s1594 + $0x98] sm:$0xff]
    %v1615 = vld [vmem:[%s1594 + $0xa0] sm:$0xff]
    %v1616 = vld [vmem:[%s1594 + $0xa8] sm:$0xff]
    %v1617 = vld [vmem:[%s1594 + $0xb0] sm:$0xff]
    %v1618 = vld [vmem:[%s1594 + $0xb8] sm:$0xff]
    %v1619 = vld [vmem:[%s1594 + $0xc0] sm:$0xff]
    %v1620 = vld [vmem:[%s1594 + $0xc8] sm:$0xff]
    %v1621 = vld [vmem:[%s1594 + $0xd0] sm:$0xff]
    %v1622 = vld [vmem:[%s1594 + $0xd8] sm:$0xff]
    %v1623 = vld [vmem:[%s1594 + $0xe0] sm:$0xff]
    %v1624 = vld [vmem:[%s1594 + $0xe8] sm:$0xff]
    %v1625 = vld [vmem:[%s1594 + $0xf0] sm:$0xff]
    %v1626 = vld [vmem:[%s1594 + $0xf8] sm:$0xff]
    %v1627 = vld [vmem:[%s1594 + $0x100] sm:$0xff]
    %v1628 = vld [vmem:[%s1594 + $0x108] sm:$0xff]
    %v1629 = vld [vmem:[%s1594 + $0x110] sm:$0xff]
    %v1630 = vld [vmem:[%s1594 + $0x118] sm:$0xff]
    %v1631 = vld [vmem:[%s1594 + $0x120] sm:$0xff]
    %v1632 = vld [vmem:[%s1594 + $0x128] sm:$0xff]
    %v1633 = vld [vmem:[%s1594 + $0x130] sm:$0xff]
    %v1634 = vld [vmem:[%s1594 + $0x138] sm:$0xff]
    %v1635 = vld [vmem:[%s1594 + $0x140] sm:$0xff]
    %v1636 = vld [vmem:[%s1594 + $0x148] sm:$0xff]
    %v1637 = vld [vmem:[%s1594 + $0x150] sm:$0xff]
    %v1638 = vld [vmem:[%s1594 + $0x158] sm:$0xff]
    %v1639 = vld [vmem:[%s1594 + $0x160] sm:$0xff]
    %v1640 = vld [vmem:[%s1594 + $0x168] sm:$0xff]
    %v1641 = vld [vmem:[%s1594 + $0x170] sm:$0xff]
    %v1642 = vld [vmem:[%s1594 + $0x178] sm:$0xff]
    %v1643 = vld [vmem:[%s1594 + $0x180] sm:$0xff]
    %v1644 = vld [vmem:[%s1594 + $0x188] sm:$0xff]
    %v1645 = vld [vmem:[%s1594 + $0x190] sm:$0xff]
    %v1646 = vld [vmem:[%s1594 + $0x198] sm:$0xff]
    %v1647 = vld [vmem:[%s1594 + $0x1a0] sm:$0xff]
    %v1648 = vld [vmem:[%s1594 + $0x1a8] sm:$0xff]
    %v1681 = vunpack.c.l.b16 %v1562
    %v1682 = vunpack.c.h.b16 %v1562
    %v1683 = vunpack.c.l.b16 %v1563
    %v1684 = vunpack.c.h.b16 %v1563
    %v1685 = vunpack.c.l.b16 %v1564
    %v1686 = vunpack.c.h.b16 %v1564
    %v1687 = vunpack.c.l.b16 %v1565
    %v1688 = vunpack.c.h.b16 %v1565
    %v1689 = vunpack.c.l.b16 %v1566
    %v1690 = vunpack.c.h.b16 %v1566
    %v1691 = vunpack.c.l.b16 %v1567
    %v1692 = vunpack.c.h.b16 %v1567
    %v1693 = vunpack.c.l.b16 %v1568
    %v1694 = vunpack.c.h.b16 %v1568
    %v1695 = vunpack.c.l.b16 %v1569
    %v1696 = vunpack.c.h.b16 %v1569
    %v1697 = vunpack.c.l.b16 %v1570
    %v1698 = vunpack.c.h.b16 %v1570
    %v1699 = vunpack.c.l.b16 %v1571
    %v1700 = vunpack.c.h.b16 %v1571
    %v1701 = vunpack.c.l.b16 %v1572
    %v1702 = vunpack.c.h.b16 %v1572
    %v1703 = vunpack.c.l.b16 %v1573
    %v1704 = vunpack.c.h.b16 %v1573
    %v1705 = vunpack.c.l.b16 %v1574
    %v1706 = vunpack.c.h.b16 %v1574
    %v1707 = vunpack.c.l.b16 %v1575
    %v1708 = vunpack.c.h.b16 %v1575
    %v1709 = vunpack.c.l.b16 %v1576
    %v1710 = vunpack.c.h.b16 %v1576
    %v1711 = vunpack.c.l.b16 %v1577
    %v1712 = vunpack.c.h.b16 %v1577
    %v1713 = vunpack.c.l.b16 %v1578
    %v1714 = vunpack.c.h.b16 %v1578
    %v1715 = vunpack.c.l.b16 %v1579
    %v1716 = vunpack.c.h.b16 %v1579
    %v1717 = vunpack.c.l.b16 %v1580
    %v1718 = vunpack.c.h.b16 %v1580
    %v1719 = vunpack.c.l.b16 %v1581
    %v1720 = vunpack.c.h.b16 %v1581
    %v1721 = vunpack.c.l.b16 %v1582
    %v1722 = vunpack.c.h.b16 %v1582
    %v1723 = vunpack.c.l.b16 %v1583
    %v1724 = vunpack.c.h.b16 %v1583
    %v1725 = vunpack.c.l.b16 %v1584
    %v1726 = vunpack.c.h.b16 %v1584
    %v1727 = vunpack.c.l.b16 %v1585
    %v1728 = vunpack.c.h.b16 %v1585
    %v1729 = vunpack.c.l.b16 %v1586
    %v1730 = vunpack.c.h.b16 %v1586
    %v1731 = vunpack.c.l.b16 %v1587
    %v1732 = vunpack.c.h.b16 %v1587
    %v1733 = vunpack.c.l.b16 %v1588
    %v1734 = vunpack.c.h.b16 %v1588
    %v1735 = vunpack.c.l.b16 %v1589
    %v1736 = vunpack.c.h.b16 %v1589
    %v1737 = vunpack.c.l.b16 %v1590
    %v1738 = vunpack.c.h.b16 %v1590
    %v1739 = vunpack.c.l.b16 %v1591
    %v1740 = vunpack.c.h.b16 %v1591
    %v1741 = vunpack.c.l.b16 %v1592
    %v1742 = vunpack.c.h.b16 %v1592
    %v1743 = vunpack.c.l.b16 %v1593
    %v1744 = vunpack.c.h.b16 %v1593
    %v1745 = vpack.c.b16 %v1685, %v1681
    %v1746 = vpack.c.b16 %v1686, %v1682
    %v1747 = vpack.c.b16 %v1687, %v1683
    %v1748 = vpack.c.b16 %v1688, %v1684
    %v1749 = vpack.c.b16 %v1693, %v1689
    %v1750 = vpack.c.b16 %v1694, %v1690
    %v1751 = vpack.c.b16 %v1695, %v1691
    %v1752 = vpack.c.b16 %v1696, %v1692
    %v1753 = vpack.c.b16 %v1701, %v1697
    %v1754 = vpack.c.b16 %v1702, %v1698
    %v1755 = vpack.c.b16 %v1703, %v1699
    %v1756 = vpack.c.b16 %v1704, %v1700
    %v1757 = vpack.c.b16 %v1709, %v1705
    %v1758 = vpack.c.b16 %v1710, %v1706
    %v1759 = vpack.c.b16 %v1711, %v1707
    %v1760 = vpack.c.b16 %v1712, %v1708
    %v1761 = vpack.c.b16 %v1717, %v1713
    %v1762 = vpack.c.b16 %v1718, %v1714
    %v1763 = vpack.c.b16 %v1719, %v1715
    %v1764 = vpack.c.b16 %v1720, %v1716
    %v1765 = vpack.c.b16 %v1725, %v1721
    %v1766 = vpack.c.b16 %v1726, %v1722
    %v1767 = vpack.c.b16 %v1727, %v1723
    %v1768 = vpack.c.b16 %v1728, %v1724
    %v1769 = vpack.c.b16 %v1733, %v1729
    %v1770 = vpack.c.b16 %v1734, %v1730
    %v1771 = vpack.c.b16 %v1735, %v1731
    %v1772 = vpack.c.b16 %v1736, %v1732
    %v1773 = vpack.c.b16 %v1741, %v1737
    %v1774 = vpack.c.b16 %v1742, %v1738
    %v1775 = vpack.c.b16 %v1743, %v1739
    %v1776 = vpack.c.b16 %v1744, %v1740
    %v1855 = vunpack.c.l.b16 %v1595
    %v1856 = vunpack.c.h.b16 %v1595
    %v1857 = vunpack.c.l.b16 %v1596
    %v1858 = vunpack.c.h.b16 %v1596
    %v1859 = vunpack.c.l.b16 %v1597
    %v1860 = vunpack.c.h.b16 %v1597
    %v1861 = vunpack.c.l.b16 %v1598
    %v1862 = vunpack.c.h.b16 %v1598
    %v1863 = vunpack.c.l.b16 %v1599
    %v1864 = vunpack.c.h.b16 %v1599
    %v1865 = vunpack.c.l.b16 %v1600
    %v1866 = vunpack.c.h.b16 %v1600
    %v1867 = vunpack.c.l.b16 %v1601
    %v1868 = vunpack.c.h.b16 %v1601
    %v1869 = vunpack.c.l.b16 %v1602
    %v1870 = vunpack.c.h.b16 %v1602
    %v1871 = vunpack.c.l.b16 %v1603
    %v1872 = vunpack.c.h.b16 %v1603
    %v1873 = vunpack.c.l.b16 %v1604
    %v1874 = vunpack.c.h.b16 %v1604
    %v1875 = vunpack.c.l.b16 %v1605
    %v1876 = vunpack.c.h.b16 %v1605
    %v1877 = vunpack.c.l.b16 %v1606
    %v1878 = vunpack.c.h.b16 %v1606
    %v1879 = vunpack.c.l.b16 %v1607
    %v1880 = vunpack.c.h.b16 %v1607
    %v1881 = vunpack.c.l.b16 %v1608
    %v1882 = vunpack.c.h.b16 %v1608
    %v1883 = vunpack.c.l.b16 %v1609
    %v1884 = vunpack.c.h.b16 %v1609
    %v1885 = vunpack.c.l.b16 %v1610
    %v1886 = vunpack.c.h.b16 %v1610
    %v1887 = vunpack.c.l.b16 %v1611
    %v1888 = vunpack.c.h.b16 %v1611
    %v1889 = vunpack.c.l.b16 %v1612
    %v1890 = vunpack.c.h.b16 %v1612
    %v1891 = vunpack.c.l.b16 %v1613
    %v1892 = vunpack.c.h.b16 %v1613
    %v1893 = vunpack.c.l.b16 %v1614
    %v1894 = vunpack.c.h.b16 %v1614
    %v1895 = vunpack.c.l.b16 %v1615
    %v1896 = vunpack.c.h.b16 %v1615
    %v1897 = vunpack.c.l.b16 %v1616
    %v1898 = vunpack.c.h.b16 %v1616
    %v1899 = vunpack.c.l.b16 %v1617
    %v1900 = vunpack.c.h.b16 %v1617
    %v1901 = vunpack.c.l.b16 %v1618
    %v1902 = vunpack.c.h.b16 %v1618
    %v1903 = vunpack.c.l.b16 %v1619
    %v1904 = vunpack.c.h.b16 %v1619
    %v1905 = vunpack.c.l.b16 %v1620
    %v1906 = vunpack.c.h.b16 %v1620
    %v1907 = vunpack.c.l.b16 %v1621
    %v1908 = vunpack.c.h.b16 %v1621
    %v1909 = vunpack.c.l.b16 %v1622
    %v1910 = vunpack.c.h.b16 %v1622
    %v1911 = vunpack.c.l.b16 %v1623
    %v1912 = vunpack.c.h.b16 %v1623
    %v1913 = vunpack.c.l.b16 %v1624
    %v1914 = vunpack.c.h.b16 %v1624
    %v1915 = vunpack.c.l.b16 %v1625
    %v1916 = vunpack.c.h.b16 %v1625
    %v1917 = vunpack.c.l.b16 %v1626
    %v1918 = vunpack.c.h.b16 %v1626
    %v1919 = vunpack.c.l.b16 %v1627
    %v1920 = vunpack.c.h.b16 %v1627
    %v1921 = vunpack.c.l.b16 %v1628
    %v1922 = vunpack.c.h.b16 %v1628
    %v1923 = vunpack.c.l.b16 %v1629
    %v1924 = vunpack.c.h.b16 %v1629
    %v1925 = vunpack.c.l.b16 %v1630
    %v1926 = vunpack.c.h.b16 %v1630
    %v1927 = vunpack.c.l.b16 %v1631
    %v1928 = vunpack.c.h.b16 %v1631
    %v1929 = vunpack.c.l.b16 %v1632
    %v1930 = vunpack.c.h.b16 %v1632
    %v1931 = vunpack.c.l.b16 %v1633
    %v1932 = vunpack.c.h.b16 %v1633
    %v1933 = vunpack.c.l.b16 %v1634
    %v1934 = vunpack.c.h.b16 %v1634
    %v1935 = vunpack.c.l.b16 %v1635
    %v1936 = vunpack.c.h.b16 %v1635
    %v1937 = vunpack.c.l.b16 %v1636
    %v1938 = vunpack.c.h.b16 %v1636
    %v1939 = vunpack.c.l.b16 %v1637
    %v1940 = vunpack.c.h.b16 %v1637
    %v1941 = vunpack.c.l.b16 %v1638
    %v1942 = vunpack.c.h.b16 %v1638
    %v1943 = vunpack.c.l.b16 %v1639
    %v1944 = vunpack.c.h.b16 %v1639
    %v1945 = vunpack.c.l.b16 %v1640
    %v1946 = vunpack.c.h.b16 %v1640
    %v1947 = vunpack.c.l.b16 %v1641
    %v1948 = vunpack.c.h.b16 %v1641
    %v1949 = vunpack.c.l.b16 %v1642
    %v1950 = vunpack.c.h.b16 %v1642
    %v1951 = vunpack.c.l.b16 %v1643
    %v1952 = vunpack.c.h.b16 %v1643
    %v1953 = vunpack.c.l.b16 %v1644
    %v1954 = vunpack.c.h.b16 %v1644
    %v1955 = vunpack.c.l.b16 %v1645
    %v1956 = vunpack.c.h.b16 %v1645
    %v1957 = vunpack.c.l.b16 %v1646
    %v1958 = vunpack.c.h.b16 %v1646
    %v1959 = vunpack.c.l.b16 %v1647
    %v1960 = vunpack.c.h.b16 %v1647
    %v1961 = vunpack.c.l.b16 %v1648
    %v1962 = vunpack.c.h.b16 %v1648
    %v1963 = vpack.c.b16 %v1857, %v1855
    %v1964 = vpack.c.b16 %v1858, %v1856
    %v1965 = vpack.c.b16 %v1861, %v1859
    %v1966 = vpack.c.b16 %v1862, %v1860
    %v1967 = vpack.c.b16 %v1865, %v1863
    %v1968 = vpack.c.b16 %v1866, %v1864
    %v1969 = vpack.c.b16 %v1869, %v1867
    %v1970 = vpack.c.b16 %v1870, %v1868
    %v1971 = vpack.c.b16 %v1873, %v1871
    %v1972 = vpack.c.b16 %v1874, %v1872
    %v1973 = vpack.c.b16 %v1877, %v1875
    %v1974 = vpack.c.b16 %v1878, %v1876
    %v1975 = vpack.c.b16 %v1881, %v1879
    %v1976 = vpack.c.b16 %v1882, %v1880
    %v1977 = vpack.c.b16 %v1885, %v1883
    %v1978 = vpack.c.b16 %v1886, %v1884
    %v1979 = vpack.c.b16 %v1889, %v1887
    %v1980 = vpack.c.b16 %v1890, %v1888
    %v1981 = vpack.c.b16 %v1893, %v1891
    %v1982 = vpack.c.b16 %v1894, %v1892
    %v1983 = vpack.c.b16 %v1897, %v1895
    %v1984 = vpack.c.b16 %v1898, %v1896
    %v1985 = vpack.c.b16 %v1901, %v1899
    %v1986 = vpack.c.b16 %v1902, %v1900
    %v1987 = vpack.c.b16 %v1905, %v1903
    %v1988 = vpack.c.b16 %v1906, %v1904
    %v1989 = vpack.c.b16 %v1909, %v1907
    %v1990 = vpack.c.b16 %v1910, %v1908
    %v1991 = vpack.c.b16 %v1913, %v1911
    %v1992 = vpack.c.b16 %v1914, %v1912
    %v1993 = vpack.c.b16 %v1917, %v1915
    %v1994 = vpack.c.b16 %v1918, %v1916
    %v1995 = vpack.c.b16 %v1921, %v1919
    %v1996 = vpack.c.b16 %v1922, %v1920
    %v1997 = vpack.c.b16 %v1925, %v1923
    %v1998 = vpack.c.b16 %v1926, %v1924
    %v1999 = vpack.c.b16 %v1929, %v1927
    %v2000 = vpack.c.b16 %v1930, %v1928
    %v2001 = vpack.c.b16 %v1933, %v1931
    %v2002 = vpack.c.b16 %v1934, %v1932
    %v2003 = vpack.c.b16 %v1937, %v1935
    %v2004 = vpack.c.b16 %v1938, %v1936
    %v2005 = vpack.c.b16 %v1941, %v1939
    %v2006 = vpack.c.b16 %v1942, %v1940
    %v2007 = vpack.c.b16 %v1945, %v1943
    %v2008 = vpack.c.b16 %v1946, %v1944
    %v2009 = vpack.c.b16 %v1949, %v1947
    %v2010 = vpack.c.b16 %v1950, %v1948
    %v2011 = vpack.c.b16 %v1953, %v1951
    %v2012 = vpack.c.b16 %v1954, %v1952
    %v2013 = vpack.c.b16 %v1957, %v1955
    %v2014 = vpack.c.b16 %v1958, %v1956
    %v2015 = vpack.c.b16 %v1961, %v1959
    %v2016 = vpack.c.b16 %v1962, %v1960
    %v2072 = vsel %vm639, %v1748, 0
    %v2075 = vsel %vm639, %v1752, 0
    %v2078 = vsel %vm639, %v1756, 0
    %v2081 = vsel %vm639, %v1760, 0
    %v2084 = vsel %vm639, %v1764, 0
    %v2087 = vsel %vm639, %v1768, 0
    %v2090 = vsel %vm639, %v1772, 0
    %v2093 = vsel %vm639, %v1776, 0
    %2095 = vmatprep.subr.bf16.mxu0 %v1978
    %2096 = vmatpush1.bf16.msra.mxu0 %v1977
    %2097 = vmatprep.subr.bf16.mxu0 %v1976
    %2098 = vmatpush1.bf16.msra.mxu0 %v1975
    %2099 = vmatprep.subr.bf16.mxu0 %v1974
    %2100 = vmatpush1.bf16.msra.mxu0 %v1973
    %2101 = vmatprep.subr.bf16.mxu0 %v1972
    %2102 = vmatpush1.bf16.msra.mxu0 %v1971
    %2103 = vmatprep.subr.bf16.mxu0 %v1970
    %2104 = vmatpush1.bf16.msra.mxu0 %v1969
    %2105 = vmatprep.subr.bf16.mxu0 %v1968
    %2106 = vmatpush1.bf16.msra.mxu0 %v1967
    %2107 = vmatprep.subr.bf16.mxu0 %v1966
    %2108 = vmatpush1.bf16.msra.mxu0 %v1965
    %2109 = vmatprep.subr.bf16.mxu0 %v1964
    %2110 = vmatpush1.bf16.msra.mxu0 %v1963
    %2111 = vmatprep.subr.bf16.mxu0 %v1994
    %2112 = vmatpush2.bf16.msra.mxu0 %v1993
    %2113 = vmatprep.subr.bf16.mxu0 %v1992
    %2114 = vmatpush2.bf16.msra.mxu0 %v1991
    %2115 = vmatprep.subr.bf16.mxu0 %v1990
    %2116 = vmatpush2.bf16.msra.mxu0 %v1989
    %2117 = vmatprep.subr.bf16.mxu0 %v1988
    %2118 = vmatpush2.bf16.msra.mxu0 %v1987
    %2119 = vmatprep.subr.bf16.mxu0 %v1986
    %2120 = vmatpush2.bf16.msra.mxu0 %v1985
    %2121 = vmatprep.subr.bf16.mxu0 %v1984
    %2122 = vmatpush2.bf16.msra.mxu0 %v1983
    %2123 = vmatprep.subr.bf16.mxu0 %v1982
    %2124 = vmatpush2.bf16.msra.mxu0 %v1981
    %2125 = vmatprep.subr.bf16.mxu0 %v1980
    %2126 = vmatpush2.bf16.msra.mxu0 %v1979
    %2127 = vmatprep.mubr.bf16.mxu0 %v1746
    %2128 = vmatmul.mubr.bf16.gmra.mxu0 %v1745
    %v2129 = vpop.f32.mrf.mxu0
    %v2130 = vadd.f32 0.0, %v2129
    %v2131 = vpop.f32.mrf.mxu0
    %v2132 = vadd.f32 0.0, %v2131
    %v2133 = vpop.f32.mrf.mxu0
    %v2134 = vadd.f32 0.0, %v2133
    %v2135 = vpop.f32.mrf.mxu0
    %v2136 = vadd.f32 0.0, %v2135
    %2137 = vmatprep.mubr.bf16.mxu0 %v1750
    %2138 = vmatmul.mubr.bf16.gmra.mxu0 %v1749
    %v2139 = vpop.f32.mrf.mxu0
    %v2140 = vadd.f32 0.0, %v2139
    %v2141 = vpop.f32.mrf.mxu0
    %v2142 = vadd.f32 0.0, %v2141
    %v2143 = vpop.f32.mrf.mxu0
    %v2144 = vadd.f32 0.0, %v2143
    %v2145 = vpop.f32.mrf.mxu0
    %v2146 = vadd.f32 0.0, %v2145
    %2147 = vmatprep.mubr.bf16.mxu0 %v1754
    %2148 = vmatmul.mubr.bf16.gmra.mxu0 %v1753
    %v2149 = vpop.f32.mrf.mxu0
    %v2150 = vadd.f32 0.0, %v2149
    %v2151 = vpop.f32.mrf.mxu0
    %v2152 = vadd.f32 0.0, %v2151
    %v2153 = vpop.f32.mrf.mxu0
    %v2154 = vadd.f32 0.0, %v2153
    %v2155 = vpop.f32.mrf.mxu0
    %v2156 = vadd.f32 0.0, %v2155
    %2157 = vmatprep.mubr.bf16.mxu0 %v1758
    %2158 = vmatmul.mubr.bf16.gmra.mxu0 %v1757
    %v2159 = vpop.f32.mrf.mxu0
    %v2160 = vadd.f32 0.0, %v2159
    %v2161 = vpop.f32.mrf.mxu0
    %v2162 = vadd.f32 0.0, %v2161
    %v2163 = vpop.f32.mrf.mxu0
    %v2164 = vadd.f32 0.0, %v2163
    %v2165 = vpop.f32.mrf.mxu0
    %v2166 = vadd.f32 0.0, %v2165
    %2167 = vmatprep.mubr.bf16.mxu0 %v1762
    %2168 = vmatmul.mubr.bf16.gmra.mxu0 %v1761
    %v2169 = vpop.f32.mrf.mxu0
    %v2170 = vadd.f32 0.0, %v2169
    %v2171 = vpop.f32.mrf.mxu0
    %v2172 = vadd.f32 0.0, %v2171
    %v2173 = vpop.f32.mrf.mxu0
    %v2174 = vadd.f32 0.0, %v2173
    %v2175 = vpop.f32.mrf.mxu0
    %v2176 = vadd.f32 0.0, %v2175
    %2177 = vmatprep.mubr.bf16.mxu0 %v1766
    %2178 = vmatmul.mubr.bf16.gmra.mxu0 %v1765
    %v2179 = vpop.f32.mrf.mxu0
    %v2180 = vadd.f32 0.0, %v2179
    %v2181 = vpop.f32.mrf.mxu0
    %v2182 = vadd.f32 0.0, %v2181
    %v2183 = vpop.f32.mrf.mxu0
    %v2184 = vadd.f32 0.0, %v2183
    %v2185 = vpop.f32.mrf.mxu0
    %v2186 = vadd.f32 0.0, %v2185
    %2187 = vmatprep.mubr.bf16.mxu0 %v1770
    %2188 = vmatmul.mubr.bf16.gmra.mxu0 %v1769
    %v2189 = vpop.f32.mrf.mxu0
    %v2190 = vadd.f32 0.0, %v2189
    %v2191 = vpop.f32.mrf.mxu0
    %v2192 = vadd.f32 0.0, %v2191
    %v2193 = vpop.f32.mrf.mxu0
    %v2194 = vadd.f32 0.0, %v2193
    %v2195 = vpop.f32.mrf.mxu0
    %v2196 = vadd.f32 0.0, %v2195
    %2197 = vmatprep.mubr.bf16.mxu0 %v1774
    %2198 = vmatmul.mubr.bf16.gmra.mxu0 %v1773
    %v2199 = vpop.f32.mrf.mxu0
    %v2200 = vadd.f32 0.0, %v2199
    %v2201 = vpop.f32.mrf.mxu0
    %v2202 = vadd.f32 0.0, %v2201
    %v2203 = vpop.f32.mrf.mxu0
    %v2204 = vadd.f32 0.0, %v2203
    %v2205 = vpop.f32.mrf.mxu0
    %v2206 = vadd.f32 0.0, %v2205
    %2207 = vdwg.mxu0
    %2208 = vmatprep.subr.bf16.mxu0 %v2010
    %2209 = vmatpush1.bf16.msra.mxu0 %v2009
    %2210 = vmatprep.subr.bf16.mxu0 %v2008
    %2211 = vmatpush1.bf16.msra.mxu0 %v2007
    %2212 = vmatprep.subr.bf16.mxu0 %v2006
    %2213 = vmatpush1.bf16.msra.mxu0 %v2005
    %2214 = vmatprep.subr.bf16.mxu0 %v2004
    %2215 = vmatpush1.bf16.msra.mxu0 %v2003
    %2216 = vmatprep.subr.bf16.mxu0 %v2002
    %2217 = vmatpush1.bf16.msra.mxu0 %v2001
    %2218 = vmatprep.subr.bf16.mxu0 %v2000
    %2219 = vmatpush1.bf16.msra.mxu0 %v1999
    %2220 = vmatprep.subr.bf16.mxu0 %v1998
    %2221 = vmatpush1.bf16.msra.mxu0 %v1997
    %2222 = vmatprep.subr.bf16.mxu0 %v1996
    %2223 = vmatpush1.bf16.msra.mxu0 %v1995
    %2224 = vmatprep.subr.bf16.mxu0 0
    %2225 = vmatpush2.bf16.msra.mxu0 0
    %2226 = vmatprep.subr.bf16.mxu0 0
    %2227 = vmatpush2.bf16.msra.mxu0 0
    %2228 = vmatprep.subr.bf16.mxu0 0
    %2229 = vmatpush2.bf16.msra.mxu0 0
    %2230 = vmatprep.subr.bf16.mxu0 0
    %2231 = vmatpush2.bf16.msra.mxu0 0
    %2232 = vmatprep.subr.bf16.mxu0 0
    %2233 = vmatpush2.bf16.msra.mxu0 0
    %2234 = vmatprep.subr.bf16.mxu0 %v2016
    %2235 = vmatpush2.bf16.msra.mxu0 %v2015
    %2236 = vmatprep.subr.bf16.mxu0 %v2014
    %2237 = vmatpush2.bf16.msra.mxu0 %v2013
    %2238 = vmatprep.subr.bf16.mxu0 %v2012
    %2239 = vmatpush2.bf16.msra.mxu0 %v2011
    %2240 = vmatprep.mubr.bf16.mxu0 %v2072
    %2241 = vmatmul.mubr.bf16.gmra.mxu0 %v1747
    %v2242 = vpop.f32.mrf.mxu0
    %v2243 = vadd.f32 %v2130, %v2242
    %v2244 = vpop.f32.mrf.mxu0
    %v2245 = vadd.f32 %v2132, %v2244
    %v2246 = vpop.f32.mrf.mxu0
    %v2247 = vadd.f32 %v2134, %v2246
    %v2248 = vpop.f32.mrf.mxu0
    %v2249 = vadd.f32 %v2136, %v2248
    %2250 = vmatprep.mubr.bf16.mxu0 %v2075
    %2251 = vmatmul.mubr.bf16.gmra.mxu0 %v1751
    %v2252 = vpop.f32.mrf.mxu0
    %v2253 = vadd.f32 %v2140, %v2252
    %v2254 = vpop.f32.mrf.mxu0
    %v2255 = vadd.f32 %v2142, %v2254
    %v2256 = vpop.f32.mrf.mxu0
    %v2257 = vadd.f32 %v2144, %v2256
    %v2258 = vpop.f32.mrf.mxu0
    %v2259 = vadd.f32 %v2146, %v2258
    %2260 = vmatprep.mubr.bf16.mxu0 %v2078
    %2261 = vmatmul.mubr.bf16.gmra.mxu0 %v1755
    %v2262 = vpop.f32.mrf.mxu0
    %v2263 = vadd.f32 %v2150, %v2262
    %v2264 = vpop.f32.mrf.mxu0
    %v2265 = vadd.f32 %v2152, %v2264
    %v2266 = vpop.f32.mrf.mxu0
    %v2267 = vadd.f32 %v2154, %v2266
    %v2268 = vpop.f32.mrf.mxu0
    %v2269 = vadd.f32 %v2156, %v2268
    %2270 = vmatprep.mubr.bf16.mxu0 %v2081
    %2271 = vmatmul.mubr.bf16.gmra.mxu0 %v1759
    %v2272 = vpop.f32.mrf.mxu0
    %v2273 = vadd.f32 %v2160, %v2272
    %v2274 = vpop.f32.mrf.mxu0
    %v2275 = vadd.f32 %v2162, %v2274
    %v2276 = vpop.f32.mrf.mxu0
    %v2277 = vadd.f32 %v2164, %v2276
    %v2278 = vpop.f32.mrf.mxu0
    %v2279 = vadd.f32 %v2166, %v2278
    %2280 = vmatprep.mubr.bf16.mxu0 %v2084
    %2281 = vmatmul.mubr.bf16.gmra.mxu0 %v1763
    %v2282 = vpop.f32.mrf.mxu0
    %v2283 = vadd.f32 %v2170, %v2282
    %v2284 = vpop.f32.mrf.mxu0
    %v2285 = vadd.f32 %v2172, %v2284
    %v2286 = vpop.f32.mrf.mxu0
    %v2287 = vadd.f32 %v2174, %v2286
    %v2288 = vpop.f32.mrf.mxu0
    %v2289 = vadd.f32 %v2176, %v2288
    %2290 = vmatprep.mubr.bf16.mxu0 %v2087
    %2291 = vmatmul.mubr.bf16.gmra.mxu0 %v1767
    %v2292 = vpop.f32.mrf.mxu0
    %v2293 = vadd.f32 %v2180, %v2292
    %v2294 = vpop.f32.mrf.mxu0
    %v2295 = vadd.f32 %v2182, %v2294
    %v2296 = vpop.f32.mrf.mxu0
    %v2297 = vadd.f32 %v2184, %v2296
    %v2298 = vpop.f32.mrf.mxu0
    %v2299 = vadd.f32 %v2186, %v2298
    %2300 = vmatprep.mubr.bf16.mxu0 %v2090
    %2301 = vmatmul.mubr.bf16.gmra.mxu0 %v1771
    %v2302 = vpop.f32.mrf.mxu0
    %v2303 = vadd.f32 %v2190, %v2302
    %v2304 = vpop.f32.mrf.mxu0
    %v2305 = vadd.f32 %v2192, %v2304
    %v2306 = vpop.f32.mrf.mxu0
    %v2307 = vadd.f32 %v2194, %v2306
    %v2308 = vpop.f32.mrf.mxu0
    %v2309 = vadd.f32 %v2196, %v2308
    %2310 = vmatprep.mubr.bf16.mxu0 %v2093
    %2311 = vmatmul.mubr.bf16.gmra.mxu0 %v1775
    %v2312 = vpop.f32.mrf.mxu0
    %v2313 = vadd.f32 %v2200, %v2312
    %v2314 = vpop.f32.mrf.mxu0
    %v2315 = vadd.f32 %v2202, %v2314
    %v2316 = vpop.f32.mrf.mxu0
    %v2317 = vadd.f32 %v2204, %v2316
    %v2318 = vpop.f32.mrf.mxu0
    %v2319 = vadd.f32 %v2206, %v2318
    %2320 = vdwg.mxu0
    %v2321 = vadd.f32 %v1484, %v2243
    %v2322 = vadd.f32 %v1486, %v2245
    %v2323 = vadd.f32 %v1488, %v2247
    %v2324 = vadd.f32 %v1490, %v2249
    %v2325 = vadd.f32 %v1494, %v2253
    %v2326 = vadd.f32 %v1496, %v2255
    %v2327 = vadd.f32 %v1498, %v2257
    %v2328 = vadd.f32 %v1500, %v2259
    %v2329 = vadd.f32 %v1504, %v2263
    %v2330 = vadd.f32 %v1506, %v2265
    %v2331 = vadd.f32 %v1508, %v2267
    %v2332 = vadd.f32 %v1510, %v2269
    %v2333 = vadd.f32 %v1514, %v2273
    %v2334 = vadd.f32 %v1516, %v2275
    %v2335 = vadd.f32 %v1518, %v2277
    %v2336 = vadd.f32 %v1520, %v2279
    %v2337 = vadd.f32 %v1524, %v2283
    %v2338 = vadd.f32 %v1526, %v2285
    %v2339 = vadd.f32 %v1528, %v2287
    %v2340 = vadd.f32 %v1530, %v2289
    %v2341 = vadd.f32 %v1534, %v2293
    %v2342 = vadd.f32 %v1536, %v2295
    %v2343 = vadd.f32 %v1538, %v2297
    %v2344 = vadd.f32 %v1540, %v2299
    %v2345 = vadd.f32 %v1544, %v2303
    %v2346 = vadd.f32 %v1546, %v2305
    %v2347 = vadd.f32 %v1548, %v2307
    %v2348 = vadd.f32 %v1550, %v2309
    %v2349 = vadd.f32 %v1554, %v2313
    %v2350 = vadd.f32 %v1556, %v2315
    %v2351 = vadd.f32 %v1558, %v2317
    %v2352 = vadd.f32 %v1560, %v2319
    %v2353 = vld [vmem:[%s2] sm:$0x3]
    %v2355 = vlaneseq
    %v2356 = vshrl.u32 %v2355, 7
    %v2357 = vsub.s32 0, %v2356
    %v2358 = vrot.slane %v2353, %v2357
    %v2359 = vlaneseq
    %v2360 = vshrl.u32 %v2359, 7
    %v2361 = vsub.s32 1, %v2360
    %v2362 = vrot.slane %v2353, %v2361
    %v2365 = vadd.f32 %v2321, %v2358
    %v2366 = vadd.f32 %v2322, %v2362
    %v2367 = vadd.f32 %v2323, %v2358
    %v2368 = vadd.f32 %v2324, %v2362
    %v2369 = vadd.f32 %v2325, %v2358
    %v2370 = vadd.f32 %v2326, %v2362
    %v2371 = vadd.f32 %v2327, %v2358
    %v2372 = vadd.f32 %v2328, %v2362
    %v2373 = vadd.f32 %v2329, %v2358
    %v2374 = vadd.f32 %v2330, %v2362
    %v2375 = vadd.f32 %v2331, %v2358
    %v2376 = vadd.f32 %v2332, %v2362
    %v2377 = vadd.f32 %v2333, %v2358
    %v2378 = vadd.f32 %v2334, %v2362
    %v2379 = vadd.f32 %v2335, %v2358
    %v2380 = vadd.f32 %v2336, %v2362
    %v2381 = vadd.f32 %v2337, %v2358
    %v2382 = vadd.f32 %v2338, %v2362
    %v2383 = vadd.f32 %v2339, %v2358
    %v2384 = vadd.f32 %v2340, %v2362
    %v2385 = vadd.f32 %v2341, %v2358
    %v2386 = vadd.f32 %v2342, %v2362
    %v2387 = vadd.f32 %v2343, %v2358
    %v2388 = vadd.f32 %v2344, %v2362
    %v2389 = vadd.f32 %v2345, %v2358
    %v2390 = vadd.f32 %v2346, %v2362
    %v2391 = vadd.f32 %v2347, %v2358
    %v2392 = vadd.f32 %v2348, %v2362
    %v2393 = vadd.f32 %v2349, %v2358
    %v2394 = vadd.f32 %v2350, %v2362
    %v2395 = vadd.f32 %v2351, %v2358
    %v2396 = vadd.f32 %v2352, %v2362
    %2397 = vxpose.xlu0.b32.start [1/16] %v2365, 128
    %2398 = vxpose.xlu0.b32.cont [2/16] %v2367, 128
    %2399 = vxpose.xlu0.b32.cont [3/16] %v2369, 128
    %2400 = vxpose.xlu0.b32.cont [4/16] %v2371, 128
    %2401 = vxpose.xlu0.b32.cont [5/16] %v2373, 128
    %2402 = vxpose.xlu0.b32.cont [6/16] %v2375, 128
    %2403 = vxpose.xlu0.b32.cont [7/16] %v2377, 128
    %2404 = vxpose.xlu0.b32.cont [8/16] %v2379, 128
    %2405 = vxpose.xlu0.b32.cont [9/16] %v2381, 128
    %2406 = vxpose.xlu0.b32.cont [10/16] %v2383, 128
    %2407 = vxpose.xlu0.b32.cont [11/16] %v2385, 128
    %2408 = vxpose.xlu0.b32.cont [12/16] %v2387, 128
    %2409 = vxpose.xlu0.b32.cont [13/16] %v2389, 128
    %2410 = vxpose.xlu0.b32.cont [14/16] %v2391, 128
    %2411 = vxpose.xlu0.b32.cont [15/16] %v2393, 128
    %2412 = vxpose.xlu0.b32.end [16/16] %v2395, 128
    %v2413 = vpop.trf.xlu0
    %v2414 = vpop.trf.xlu0
    %v2415 = vpop.trf.xlu0
    %v2416 = vpop.trf.xlu0
    %v2417 = vpop.trf.xlu0
    %v2418 = vpop.trf.xlu0
    %v2419 = vpop.trf.xlu0
    %v2420 = vpop.trf.xlu0
    %v2421 = vpop.trf.xlu0
    %v2422 = vpop.trf.xlu0
    %v2423 = vpop.trf.xlu0
    %v2424 = vpop.trf.xlu0
    %v2425 = vpop.trf.xlu0
    %v2426 = vpop.trf.xlu0
    %v2427 = vpop.trf.xlu0
    %v2428 = vpop.trf.xlu0
    %2429 = vxpose.xlu0.b32.start [1/16] %v2366, 128
    %2430 = vxpose.xlu0.b32.cont [2/16] %v2368, 128
    %2431 = vxpose.xlu0.b32.cont [3/16] %v2370, 128
    %2432 = vxpose.xlu0.b32.cont [4/16] %v2372, 128
    %2433 = vxpose.xlu0.b32.cont [5/16] %v2374, 128
    %2434 = vxpose.xlu0.b32.cont [6/16] %v2376, 128
    %2435 = vxpose.xlu0.b32.cont [7/16] %v2378, 128
    %2436 = vxpose.xlu0.b32.cont [8/16] %v2380, 128
    %2437 = vxpose.xlu0.b32.cont [9/16] %v2382, 128
    %2438 = vxpose.xlu0.b32.cont [10/16] %v2384, 128
    %2439 = vxpose.xlu0.b32.cont [11/16] %v2386, 128
    %2440 = vxpose.xlu0.b32.cont [12/16] %v2388, 128
    %2441 = vxpose.xlu0.b32.cont [13/16] %v2390, 128
    %2442 = vxpose.xlu0.b32.cont [14/16] %v2392, 128
    %2443 = vxpose.xlu0.b32.cont [15/16] %v2394, 128
    %2444 = vxpose.xlu0.b32.end [16/16] %v2396, 128
    %v2445 = vpop.trf.xlu0
    %v2446 = vpop.trf.xlu0
    %v2447 = vpop.trf.xlu0
    %v2448 = vpop.trf.xlu0
    %v2449 = vpop.trf.xlu0
    %v2450 = vpop.trf.xlu0
    %v2451 = vpop.trf.xlu0
    %v2452 = vpop.trf.xlu0
    %v2453 = vpop.trf.xlu0
    %v2454 = vpop.trf.xlu0
    %v2455 = vpop.trf.xlu0
    %v2456 = vpop.trf.xlu0
    %v2457 = vpop.trf.xlu0
    %v2458 = vpop.trf.xlu0
    %v2459 = vpop.trf.xlu0
    %v2460 = vpop.trf.xlu0
    %2461 = vst [vmem:[#allocation7] sm:$0xff] %v2413
    %2462 = vst [vmem:[#allocation7 + $0x8] sm:$0xff] %v2414
    %2463 = vst [vmem:[#allocation7 + $0x10] sm:$0xff] %v2415
    %2464 = vst [vmem:[#allocation7 + $0x18] sm:$0xff] %v2416
    %2465 = vst [vmem:[#allocation7 + $0x20] sm:$0xff] %v2417
    %2466 = vst [vmem:[#allocation7 + $0x28] sm:$0xff] %v2418
    %2467 = vst [vmem:[#allocation7 + $0x30] sm:$0xff] %v2419
    %2468 = vst [vmem:[#allocation7 + $0x38] sm:$0xff] %v2420
    %2469 = vst [vmem:[#allocation7 + $0x40] sm:$0xff] %v2421
    %2470 = vst [vmem:[#allocation7 + $0x48] sm:$0xff] %v2422
    %2471 = vst [vmem:[#allocation7 + $0x50] sm:$0xff] %v2423
    %2472 = vst [vmem:[#allocation7 + $0x58] sm:$0xff] %v2424
    %2473 = vst [vmem:[#allocation7 + $0x60] sm:$0xff] %v2425
    %2474 = vst [vmem:[#allocation7 + $0x68] sm:$0xff] %v2426
    %2475 = vst [vmem:[#allocation7 + $0x70] sm:$0xff] %v2427
    %2476 = vst [vmem:[#allocation7 + $0x78] sm:$0xff] %v2428
    %2477 = vst [vmem:[#allocation7 + $0x80] sm:$0xff] %v2445
    %2478 = vst [vmem:[#allocation7 + $0x88] sm:$0xff] %v2446
    // Predicated region
    $region22: #{tpu_custom_call.1} parent=1 // pred_check
      _
    $region23: #{tpu_custom_call.1} parent=1 // pred_check_branch
      %2480 = sbr.rel (0) target = $region25
    $region24: #{tpu_custom_call.1} parent=1 // pred_region
      %s2482 = ssub.s32 2304, 2304
      %2483 = vsyncadd [#allocation4], %s2482
      %s2484 = sshll.u32 [#allocation7], 4
      %s2485 = int_to_ptr.vmem [resolvable:$true] %s2484
      %2490 = dma.vmem_to_hbm [thread:$0]  %s2485, 2304, %s3, [#allocation4], 128, 128, 8
    $region25: #{tpu_custom_call.1} parent=1 // pred_fallthru
      _
    // Predicated region
    $region26: #{tpu_custom_call.1} parent=1 // pred_check
      _
    $region27: #{tpu_custom_call.1} parent=1 // pred_check_branch
      %2492 = sbr.rel (0) target = $region29
    $region28: #{tpu_custom_call.1} parent=1 // pred_region
      %2493 = dma.done [#allocation4], 2304
    $region29: #{tpu_custom_call.1} parent=1 // pred_fallthru
      _
    %2494 = vsyncpa [#allocation3], 1
    %2495 = vsyncpa [#allocation6], 1
    %2496 = vsyncpa [#allocation4], 1

// kernel: _conv1_jit.1
$region0: #{_conv1_jit.1}
  #allocation0 [shape = 'u32[]', space=smem, size = 0x4, offset = 0x4, fixed_abs, tag = 'smem constant byte address 0x4 - core index']
  #allocation1 [shape = 'u32[144,128]{1,0:T(1,128)}', space=vmem, size = 0x12000, scoped, tag = 'internal scratch']
  %s0 = inlined_call_operand.vmem [shape: bf16[2,56,24,432], index: 0, kind: input, shape index: {}]
  %s1 = inlined_call_operand.vmem [shape: bf16[3,432,256], index: 1, kind: input, shape index: {}]
  %s2 = inlined_call_operand.vmem [shape: f32[1,256], index: 2, kind: input, shape index: {}]
  %s3 = inlined_call_operand.hbm [shape: f32[2,448,144], index: 3, kind: output, shape index: {}]
  %s4 = sld [smem:[#allocation0]]
  $region45: #{_conv1_jit.1} parent=0
    _
  %s6 = ssub.s32 1, %s4
  %s7 = scalar_select 0, %s6, %s4
  $region1: #{_conv1_jit.1} parent=0
    #allocation2 [shape = 'u8[786432]{0}', space=vmem, size = 0xc0000, scoped, tag = 'output window, operand 0']
    #allocation3 [shape = 's32[2]{0}', space=sflag, size = 0x8, scoped, tag = 'scoped memory for _conv1_jit.1']
    %8 = vsyncpa [#allocation3], 0
    %s9 = scalar_lea.sflag [#allocation3], 1
    %10 = vsyncpa %s9, 0
    loop: start=0, step=1, limit=6
    $region2: #{_conv1_jit.1} parent=1 // loop_pre_header
      _
    $region3: #{_conv1_jit.1} parent=1 // loop_header
      %s12 = sphi 0, %s16
      %p13 = scmp.ge.s32.totalorder %s12, 6
      %s19 = sphi 0, %s31
      %s20 = sphi 0, %s27
      %s21 = sphi 0, %s19
      %s22 = sphi 0, %s20
      %s23 = sphi 0, %s21
      %s24 = sphi 0, %s22
      %s36 = sphi 0, %s38
      %s39 = sphi 0, %s36
      %s40 = sphi 0, %s39
      %s56 = sphi 0, %s40
      %s60 = sphi 0, %s60
      %s62 = sphi 0, %s60
      %s63 = sphi 0, %s62
      %s77 = sphi 0, %s63
      %s81 = sphi 0, %s81
      %s83 = sphi 0, %s81
      %s84 = sphi 0, %s83
      %s98 = sphi 0, %s84
      %s106 = sphi 0, %s108
      %s109 = sphi 0, %s106
      %s110 = sphi 0, %s109
      %s126 = sphi 0, %s110
    $region4: #{_conv1_jit.1} parent=1 // loop_header_branch
      %15 = sbr.rel (%p13) target = $region8
    $region5: #{_conv1_jit.1} parent=1 // loop_body
      %s17 = ssub.s32 %s12, 1
      %s18 = ssub.s32 %s12, 2
      %s25 = sadd.s32 1, %s20
      %p26 = scmp.ge.s32.totalorder %s25, 2
      %s27 = scalar_select %p26, 0, %s25
      %s28 = sadd.s32 1, %s19
      %s29 = scalar_select %p26, %s28, %s19
      %p30 = scmp.ge.s32.totalorder %s29, 2
      %s31 = scalar_select %p30, 0, %s29
      %s32 = ssub.s32 %s19, %s31
      %s33 = ssub.s32 %s20, %s27
      %s34 = sor.u32 %s32, %s33
      %p35 = scmp.eq.s32.totalorder %s34, 0
      %s37 = sadd.s32 %s36, 1
      %s38 = scalar_select %p35, %s36, %s37
      %p41 = pneg %p35
      %p42 = scmp.eq.s32.totalorder %s12, 3
      %p43 = por %p41, %p42
      %p44 = scmp.ne.s32.totalorder %s36, %s39
      %p45 = scmp.eq.s32.totalorder %s12, 0
      %p46 = por %p44, %p45
      %p47 = scmp.ne.s32.totalorder %s36, %s39
      %p48 = scmp.eq.s32.totalorder %s17, 3
      %p49 = por %p47, %p48
      %p50 = scmp.ne.s32.totalorder %s39, %s40
      %p51 = scmp.eq.s32.totalorder %s17, 0
      %p52 = por %p50, %p51
      %p53 = scmp.ne.s32.totalorder %s39, %s40
      %p54 = scmp.eq.s32.totalorder %s18, 3
      %p55 = por %p53, %p54
      %p57 = scmp.ne.s32.totalorder %s40, %s56
      %p58 = scmp.eq.s32.totalorder %s18, 0
      %p59 = por %p57, %p58
      %s61 = sadd.s32 %s60, 1
      %p64 = scmp.eq.s32.totalorder %s12, 3
      %p65 = scmp.ne.s32.totalorder %s60, %s62
      %p66 = scmp.eq.s32.totalorder %s12, 0
      %p67 = por %p65, %p66
      %p68 = scmp.ne.s32.totalorder %s60, %s62
      %p69 = scmp.eq.s32.totalorder %s17, 3
      %p70 = por %p68, %p69
      %p71 = scmp.ne.s32.totalorder %s62, %s63
      %p72 = scmp.eq.s32.totalorder %s17, 0
      %p73 = por %p71, %p72
      %p74 = scmp.ne.s32.totalorder %s62, %s63
      %p75 = scmp.eq.s32.totalorder %s18, 3
      %p76 = por %p74, %p75
      %p78 = scmp.ne.s32.totalorder %s63, %s77
      %p79 = scmp.eq.s32.totalorder %s18, 0
      %p80 = por %p78, %p79
      %s82 = sadd.s32 %s81, 1
      %p85 = scmp.eq.s32.totalorder %s12, 3
      %p86 = scmp.ne.s32.totalorder %s81, %s83
      %p87 = scmp.eq.s32.totalorder %s12, 0
      %p88 = por %p86, %p87
      %p89 = scmp.ne.s32.totalorder %s81, %s83
      %p90 = scmp.eq.s32.totalorder %s17, 3
      %p91 = por %p89, %p90
      %p92 = scmp.ne.s32.totalorder %s83, %s84
      %p93 = scmp.eq.s32.totalorder %s17, 0
      %p94 = por %p92, %p93
      %p95 = scmp.ne.s32.totalorder %s83, %s84
      %p96 = scmp.eq.s32.totalorder %s18, 3
      %p97 = por %p95, %p96
      %p99 = scmp.ne.s32.totalorder %s84, %s98
      %p100 = scmp.eq.s32.totalorder %s18, 0
      %p101 = por %p99, %p100
      %s102 = ssub.s32 %s19, %s31
      %s103 = ssub.s32 %s20, %s27
      %s104 = sor.u32 %s102, %s103
      %p105 = scmp.eq.s32.totalorder %s104, 0
      %s107 = sadd.s32 %s106, 1
      %s108 = scalar_select %p105, %s106, %s107
      %p111 = pneg %p105
      %p112 = scmp.eq.s32.totalorder %s12, 3
      %p113 = por %p111, %p112
      %p114 = scmp.ne.s32.totalorder %s106, %s109
      %p115 = scmp.eq.s32.totalorder %s12, 0
      %p116 = por %p114, %p115
      %p117 = scmp.ne.s32.totalorder %s106, %s109
      %p118 = scmp.eq.s32.totalorder %s17, 3
      %p119 = por %p117, %p118
      %p120 = scmp.ne.s32.totalorder %s109, %s110
      %p121 = scmp.eq.s32.totalorder %s17, 0
      %p122 = por %p120, %p121
      %p123 = scmp.ne.s32.totalorder %s109, %s110
      %p124 = scmp.eq.s32.totalorder %s18, 3
      %p125 = por %p123, %p124
      %p127 = scmp.ne.s32.totalorder %s110, %s126
      %p128 = scmp.eq.s32.totalorder %s18, 0
      %p129 = por %p127, %p128
      %p130 = scmp.le.s32.totalorder 1, %s12
      %p131 = scmp.lt.s32.totalorder %s12, 5
      %p132 = pnand %p130, %p131
      %p133 = pneg %p132
      // Predicated region
      $region9: #{_conv1_jit.1} parent=5 // pred_check
        _
      $region10: #{_conv1_jit.1} parent=5 // pred_check_branch
        %135 = sbr.rel (%p132) target = $region12
      $region11: #{_conv1_jit.1} parent=5 // pred_region
        %s136 = ssub.s32 %s12, 1
        // Predicated region
        $region13: #{_conv1_jit.1} parent=11 // pred_check
          %p137 = pneg %p73
        $region14: #{_conv1_jit.1} parent=11 // pred_check_branch
          %139 = sbr.rel (%p137) target = $region16
        $region15: #{_conv1_jit.1} parent=11 // pred_region
          _
        $region16: #{_conv1_jit.1} parent=11 // pred_fallthru
          _
        // Predicated region
        $region17: #{_conv1_jit.1} parent=11 // pred_check
          %p140 = pneg %p94
        $region18: #{_conv1_jit.1} parent=11 // pred_check_branch
          %142 = sbr.rel (%p140) target = $region20
        $region19: #{_conv1_jit.1} parent=11 // pred_region
          _
        $region20: #{_conv1_jit.1} parent=11 // pred_fallthru
          _
      $region12: #{_conv1_jit.1} parent=5 // pred_fallthru
        _
      %p143 = scmp.lt.s32.totalorder %s12, 4
      // Predicated region
      $region21: #{_conv1_jit.1} parent=5 // pred_check
        %p144 = pneg %p143
      $region22: #{_conv1_jit.1} parent=5 // pred_check_branch
        %146 = sbr.rel (%p144) target = $region24
      $region23: #{_conv1_jit.1} parent=5 // pred_region
        // Predicated region
        $region25: #{_conv1_jit.1} parent=23 // pred_check
          %p147 = pneg %p46
        $region26: #{_conv1_jit.1} parent=23 // pred_check_branch
          %149 = sbr.rel (%p147) target = $region28
        $region27: #{_conv1_jit.1} parent=23 // pred_region
          %s150 = smul.u32 48, %s20
          %s151 = ssub.s32 56, %s150
          %p152 = scmp.lt.s32.totalorder %s151, 48
          %s153 = scalar_select %p152, %s151, 48
          %s154 = smul.u32 64, %s153
          %s155 = smul.u32 %s154, 3
          %s156 = smul.u32 %s155, 4
          %p157 = scmp.lt.s32.totalorder %s19, 1
          %s158 = scalar_select %p157, %s19, 1
          %p159 = scmp.lt.s32.totalorder %s150, 55
          %s160 = scalar_select %p159, %s150, 55
          %s161 = smul.addr %s160, 12
          %s162 = smul.addr %s158, 672
          %s163 = sadd.s32 %s161, %s162
          %s164 = smul.addr %s163, 4
          %s165 = scalar_lea.vmem %s0, %s164
          %s166 = smul.u32 48, %s20
          %s167 = ssub.s32 56, %s166
          %p168 = scmp.lt.s32.totalorder %s167, 48
          %s169 = scalar_select %p168, %s167, 48
          %s170 = smul.u32 64, %s169
          %s171 = smul.u32 %s170, 3
          %s172 = smul.u32 %s171, 4
        $region28: #{_conv1_jit.1} parent=23 // pred_fallthru
          _
      $region24: #{_conv1_jit.1} parent=5 // pred_fallthru
        _
      %p173 = scmp.le.s32.totalorder 1, %s12
      %p174 = scmp.lt.s32.totalorder %s12, 5
      %p175 = pnand %p173, %p174
      %p176 = pneg %p175
      // Predicated region
      $region29: #{_conv1_jit.1} parent=5 // pred_check
        _
      $region30: #{_conv1_jit.1} parent=5 // pred_check_branch
        %178 = sbr.rel (%p175) target = $region32
      $region31: #{_conv1_jit.1} parent=5 // pred_region
        %s179 = ssub.s32 %s12, 1
        %s180 = smul.u32 48, %s22
        %s181 = ssub.s32 56, %s180
        %p182 = scmp.lt.s32.totalorder %s181, 48
        %s183 = scalar_select %p182, %s181, 48
        %s184 = smul.u32 64, %s183
        %s185 = smul.u32 %s184, 3
        %s186 = smul.u32 %s185, 4
        %p187 = scmp.lt.s32.totalorder %s21, 1
        %s188 = scalar_select %p187, %s21, 1
        %p189 = scmp.lt.s32.totalorder %s180, 55
        %s190 = scalar_select %p189, %s180, 55
        %s191 = smul.addr %s190, 12
        %s192 = smul.addr %s188, 672
        %s193 = sadd.s32 %s191, %s192
        %s194 = smul.addr %s193, 4
        %s195 = scalar_lea.vmem %s0, %s194
        %p196 = pneg %p52
        %p197 = pneg %p49
        %p198 = pneg %p73
        %p199 = pneg %p70
        %p200 = pneg %p94
        %p201 = pneg %p91
        %p202 = pneg %p122
        %p203 = pneg %p119
        %s204 = sand.u32 %s109, 1
        %s205 = scalar_lea.sflag [#allocation3], %s204
        %s206 = sand.u32 %s109, 1
        %s207 = smul.addr %s206, 768
        %s208 = scalar_lea.vmem [#allocation2], %s207
        %s209 = smul.u32 48, %s22
        %s210 = ssub.s32 56, %s209
        %p211 = scmp.lt.s32.totalorder %s210, 48
        %s212 = scalar_select %p211, %s210, 48
        %s213 = smul.u32 64, %s212
        %s214 = smul.u32 %s213, 3
        %s215 = smul.u32 %s214, 4
        %p216 = scmp.lt.s32.totalorder %s21, 1
        %s217 = scalar_select %p216, %s21, 1
        %p218 = scmp.lt.s32.totalorder %s209, 55
        %s219 = scalar_select %p218, %s209, 55
        %s220 = smul.addr %s219, 12
        %s221 = smul.addr %s217, 672
        %s222 = sadd.s32 %s220, %s221
        %s223 = smul.addr %s222, 4
        %s224 = scalar_lea.vmem %s0, %s223
        %s225 = smul.u32 48, %s22
        %s226 = ssub.s32 56, %s225
        %p227 = scmp.lt.s32.totalorder %s226, 48
        %s228 = scalar_select %p227, %s226, 48
        %s229 = smul.u32 64, %s228
        %s230 = smul.u32 %s229, 3
        %s231 = smul.u32 %s230, 4
        %s232 = smul.u32 48, %s22
        %s233 = ssub.s32 56, %s232
        %p234 = scmp.lt.s32.totalorder %s233, 48
        %s235 = scalar_select %p234, %s233, 48
        %s236 = smul.u32 128, %s235
        %s237 = smul.u32 %s236, 2
        %v239 = vld [vmem:[%s224] sm:$0xff]
        %v240 = vld [vmem:[%s224 + $0x8] sm:$0xff]
        %v241 = vld [vmem:[%s224 + $0x30] sm:$0xff]
        %v242 = vld [vmem:[%s224 + $0x38] sm:$0xff]
        %v243 = vld [vmem:[%s224 + $0x60] sm:$0xff]
        %v244 = vld [vmem:[%s224 + $0x68] sm:$0xff]
        %v245 = vld [vmem:[%s224 + $0x90] sm:$0xff]
        %v246 = vld [vmem:[%s224 + $0x98] sm:$0xff]
        %v247 = vld [vmem:[%s224 + $0xc0] sm:$0xff]
        %v248 = vld [vmem:[%s224 + $0xc8] sm:$0xff]
        %v249 = vld [vmem:[%s224 + $0xf0] sm:$0xff]
        %v250 = vld [vmem:[%s224 + $0xf8] sm:$0xff]
        %v251 = vld [vmem:[%s224 + $0x120] sm:$0xff]
        %v252 = vld [vmem:[%s224 + $0x128] sm:$0xff]
        %v253 = vld [vmem:[%s224 + $0x150] sm:$0xff]
        %v254 = vld [vmem:[%s224 + $0x158] sm:$0xff]
        %v255 = vld [vmem:[%s224 + $0x180] sm:$0xff]
        %v256 = vld [vmem:[%s224 + $0x188] sm:$0xff]
        %v257 = vld [vmem:[%s224 + $0x1b0] sm:$0xff]
        %v258 = vld [vmem:[%s224 + $0x1b8] sm:$0xff]
        %v259 = vld [vmem:[%s224 + $0x1e0] sm:$0xff]
        %v260 = vld [vmem:[%s224 + $0x1e8] sm:$0xff]
        %v261 = vld [vmem:[%s224 + $0x210] sm:$0xff]
        %v262 = vld [vmem:[%s224 + $0x218] sm:$0xff]
        %v263 = vld [vmem:[%s224 + $0x240] sm:$0xff]
        %v264 = vld [vmem:[%s224 + $0x248] sm:$0xff]
        %v265 = vld [vmem:[%s224 + $0x270] sm:$0xff]
        %v266 = vld [vmem:[%s224 + $0x278] sm:$0xff]
        %v267 = vld [vmem:[%s224 + $0x2a0] sm:$0xff]
        %v268 = vld [vmem:[%s224 + $0x2a8] sm:$0xff]
        %v269 = vld [vmem:[%s224 + $0x2d0] sm:$0xff]
        %v270 = vld [vmem:[%s224 + $0x2d8] sm:$0xff]
        %v271 = vld [vmem:[%s224 + $0x300] sm:$0xff]
        %v272 = vld [vmem:[%s224 + $0x308] sm:$0xff]
        %v273 = vld [vmem:[%s224 + $0x330] sm:$0xff]
        %v274 = vld [vmem:[%s224 + $0x338] sm:$0xff]
        %v275 = vld [vmem:[%s224 + $0x360] sm:$0xff]
        %v276 = vld [vmem:[%s224 + $0x368] sm:$0xff]
        %v277 = vld [vmem:[%s224 + $0x390] sm:$0xff]
        %v278 = vld [vmem:[%s224 + $0x398] sm:$0xff]
        %v279 = vld [vmem:[%s224 + $0x3c0] sm:$0xff]
        %v280 = vld [vmem:[%s224 + $0x3c8] sm:$0xff]
        %v281 = vld [vmem:[%s224 + $0x3f0] sm:$0xff]
        %v282 = vld [vmem:[%s224 + $0x3f8] sm:$0xff]
        %v283 = vld [vmem:[%s224 + $0x420] sm:$0xff]
        %v284 = vld [vmem:[%s224 + $0x428] sm:$0xff]
        %v285 = vld [vmem:[%s224 + $0x450] sm:$0xff]
        %v286 = vld [vmem:[%s224 + $0x458] sm:$0xff]
        %v287 = vld [vmem:[%s224 + $0x480] sm:$0xff]
        %v288 = vld [vmem:[%s224 + $0x488] sm:$0xff]
        %v289 = vld [vmem:[%s224 + $0x4b0] sm:$0xff]
        %v290 = vld [vmem:[%s224 + $0x4b8] sm:$0xff]
        %v291 = vld [vmem:[%s224 + $0x4e0] sm:$0xff]
        %v292 = vld [vmem:[%s224 + $0x4e8] sm:$0xff]
        %v293 = vld [vmem:[%s224 + $0x510] sm:$0xff]
        %v294 = vld [vmem:[%s224 + $0x518] sm:$0xff]
        %v295 = vld [vmem:[%s224 + $0x540] sm:$0xff]
        %v296 = vld [vmem:[%s224 + $0x548] sm:$0xff]
        %v297 = vld [vmem:[%s224 + $0x570] sm:$0xff]
        %v298 = vld [vmem:[%s224 + $0x578] sm:$0xff]
        %v299 = vld [vmem:[%s224 + $0x5a0] sm:$0xff]
        %v300 = vld [vmem:[%s224 + $0x5a8] sm:$0xff]
        %v301 = vld [vmem:[%s224 + $0x5d0] sm:$0xff]
        %v302 = vld [vmem:[%s224 + $0x5d8] sm:$0xff]
        %v303 = vld [vmem:[%s224 + $0x600] sm:$0xff]
        %v304 = vld [vmem:[%s224 + $0x608] sm:$0xff]
        %v305 = vld [vmem:[%s224 + $0x630] sm:$0xff]
        %v306 = vld [vmem:[%s224 + $0x638] sm:$0xff]
        %v307 = vld [vmem:[%s224 + $0x660] sm:$0xff]
        %v308 = vld [vmem:[%s224 + $0x668] sm:$0xff]
        %v309 = vld [vmem:[%s224 + $0x690] sm:$0xff]
        %v310 = vld [vmem:[%s224 + $0x698] sm:$0xff]
        %v311 = vld [vmem:[%s224 + $0x6c0] sm:$0xff]
        %v312 = vld [vmem:[%s224 + $0x6c8] sm:$0xff]
        %v313 = vld [vmem:[%s224 + $0x6f0] sm:$0xff]
        %v314 = vld [vmem:[%s224 + $0x6f8] sm:$0xff]
        %v315 = vld [vmem:[%s224 + $0x720] sm:$0xff]
        %v316 = vld [vmem:[%s224 + $0x728] sm:$0xff]
        %v317 = vld [vmem:[%s224 + $0x750] sm:$0xff]
        %v318 = vld [vmem:[%s224 + $0x758] sm:$0xff]
        %v319 = vld [vmem:[%s224 + $0x780] sm:$0xff]
        %v320 = vld [vmem:[%s224 + $0x788] sm:$0xff]
        %v321 = vld [vmem:[%s224 + $0x7b0] sm:$0xff]
        %v322 = vld [vmem:[%s224 + $0x7b8] sm:$0xff]
        %v323 = vld [vmem:[%s224 + $0x7e0] sm:$0xff]
        %v324 = vld [vmem:[%s224 + $0x7e8] sm:$0xff]
        %v325 = vld [vmem:[%s224 + $0x810] sm:$0xff]
        %v326 = vld [vmem:[%s224 + $0x818] sm:$0xff]
        %v327 = vld [vmem:[%s224 + $0x840] sm:$0xff]
        %v328 = vld [vmem:[%s224 + $0x848] sm:$0xff]
        %v329 = vld [vmem:[%s224 + $0x870] sm:$0xff]
        %v330 = vld [vmem:[%s224 + $0x878] sm:$0xff]
        %v331 = vld [vmem:[%s224 + $0x8a0] sm:$0xff]
        %v332 = vld [vmem:[%s224 + $0x8a8] sm:$0xff]
        %v333 = vld [vmem:[%s224 + $0x8d0] sm:$0xff]
        %v334 = vld [vmem:[%s224 + $0x8d8] sm:$0xff]
        %v335 = vld [vmem:[%s1] sm:$0xff]
        %v336 = vld [vmem:[%s1 + $0x8] sm:$0xff]
        %v337 = vld [vmem:[%s1 + $0x10] sm:$0xff]
        %v338 = vld [vmem:[%s1 + $0x18] sm:$0xff]
        %v339 = vld [vmem:[%s1 + $0x20] sm:$0xff]
        %v340 = vld [vmem:[%s1 + $0x28] sm:$0xff]
        %v341 = vld [vmem:[%s1 + $0x30] sm:$0xff]
        %v342 = vld [vmem:[%s1 + $0x38] sm:$0xff]
        %v343 = vld [vmem:[%s1 + $0x40] sm:$0xff]
        %v344 = vld [vmem:[%s1 + $0x48] sm:$0xff]
        %v345 = vld [vmem:[%s1 + $0x50] sm:$0xff]
        %v346 = vld [vmem:[%s1 + $0x58] sm:$0xff]
        %v347 = vld [vmem:[%s1 + $0x60] sm:$0xff]
        %v348 = vld [vmem:[%s1 + $0x68] sm:$0xff]
        %v349 = vld [vmem:[%s1 + $0x70] sm:$0xff]
        %v350 = vld [vmem:[%s1 + $0x78] sm:$0xff]
        %v351 = vld [vmem:[%s1 + $0x80] sm:$0xff]
        %v352 = vld [vmem:[%s1 + $0x88] sm:$0xff]
        %v353 = vld [vmem:[%s1 + $0x90] sm:$0xff]
        %v354 = vld [vmem:[%s1 + $0x98] sm:$0xff]
        %v355 = vld [vmem:[%s1 + $0xa0] sm:$0xff]
        %v356 = vld [vmem:[%s1 + $0xa8] sm:$0xff]
        %v357 = vld [vmem:[%s1 + $0xb0] sm:$0xff]
        %v358 = vld [vmem:[%s1 + $0xb8] sm:$0xff]
        %v359 = vld [vmem:[%s1 + $0xc0] sm:$0xff]
        %v360 = vld [vmem:[%s1 + $0xc8] sm:$0xff]
        %v361 = vld [vmem:[%s1 + $0xd0] sm:$0xff]
        %v362 = vld [vmem:[%s1 + $0xd8] sm:$0xff]
        %v363 = vld [vmem:[%s1 + $0xe0] sm:$0xff]
        %v364 = vld [vmem:[%s1 + $0xe8] sm:$0xff]
        %v365 = vld [vmem:[%s1 + $0xf0] sm:$0xff]
        %v366 = vld [vmem:[%s1 + $0xf8] sm:$0xff]
        %v367 = vld [vmem:[%s1 + $0x100] sm:$0xff]
        %v368 = vld [vmem:[%s1 + $0x108] sm:$0xff]
        %v369 = vld [vmem:[%s1 + $0x110] sm:$0xff]
        %v370 = vld [vmem:[%s1 + $0x118] sm:$0xff]
        %v371 = vld [vmem:[%s1 + $0x120] sm:$0xff]
        %v372 = vld [vmem:[%s1 + $0x128] sm:$0xff]
        %v373 = vld [vmem:[%s1 + $0x130] sm:$0xff]
        %v374 = vld [vmem:[%s1 + $0x138] sm:$0xff]
        %v375 = vld [vmem:[%s1 + $0x140] sm:$0xff]
        %v376 = vld [vmem:[%s1 + $0x148] sm:$0xff]
        %v377 = vld [vmem:[%s1 + $0x150] sm:$0xff]
        %v378 = vld [vmem:[%s1 + $0x158] sm:$0xff]
        %v379 = vld [vmem:[%s1 + $0x160] sm:$0xff]
        %v380 = vld [vmem:[%s1 + $0x168] sm:$0xff]
        %v381 = vld [vmem:[%s1 + $0x170] sm:$0xff]
        %v382 = vld [vmem:[%s1 + $0x178] sm:$0xff]
        %v383 = vld [vmem:[%s1 + $0x180] sm:$0xff]
        %v384 = vld [vmem:[%s1 + $0x188] sm:$0xff]
        %v385 = vld [vmem:[%s1 + $0x190] sm:$0xff]
        %v386 = vld [vmem:[%s1 + $0x198] sm:$0xff]
        %v387 = vld [vmem:[%s1 + $0x1a0] sm:$0xff]
        %v388 = vld [vmem:[%s1 + $0x1a8] sm:$0xff]
        %v389 = vld [vmem:[%s224 + $0x10] sm:$0xff]
        %v390 = vld [vmem:[%s224 + $0x18] sm:$0xff]
        %v391 = vld [vmem:[%s224 + $0x40] sm:$0xff]
        %v392 = vld [vmem:[%s224 + $0x48] sm:$0xff]
        %v393 = vld [vmem:[%s224 + $0x70] sm:$0xff]
        %v394 = vld [vmem:[%s224 + $0x78] sm:$0xff]
        %v395 = vld [vmem:[%s224 + $0xa0] sm:$0xff]
        %v396 = vld [vmem:[%s224 + $0xa8] sm:$0xff]
        %v397 = vld [vmem:[%s224 + $0xd0] sm:$0xff]
        %v398 = vld [vmem:[%s224 + $0xd8] sm:$0xff]
        %v399 = vld [vmem:[%s224 + $0x100] sm:$0xff]
        %v400 = vld [vmem:[%s224 + $0x108] sm:$0xff]
        %v401 = vld [vmem:[%s224 + $0x130] sm:$0xff]
        %v402 = vld [vmem:[%s224 + $0x138] sm:$0xff]
        %v403 = vld [vmem:[%s224 + $0x160] sm:$0xff]
        %v404 = vld [vmem:[%s224 + $0x168] sm:$0xff]
        %v405 = vld [vmem:[%s224 + $0x190] sm:$0xff]
        %v406 = vld [vmem:[%s224 + $0x198] sm:$0xff]
        %v407 = vld [vmem:[%s224 + $0x1c0] sm:$0xff]
        %v408 = vld [vmem:[%s224 + $0x1c8] sm:$0xff]
        %v409 = vld [vmem:[%s224 + $0x1f0] sm:$0xff]
        %v410 = vld [vmem:[%s224 + $0x1f8] sm:$0xff]
        %v411 = vld [vmem:[%s224 + $0x220] sm:$0xff]
        %v412 = vld [vmem:[%s224 + $0x228] sm:$0xff]
        %v413 = vld [vmem:[%s224 + $0x250] sm:$0xff]
        %v414 = vld [vmem:[%s224 + $0x258] sm:$0xff]
        %v415 = vld [vmem:[%s224 + $0x280] sm:$0xff]
        %v416 = vld [vmem:[%s224 + $0x288] sm:$0xff]
        %v417 = vld [vmem:[%s224 + $0x2b0] sm:$0xff]
        %v418 = vld [vmem:[%s224 + $0x2b8] sm:$0xff]
        %v419 = vld [vmem:[%s224 + $0x2e0] sm:$0xff]
        %v420 = vld [vmem:[%s224 + $0x2e8] sm:$0xff]
        %v421 = vld [vmem:[%s224 + $0x310] sm:$0xff]
        %v422 = vld [vmem:[%s224 + $0x318] sm:$0xff]
        %v423 = vld [vmem:[%s224 + $0x340] sm:$0xff]
        %v424 = vld [vmem:[%s224 + $0x348] sm:$0xff]
        %v425 = vld [vmem:[%s224 + $0x370] sm:$0xff]
        %v426 = vld [vmem:[%s224 + $0x378] sm:$0xff]
        %v427 = vld [vmem:[%s224 + $0x3a0] sm:$0xff]
        %v428 = vld [vmem:[%s224 + $0x3a8] sm:$0xff]
        %v429 = vld [vmem:[%s224 + $0x3d0] sm:$0xff]
        %v430 = vld [vmem:[%s224 + $0x3d8] sm:$0xff]
        %v431 = vld [vmem:[%s224 + $0x400] sm:$0xff]
        %v432 = vld [vmem:[%s224 + $0x408] sm:$0xff]
        %v433 = vld [vmem:[%s224 + $0x430] sm:$0xff]
        %v434 = vld [vmem:[%s224 + $0x438] sm:$0xff]
        %v435 = vld [vmem:[%s224 + $0x460] sm:$0xff]
        %v436 = vld [vmem:[%s224 + $0x468] sm:$0xff]
        %v437 = vld [vmem:[%s224 + $0x490] sm:$0xff]
        %v438 = vld [vmem:[%s224 + $0x498] sm:$0xff]
        %v439 = vld [vmem:[%s224 + $0x4c0] sm:$0xff]
        %v440 = vld [vmem:[%s224 + $0x4c8] sm:$0xff]
        %v441 = vld [vmem:[%s224 + $0x4f0] sm:$0xff]
        %v442 = vld [vmem:[%s224 + $0x4f8] sm:$0xff]
        %v443 = vld [vmem:[%s224 + $0x520] sm:$0xff]
        %v444 = vld [vmem:[%s224 + $0x528] sm:$0xff]
        %v445 = vld [vmem:[%s224 + $0x550] sm:$0xff]
        %v446 = vld [vmem:[%s224 + $0x558] sm:$0xff]
        %v447 = vld [vmem:[%s224 + $0x580] sm:$0xff]
        %v448 = vld [vmem:[%s224 + $0x588] sm:$0xff]
        %v449 = vld [vmem:[%s224 + $0x5b0] sm:$0xff]
        %v450 = vld [vmem:[%s224 + $0x5b8] sm:$0xff]
        %v451 = vld [vmem:[%s224 + $0x5e0] sm:$0xff]
        %v452 = vld [vmem:[%s224 + $0x5e8] sm:$0xff]
        %v453 = vld [vmem:[%s224 + $0x610] sm:$0xff]
        %v454 = vld [vmem:[%s224 + $0x618] sm:$0xff]
        %v455 = vld [vmem:[%s224 + $0x640] sm:$0xff]
        %v456 = vld [vmem:[%s224 + $0x648] sm:$0xff]
        %v457 = vld [vmem:[%s224 + $0x670] sm:$0xff]
        %v458 = vld [vmem:[%s224 + $0x678] sm:$0xff]
        %v459 = vld [vmem:[%s224 + $0x6a0] sm:$0xff]
        %v460 = vld [vmem:[%s224 + $0x6a8] sm:$0xff]
        %v461 = vld [vmem:[%s224 + $0x6d0] sm:$0xff]
        %v462 = vld [vmem:[%s224 + $0x6d8] sm:$0xff]
        %v463 = vld [vmem:[%s224 + $0x700] sm:$0xff]
        %v464 = vld [vmem:[%s224 + $0x708] sm:$0xff]
        %v465 = vld [vmem:[%s224 + $0x730] sm:$0xff]
        %v466 = vld [vmem:[%s224 + $0x738] sm:$0xff]
        %v467 = vld [vmem:[%s224 + $0x760] sm:$0xff]
        %v468 = vld [vmem:[%s224 + $0x768] sm:$0xff]
        %v469 = vld [vmem:[%s224 + $0x790] sm:$0xff]
        %v470 = vld [vmem:[%s224 + $0x798] sm:$0xff]
        %v471 = vld [vmem:[%s224 + $0x7c0] sm:$0xff]
        %v472 = vld [vmem:[%s224 + $0x7c8] sm:$0xff]
        %v473 = vld [vmem:[%s224 + $0x7f0] sm:$0xff]
        %v474 = vld [vmem:[%s224 + $0x7f8] sm:$0xff]
        %v475 = vld [vmem:[%s224 + $0x820] sm:$0xff]
        %v476 = vld [vmem:[%s224 + $0x828] sm:$0xff]
        %v477 = vld [vmem:[%s224 + $0x850] sm:$0xff]
        %v478 = vld [vmem:[%s224 + $0x858] sm:$0xff]
        %v479 = vld [vmem:[%s224 + $0x880] sm:$0xff]
        %v480 = vld [vmem:[%s224 + $0x888] sm:$0xff]
        %v481 = vld [vmem:[%s224 + $0x8b0] sm:$0xff]
        %v482 = vld [vmem:[%s224 + $0x8b8] sm:$0xff]
        %v483 = vld [vmem:[%s224 + $0x8e0] sm:$0xff]
        %v484 = vld [vmem:[%s224 + $0x8e8] sm:$0xff]
        %s485 = scalar_lea.vmem %s1, 432
        %v486 = vld [vmem:[%s485] sm:$0xff]
        %v487 = vld [vmem:[%s485 + $0x8] sm:$0xff]
        %v488 = vld [vmem:[%s485 + $0x10] sm:$0xff]
        %v489 = vld [vmem:[%s485 + $0x18] sm:$0xff]
        %v490 = vld [vmem:[%s485 + $0x20] sm:$0xff]
        %v491 = vld [vmem:[%s485 + $0x28] sm:$0xff]
        %v492 = vld [vmem:[%s485 + $0x30] sm:$0xff]
        %v493 = vld [vmem:[%s485 + $0x38] sm:$0xff]
        %v494 = vld [vmem:[%s485 + $0x40] sm:$0xff]
        %v495 = vld [vmem:[%s485 + $0x48] sm:$0xff]
        %v496 = vld [vmem:[%s485 + $0x50] sm:$0xff]
        %v497 = vld [vmem:[%s485 + $0x58] sm:$0xff]
        %v498 = vld [vmem:[%s485 + $0x60] sm:$0xff]
        %v499 = vld [vmem:[%s485 + $0x68] sm:$0xff]
        %v500 = vld [vmem:[%s485 + $0x70] sm:$0xff]
        %v501 = vld [vmem:[%s485 + $0x78] sm:$0xff]
        %v502 = vld [vmem:[%s485 + $0x80] sm:$0xff]
        %v503 = vld [vmem:[%s485 + $0x88] sm:$0xff]
        %v504 = vld [vmem:[%s485 + $0x90] sm:$0xff]
        %v505 = vld [vmem:[%s485 + $0x98] sm:$0xff]
        %v506 = vld [vmem:[%s485 + $0xa0] sm:$0xff]
        %v507 = vld [vmem:[%s485 + $0xa8] sm:$0xff]
        %v508 = vld [vmem:[%s485 + $0xb0] sm:$0xff]
        %v509 = vld [vmem:[%s485 + $0xb8] sm:$0xff]
        %v510 = vld [vmem:[%s485 + $0xc0] sm:$0xff]
        %v511 = vld [vmem:[%s485 + $0xc8] sm:$0xff]
        %v512 = vld [vmem:[%s485 + $0xd0] sm:$0xff]
        %v513 = vld [vmem:[%s485 + $0xd8] sm:$0xff]
        %v514 = vld [vmem:[%s485 + $0xe0] sm:$0xff]
        %v515 = vld [vmem:[%s485 + $0xe8] sm:$0xff]
        %v516 = vld [vmem:[%s485 + $0xf0] sm:$0xff]
        %v517 = vld [vmem:[%s485 + $0xf8] sm:$0xff]
        %v518 = vld [vmem:[%s485 + $0x100] sm:$0xff]
        %v519 = vld [vmem:[%s485 + $0x108] sm:$0xff]
        %v520 = vld [vmem:[%s485 + $0x110] sm:$0xff]
        %v521 = vld [vmem:[%s485 + $0x118] sm:$0xff]
        %v522 = vld [vmem:[%s485 + $0x120] sm:$0xff]
        %v523 = vld [vmem:[%s485 + $0x128] sm:$0xff]
        %v524 = vld [vmem:[%s485 + $0x130] sm:$0xff]
        %v525 = vld [vmem:[%s485 + $0x138] sm:$0xff]
        %v526 = vld [vmem:[%s485 + $0x140] sm:$0xff]
        %v527 = vld [vmem:[%s485 + $0x148] sm:$0xff]
        %v528 = vld [vmem:[%s485 + $0x150] sm:$0xff]
        %v529 = vld [vmem:[%s485 + $0x158] sm:$0xff]
        %v530 = vld [vmem:[%s485 + $0x160] sm:$0xff]
        %v531 = vld [vmem:[%s485 + $0x168] sm:$0xff]
        %v532 = vld [vmem:[%s485 + $0x170] sm:$0xff]
        %v533 = vld [vmem:[%s485 + $0x178] sm:$0xff]
        %v534 = vld [vmem:[%s485 + $0x180] sm:$0xff]
        %v535 = vld [vmem:[%s485 + $0x188] sm:$0xff]
        %v536 = vld [vmem:[%s485 + $0x190] sm:$0xff]
        %v537 = vld [vmem:[%s485 + $0x198] sm:$0xff]
        %v538 = vld [vmem:[%s485 + $0x1a0] sm:$0xff]
        %v539 = vld [vmem:[%s485 + $0x1a8] sm:$0xff]
        %v636 = vunpack.c.l.b16 %v389
        %v637 = vunpack.c.h.b16 %v389
        %v638 = vunpack.c.l.b16 %v390
        %v639 = vunpack.c.h.b16 %v390
        %v640 = vunpack.c.l.b16 %v391
        %v641 = vunpack.c.h.b16 %v391
        %v642 = vunpack.c.l.b16 %v392
        %v643 = vunpack.c.h.b16 %v392
        %v644 = vunpack.c.l.b16 %v393
        %v645 = vunpack.c.h.b16 %v393
        %v646 = vunpack.c.l.b16 %v394
        %v647 = vunpack.c.h.b16 %v394
        %v648 = vunpack.c.l.b16 %v395
        %v649 = vunpack.c.h.b16 %v395
        %v650 = vunpack.c.l.b16 %v396
        %v651 = vunpack.c.h.b16 %v396
        %v652 = vunpack.c.l.b16 %v397
        %v653 = vunpack.c.h.b16 %v397
        %v654 = vunpack.c.l.b16 %v398
        %v655 = vunpack.c.h.b16 %v398
        %v656 = vunpack.c.l.b16 %v399
        %v657 = vunpack.c.h.b16 %v399
        %v658 = vunpack.c.l.b16 %v400
        %v659 = vunpack.c.h.b16 %v400
        %v660 = vunpack.c.l.b16 %v401
        %v661 = vunpack.c.h.b16 %v401
        %v662 = vunpack.c.l.b16 %v402
        %v663 = vunpack.c.h.b16 %v402
        %v664 = vunpack.c.l.b16 %v403
        %v665 = vunpack.c.h.b16 %v403
        %v666 = vunpack.c.l.b16 %v404
        %v667 = vunpack.c.h.b16 %v404
        %v668 = vunpack.c.l.b16 %v405
        %v669 = vunpack.c.h.b16 %v405
        %v670 = vunpack.c.l.b16 %v406
        %v671 = vunpack.c.h.b16 %v406
        %v672 = vunpack.c.l.b16 %v407
        %v673 = vunpack.c.h.b16 %v407
        %v674 = vunpack.c.l.b16 %v408
        %v675 = vunpack.c.h.b16 %v408
        %v676 = vunpack.c.l.b16 %v409
        %v677 = vunpack.c.h.b16 %v409
        %v678 = vunpack.c.l.b16 %v410
        %v679 = vunpack.c.h.b16 %v410
        %v680 = vunpack.c.l.b16 %v411
        %v681 = vunpack.c.h.b16 %v411
        %v682 = vunpack.c.l.b16 %v412
        %v683 = vunpack.c.h.b16 %v412
        %v684 = vunpack.c.l.b16 %v413
        %v685 = vunpack.c.h.b16 %v413
        %v686 = vunpack.c.l.b16 %v414
        %v687 = vunpack.c.h.b16 %v414
        %v688 = vunpack.c.l.b16 %v415
        %v689 = vunpack.c.h.b16 %v415
        %v690 = vunpack.c.l.b16 %v416
        %v691 = vunpack.c.h.b16 %v416
        %v692 = vunpack.c.l.b16 %v417
        %v693 = vunpack.c.h.b16 %v417
        %v694 = vunpack.c.l.b16 %v418
        %v695 = vunpack.c.h.b16 %v418
        %v696 = vunpack.c.l.b16 %v419
        %v697 = vunpack.c.h.b16 %v419
        %v698 = vunpack.c.l.b16 %v420
        %v699 = vunpack.c.h.b16 %v420
        %v700 = vunpack.c.l.b16 %v421
        %v701 = vunpack.c.h.b16 %v421
        %v702 = vunpack.c.l.b16 %v422
        %v703 = vunpack.c.h.b16 %v422
        %v704 = vunpack.c.l.b16 %v423
        %v705 = vunpack.c.h.b16 %v423
        %v706 = vunpack.c.l.b16 %v424
        %v707 = vunpack.c.h.b16 %v424
        %v708 = vunpack.c.l.b16 %v425
        %v709 = vunpack.c.h.b16 %v425
        %v710 = vunpack.c.l.b16 %v426
        %v711 = vunpack.c.h.b16 %v426
        %v712 = vunpack.c.l.b16 %v427
        %v713 = vunpack.c.h.b16 %v427
        %v714 = vunpack.c.l.b16 %v428
        %v715 = vunpack.c.h.b16 %v428
        %v716 = vunpack.c.l.b16 %v429
        %v717 = vunpack.c.h.b16 %v429
        %v718 = vunpack.c.l.b16 %v430
        %v719 = vunpack.c.h.b16 %v430
        %v720 = vunpack.c.l.b16 %v431
        %v721 = vunpack.c.h.b16 %v431
        %v722 = vunpack.c.l.b16 %v432
        %v723 = vunpack.c.h.b16 %v432
        %v724 = vunpack.c.l.b16 %v433
        %v725 = vunpack.c.h.b16 %v433
        %v726 = vunpack.c.l.b16 %v434
        %v727 = vunpack.c.h.b16 %v434
        %v728 = vunpack.c.l.b16 %v435
        %v729 = vunpack.c.h.b16 %v435
        %v730 = vunpack.c.l.b16 %v436
        %v731 = vunpack.c.h.b16 %v436
        %v732 = vunpack.c.l.b16 %v437
        %v733 = vunpack.c.h.b16 %v437
        %v734 = vunpack.c.l.b16 %v438
        %v735 = vunpack.c.h.b16 %v438
        %v736 = vunpack.c.l.b16 %v439
        %v737 = vunpack.c.h.b16 %v439
        %v738 = vunpack.c.l.b16 %v440
        %v739 = vunpack.c.h.b16 %v440
        %v740 = vunpack.c.l.b16 %v441
        %v741 = vunpack.c.h.b16 %v441
        %v742 = vunpack.c.l.b16 %v442
        %v743 = vunpack.c.h.b16 %v442
        %v744 = vunpack.c.l.b16 %v443
        %v745 = vunpack.c.h.b16 %v443
        %v746 = vunpack.c.l.b16 %v444
        %v747 = vunpack.c.h.b16 %v444
        %v748 = vunpack.c.l.b16 %v445
        %v749 = vunpack.c.h.b16 %v445
        %v750 = vunpack.c.l.b16 %v446
        %v751 = vunpack.c.h.b16 %v446
        %v752 = vunpack.c.l.b16 %v447
        %v753 = vunpack.c.h.b16 %v447
        %v754 = vunpack.c.l.b16 %v448
        %v755 = vunpack.c.h.b16 %v448
        %v756 = vunpack.c.l.b16 %v449
        %v757 = vunpack.c.h.b16 %v449
        %v758 = vunpack.c.l.b16 %v450
        %v759 = vunpack.c.h.b16 %v450
        %v760 = vunpack.c.l.b16 %v451
        %v761 = vunpack.c.h.b16 %v451
        %v762 = vunpack.c.l.b16 %v452
        %v763 = vunpack.c.h.b16 %v452
        %v764 = vunpack.c.l.b16 %v453
        %v765 = vunpack.c.h.b16 %v453
        %v766 = vunpack.c.l.b16 %v454
        %v767 = vunpack.c.h.b16 %v454
        %v768 = vunpack.c.l.b16 %v455
        %v769 = vunpack.c.h.b16 %v455
        %v770 = vunpack.c.l.b16 %v456
        %v771 = vunpack.c.h.b16 %v456
        %v772 = vunpack.c.l.b16 %v457
        %v773 = vunpack.c.h.b16 %v457
        %v774 = vunpack.c.l.b16 %v458
        %v775 = vunpack.c.h.b16 %v458
        %v776 = vunpack.c.l.b16 %v459
        %v777 = vunpack.c.h.b16 %v459
        %v778 = vunpack.c.l.b16 %v460
        %v779 = vunpack.c.h.b16 %v460
        %v780 = vunpack.c.l.b16 %v461
        %v781 = vunpack.c.h.b16 %v461
        %v782 = vunpack.c.l.b16 %v462
        %v783 = vunpack.c.h.b16 %v462
        %v784 = vunpack.c.l.b16 %v463
        %v785 = vunpack.c.h.b16 %v463
        %v786 = vunpack.c.l.b16 %v464
        %v787 = vunpack.c.h.b16 %v464
        %v788 = vunpack.c.l.b16 %v465
        %v789 = vunpack.c.h.b16 %v465
        %v790 = vunpack.c.l.b16 %v466
        %v791 = vunpack.c.h.b16 %v466
        %v792 = vunpack.c.l.b16 %v467
        %v793 = vunpack.c.h.b16 %v467
        %v794 = vunpack.c.l.b16 %v468
        %v795 = vunpack.c.h.b16 %v468
        %v796 = vunpack.c.l.b16 %v469
        %v797 = vunpack.c.h.b16 %v469
        %v798 = vunpack.c.l.b16 %v470
        %v799 = vunpack.c.h.b16 %v470
        %v800 = vunpack.c.l.b16 %v471
        %v801 = vunpack.c.h.b16 %v471
        %v802 = vunpack.c.l.b16 %v472
        %v803 = vunpack.c.h.b16 %v472
        %v804 = vunpack.c.l.b16 %v473
        %v805 = vunpack.c.h.b16 %v473
        %v806 = vunpack.c.l.b16 %v474
        %v807 = vunpack.c.h.b16 %v474
        %v808 = vunpack.c.l.b16 %v475
        %v809 = vunpack.c.h.b16 %v475
        %v810 = vunpack.c.l.b16 %v476
        %v811 = vunpack.c.h.b16 %v476
        %v812 = vunpack.c.l.b16 %v477
        %v813 = vunpack.c.h.b16 %v477
        %v814 = vunpack.c.l.b16 %v478
        %v815 = vunpack.c.h.b16 %v478
        %v816 = vunpack.c.l.b16 %v479
        %v817 = vunpack.c.h.b16 %v479
        %v818 = vunpack.c.l.b16 %v480
        %v819 = vunpack.c.h.b16 %v480
        %v820 = vunpack.c.l.b16 %v481
        %v821 = vunpack.c.h.b16 %v481
        %v822 = vunpack.c.l.b16 %v482
        %v823 = vunpack.c.h.b16 %v482
        %v824 = vunpack.c.l.b16 %v483
        %v825 = vunpack.c.h.b16 %v483
        %v826 = vunpack.c.l.b16 %v484
        %v827 = vunpack.c.h.b16 %v484
        %v828 = vpack.c.b16 %v640, %v636
        %v829 = vpack.c.b16 %v641, %v637
        %v830 = vpack.c.b16 %v642, %v638
        %v831 = vpack.c.b16 %v643, %v639
        %v832 = vpack.c.b16 %v648, %v644
        %v833 = vpack.c.b16 %v649, %v645
        %v834 = vpack.c.b16 %v650, %v646
        %v835 = vpack.c.b16 %v651, %v647
        %v836 = vpack.c.b16 %v656, %v652
        %v837 = vpack.c.b16 %v657, %v653
        %v838 = vpack.c.b16 %v658, %v654
        %v839 = vpack.c.b16 %v659, %v655
        %v840 = vpack.c.b16 %v664, %v660
        %v841 = vpack.c.b16 %v665, %v661
        %v842 = vpack.c.b16 %v666, %v662
        %v843 = vpack.c.b16 %v667, %v663
        %v844 = vpack.c.b16 %v672, %v668
        %v845 = vpack.c.b16 %v673, %v669
        %v846 = vpack.c.b16 %v674, %v670
        %v847 = vpack.c.b16 %v675, %v671
        %v848 = vpack.c.b16 %v680, %v676
        %v849 = vpack.c.b16 %v681, %v677
        %v850 = vpack.c.b16 %v682, %v678
        %v851 = vpack.c.b16 %v683, %v679
        %v852 = vpack.c.b16 %v688, %v684
        %v853 = vpack.c.b16 %v689, %v685
        %v854 = vpack.c.b16 %v690, %v686
        %v855 = vpack.c.b16 %v691, %v687
        %v856 = vpack.c.b16 %v696, %v692
        %v857 = vpack.c.b16 %v697, %v693
        %v858 = vpack.c.b16 %v698, %v694
        %v859 = vpack.c.b16 %v699, %v695
        %v860 = vpack.c.b16 %v704, %v700
        %v861 = vpack.c.b16 %v705, %v701
        %v862 = vpack.c.b16 %v706, %v702
        %v863 = vpack.c.b16 %v707, %v703
        %v864 = vpack.c.b16 %v712, %v708
        %v865 = vpack.c.b16 %v713, %v709
        %v866 = vpack.c.b16 %v714, %v710
        %v867 = vpack.c.b16 %v715, %v711
        %v868 = vpack.c.b16 %v720, %v716
        %v869 = vpack.c.b16 %v721, %v717
        %v870 = vpack.c.b16 %v722, %v718
        %v871 = vpack.c.b16 %v723, %v719
        %v872 = vpack.c.b16 %v728, %v724
        %v873 = vpack.c.b16 %v729, %v725
        %v874 = vpack.c.b16 %v730, %v726
        %v875 = vpack.c.b16 %v731, %v727
        %v876 = vpack.c.b16 %v736, %v732
        %v877 = vpack.c.b16 %v737, %v733
        %v878 = vpack.c.b16 %v738, %v734
        %v879 = vpack.c.b16 %v739, %v735
        %v880 = vpack.c.b16 %v744, %v740
        %v881 = vpack.c.b16 %v745, %v741
        %v882 = vpack.c.b16 %v746, %v742
        %v883 = vpack.c.b16 %v747, %v743
        %v884 = vpack.c.b16 %v752, %v748
        %v885 = vpack.c.b16 %v753, %v749
        %v886 = vpack.c.b16 %v754, %v750
        %v887 = vpack.c.b16 %v755, %v751
        %v888 = vpack.c.b16 %v760, %v756
        %v889 = vpack.c.b16 %v761, %v757
        %v890 = vpack.c.b16 %v762, %v758
        %v891 = vpack.c.b16 %v763, %v759
        %v892 = vpack.c.b16 %v768, %v764
        %v893 = vpack.c.b16 %v769, %v765
        %v894 = vpack.c.b16 %v770, %v766
        %v895 = vpack.c.b16 %v771, %v767
        %v896 = vpack.c.b16 %v776, %v772
        %v897 = vpack.c.b16 %v777, %v773
        %v898 = vpack.c.b16 %v778, %v774
        %v899 = vpack.c.b16 %v779, %v775
        %v900 = vpack.c.b16 %v784, %v780
        %v901 = vpack.c.b16 %v785, %v781
        %v902 = vpack.c.b16 %v786, %v782
        %v903 = vpack.c.b16 %v787, %v783
        %v904 = vpack.c.b16 %v792, %v788
        %v905 = vpack.c.b16 %v793, %v789
        %v906 = vpack.c.b16 %v794, %v790
        %v907 = vpack.c.b16 %v795, %v791
        %v908 = vpack.c.b16 %v800, %v796
        %v909 = vpack.c.b16 %v801, %v797
        %v910 = vpack.c.b16 %v802, %v798
        %v911 = vpack.c.b16 %v803, %v799
        %v912 = vpack.c.b16 %v808, %v804
        %v913 = vpack.c.b16 %v809, %v805
        %v914 = vpack.c.b16 %v810, %v806
        %v915 = vpack.c.b16 %v811, %v807
        %v916 = vpack.c.b16 %v816, %v812
        %v917 = vpack.c.b16 %v817, %v813
        %v918 = vpack.c.b16 %v818, %v814
        %v919 = vpack.c.b16 %v819, %v815
        %v920 = vpack.c.b16 %v824, %v820
        %v921 = vpack.c.b16 %v825, %v821
        %v922 = vpack.c.b16 %v826, %v822
        %v923 = vpack.c.b16 %v827, %v823
        %v1050 = vunpack.c.l.b16 %v486
        %v1051 = vunpack.c.h.b16 %v486
        %v1052 = vunpack.c.l.b16 %v487
        %v1053 = vunpack.c.h.b16 %v487
        %v1054 = vunpack.c.l.b16 %v488
        %v1055 = vunpack.c.h.b16 %v488
        %v1056 = vunpack.c.l.b16 %v489
        %v1057 = vunpack.c.h.b16 %v489
        %v1058 = vunpack.c.l.b16 %v490
        %v1059 = vunpack.c.h.b16 %v490
        %v1060 = vunpack.c.l.b16 %v491
        %v1061 = vunpack.c.h.b16 %v491
        %v1062 = vunpack.c.l.b16 %v492
        %v1063 = vunpack.c.h.b16 %v492
        %v1064 = vunpack.c.l.b16 %v493
        %v1065 = vunpack.c.h.b16 %v493
        %v1066 = vunpack.c.l.b16 %v494
        %v1067 = vunpack.c.h.b16 %v494
        %v1068 = vunpack.c.l.b16 %v495
        %v1069 = vunpack.c.h.b16 %v495
        %v1070 = vunpack.c.l.b16 %v496
        %v1071 = vunpack.c.h.b16 %v496
        %v1072 = vunpack.c.l.b16 %v497
        %v1073 = vunpack.c.h.b16 %v497
        %v1074 = vunpack.c.l.b16 %v498
        %v1075 = vunpack.c.h.b16 %v498
        %v1076 = vunpack.c.l.b16 %v499
        %v1077 = vunpack.c.h.b16 %v499
        %v1078 = vunpack.c.l.b16 %v500
        %v1079 = vunpack.c.h.b16 %v500
        %v1080 = vunpack.c.l.b16 %v501
        %v1081 = vunpack.c.h.b16 %v501
        %v1082 = vunpack.c.l.b16 %v502
        %v1083 = vunpack.c.h.b16 %v502
        %v1084 = vunpack.c.l.b16 %v503
        %v1085 = vunpack.c.h.b16 %v503
        %v1086 = vunpack.c.l.b16 %v504
        %v1087 = vunpack.c.h.b16 %v504
        %v1088 = vunpack.c.l.b16 %v505
        %v1089 = vunpack.c.h.b16 %v505
        %v1090 = vunpack.c.l.b16 %v506
        %v1091 = vunpack.c.h.b16 %v506
        %v1092 = vunpack.c.l.b16 %v507
        %v1093 = vunpack.c.h.b16 %v507
        %v1094 = vunpack.c.l.b16 %v508
        %v1095 = vunpack.c.h.b16 %v508
        %v1096 = vunpack.c.l.b16 %v509
        %v1097 = vunpack.c.h.b16 %v509
        %v1098 = vunpack.c.l.b16 %v510
        %v1099 = vunpack.c.h.b16 %v510
        %v1100 = vunpack.c.l.b16 %v511
        %v1101 = vunpack.c.h.b16 %v511
        %v1102 = vunpack.c.l.b16 %v512
        %v1103 = vunpack.c.h.b16 %v512
        %v1104 = vunpack.c.l.b16 %v513
        %v1105 = vunpack.c.h.b16 %v513
        %v1106 = vunpack.c.l.b16 %v514
        %v1107 = vunpack.c.h.b16 %v514
        %v1108 = vunpack.c.l.b16 %v515
        %v1109 = vunpack.c.h.b16 %v515
        %v1110 = vunpack.c.l.b16 %v516
        %v1111 = vunpack.c.h.b16 %v516
        %v1112 = vunpack.c.l.b16 %v517
        %v1113 = vunpack.c.h.b16 %v517
        %v1114 = vunpack.c.l.b16 %v518
        %v1115 = vunpack.c.h.b16 %v518
        %v1116 = vunpack.c.l.b16 %v519
        %v1117 = vunpack.c.h.b16 %v519
        %v1118 = vunpack.c.l.b16 %v520
        %v1119 = vunpack.c.h.b16 %v520
        %v1120 = vunpack.c.l.b16 %v521
        %v1121 = vunpack.c.h.b16 %v521
        %v1122 = vunpack.c.l.b16 %v522
        %v1123 = vunpack.c.h.b16 %v522
        %v1124 = vunpack.c.l.b16 %v523
        %v1125 = vunpack.c.h.b16 %v523
        %v1126 = vunpack.c.l.b16 %v524
        %v1127 = vunpack.c.h.b16 %v524
        %v1128 = vunpack.c.l.b16 %v525
        %v1129 = vunpack.c.h.b16 %v525
        %v1130 = vunpack.c.l.b16 %v526
        %v1131 = vunpack.c.h.b16 %v526
        %v1132 = vunpack.c.l.b16 %v527
        %v1133 = vunpack.c.h.b16 %v527
        %v1134 = vunpack.c.l.b16 %v528
        %v1135 = vunpack.c.h.b16 %v528
        %v1136 = vunpack.c.l.b16 %v529
        %v1137 = vunpack.c.h.b16 %v529
        %v1138 = vunpack.c.l.b16 %v530
        %v1139 = vunpack.c.h.b16 %v530
        %v1140 = vunpack.c.l.b16 %v531
        %v1141 = vunpack.c.h.b16 %v531
        %v1142 = vunpack.c.l.b16 %v532
        %v1143 = vunpack.c.h.b16 %v532
        %v1144 = vunpack.c.l.b16 %v533
        %v1145 = vunpack.c.h.b16 %v533
        %v1146 = vunpack.c.l.b16 %v534
        %v1147 = vunpack.c.h.b16 %v534
        %v1148 = vunpack.c.l.b16 %v535
        %v1149 = vunpack.c.h.b16 %v535
        %v1150 = vunpack.c.l.b16 %v536
        %v1151 = vunpack.c.h.b16 %v536
        %v1152 = vunpack.c.l.b16 %v537
        %v1153 = vunpack.c.h.b16 %v537
        %v1154 = vunpack.c.l.b16 %v538
        %v1155 = vunpack.c.h.b16 %v538
        %v1156 = vunpack.c.l.b16 %v539
        %v1157 = vunpack.c.h.b16 %v539
        %v1158 = vpack.c.b16 %v1052, %v1050
        %v1159 = vpack.c.b16 %v1053, %v1051
        %v1160 = vpack.c.b16 %v1056, %v1054
        %v1161 = vpack.c.b16 %v1057, %v1055
        %v1162 = vpack.c.b16 %v1060, %v1058
        %v1163 = vpack.c.b16 %v1061, %v1059
        %v1164 = vpack.c.b16 %v1064, %v1062
        %v1165 = vpack.c.b16 %v1065, %v1063
        %v1166 = vpack.c.b16 %v1068, %v1066
        %v1167 = vpack.c.b16 %v1069, %v1067
        %v1168 = vpack.c.b16 %v1072, %v1070
        %v1169 = vpack.c.b16 %v1073, %v1071
        %v1170 = vpack.c.b16 %v1076, %v1074
        %v1171 = vpack.c.b16 %v1077, %v1075
        %v1172 = vpack.c.b16 %v1080, %v1078
        %v1173 = vpack.c.b16 %v1081, %v1079
        %v1174 = vpack.c.b16 %v1084, %v1082
        %v1175 = vpack.c.b16 %v1085, %v1083
        %v1176 = vpack.c.b16 %v1088, %v1086
        %v1177 = vpack.c.b16 %v1089, %v1087
        %v1178 = vpack.c.b16 %v1092, %v1090
        %v1179 = vpack.c.b16 %v1093, %v1091
        %v1180 = vpack.c.b16 %v1096, %v1094
        %v1181 = vpack.c.b16 %v1097, %v1095
        %v1182 = vpack.c.b16 %v1100, %v1098
        %v1183 = vpack.c.b16 %v1101, %v1099
        %v1184 = vpack.c.b16 %v1104, %v1102
        %v1185 = vpack.c.b16 %v1105, %v1103
        %v1186 = vpack.c.b16 %v1108, %v1106
        %v1187 = vpack.c.b16 %v1109, %v1107
        %v1188 = vpack.c.b16 %v1112, %v1110
        %v1189 = vpack.c.b16 %v1113, %v1111
        %v1190 = vpack.c.b16 %v1116, %v1114
        %v1191 = vpack.c.b16 %v1117, %v1115
        %v1192 = vpack.c.b16 %v1120, %v1118
        %v1193 = vpack.c.b16 %v1121, %v1119
        %v1194 = vpack.c.b16 %v1124, %v1122
        %v1195 = vpack.c.b16 %v1125, %v1123
        %v1196 = vpack.c.b16 %v1128, %v1126
        %v1197 = vpack.c.b16 %v1129, %v1127
        %v1198 = vpack.c.b16 %v1132, %v1130
        %v1199 = vpack.c.b16 %v1133, %v1131
        %v1200 = vpack.c.b16 %v1136, %v1134
        %v1201 = vpack.c.b16 %v1137, %v1135
        %v1202 = vpack.c.b16 %v1140, %v1138
        %v1203 = vpack.c.b16 %v1141, %v1139
        %v1204 = vpack.c.b16 %v1144, %v1142
        %v1205 = vpack.c.b16 %v1145, %v1143
        %v1206 = vpack.c.b16 %v1148, %v1146
        %v1207 = vpack.c.b16 %v1149, %v1147
        %v1208 = vpack.c.b16 %v1152, %v1150
        %v1209 = vpack.c.b16 %v1153, %v1151
        %v1210 = vpack.c.b16 %v1156, %v1154
        %v1211 = vpack.c.b16 %v1157, %v1155
        %vm1266 = vcmask 392192
        %v1268 = vsel %vm1266, %v831, 0
        %v1271 = vsel %vm1266, %v835, 0
        %v1274 = vsel %vm1266, %v839, 0
        %v1277 = vsel %vm1266, %v843, 0
        %v1280 = vsel %vm1266, %v847, 0
        %v1283 = vsel %vm1266, %v851, 0
        %v1286 = vsel %vm1266, %v855, 0
        %v1289 = vsel %vm1266, %v859, 0
        %v1292 = vsel %vm1266, %v863, 0
        %v1295 = vsel %vm1266, %v867, 0
        %v1298 = vsel %vm1266, %v871, 0
        %v1301 = vsel %vm1266, %v875, 0
        %v1304 = vsel %vm1266, %v879, 0
        %v1307 = vsel %vm1266, %v883, 0
        %v1310 = vsel %vm1266, %v887, 0
        %v1313 = vsel %vm1266, %v891, 0
        %v1316 = vsel %vm1266, %v895, 0
        %v1319 = vsel %vm1266, %v899, 0
        %v1322 = vsel %vm1266, %v903, 0
        %v1325 = vsel %vm1266, %v907, 0
        %v1328 = vsel %vm1266, %v911, 0
        %v1331 = vsel %vm1266, %v915, 0
        %v1334 = vsel %vm1266, %v919, 0
        %v1337 = vsel %vm1266, %v923, 0
        %1339 = vmatprep.subr.bf16.mxu0 %v1173
        %1340 = vmatpush1.bf16.msra.mxu0 %v1172
        %1341 = vmatprep.subr.bf16.mxu0 %v1171
        %1342 = vmatpush1.bf16.msra.mxu0 %v1170
        %1343 = vmatprep.subr.bf16.mxu0 %v1169
        %1344 = vmatpush1.bf16.msra.mxu0 %v1168
        %1345 = vmatprep.subr.bf16.mxu0 %v1167
        %1346 = vmatpush1.bf16.msra.mxu0 %v1166
        %1347 = vmatprep.subr.bf16.mxu0 %v1165
        %1348 = vmatpush1.bf16.msra.mxu0 %v1164
        %1349 = vmatprep.subr.bf16.mxu0 %v1163
        %1350 = vmatpush1.bf16.msra.mxu0 %v1162
        %1351 = vmatprep.subr.bf16.mxu0 %v1161
        %1352 = vmatpush1.bf16.msra.mxu0 %v1160
        %1353 = vmatprep.subr.bf16.mxu0 %v1159
        %1354 = vmatpush1.bf16.msra.mxu0 %v1158
        %1355 = vmatprep.subr.bf16.mxu0 %v1189
        %1356 = vmatpush2.bf16.msra.mxu0 %v1188
        %1357 = vmatprep.subr.bf16.mxu0 %v1187
        %1358 = vmatpush2.bf16.msra.mxu0 %v1186
        %1359 = vmatprep.subr.bf16.mxu0 %v1185
        %1360 = vmatpush2.bf16.msra.mxu0 %v1184
        %1361 = vmatprep.subr.bf16.mxu0 %v1183
        %1362 = vmatpush2.bf16.msra.mxu0 %v1182
        %1363 = vmatprep.subr.bf16.mxu0 %v1181
        %1364 = vmatpush2.bf16.msra.mxu0 %v1180
        %1365 = vmatprep.subr.bf16.mxu0 %v1179
        %1366 = vmatpush2.bf16.msra.mxu0 %v1178
        %1367 = vmatprep.subr.bf16.mxu0 %v1177
        %1368 = vmatpush2.bf16.msra.mxu0 %v1176
        %1369 = vmatprep.subr.bf16.mxu0 %v1175
        %1370 = vmatpush2.bf16.msra.mxu0 %v1174
        %1371 = vmatprep.mubr.bf16.mxu0 %v829
        %1372 = vmatmul.mubr.bf16.gmra.mxu0 %v828
        %v1373 = vpop.f32.mrf.mxu0
        %v1374 = vadd.f32 0.0, %v1373
        %v1375 = vpop.f32.mrf.mxu0
        %v1376 = vadd.f32 0.0, %v1375
        %v1377 = vpop.f32.mrf.mxu0
        %v1378 = vadd.f32 0.0, %v1377
        %v1379 = vpop.f32.mrf.mxu0
        %v1380 = vadd.f32 0.0, %v1379
        %1381 = vmatprep.mubr.bf16.mxu0 %v833
        %1382 = vmatmul.mubr.bf16.gmra.mxu0 %v832
        %v1383 = vpop.f32.mrf.mxu0
        %v1384 = vadd.f32 0.0, %v1383
        %v1385 = vpop.f32.mrf.mxu0
        %v1386 = vadd.f32 0.0, %v1385
        %v1387 = vpop.f32.mrf.mxu0
        %v1388 = vadd.f32 0.0, %v1387
        %v1389 = vpop.f32.mrf.mxu0
        %v1390 = vadd.f32 0.0, %v1389
        %1391 = vmatprep.mubr.bf16.mxu0 %v837
        %1392 = vmatmul.mubr.bf16.gmra.mxu0 %v836
        %v1393 = vpop.f32.mrf.mxu0
        %v1394 = vadd.f32 0.0, %v1393
        %v1395 = vpop.f32.mrf.mxu0
        %v1396 = vadd.f32 0.0, %v1395
        %v1397 = vpop.f32.mrf.mxu0
        %v1398 = vadd.f32 0.0, %v1397
        %v1399 = vpop.f32.mrf.mxu0
        %v1400 = vadd.f32 0.0, %v1399
        %1401 = vmatprep.mubr.bf16.mxu0 %v841
        %1402 = vmatmul.mubr.bf16.gmra.mxu0 %v840
        %v1403 = vpop.f32.mrf.mxu0
        %v1404 = vadd.f32 0.0, %v1403
        %v1405 = vpop.f32.mrf.mxu0
        %v1406 = vadd.f32 0.0, %v1405
        %v1407 = vpop.f32.mrf.mxu0
        %v1408 = vadd.f32 0.0, %v1407
        %v1409 = vpop.f32.mrf.mxu0
        %v1410 = vadd.f32 0.0, %v1409
        %1411 = vmatprep.mubr.bf16.mxu0 %v845
        %1412 = vmatmul.mubr.bf16.gmra.mxu0 %v844
        %v1413 = vpop.f32.mrf.mxu0
        %v1414 = vadd.f32 0.0, %v1413
        %v1415 = vpop.f32.mrf.mxu0
        %v1416 = vadd.f32 0.0, %v1415
        %v1417 = vpop.f32.mrf.mxu0
        %v1418 = vadd.f32 0.0, %v1417
        %v1419 = vpop.f32.mrf.mxu0
        %v1420 = vadd.f32 0.0, %v1419
        %1421 = vmatprep.mubr.bf16.mxu0 %v849
        %1422 = vmatmul.mubr.bf16.gmra.mxu0 %v848
        %v1423 = vpop.f32.mrf.mxu0
        %v1424 = vadd.f32 0.0, %v1423
        %v1425 = vpop.f32.mrf.mxu0
        %v1426 = vadd.f32 0.0, %v1425
        %v1427 = vpop.f32.mrf.mxu0
        %v1428 = vadd.f32 0.0, %v1427
        %v1429 = vpop.f32.mrf.mxu0
        %v1430 = vadd.f32 0.0, %v1429
        %1431 = vmatprep.mubr.bf16.mxu0 %v853
        %1432 = vmatmul.mubr.bf16.gmra.mxu0 %v852
        %v1433 = vpop.f32.mrf.mxu0
        %v1434 = vadd.f32 0.0, %v1433
        %v1435 = vpop.f32.mrf.mxu0
        %v1436 = vadd.f32 0.0, %v1435
        %v1437 = vpop.f32.mrf.mxu0
        %v1438 = vadd.f32 0.0, %v1437
        %v1439 = vpop.f32.mrf.mxu0
        %v1440 = vadd.f32 0.0, %v1439
        %1441 = vmatprep.mubr.bf16.mxu0 %v857
        %1442 = vmatmul.mubr.bf16.gmra.mxu0 %v856
        %v1443 = vpop.f32.mrf.mxu0
        %v1444 = vadd.f32 0.0, %v1443
        %v1445 = vpop.f32.mrf.mxu0
        %v1446 = vadd.f32 0.0, %v1445
        %v1447 = vpop.f32.mrf.mxu0
        %v1448 = vadd.f32 0.0, %v1447
        %v1449 = vpop.f32.mrf.mxu0
        %v1450 = vadd.f32 0.0, %v1449
        %1451 = vmatprep.mubr.bf16.mxu0 %v861
        %1452 = vmatmul.mubr.bf16.gmra.mxu0 %v860
        %v1453 = vpop.f32.mrf.mxu0
        %v1454 = vadd.f32 0.0, %v1453
        %v1455 = vpop.f32.mrf.mxu0
        %v1456 = vadd.f32 0.0, %v1455
        %v1457 = vpop.f32.mrf.mxu0
        %v1458 = vadd.f32 0.0, %v1457
        %v1459 = vpop.f32.mrf.mxu0
        %v1460 = vadd.f32 0.0, %v1459
        %1461 = vmatprep.mubr.bf16.mxu0 %v865
        %1462 = vmatmul.mubr.bf16.gmra.mxu0 %v864
        %v1463 = vpop.f32.mrf.mxu0
        %v1464 = vadd.f32 0.0, %v1463
        %v1465 = vpop.f32.mrf.mxu0
        %v1466 = vadd.f32 0.0, %v1465
        %v1467 = vpop.f32.mrf.mxu0
        %v1468 = vadd.f32 0.0, %v1467
        %v1469 = vpop.f32.mrf.mxu0
        %v1470 = vadd.f32 0.0, %v1469
        %1471 = vmatprep.mubr.bf16.mxu0 %v869
        %1472 = vmatmul.mubr.bf16.gmra.mxu0 %v868
        %v1473 = vpop.f32.mrf.mxu0
        %v1474 = vadd.f32 0.0, %v1473
        %v1475 = vpop.f32.mrf.mxu0
        %v1476 = vadd.f32 0.0, %v1475
        %v1477 = vpop.f32.mrf.mxu0
        %v1478 = vadd.f32 0.0, %v1477
        %v1479 = vpop.f32.mrf.mxu0
        %v1480 = vadd.f32 0.0, %v1479
        %1481 = vmatprep.mubr.bf16.mxu0 %v873
        %1482 = vmatmul.mubr.bf16.gmra.mxu0 %v872
        %v1483 = vpop.f32.mrf.mxu0
        %v1484 = vadd.f32 0.0, %v1483
        %v1485 = vpop.f32.mrf.mxu0
        %v1486 = vadd.f32 0.0, %v1485
        %v1487 = vpop.f32.mrf.mxu0
        %v1488 = vadd.f32 0.0, %v1487
        %v1489 = vpop.f32.mrf.mxu0
        %v1490 = vadd.f32 0.0, %v1489
        %1491 = vmatprep.mubr.bf16.mxu0 %v877
        %1492 = vmatmul.mubr.bf16.gmra.mxu0 %v876
        %v1493 = vpop.f32.mrf.mxu0
        %v1494 = vadd.f32 0.0, %v1493
        %v1495 = vpop.f32.mrf.mxu0
        %v1496 = vadd.f32 0.0, %v1495
        %v1497 = vpop.f32.mrf.mxu0
        %v1498 = vadd.f32 0.0, %v1497
        %v1499 = vpop.f32.mrf.mxu0
        %v1500 = vadd.f32 0.0, %v1499
        %1501 = vmatprep.mubr.bf16.mxu0 %v881
        %1502 = vmatmul.mubr.bf16.gmra.mxu0 %v880
        %v1503 = vpop.f32.mrf.mxu0
        %v1504 = vadd.f32 0.0, %v1503
        %v1505 = vpop.f32.mrf.mxu0
        %v1506 = vadd.f32 0.0, %v1505
        %v1507 = vpop.f32.mrf.mxu0
        %v1508 = vadd.f32 0.0, %v1507
        %v1509 = vpop.f32.mrf.mxu0
        %v1510 = vadd.f32 0.0, %v1509
        %1511 = vmatprep.mubr.bf16.mxu0 %v885
        %1512 = vmatmul.mubr.bf16.gmra.mxu0 %v884
        %v1513 = vpop.f32.mrf.mxu0
        %v1514 = vadd.f32 0.0, %v1513
        %v1515 = vpop.f32.mrf.mxu0
        %v1516 = vadd.f32 0.0, %v1515
        %v1517 = vpop.f32.mrf.mxu0
        %v1518 = vadd.f32 0.0, %v1517
        %v1519 = vpop.f32.mrf.mxu0
        %v1520 = vadd.f32 0.0, %v1519
        %1521 = vmatprep.mubr.bf16.mxu0 %v889
        %1522 = vmatmul.mubr.bf16.gmra.mxu0 %v888
        %v1523 = vpop.f32.mrf.mxu0
        %v1524 = vadd.f32 0.0, %v1523
        %v1525 = vpop.f32.mrf.mxu0
        %v1526 = vadd.f32 0.0, %v1525
        %v1527 = vpop.f32.mrf.mxu0
        %v1528 = vadd.f32 0.0, %v1527
        %v1529 = vpop.f32.mrf.mxu0
        %v1530 = vadd.f32 0.0, %v1529
        %1531 = vmatprep.mubr.bf16.mxu0 %v893
        %1532 = vmatmul.mubr.bf16.gmra.mxu0 %v892
        %v1533 = vpop.f32.mrf.mxu0
        %v1534 = vadd.f32 0.0, %v1533
        %v1535 = vpop.f32.mrf.mxu0
        %v1536 = vadd.f32 0.0, %v1535
        %v1537 = vpop.f32.mrf.mxu0
        %v1538 = vadd.f32 0.0, %v1537
        %v1539 = vpop.f32.mrf.mxu0
        %v1540 = vadd.f32 0.0, %v1539
        %1541 = vmatprep.mubr.bf16.mxu0 %v897
        %1542 = vmatmul.mubr.bf16.gmra.mxu0 %v896
        %v1543 = vpop.f32.mrf.mxu0
        %v1544 = vadd.f32 0.0, %v1543
        %v1545 = vpop.f32.mrf.mxu0
        %v1546 = vadd.f32 0.0, %v1545
        %v1547 = vpop.f32.mrf.mxu0
        %v1548 = vadd.f32 0.0, %v1547
        %v1549 = vpop.f32.mrf.mxu0
        %v1550 = vadd.f32 0.0, %v1549
        %1551 = vmatprep.mubr.bf16.mxu0 %v901
        %1552 = vmatmul.mubr.bf16.gmra.mxu0 %v900
        %v1553 = vpop.f32.mrf.mxu0
        %v1554 = vadd.f32 0.0, %v1553
        %v1555 = vpop.f32.mrf.mxu0
        %v1556 = vadd.f32 0.0, %v1555
        %v1557 = vpop.f32.mrf.mxu0
        %v1558 = vadd.f32 0.0, %v1557
        %v1559 = vpop.f32.mrf.mxu0
        %v1560 = vadd.f32 0.0, %v1559
        %1561 = vmatprep.mubr.bf16.mxu0 %v905
        %1562 = vmatmul.mubr.bf16.gmra.mxu0 %v904
        %v1563 = vpop.f32.mrf.mxu0
        %v1564 = vadd.f32 0.0, %v1563
        %v1565 = vpop.f32.mrf.mxu0
        %v1566 = vadd.f32 0.0, %v1565
        %v1567 = vpop.f32.mrf.mxu0
        %v1568 = vadd.f32 0.0, %v1567
        %v1569 = vpop.f32.mrf.mxu0
        %v1570 = vadd.f32 0.0, %v1569
        %1571 = vmatprep.mubr.bf16.mxu0 %v909
        %1572 = vmatmul.mubr.bf16.gmra.mxu0 %v908
        %v1573 = vpop.f32.mrf.mxu0
        %v1574 = vadd.f32 0.0, %v1573
        %v1575 = vpop.f32.mrf.mxu0
        %v1576 = vadd.f32 0.0, %v1575
        %v1577 = vpop.f32.mrf.mxu0
        %v1578 = vadd.f32 0.0, %v1577
        %v1579 = vpop.f32.mrf.mxu0
        %v1580 = vadd.f32 0.0, %v1579
        %1581 = vmatprep.mubr.bf16.mxu0 %v913
        %1582 = vmatmul.mubr.bf16.gmra.mxu0 %v912
        %v1583 = vpop.f32.mrf.mxu0
        %v1584 = vadd.f32 0.0, %v1583
        %v1585 = vpop.f32.mrf.mxu0
        %v1586 = vadd.f32 0.0, %v1585
        %v1587 = vpop.f32.mrf.mxu0
        %v1588 = vadd.f32 0.0, %v1587
        %v1589 = vpop.f32.mrf.mxu0
        %v1590 = vadd.f32 0.0, %v1589
        %1591 = vmatprep.mubr.bf16.mxu0 %v917
        %1592 = vmatmul.mubr.bf16.gmra.mxu0 %v916
        %v1593 = vpop.f32.mrf.mxu0
        %v1594 = vadd.f32 0.0, %v1593
        %v1595 = vpop.f32.mrf.mxu0
        %v1596 = vadd.f32 0.0, %v1595
        %v1597 = vpop.f32.mrf.mxu0
        %v1598 = vadd.f32 0.0, %v1597
        %v1599 = vpop.f32.mrf.mxu0
        %v1600 = vadd.f32 0.0, %v1599
        %1601 = vmatprep.mubr.bf16.mxu0 %v921
        %1602 = vmatmul.mubr.bf16.gmra.mxu0 %v920
        %v1603 = vpop.f32.mrf.mxu0
        %v1604 = vadd.f32 0.0, %v1603
        %v1605 = vpop.f32.mrf.mxu0
        %v1606 = vadd.f32 0.0, %v1605
        %v1607 = vpop.f32.mrf.mxu0
        %v1608 = vadd.f32 0.0, %v1607
        %v1609 = vpop.f32.mrf.mxu0
        %v1610 = vadd.f32 0.0, %v1609
        %1611 = vdwg.mxu0
        %1612 = vmatprep.subr.bf16.mxu0 %v1205
        %1613 = vmatpush1.bf16.msra.mxu0 %v1204
        %1614 = vmatprep.subr.bf16.mxu0 %v1203
        %1615 = vmatpush1.bf16.msra.mxu0 %v1202
        %1616 = vmatprep.subr.bf16.mxu0 %v1201
        %1617 = vmatpush1.bf16.msra.mxu0 %v1200
        %1618 = vmatprep.subr.bf16.mxu0 %v1199
        %1619 = vmatpush1.bf16.msra.mxu0 %v1198
        %1620 = vmatprep.subr.bf16.mxu0 %v1197
        %1621 = vmatpush1.bf16.msra.mxu0 %v1196
        %1622 = vmatprep.subr.bf16.mxu0 %v1195
        %1623 = vmatpush1.bf16.msra.mxu0 %v1194
        %1624 = vmatprep.subr.bf16.mxu0 %v1193
        %1625 = vmatpush1.bf16.msra.mxu0 %v1192
        %1626 = vmatprep.subr.bf16.mxu0 %v1191
        %1627 = vmatpush1.bf16.msra.mxu0 %v1190
        %1628 = vmatprep.subr.bf16.mxu0 0
        %1629 = vmatpush2.bf16.msra.mxu0 0
        %1630 = vmatprep.subr.bf16.mxu0 0
        %1631 = vmatpush2.bf16.msra.mxu0 0
        %1632 = vmatprep.subr.bf16.mxu0 0
        %1633 = vmatpush2.bf16.msra.mxu0 0
        %1634 = vmatprep.subr.bf16.mxu0 0
        %1635 = vmatpush2.bf16.msra.mxu0 0
        %1636 = vmatprep.subr.bf16.mxu0 0
        %1637 = vmatpush2.bf16.msra.mxu0 0
        %1638 = vmatprep.subr.bf16.mxu0 %v1211
        %1639 = vmatpush2.bf16.msra.mxu0 %v1210
        %1640 = vmatprep.subr.bf16.mxu0 %v1209
        %1641 = vmatpush2.bf16.msra.mxu0 %v1208
        %1642 = vmatprep.subr.bf16.mxu0 %v1207
        %1643 = vmatpush2.bf16.msra.mxu0 %v1206
        %1644 = vmatprep.mubr.bf16.mxu0 %v1268
        %1645 = vmatmul.mubr.bf16.gmra.mxu0 %v830
        %v1646 = vpop.f32.mrf.mxu0
        %v1647 = vadd.f32 %v1374, %v1646
        %v1648 = vpop.f32.mrf.mxu0
        %v1649 = vadd.f32 %v1376, %v1648
        %v1650 = vpop.f32.mrf.mxu0
        %v1651 = vadd.f32 %v1378, %v1650
        %v1652 = vpop.f32.mrf.mxu0
        %v1653 = vadd.f32 %v1380, %v1652
        %1654 = vmatprep.mubr.bf16.mxu0 %v1271
        %1655 = vmatmul.mubr.bf16.gmra.mxu0 %v834
        %v1656 = vpop.f32.mrf.mxu0
        %v1657 = vadd.f32 %v1384, %v1656
        %v1658 = vpop.f32.mrf.mxu0
        %v1659 = vadd.f32 %v1386, %v1658
        %v1660 = vpop.f32.mrf.mxu0
        %v1661 = vadd.f32 %v1388, %v1660
        %v1662 = vpop.f32.mrf.mxu0
        %v1663 = vadd.f32 %v1390, %v1662
        %1664 = vmatprep.mubr.bf16.mxu0 %v1274
        %1665 = vmatmul.mubr.bf16.gmra.mxu0 %v838
        %v1666 = vpop.f32.mrf.mxu0
        %v1667 = vadd.f32 %v1394, %v1666
        %v1668 = vpop.f32.mrf.mxu0
        %v1669 = vadd.f32 %v1396, %v1668
        %v1670 = vpop.f32.mrf.mxu0
        %v1671 = vadd.f32 %v1398, %v1670
        %v1672 = vpop.f32.mrf.mxu0
        %v1673 = vadd.f32 %v1400, %v1672
        %1674 = vmatprep.mubr.bf16.mxu0 %v1277
        %1675 = vmatmul.mubr.bf16.gmra.mxu0 %v842
        %v1676 = vpop.f32.mrf.mxu0
        %v1677 = vadd.f32 %v1404, %v1676
        %v1678 = vpop.f32.mrf.mxu0
        %v1679 = vadd.f32 %v1406, %v1678
        %v1680 = vpop.f32.mrf.mxu0
        %v1681 = vadd.f32 %v1408, %v1680
        %v1682 = vpop.f32.mrf.mxu0
        %v1683 = vadd.f32 %v1410, %v1682
        %1684 = vmatprep.mubr.bf16.mxu0 %v1280
        %1685 = vmatmul.mubr.bf16.gmra.mxu0 %v846
        %v1686 = vpop.f32.mrf.mxu0
        %v1687 = vadd.f32 %v1414, %v1686
        %v1688 = vpop.f32.mrf.mxu0
        %v1689 = vadd.f32 %v1416, %v1688
        %v1690 = vpop.f32.mrf.mxu0
        %v1691 = vadd.f32 %v1418, %v1690
        %v1692 = vpop.f32.mrf.mxu0
        %v1693 = vadd.f32 %v1420, %v1692
        %1694 = vmatprep.mubr.bf16.mxu0 %v1283
        %1695 = vmatmul.mubr.bf16.gmra.mxu0 %v850
        %v1696 = vpop.f32.mrf.mxu0
        %v1697 = vadd.f32 %v1424, %v1696
        %v1698 = vpop.f32.mrf.mxu0
        %v1699 = vadd.f32 %v1426, %v1698
        %v1700 = vpop.f32.mrf.mxu0
        %v1701 = vadd.f32 %v1428, %v1700
        %v1702 = vpop.f32.mrf.mxu0
        %v1703 = vadd.f32 %v1430, %v1702
        %1704 = vmatprep.mubr.bf16.mxu0 %v1286
        %1705 = vmatmul.mubr.bf16.gmra.mxu0 %v854
        %v1706 = vpop.f32.mrf.mxu0
        %v1707 = vadd.f32 %v1434, %v1706
        %v1708 = vpop.f32.mrf.mxu0
        %v1709 = vadd.f32 %v1436, %v1708
        %v1710 = vpop.f32.mrf.mxu0
        %v1711 = vadd.f32 %v1438, %v1710
        %v1712 = vpop.f32.mrf.mxu0
        %v1713 = vadd.f32 %v1440, %v1712
        %1714 = vmatprep.mubr.bf16.mxu0 %v1289
        %1715 = vmatmul.mubr.bf16.gmra.mxu0 %v858
        %v1716 = vpop.f32.mrf.mxu0
        %v1717 = vadd.f32 %v1444, %v1716
        %v1718 = vpop.f32.mrf.mxu0
        %v1719 = vadd.f32 %v1446, %v1718
        %v1720 = vpop.f32.mrf.mxu0
        %v1721 = vadd.f32 %v1448, %v1720
        %v1722 = vpop.f32.mrf.mxu0
        %v1723 = vadd.f32 %v1450, %v1722
        %1724 = vmatprep.mubr.bf16.mxu0 %v1292
        %1725 = vmatmul.mubr.bf16.gmra.mxu0 %v862
        %v1726 = vpop.f32.mrf.mxu0
        %v1727 = vadd.f32 %v1454, %v1726
        %v1728 = vpop.f32.mrf.mxu0
        %v1729 = vadd.f32 %v1456, %v1728
        %v1730 = vpop.f32.mrf.mxu0
        %v1731 = vadd.f32 %v1458, %v1730
        %v1732 = vpop.f32.mrf.mxu0
        %v1733 = vadd.f32 %v1460, %v1732
        %1734 = vmatprep.mubr.bf16.mxu0 %v1295
        %1735 = vmatmul.mubr.bf16.gmra.mxu0 %v866
        %v1736 = vpop.f32.mrf.mxu0
        %v1737 = vadd.f32 %v1464, %v1736
        %v1738 = vpop.f32.mrf.mxu0
        %v1739 = vadd.f32 %v1466, %v1738
        %v1740 = vpop.f32.mrf.mxu0
        %v1741 = vadd.f32 %v1468, %v1740
        %v1742 = vpop.f32.mrf.mxu0
        %v1743 = vadd.f32 %v1470, %v1742
        %1744 = vmatprep.mubr.bf16.mxu0 %v1298
        %1745 = vmatmul.mubr.bf16.gmra.mxu0 %v870
        %v1746 = vpop.f32.mrf.mxu0
        %v1747 = vadd.f32 %v1474, %v1746
        %v1748 = vpop.f32.mrf.mxu0
        %v1749 = vadd.f32 %v1476, %v1748
        %v1750 = vpop.f32.mrf.mxu0
        %v1751 = vadd.f32 %v1478, %v1750
        %v1752 = vpop.f32.mrf.mxu0
        %v1753 = vadd.f32 %v1480, %v1752
        %1754 = vmatprep.mubr.bf16.mxu0 %v1301
        %1755 = vmatmul.mubr.bf16.gmra.mxu0 %v874
        %v1756 = vpop.f32.mrf.mxu0
        %v1757 = vadd.f32 %v1484, %v1756
        %v1758 = vpop.f32.mrf.mxu0
        %v1759 = vadd.f32 %v1486, %v1758
        %v1760 = vpop.f32.mrf.mxu0
        %v1761 = vadd.f32 %v1488, %v1760
        %v1762 = vpop.f32.mrf.mxu0
        %v1763 = vadd.f32 %v1490, %v1762
        %1764 = vmatprep.mubr.bf16.mxu0 %v1304
        %1765 = vmatmul.mubr.bf16.gmra.mxu0 %v878
        %v1766 = vpop.f32.mrf.mxu0
        %v1767 = vadd.f32 %v1494, %v1766
        %v1768 = vpop.f32.mrf.mxu0
        %v1769 = vadd.f32 %v1496, %v1768
        %v1770 = vpop.f32.mrf.mxu0
        %v1771 = vadd.f32 %v1498, %v1770
        %v1772 = vpop.f32.mrf.mxu0
        %v1773 = vadd.f32 %v1500, %v1772
        %1774 = vmatprep.mubr.bf16.mxu0 %v1307
        %1775 = vmatmul.mubr.bf16.gmra.mxu0 %v882
        %v1776 = vpop.f32.mrf.mxu0
        %v1777 = vadd.f32 %v1504, %v1776
        %v1778 = vpop.f32.mrf.mxu0
        %v1779 = vadd.f32 %v1506, %v1778
        %v1780 = vpop.f32.mrf.mxu0
        %v1781 = vadd.f32 %v1508, %v1780
        %v1782 = vpop.f32.mrf.mxu0
        %v1783 = vadd.f32 %v1510, %v1782
        %1784 = vmatprep.mubr.bf16.mxu0 %v1310
        %1785 = vmatmul.mubr.bf16.gmra.mxu0 %v886
        %v1786 = vpop.f32.mrf.mxu0
        %v1787 = vadd.f32 %v1514, %v1786
        %v1788 = vpop.f32.mrf.mxu0
        %v1789 = vadd.f32 %v1516, %v1788
        %v1790 = vpop.f32.mrf.mxu0
        %v1791 = vadd.f32 %v1518, %v1790
        %v1792 = vpop.f32.mrf.mxu0
        %v1793 = vadd.f32 %v1520, %v1792
        %1794 = vmatprep.mubr.bf16.mxu0 %v1313
        %1795 = vmatmul.mubr.bf16.gmra.mxu0 %v890
        %v1796 = vpop.f32.mrf.mxu0
        %v1797 = vadd.f32 %v1524, %v1796
        %v1798 = vpop.f32.mrf.mxu0
        %v1799 = vadd.f32 %v1526, %v1798
        %v1800 = vpop.f32.mrf.mxu0
        %v1801 = vadd.f32 %v1528, %v1800
        %v1802 = vpop.f32.mrf.mxu0
        %v1803 = vadd.f32 %v1530, %v1802
        %1804 = vmatprep.mubr.bf16.mxu0 %v1316
        %1805 = vmatmul.mubr.bf16.gmra.mxu0 %v894
        %v1806 = vpop.f32.mrf.mxu0
        %v1807 = vadd.f32 %v1534, %v1806
        %v1808 = vpop.f32.mrf.mxu0
        %v1809 = vadd.f32 %v1536, %v1808
        %v1810 = vpop.f32.mrf.mxu0
        %v1811 = vadd.f32 %v1538, %v1810
        %v1812 = vpop.f32.mrf.mxu0
        %v1813 = vadd.f32 %v1540, %v1812
        %1814 = vmatprep.mubr.bf16.mxu0 %v1319
        %1815 = vmatmul.mubr.bf16.gmra.mxu0 %v898
        %v1816 = vpop.f32.mrf.mxu0
        %v1817 = vadd.f32 %v1544, %v1816
        %v1818 = vpop.f32.mrf.mxu0
        %v1819 = vadd.f32 %v1546, %v1818
        %v1820 = vpop.f32.mrf.mxu0
        %v1821 = vadd.f32 %v1548, %v1820
        %v1822 = vpop.f32.mrf.mxu0
        %v1823 = vadd.f32 %v1550, %v1822
        %1824 = vmatprep.mubr.bf16.mxu0 %v1322
        %1825 = vmatmul.mubr.bf16.gmra.mxu0 %v902
        %v1826 = vpop.f32.mrf.mxu0
        %v1827 = vadd.f32 %v1554, %v1826
        %v1828 = vpop.f32.mrf.mxu0
        %v1829 = vadd.f32 %v1556, %v1828
        %v1830 = vpop.f32.mrf.mxu0
        %v1831 = vadd.f32 %v1558, %v1830
        %v1832 = vpop.f32.mrf.mxu0
        %v1833 = vadd.f32 %v1560, %v1832
        %1834 = vmatprep.mubr.bf16.mxu0 %v1325
        %1835 = vmatmul.mubr.bf16.gmra.mxu0 %v906
        %v1836 = vpop.f32.mrf.mxu0
        %v1837 = vadd.f32 %v1564, %v1836
        %v1838 = vpop.f32.mrf.mxu0
        %v1839 = vadd.f32 %v1566, %v1838
        %v1840 = vpop.f32.mrf.mxu0
        %v1841 = vadd.f32 %v1568, %v1840
        %v1842 = vpop.f32.mrf.mxu0
        %v1843 = vadd.f32 %v1570, %v1842
        %1844 = vmatprep.mubr.bf16.mxu0 %v1328
        %1845 = vmatmul.mubr.bf16.gmra.mxu0 %v910
        %v1846 = vpop.f32.mrf.mxu0
        %v1847 = vadd.f32 %v1574, %v1846
        %v1848 = vpop.f32.mrf.mxu0
        %v1849 = vadd.f32 %v1576, %v1848
        %v1850 = vpop.f32.mrf.mxu0
        %v1851 = vadd.f32 %v1578, %v1850
        %v1852 = vpop.f32.mrf.mxu0
        %v1853 = vadd.f32 %v1580, %v1852
        %1854 = vmatprep.mubr.bf16.mxu0 %v1331
        %1855 = vmatmul.mubr.bf16.gmra.mxu0 %v914
        %v1856 = vpop.f32.mrf.mxu0
        %v1857 = vadd.f32 %v1584, %v1856
        %v1858 = vpop.f32.mrf.mxu0
        %v1859 = vadd.f32 %v1586, %v1858
        %v1860 = vpop.f32.mrf.mxu0
        %v1861 = vadd.f32 %v1588, %v1860
        %v1862 = vpop.f32.mrf.mxu0
        %v1863 = vadd.f32 %v1590, %v1862
        %1864 = vmatprep.mubr.bf16.mxu0 %v1334
        %1865 = vmatmul.mubr.bf16.gmra.mxu0 %v918
        %v1866 = vpop.f32.mrf.mxu0
        %v1867 = vadd.f32 %v1594, %v1866
        %v1868 = vpop.f32.mrf.mxu0
        %v1869 = vadd.f32 %v1596, %v1868
        %v1870 = vpop.f32.mrf.mxu0
        %v1871 = vadd.f32 %v1598, %v1870
        %v1872 = vpop.f32.mrf.mxu0
        %v1873 = vadd.f32 %v1600, %v1872
        %1874 = vmatprep.mubr.bf16.mxu0 %v1337
        %1875 = vmatmul.mubr.bf16.gmra.mxu0 %v922
        %v1876 = vpop.f32.mrf.mxu0
        %v1877 = vadd.f32 %v1604, %v1876
        %v1878 = vpop.f32.mrf.mxu0
        %v1879 = vadd.f32 %v1606, %v1878
        %v1880 = vpop.f32.mrf.mxu0
        %v1881 = vadd.f32 %v1608, %v1880
        %v1882 = vpop.f32.mrf.mxu0
        %v1883 = vadd.f32 %v1610, %v1882
        %1884 = vdwg.mxu0
        %v1981 = vunpack.c.l.b16 %v239
        %v1982 = vunpack.c.h.b16 %v239
        %v1983 = vunpack.c.l.b16 %v240
        %v1984 = vunpack.c.h.b16 %v240
        %v1985 = vunpack.c.l.b16 %v241
        %v1986 = vunpack.c.h.b16 %v241
        %v1987 = vunpack.c.l.b16 %v242
        %v1988 = vunpack.c.h.b16 %v242
        %v1989 = vunpack.c.l.b16 %v243
        %v1990 = vunpack.c.h.b16 %v243
        %v1991 = vunpack.c.l.b16 %v244
        %v1992 = vunpack.c.h.b16 %v244
        %v1993 = vunpack.c.l.b16 %v245
        %v1994 = vunpack.c.h.b16 %v245
        %v1995 = vunpack.c.l.b16 %v246
        %v1996 = vunpack.c.h.b16 %v246
        %v1997 = vunpack.c.l.b16 %v247
        %v1998 = vunpack.c.h.b16 %v247
        %v1999 = vunpack.c.l.b16 %v248
        %v2000 = vunpack.c.h.b16 %v248
        %v2001 = vunpack.c.l.b16 %v249
        %v2002 = vunpack.c.h.b16 %v249
        %v2003 = vunpack.c.l.b16 %v250
        %v2004 = vunpack.c.h.b16 %v250
        %v2005 = vunpack.c.l.b16 %v251
        %v2006 = vunpack.c.h.b16 %v251
        %v2007 = vunpack.c.l.b16 %v252
        %v2008 = vunpack.c.h.b16 %v252
        %v2009 = vunpack.c.l.b16 %v253
        %v2010 = vunpack.c.h.b16 %v253
        %v2011 = vunpack.c.l.b16 %v254
        %v2012 = vunpack.c.h.b16 %v254
        %v2013 = vunpack.c.l.b16 %v255
        %v2014 = vunpack.c.h.b16 %v255
        %v2015 = vunpack.c.l.b16 %v256
        %v2016 = vunpack.c.h.b16 %v256
        %v2017 = vunpack.c.l.b16 %v257
        %v2018 = vunpack.c.h.b16 %v257
        %v2019 = vunpack.c.l.b16 %v258
        %v2020 = vunpack.c.h.b16 %v258
        %v2021 = vunpack.c.l.b16 %v259
        %v2022 = vunpack.c.h.b16 %v259
        %v2023 = vunpack.c.l.b16 %v260
        %v2024 = vunpack.c.h.b16 %v260
        %v2025 = vunpack.c.l.b16 %v261
        %v2026 = vunpack.c.h.b16 %v261
        %v2027 = vunpack.c.l.b16 %v262
        %v2028 = vunpack.c.h.b16 %v262
        %v2029 = vunpack.c.l.b16 %v263
        %v2030 = vunpack.c.h.b16 %v263
        %v2031 = vunpack.c.l.b16 %v264
        %v2032 = vunpack.c.h.b16 %v264
        %v2033 = vunpack.c.l.b16 %v265
        %v2034 = vunpack.c.h.b16 %v265
        %v2035 = vunpack.c.l.b16 %v266
        %v2036 = vunpack.c.h.b16 %v266
        %v2037 = vunpack.c.l.b16 %v267
        %v2038 = vunpack.c.h.b16 %v267
        %v2039 = vunpack.c.l.b16 %v268
        %v2040 = vunpack.c.h.b16 %v268
        %v2041 = vunpack.c.l.b16 %v269
        %v2042 = vunpack.c.h.b16 %v269
        %v2043 = vunpack.c.l.b16 %v270
        %v2044 = vunpack.c.h.b16 %v270
        %v2045 = vunpack.c.l.b16 %v271
        %v2046 = vunpack.c.h.b16 %v271
        %v2047 = vunpack.c.l.b16 %v272
        %v2048 = vunpack.c.h.b16 %v272
        %v2049 = vunpack.c.l.b16 %v273
        %v2050 = vunpack.c.h.b16 %v273
        %v2051 = vunpack.c.l.b16 %v274
        %v2052 = vunpack.c.h.b16 %v274
        %v2053 = vunpack.c.l.b16 %v275
        %v2054 = vunpack.c.h.b16 %v275
        %v2055 = vunpack.c.l.b16 %v276
        %v2056 = vunpack.c.h.b16 %v276
        %v2057 = vunpack.c.l.b16 %v277
        %v2058 = vunpack.c.h.b16 %v277
        %v2059 = vunpack.c.l.b16 %v278
        %v2060 = vunpack.c.h.b16 %v278
        %v2061 = vunpack.c.l.b16 %v279
        %v2062 = vunpack.c.h.b16 %v279
        %v2063 = vunpack.c.l.b16 %v280
        %v2064 = vunpack.c.h.b16 %v280
        %v2065 = vunpack.c.l.b16 %v281
        %v2066 = vunpack.c.h.b16 %v281
        %v2067 = vunpack.c.l.b16 %v282
        %v2068 = vunpack.c.h.b16 %v282
        %v2069 = vunpack.c.l.b16 %v283
        %v2070 = vunpack.c.h.b16 %v283
        %v2071 = vunpack.c.l.b16 %v284
        %v2072 = vunpack.c.h.b16 %v284
        %v2073 = vunpack.c.l.b16 %v285
        %v2074 = vunpack.c.h.b16 %v285
        %v2075 = vunpack.c.l.b16 %v286
        %v2076 = vunpack.c.h.b16 %v286
        %v2077 = vunpack.c.l.b16 %v287
        %v2078 = vunpack.c.h.b16 %v287
        %v2079 = vunpack.c.l.b16 %v288
        %v2080 = vunpack.c.h.b16 %v288
        %v2081 = vunpack.c.l.b16 %v289
        %v2082 = vunpack.c.h.b16 %v289
        %v2083 = vunpack.c.l.b16 %v290
        %v2084 = vunpack.c.h.b16 %v290
        %v2085 = vunpack.c.l.b16 %v291
        %v2086 = vunpack.c.h.b16 %v291
        %v2087 = vunpack.c.l.b16 %v292
        %v2088 = vunpack.c.h.b16 %v292
        %v2089 = vunpack.c.l.b16 %v293
        %v2090 = vunpack.c.h.b16 %v293
        %v2091 = vunpack.c.l.b16 %v294
        %v2092 = vunpack.c.h.b16 %v294
        %v2093 = vunpack.c.l.b16 %v295
        %v2094 = vunpack.c.h.b16 %v295
        %v2095 = vunpack.c.l.b16 %v296
        %v2096 = vunpack.c.h.b16 %v296
        %v2097 = vunpack.c.l.b16 %v297
        %v2098 = vunpack.c.h.b16 %v297
        %v2099 = vunpack.c.l.b16 %v298
        %v2100 = vunpack.c.h.b16 %v298
        %v2101 = vunpack.c.l.b16 %v299
        %v2102 = vunpack.c.h.b16 %v299
        %v2103 = vunpack.c.l.b16 %v300
        %v2104 = vunpack.c.h.b16 %v300
        %v2105 = vunpack.c.l.b16 %v301
        %v2106 = vunpack.c.h.b16 %v301
        %v2107 = vunpack.c.l.b16 %v302
        %v2108 = vunpack.c.h.b16 %v302
        %v2109 = vunpack.c.l.b16 %v303
        %v2110 = vunpack.c.h.b16 %v303
        %v2111 = vunpack.c.l.b16 %v304
        %v2112 = vunpack.c.h.b16 %v304
        %v2113 = vunpack.c.l.b16 %v305
        %v2114 = vunpack.c.h.b16 %v305
        %v2115 = vunpack.c.l.b16 %v306
        %v2116 = vunpack.c.h.b16 %v306
        %v2117 = vunpack.c.l.b16 %v307
        %v2118 = vunpack.c.h.b16 %v307
        %v2119 = vunpack.c.l.b16 %v308
        %v2120 = vunpack.c.h.b16 %v308
        %v2121 = vunpack.c.l.b16 %v309
        %v2122 = vunpack.c.h.b16 %v309
        %v2123 = vunpack.c.l.b16 %v310
        %v2124 = vunpack.c.h.b16 %v310
        %v2125 = vunpack.c.l.b16 %v311
        %v2126 = vunpack.c.h.b16 %v311
        %v2127 = vunpack.c.l.b16 %v312
        %v2128 = vunpack.c.h.b16 %v312
        %v2129 = vunpack.c.l.b16 %v313
        %v2130 = vunpack.c.h.b16 %v313
        %v2131 = vunpack.c.l.b16 %v314
        %v2132 = vunpack.c.h.b16 %v314
        %v2133 = vunpack.c.l.b16 %v315
        %v2134 = vunpack.c.h.b16 %v315
        %v2135 = vunpack.c.l.b16 %v316
        %v2136 = vunpack.c.h.b16 %v316
        %v2137 = vunpack.c.l.b16 %v317
        %v2138 = vunpack.c.h.b16 %v317
        %v2139 = vunpack.c.l.b16 %v318
        %v2140 = vunpack.c.h.b16 %v318
        %v2141 = vunpack.c.l.b16 %v319
        %v2142 = vunpack.c.h.b16 %v319
        %v2143 = vunpack.c.l.b16 %v320
        %v2144 = vunpack.c.h.b16 %v320
        %v2145 = vunpack.c.l.b16 %v321
        %v2146 = vunpack.c.h.b16 %v321
        %v2147 = vunpack.c.l.b16 %v322
        %v2148 = vunpack.c.h.b16 %v322
        %v2149 = vunpack.c.l.b16 %v323
        %v2150 = vunpack.c.h.b16 %v323
        %v2151 = vunpack.c.l.b16 %v324
        %v2152 = vunpack.c.h.b16 %v324
        %v2153 = vunpack.c.l.b16 %v325
        %v2154 = vunpack.c.h.b16 %v325
        %v2155 = vunpack.c.l.b16 %v326
        %v2156 = vunpack.c.h.b16 %v326
        %v2157 = vunpack.c.l.b16 %v327
        %v2158 = vunpack.c.h.b16 %v327
        %v2159 = vunpack.c.l.b16 %v328
        %v2160 = vunpack.c.h.b16 %v328
        %v2161 = vunpack.c.l.b16 %v329
        %v2162 = vunpack.c.h.b16 %v329
        %v2163 = vunpack.c.l.b16 %v330
        %v2164 = vunpack.c.h.b16 %v330
        %v2165 = vunpack.c.l.b16 %v331
        %v2166 = vunpack.c.h.b16 %v331
        %v2167 = vunpack.c.l.b16 %v332
        %v2168 = vunpack.c.h.b16 %v332
        %v2169 = vunpack.c.l.b16 %v333
        %v2170 = vunpack.c.h.b16 %v333
        %v2171 = vunpack.c.l.b16 %v334
        %v2172 = vunpack.c.h.b16 %v334
        %v2173 = vpack.c.b16 %v1985, %v1981
        %v2174 = vpack.c.b16 %v1986, %v1982
        %v2175 = vpack.c.b16 %v1987, %v1983
        %v2176 = vpack.c.b16 %v1988, %v1984
        %v2177 = vpack.c.b16 %v1993, %v1989
        %v2178 = vpack.c.b16 %v1994, %v1990
        %v2179 = vpack.c.b16 %v1995, %v1991
        %v2180 = vpack.c.b16 %v1996, %v1992
        %v2181 = vpack.c.b16 %v2001, %v1997
        %v2182 = vpack.c.b16 %v2002, %v1998
        %v2183 = vpack.c.b16 %v2003, %v1999
        %v2184 = vpack.c.b16 %v2004, %v2000
        %v2185 = vpack.c.b16 %v2009, %v2005
        %v2186 = vpack.c.b16 %v2010, %v2006
        %v2187 = vpack.c.b16 %v2011, %v2007
        %v2188 = vpack.c.b16 %v2012, %v2008
        %v2189 = vpack.c.b16 %v2017, %v2013
        %v2190 = vpack.c.b16 %v2018, %v2014
        %v2191 = vpack.c.b16 %v2019, %v2015
        %v2192 = vpack.c.b16 %v2020, %v2016
        %v2193 = vpack.c.b16 %v2025, %v2021
        %v2194 = vpack.c.b16 %v2026, %v2022
        %v2195 = vpack.c.b16 %v2027, %v2023
        %v2196 = vpack.c.b16 %v2028, %v2024
        %v2197 = vpack.c.b16 %v2033, %v2029
        %v2198 = vpack.c.b16 %v2034, %v2030
        %v2199 = vpack.c.b16 %v2035, %v2031
        %v2200 = vpack.c.b16 %v2036, %v2032
        %v2201 = vpack.c.b16 %v2041, %v2037
        %v2202 = vpack.c.b16 %v2042, %v2038
        %v2203 = vpack.c.b16 %v2043, %v2039
        %v2204 = vpack.c.b16 %v2044, %v2040
        %v2205 = vpack.c.b16 %v2049, %v2045
        %v2206 = vpack.c.b16 %v2050, %v2046
        %v2207 = vpack.c.b16 %v2051, %v2047
        %v2208 = vpack.c.b16 %v2052, %v2048
        %v2209 = vpack.c.b16 %v2057, %v2053
        %v2210 = vpack.c.b16 %v2058, %v2054
        %v2211 = vpack.c.b16 %v2059, %v2055
        %v2212 = vpack.c.b16 %v2060, %v2056
        %v2213 = vpack.c.b16 %v2065, %v2061
        %v2214 = vpack.c.b16 %v2066, %v2062
        %v2215 = vpack.c.b16 %v2067, %v2063
        %v2216 = vpack.c.b16 %v2068, %v2064
        %v2217 = vpack.c.b16 %v2073, %v2069
        %v2218 = vpack.c.b16 %v2074, %v2070
        %v2219 = vpack.c.b16 %v2075, %v2071
        %v2220 = vpack.c.b16 %v2076, %v2072
        %v2221 = vpack.c.b16 %v2081, %v2077
        %v2222 = vpack.c.b16 %v2082, %v2078
        %v2223 = vpack.c.b16 %v2083, %v2079
        %v2224 = vpack.c.b16 %v2084, %v2080
        %v2225 = vpack.c.b16 %v2089, %v2085
        %v2226 = vpack.c.b16 %v2090, %v2086
        %v2227 = vpack.c.b16 %v2091, %v2087
        %v2228 = vpack.c.b16 %v2092, %v2088
        %v2229 = vpack.c.b16 %v2097, %v2093
        %v2230 = vpack.c.b16 %v2098, %v2094
        %v2231 = vpack.c.b16 %v2099, %v2095
        %v2232 = vpack.c.b16 %v2100, %v2096
        %v2233 = vpack.c.b16 %v2105, %v2101
        %v2234 = vpack.c.b16 %v2106, %v2102
        %v2235 = vpack.c.b16 %v2107, %v2103
        %v2236 = vpack.c.b16 %v2108, %v2104
        %v2237 = vpack.c.b16 %v2113, %v2109
        %v2238 = vpack.c.b16 %v2114, %v2110
        %v2239 = vpack.c.b16 %v2115, %v2111
        %v2240 = vpack.c.b16 %v2116, %v2112
        %v2241 = vpack.c.b16 %v2121, %v2117
        %v2242 = vpack.c.b16 %v2122, %v2118
        %v2243 = vpack.c.b16 %v2123, %v2119
        %v2244 = vpack.c.b16 %v2124, %v2120
        %v2245 = vpack.c.b16 %v2129, %v2125
        %v2246 = vpack.c.b16 %v2130, %v2126
        %v2247 = vpack.c.b16 %v2131, %v2127
        %v2248 = vpack.c.b16 %v2132, %v2128
        %v2249 = vpack.c.b16 %v2137, %v2133
        %v2250 = vpack.c.b16 %v2138, %v2134
        %v2251 = vpack.c.b16 %v2139, %v2135
        %v2252 = vpack.c.b16 %v2140, %v2136
        %v2253 = vpack.c.b16 %v2145, %v2141
        %v2254 = vpack.c.b16 %v2146, %v2142
        %v2255 = vpack.c.b16 %v2147, %v2143
        %v2256 = vpack.c.b16 %v2148, %v2144
        %v2257 = vpack.c.b16 %v2153, %v2149
        %v2258 = vpack.c.b16 %v2154, %v2150
        %v2259 = vpack.c.b16 %v2155, %v2151
        %v2260 = vpack.c.b16 %v2156, %v2152
        %v2261 = vpack.c.b16 %v2161, %v2157
        %v2262 = vpack.c.b16 %v2162, %v2158
        %v2263 = vpack.c.b16 %v2163, %v2159
        %v2264 = vpack.c.b16 %v2164, %v2160
        %v2265 = vpack.c.b16 %v2169, %v2165
        %v2266 = vpack.c.b16 %v2170, %v2166
        %v2267 = vpack.c.b16 %v2171, %v2167
        %v2268 = vpack.c.b16 %v2172, %v2168
        %v2395 = vunpack.c.l.b16 %v335
        %v2396 = vunpack.c.h.b16 %v335
        %v2397 = vunpack.c.l.b16 %v336
        %v2398 = vunpack.c.h.b16 %v336
        %v2399 = vunpack.c.l.b16 %v337
        %v2400 = vunpack.c.h.b16 %v337
        %v2401 = vunpack.c.l.b16 %v338
        %v2402 = vunpack.c.h.b16 %v338
        %v2403 = vunpack.c.l.b16 %v339
        %v2404 = vunpack.c.h.b16 %v339
        %v2405 = vunpack.c.l.b16 %v340
        %v2406 = vunpack.c.h.b16 %v340
        %v2407 = vunpack.c.l.b16 %v341
        %v2408 = vunpack.c.h.b16 %v341
        %v2409 = vunpack.c.l.b16 %v342
        %v2410 = vunpack.c.h.b16 %v342
        %v2411 = vunpack.c.l.b16 %v343
        %v2412 = vunpack.c.h.b16 %v343
        %v2413 = vunpack.c.l.b16 %v344
        %v2414 = vunpack.c.h.b16 %v344
        %v2415 = vunpack.c.l.b16 %v345
        %v2416 = vunpack.c.h.b16 %v345
        %v2417 = vunpack.c.l.b16 %v346
        %v2418 = vunpack.c.h.b16 %v346
        %v2419 = vunpack.c.l.b16 %v347
        %v2420 = vunpack.c.h.b16 %v347
        %v2421 = vunpack.c.l.b16 %v348
        %v2422 = vunpack.c.h.b16 %v348
        %v2423 = vunpack.c.l.b16 %v349
        %v2424 = vunpack.c.h.b16 %v349
        %v2425 = vunpack.c.l.b16 %v350
        %v2426 = vunpack.c.h.b16 %v350
        %v2427 = vunpack.c.l.b16 %v351
        %v2428 = vunpack.c.h.b16 %v351
        %v2429 = vunpack.c.l.b16 %v352
        %v2430 = vunpack.c.h.b16 %v352
        %v2431 = vunpack.c.l.b16 %v353
        %v2432 = vunpack.c.h.b16 %v353
        %v2433 = vunpack.c.l.b16 %v354
        %v2434 = vunpack.c.h.b16 %v354
        %v2435 = vunpack.c.l.b16 %v355
        %v2436 = vunpack.c.h.b16 %v355
        %v2437 = vunpack.c.l.b16 %v356
        %v2438 = vunpack.c.h.b16 %v356
        %v2439 = vunpack.c.l.b16 %v357
        %v2440 = vunpack.c.h.b16 %v357
        %v2441 = vunpack.c.l.b16 %v358
        %v2442 = vunpack.c.h.b16 %v358
        %v2443 = vunpack.c.l.b16 %v359
        %v2444 = vunpack.c.h.b16 %v359
        %v2445 = vunpack.c.l.b16 %v360
        %v2446 = vunpack.c.h.b16 %v360
        %v2447 = vunpack.c.l.b16 %v361
        %v2448 = vunpack.c.h.b16 %v361
        %v2449 = vunpack.c.l.b16 %v362
        %v2450 = vunpack.c.h.b16 %v362
        %v2451 = vunpack.c.l.b16 %v363
        %v2452 = vunpack.c.h.b16 %v363
        %v2453 = vunpack.c.l.b16 %v364
        %v2454 = vunpack.c.h.b16 %v364
        %v2455 = vunpack.c.l.b16 %v365
        %v2456 = vunpack.c.h.b16 %v365
        %v2457 = vunpack.c.l.b16 %v366
        %v2458 = vunpack.c.h.b16 %v366
        %v2459 = vunpack.c.l.b16 %v367
        %v2460 = vunpack.c.h.b16 %v367
        %v2461 = vunpack.c.l.b16 %v368
        %v2462 = vunpack.c.h.b16 %v368
        %v2463 = vunpack.c.l.b16 %v369
        %v2464 = vunpack.c.h.b16 %v369
        %v2465 = vunpack.c.l.b16 %v370
        %v2466 = vunpack.c.h.b16 %v370
        %v2467 = vunpack.c.l.b16 %v371
        %v2468 = vunpack.c.h.b16 %v371
        %v2469 = vunpack.c.l.b16 %v372
        %v2470 = vunpack.c.h.b16 %v372
        %v2471 = vunpack.c.l.b16 %v373
        %v2472 = vunpack.c.h.b16 %v373
        %v2473 = vunpack.c.l.b16 %v374
        %v2474 = vunpack.c.h.b16 %v374
        %v2475 = vunpack.c.l.b16 %v375
        %v2476 = vunpack.c.h.b16 %v375
        %v2477 = vunpack.c.l.b16 %v376
        %v2478 = vunpack.c.h.b16 %v376
        %v2479 = vunpack.c.l.b16 %v377
        %v2480 = vunpack.c.h.b16 %v377
        %v2481 = vunpack.c.l.b16 %v378
        %v2482 = vunpack.c.h.b16 %v378
        %v2483 = vunpack.c.l.b16 %v379
        %v2484 = vunpack.c.h.b16 %v379
        %v2485 = vunpack.c.l.b16 %v380
        %v2486 = vunpack.c.h.b16 %v380
        %v2487 = vunpack.c.l.b16 %v381
        %v2488 = vunpack.c.h.b16 %v381
        %v2489 = vunpack.c.l.b16 %v382
        %v2490 = vunpack.c.h.b16 %v382
        %v2491 = vunpack.c.l.b16 %v383
        %v2492 = vunpack.c.h.b16 %v383
        %v2493 = vunpack.c.l.b16 %v384
        %v2494 = vunpack.c.h.b16 %v384
        %v2495 = vunpack.c.l.b16 %v385
        %v2496 = vunpack.c.h.b16 %v385
        %v2497 = vunpack.c.l.b16 %v386
        %v2498 = vunpack.c.h.b16 %v386
        %v2499 = vunpack.c.l.b16 %v387
        %v2500 = vunpack.c.h.b16 %v387
        %v2501 = vunpack.c.l.b16 %v388
        %v2502 = vunpack.c.h.b16 %v388
        %v2503 = vpack.c.b16 %v2397, %v2395
        %v2504 = vpack.c.b16 %v2398, %v2396
        %v2505 = vpack.c.b16 %v2401, %v2399
        %v2506 = vpack.c.b16 %v2402, %v2400
        %v2507 = vpack.c.b16 %v2405, %v2403
        %v2508 = vpack.c.b16 %v2406, %v2404
        %v2509 = vpack.c.b16 %v2409, %v2407
        %v2510 = vpack.c.b16 %v2410, %v2408
        %v2511 = vpack.c.b16 %v2413, %v2411
        %v2512 = vpack.c.b16 %v2414, %v2412
        %v2513 = vpack.c.b16 %v2417, %v2415
        %v2514 = vpack.c.b16 %v2418, %v2416
        %v2515 = vpack.c.b16 %v2421, %v2419
        %v2516 = vpack.c.b16 %v2422, %v2420
        %v2517 = vpack.c.b16 %v2425, %v2423
        %v2518 = vpack.c.b16 %v2426, %v2424
        %v2519 = vpack.c.b16 %v2429, %v2427
        %v2520 = vpack.c.b16 %v2430, %v2428
        %v2521 = vpack.c.b16 %v2433, %v2431
        %v2522 = vpack.c.b16 %v2434, %v2432
        %v2523 = vpack.c.b16 %v2437, %v2435
        %v2524 = vpack.c.b16 %v2438, %v2436
        %v2525 = vpack.c.b16 %v2441, %v2439
        %v2526 = vpack.c.b16 %v2442, %v2440
        %v2527 = vpack.c.b16 %v2445, %v2443
        %v2528 = vpack.c.b16 %v2446, %v2444
        %v2529 = vpack.c.b16 %v2449, %v2447
        %v2530 = vpack.c.b16 %v2450, %v2448
        %v2531 = vpack.c.b16 %v2453, %v2451
        %v2532 = vpack.c.b16 %v2454, %v2452
        %v2533 = vpack.c.b16 %v2457, %v2455
        %v2534 = vpack.c.b16 %v2458, %v2456
        %v2535 = vpack.c.b16 %v2461, %v2459
        %v2536 = vpack.c.b16 %v2462, %v2460
        %v2537 = vpack.c.b16 %v2465, %v2463
        %v2538 = vpack.c.b16 %v2466, %v2464
        %v2539 = vpack.c.b16 %v2469, %v2467
        %v2540 = vpack.c.b16 %v2470, %v2468
        %v2541 = vpack.c.b16 %v2473, %v2471
        %v2542 = vpack.c.b16 %v2474, %v2472
        %v2543 = vpack.c.b16 %v2477, %v2475
        %v2544 = vpack.c.b16 %v2478, %v2476
        %v2545 = vpack.c.b16 %v2481, %v2479
        %v2546 = vpack.c.b16 %v2482, %v2480
        %v2547 = vpack.c.b16 %v2485, %v2483
        %v2548 = vpack.c.b16 %v2486, %v2484
        %v2549 = vpack.c.b16 %v2489, %v2487
        %v2550 = vpack.c.b16 %v2490, %v2488
        %v2551 = vpack.c.b16 %v2493, %v2491
        %v2552 = vpack.c.b16 %v2494, %v2492
        %v2553 = vpack.c.b16 %v2497, %v2495
        %v2554 = vpack.c.b16 %v2498, %v2496
        %v2555 = vpack.c.b16 %v2501, %v2499
        %v2556 = vpack.c.b16 %v2502, %v2500
        %v2612 = vsel %vm1266, %v2176, 0
        %v2615 = vsel %vm1266, %v2180, 0
        %v2618 = vsel %vm1266, %v2184, 0
        %v2621 = vsel %vm1266, %v2188, 0
        %v2624 = vsel %vm1266, %v2192, 0
        %v2627 = vsel %vm1266, %v2196, 0
        %v2630 = vsel %vm1266, %v2200, 0
        %v2633 = vsel %vm1266, %v2204, 0
        %v2636 = vsel %vm1266, %v2208, 0
        %v2639 = vsel %vm1266, %v2212, 0
        %v2642 = vsel %vm1266, %v2216, 0
        %v2645 = vsel %vm1266, %v2220, 0
        %v2648 = vsel %vm1266, %v2224, 0
        %v2651 = vsel %vm1266, %v2228, 0
        %v2654 = vsel %vm1266, %v2232, 0
        %v2657 = vsel %vm1266, %v2236, 0
        %v2660 = vsel %vm1266, %v2240, 0
        %v2663 = vsel %vm1266, %v2244, 0
        %v2666 = vsel %vm1266, %v2248, 0
        %v2669 = vsel %vm1266, %v2252, 0
        %v2672 = vsel %vm1266, %v2256, 0
        %v2675 = vsel %vm1266, %v2260, 0
        %v2678 = vsel %vm1266, %v2264, 0
        %v2681 = vsel %vm1266, %v2268, 0
        %2683 = vmatprep.subr.bf16.mxu0 %v2518
        %2684 = vmatpush1.bf16.msra.mxu0 %v2517
        %2685 = vmatprep.subr.bf16.mxu0 %v2516
        %2686 = vmatpush1.bf16.msra.mxu0 %v2515
        %2687 = vmatprep.subr.bf16.mxu0 %v2514
        %2688 = vmatpush1.bf16.msra.mxu0 %v2513
        %2689 = vmatprep.subr.bf16.mxu0 %v2512
        %2690 = vmatpush1.bf16.msra.mxu0 %v2511
        %2691 = vmatprep.subr.bf16.mxu0 %v2510
        %2692 = vmatpush1.bf16.msra.mxu0 %v2509
        %2693 = vmatprep.subr.bf16.mxu0 %v2508
        %2694 = vmatpush1.bf16.msra.mxu0 %v2507
        %2695 = vmatprep.subr.bf16.mxu0 %v2506
        %2696 = vmatpush1.bf16.msra.mxu0 %v2505
        %2697 = vmatprep.subr.bf16.mxu0 %v2504
        %2698 = vmatpush1.bf16.msra.mxu0 %v2503
        %2699 = vmatprep.subr.bf16.mxu0 %v2534
        %2700 = vmatpush2.bf16.msra.mxu0 %v2533
        %2701 = vmatprep.subr.bf16.mxu0 %v2532
        %2702 = vmatpush2.bf16.msra.mxu0 %v2531
        %2703 = vmatprep.subr.bf16.mxu0 %v2530
        %2704 = vmatpush2.bf16.msra.mxu0 %v2529
        %2705 = vmatprep.subr.bf16.mxu0 %v2528
        %2706 = vmatpush2.bf16.msra.mxu0 %v2527
        %2707 = vmatprep.subr.bf16.mxu0 %v2526
        %2708 = vmatpush2.bf16.msra.mxu0 %v2525
        %2709 = vmatprep.subr.bf16.mxu0 %v2524
        %2710 = vmatpush2.bf16.msra.mxu0 %v2523
        %2711 = vmatprep.subr.bf16.mxu0 %v2522
        %2712 = vmatpush2.bf16.msra.mxu0 %v2521
        %2713 = vmatprep.subr.bf16.mxu0 %v2520
        %2714 = vmatpush2.bf16.msra.mxu0 %v2519
        %2715 = vmatprep.mubr.bf16.mxu0 %v2174
        %2716 = vmatmul.mubr.bf16.gmra.mxu0 %v2173
        %v2717 = vpop.f32.mrf.mxu0
        %v2718 = vadd.f32 %v1647, %v2717
        %v2719 = vpop.f32.mrf.mxu0
        %v2720 = vadd.f32 %v1649, %v2719
        %v2721 = vpop.f32.mrf.mxu0
        %v2722 = vadd.f32 %v1651, %v2721
        %v2723 = vpop.f32.mrf.mxu0
        %v2724 = vadd.f32 %v1653, %v2723
        %2725 = vmatprep.mubr.bf16.mxu0 %v2178
        %2726 = vmatmul.mubr.bf16.gmra.mxu0 %v2177
        %v2727 = vpop.f32.mrf.mxu0
        %v2728 = vadd.f32 %v1657, %v2727
        %v2729 = vpop.f32.mrf.mxu0
        %v2730 = vadd.f32 %v1659, %v2729
        %v2731 = vpop.f32.mrf.mxu0
        %v2732 = vadd.f32 %v1661, %v2731
        %v2733 = vpop.f32.mrf.mxu0
        %v2734 = vadd.f32 %v1663, %v2733
        %2735 = vmatprep.mubr.bf16.mxu0 %v2182
        %2736 = vmatmul.mubr.bf16.gmra.mxu0 %v2181
        %v2737 = vpop.f32.mrf.mxu0
        %v2738 = vadd.f32 %v1667, %v2737
        %v2739 = vpop.f32.mrf.mxu0
        %v2740 = vadd.f32 %v1669, %v2739
        %v2741 = vpop.f32.mrf.mxu0
        %v2742 = vadd.f32 %v1671, %v2741
        %v2743 = vpop.f32.mrf.mxu0
        %v2744 = vadd.f32 %v1673, %v2743
        %2745 = vmatprep.mubr.bf16.mxu0 %v2186
        %2746 = vmatmul.mubr.bf16.gmra.mxu0 %v2185
        %v2747 = vpop.f32.mrf.mxu0
        %v2748 = vadd.f32 %v1677, %v2747
        %v2749 = vpop.f32.mrf.mxu0
        %v2750 = vadd.f32 %v1679, %v2749
        %v2751 = vpop.f32.mrf.mxu0
        %v2752 = vadd.f32 %v1681, %v2751
        %v2753 = vpop.f32.mrf.mxu0
        %v2754 = vadd.f32 %v1683, %v2753
        %2755 = vmatprep.mubr.bf16.mxu0 %v2190
        %2756 = vmatmul.mubr.bf16.gmra.mxu0 %v2189
        %v2757 = vpop.f32.mrf.mxu0
        %v2758 = vadd.f32 %v1687, %v2757
        %v2759 = vpop.f32.mrf.mxu0
        %v2760 = vadd.f32 %v1689, %v2759
        %v2761 = vpop.f32.mrf.mxu0
        %v2762 = vadd.f32 %v1691, %v2761
        %v2763 = vpop.f32.mrf.mxu0
        %v2764 = vadd.f32 %v1693, %v2763
        %2765 = vmatprep.mubr.bf16.mxu0 %v2194
        %2766 = vmatmul.mubr.bf16.gmra.mxu0 %v2193
        %v2767 = vpop.f32.mrf.mxu0
        %v2768 = vadd.f32 %v1697, %v2767
        %v2769 = vpop.f32.mrf.mxu0
        %v2770 = vadd.f32 %v1699, %v2769
        %v2771 = vpop.f32.mrf.mxu0
        %v2772 = vadd.f32 %v1701, %v2771
        %v2773 = vpop.f32.mrf.mxu0
        %v2774 = vadd.f32 %v1703, %v2773
        %2775 = vmatprep.mubr.bf16.mxu0 %v2198
        %2776 = vmatmul.mubr.bf16.gmra.mxu0 %v2197
        %v2777 = vpop.f32.mrf.mxu0
        %v2778 = vadd.f32 %v1707, %v2777
        %v2779 = vpop.f32.mrf.mxu0
        %v2780 = vadd.f32 %v1709, %v2779
        %v2781 = vpop.f32.mrf.mxu0
        %v2782 = vadd.f32 %v1711, %v2781
        %v2783 = vpop.f32.mrf.mxu0
        %v2784 = vadd.f32 %v1713, %v2783
        %2785 = vmatprep.mubr.bf16.mxu0 %v2202
        %2786 = vmatmul.mubr.bf16.gmra.mxu0 %v2201
        %v2787 = vpop.f32.mrf.mxu0
        %v2788 = vadd.f32 %v1717, %v2787
        %v2789 = vpop.f32.mrf.mxu0
        %v2790 = vadd.f32 %v1719, %v2789
        %v2791 = vpop.f32.mrf.mxu0
        %v2792 = vadd.f32 %v1721, %v2791
        %v2793 = vpop.f32.mrf.mxu0
        %v2794 = vadd.f32 %v1723, %v2793
        %2795 = vmatprep.mubr.bf16.mxu0 %v2206
        %2796 = vmatmul.mubr.bf16.gmra.mxu0 %v2205
        %v2797 = vpop.f32.mrf.mxu0
        %v2798 = vadd.f32 %v1727, %v2797
        %v2799 = vpop.f32.mrf.mxu0
        %v2800 = vadd.f32 %v1729, %v2799
        %v2801 = vpop.f32.mrf.mxu0
        %v2802 = vadd.f32 %v1731, %v2801
        %v2803 = vpop.f32.mrf.mxu0
        %v2804 = vadd.f32 %v1733, %v2803
        %2805 = vmatprep.mubr.bf16.mxu0 %v2210
        %2806 = vmatmul.mubr.bf16.gmra.mxu0 %v2209
        %v2807 = vpop.f32.mrf.mxu0
        %v2808 = vadd.f32 %v1737, %v2807
        %v2809 = vpop.f32.mrf.mxu0
        %v2810 = vadd.f32 %v1739, %v2809
        %v2811 = vpop.f32.mrf.mxu0
        %v2812 = vadd.f32 %v1741, %v2811
        %v2813 = vpop.f32.mrf.mxu0
        %v2814 = vadd.f32 %v1743, %v2813
        %2815 = vmatprep.mubr.bf16.mxu0 %v2214
        %2816 = vmatmul.mubr.bf16.gmra.mxu0 %v2213
        %v2817 = vpop.f32.mrf.mxu0
        %v2818 = vadd.f32 %v1747, %v2817
        %v2819 = vpop.f32.mrf.mxu0
        %v2820 = vadd.f32 %v1749, %v2819
        %v2821 = vpop.f32.mrf.mxu0
        %v2822 = vadd.f32 %v1751, %v2821
        %v2823 = vpop.f32.mrf.mxu0
        %v2824 = vadd.f32 %v1753, %v2823
        %2825 = vmatprep.mubr.bf16.mxu0 %v2218
        %2826 = vmatmul.mubr.bf16.gmra.mxu0 %v2217
        %v2827 = vpop.f32.mrf.mxu0
        %v2828 = vadd.f32 %v1757, %v2827
        %v2829 = vpop.f32.mrf.mxu0
        %v2830 = vadd.f32 %v1759, %v2829
        %v2831 = vpop.f32.mrf.mxu0
        %v2832 = vadd.f32 %v1761, %v2831
        %v2833 = vpop.f32.mrf.mxu0
        %v2834 = vadd.f32 %v1763, %v2833
        %2835 = vmatprep.mubr.bf16.mxu0 %v2222
        %2836 = vmatmul.mubr.bf16.gmra.mxu0 %v2221
        %v2837 = vpop.f32.mrf.mxu0
        %v2838 = vadd.f32 %v1767, %v2837
        %v2839 = vpop.f32.mrf.mxu0
        %v2840 = vadd.f32 %v1769, %v2839
        %v2841 = vpop.f32.mrf.mxu0
        %v2842 = vadd.f32 %v1771, %v2841
        %v2843 = vpop.f32.mrf.mxu0
        %v2844 = vadd.f32 %v1773, %v2843
        %2845 = vmatprep.mubr.bf16.mxu0 %v2226
        %2846 = vmatmul.mubr.bf16.gmra.mxu0 %v2225
        %v2847 = vpop.f32.mrf.mxu0
        %v2848 = vadd.f32 %v1777, %v2847
        %v2849 = vpop.f32.mrf.mxu0
        %v2850 = vadd.f32 %v1779, %v2849
        %v2851 = vpop.f32.mrf.mxu0
        %v2852 = vadd.f32 %v1781, %v2851
        %v2853 = vpop.f32.mrf.mxu0
        %v2854 = vadd.f32 %v1783, %v2853
        %2855 = vmatprep.mubr.bf16.mxu0 %v2230
        %2856 = vmatmul.mubr.bf16.gmra.mxu0 %v2229
        %v2857 = vpop.f32.mrf.mxu0
        %v2858 = vadd.f32 %v1787, %v2857
        %v2859 = vpop.f32.mrf.mxu0
        %v2860 = vadd.f32 %v1789, %v2859
        %v2861 = vpop.f32.mrf.mxu0
        %v2862 = vadd.f32 %v1791, %v2861
        %v2863 = vpop.f32.mrf.mxu0
        %v2864 = vadd.f32 %v1793, %v2863
        %2865 = vmatprep.mubr.bf16.mxu0 %v2234
        %2866 = vmatmul.mubr.bf16.gmra.mxu0 %v2233
        %v2867 = vpop.f32.mrf.mxu0
        %v2868 = vadd.f32 %v1797, %v2867
        %v2869 = vpop.f32.mrf.mxu0
        %v2870 = vadd.f32 %v1799, %v2869
        %v2871 = vpop.f32.mrf.mxu0
        %v2872 = vadd.f32 %v1801, %v2871
        %v2873 = vpop.f32.mrf.mxu0
        %v2874 = vadd.f32 %v1803, %v2873
        %2875 = vmatprep.mubr.bf16.mxu0 %v2238
        %2876 = vmatmul.mubr.bf16.gmra.mxu0 %v2237
        %v2877 = vpop.f32.mrf.mxu0
        %v2878 = vadd.f32 %v1807, %v2877
        %v2879 = vpop.f32.mrf.mxu0
        %v2880 = vadd.f32 %v1809, %v2879
        %v2881 = vpop.f32.mrf.mxu0
        %v2882 = vadd.f32 %v1811, %v2881
        %v2883 = vpop.f32.mrf.mxu0
        %v2884 = vadd.f32 %v1813, %v2883
        %2885 = vmatprep.mubr.bf16.mxu0 %v2242
        %2886 = vmatmul.mubr.bf16.gmra.mxu0 %v2241
        %v2887 = vpop.f32.mrf.mxu0
        %v2888 = vadd.f32 %v1817, %v2887
        %v2889 = vpop.f32.mrf.mxu0
        %v2890 = vadd.f32 %v1819, %v2889
        %v2891 = vpop.f32.mrf.mxu0
        %v2892 = vadd.f32 %v1821, %v2891
        %v2893 = vpop.f32.mrf.mxu0
        %v2894 = vadd.f32 %v1823, %v2893
        %2895 = vmatprep.mubr.bf16.mxu0 %v2246
        %2896 = vmatmul.mubr.bf16.gmra.mxu0 %v2245
        %v2897 = vpop.f32.mrf.mxu0
        %v2898 = vadd.f32 %v1827, %v2897
        %v2899 = vpop.f32.mrf.mxu0
        %v2900 = vadd.f32 %v1829, %v2899
        %v2901 = vpop.f32.mrf.mxu0
        %v2902 = vadd.f32 %v1831, %v2901
        %v2903 = vpop.f32.mrf.mxu0
        %v2904 = vadd.f32 %v1833, %v2903
        %2905 = vmatprep.mubr.bf16.mxu0 %v2250
        %2906 = vmatmul.mubr.bf16.gmra.mxu0 %v2249
        %v2907 = vpop.f32.mrf.mxu0
        %v2908 = vadd.f32 %v1837, %v2907
        %v2909 = vpop.f32.mrf.mxu0
        %v2910 = vadd.f32 %v1839, %v2909
        %v2911 = vpop.f32.mrf.mxu0
        %v2912 = vadd.f32 %v1841, %v2911
        %v2913 = vpop.f32.mrf.mxu0
        %v2914 = vadd.f32 %v1843, %v2913
        %2915 = vmatprep.mubr.bf16.mxu0 %v2254
        %2916 = vmatmul.mubr.bf16.gmra.mxu0 %v2253
        %v2917 = vpop.f32.mrf.mxu0
        %v2918 = vadd.f32 %v1847, %v2917
        %v2919 = vpop.f32.mrf.mxu0
        %v2920 = vadd.f32 %v1849, %v2919
        %v2921 = vpop.f32.mrf.mxu0
        %v2922 = vadd.f32 %v1851, %v2921
        %v2923 = vpop.f32.mrf.mxu0
        %v2924 = vadd.f32 %v1853, %v2923
        %2925 = vmatprep.mubr.bf16.mxu0 %v2258
        %2926 = vmatmul.mubr.bf16.gmra.mxu0 %v2257
        %v2927 = vpop.f32.mrf.mxu0
        %v2928 = vadd.f32 %v1857, %v2927
        %v2929 = vpop.f32.mrf.mxu0
        %v2930 = vadd.f32 %v1859, %v2929
        %v2931 = vpop.f32.mrf.mxu0
        %v2932 = vadd.f32 %v1861, %v2931
        %v2933 = vpop.f32.mrf.mxu0
        %v2934 = vadd.f32 %v1863, %v2933
        %2935 = vmatprep.mubr.bf16.mxu0 %v2262
        %2936 = vmatmul.mubr.bf16.gmra.mxu0 %v2261
        %v2937 = vpop.f32.mrf.mxu0
        %v2938 = vadd.f32 %v1867, %v2937
        %v2939 = vpop.f32.mrf.mxu0
        %v2940 = vadd.f32 %v1869, %v2939
        %v2941 = vpop.f32.mrf.mxu0
        %v2942 = vadd.f32 %v1871, %v2941
        %v2943 = vpop.f32.mrf.mxu0
        %v2944 = vadd.f32 %v1873, %v2943
        %2945 = vmatprep.mubr.bf16.mxu0 %v2266
        %2946 = vmatmul.mubr.bf16.gmra.mxu0 %v2265
        %v2947 = vpop.f32.mrf.mxu0
        %v2948 = vadd.f32 %v1877, %v2947
        %v2949 = vpop.f32.mrf.mxu0
        %v2950 = vadd.f32 %v1879, %v2949
        %v2951 = vpop.f32.mrf.mxu0
        %v2952 = vadd.f32 %v1881, %v2951
        %v2953 = vpop.f32.mrf.mxu0
        %v2954 = vadd.f32 %v1883, %v2953
        %2955 = vdwg.mxu0
        %2956 = vmatprep.subr.bf16.mxu0 %v2550
        %2957 = vmatpush1.bf16.msra.mxu0 %v2549
        %2958 = vmatprep.subr.bf16.mxu0 %v2548
        %2959 = vmatpush1.bf16.msra.mxu0 %v2547
        %2960 = vmatprep.subr.bf16.mxu0 %v2546
        %2961 = vmatpush1.bf16.msra.mxu0 %v2545
        %2962 = vmatprep.subr.bf16.mxu0 %v2544
        %2963 = vmatpush1.bf16.msra.mxu0 %v2543
        %2964 = vmatprep.subr.bf16.mxu0 %v2542
        %2965 = vmatpush1.bf16.msra.mxu0 %v2541
        %2966 = vmatprep.subr.bf16.mxu0 %v2540
        %2967 = vmatpush1.bf16.msra.mxu0 %v2539
        %2968 = vmatprep.subr.bf16.mxu0 %v2538
        %2969 = vmatpush1.bf16.msra.mxu0 %v2537
        %2970 = vmatprep.subr.bf16.mxu0 %v2536
        %2971 = vmatpush1.bf16.msra.mxu0 %v2535
        %2972 = vmatprep.subr.bf16.mxu0 0
        %2973 = vmatpush2.bf16.msra.mxu0 0
        %2974 = vmatprep.subr.bf16.mxu0 0
        %2975 = vmatpush2.bf16.msra.mxu0 0
        %2976 = vmatprep.subr.bf16.mxu0 0
        %2977 = vmatpush2.bf16.msra.mxu0 0
        %2978 = vmatprep.subr.bf16.mxu0 0
        %2979 = vmatpush2.bf16.msra.mxu0 0
        %2980 = vmatprep.subr.bf16.mxu0 0
        %2981 = vmatpush2.bf16.msra.mxu0 0
        %2982 = vmatprep.subr.bf16.mxu0 %v2556
        %2983 = vmatpush2.bf16.msra.mxu0 %v2555
        %2984 = vmatprep.subr.bf16.mxu0 %v2554
        %2985 = vmatpush2.bf16.msra.mxu0 %v2553
        %2986 = vmatprep.subr.bf16.mxu0 %v2552
        %2987 = vmatpush2.bf16.msra.mxu0 %v2551
        %2988 = vmatprep.mubr.bf16.mxu0 %v2612
        %2989 = vmatmul.mubr.bf16.gmra.mxu0 %v2175
        %v2990 = vpop.f32.mrf.mxu0
        %v2991 = vadd.f32 %v2718, %v2990
        %v2992 = vpop.f32.mrf.mxu0
        %v2993 = vadd.f32 %v2720, %v2992
        %v2994 = vpop.f32.mrf.mxu0
        %v2995 = vadd.f32 %v2722, %v2994
        %v2996 = vpop.f32.mrf.mxu0
        %v2997 = vadd.f32 %v2724, %v2996
        %2998 = vmatprep.mubr.bf16.mxu0 %v2615
        %2999 = vmatmul.mubr.bf16.gmra.mxu0 %v2179
        %v3000 = vpop.f32.mrf.mxu0
        %v3001 = vadd.f32 %v2728, %v3000
        %v3002 = vpop.f32.mrf.mxu0
        %v3003 = vadd.f32 %v2730, %v3002
        %v3004 = vpop.f32.mrf.mxu0
        %v3005 = vadd.f32 %v2732, %v3004
        %v3006 = vpop.f32.mrf.mxu0
        %v3007 = vadd.f32 %v2734, %v3006
        %3008 = vmatprep.mubr.bf16.mxu0 %v2618
        %3009 = vmatmul.mubr.bf16.gmra.mxu0 %v2183
        %v3010 = vpop.f32.mrf.mxu0
        %v3011 = vadd.f32 %v2738, %v3010
        %v3012 = vpop.f32.mrf.mxu0
        %v3013 = vadd.f32 %v2740, %v3012
        %v3014 = vpop.f32.mrf.mxu0
        %v3015 = vadd.f32 %v2742, %v3014
        %v3016 = vpop.f32.mrf.mxu0
        %v3017 = vadd.f32 %v2744, %v3016
        %3018 = vmatprep.mubr.bf16.mxu0 %v2621
        %3019 = vmatmul.mubr.bf16.gmra.mxu0 %v2187
        %v3020 = vpop.f32.mrf.mxu0
        %v3021 = vadd.f32 %v2748, %v3020
        %v3022 = vpop.f32.mrf.mxu0
        %v3023 = vadd.f32 %v2750, %v3022
        %v3024 = vpop.f32.mrf.mxu0
        %v3025 = vadd.f32 %v2752, %v3024
        %v3026 = vpop.f32.mrf.mxu0
        %v3027 = vadd.f32 %v2754, %v3026
        %3028 = vmatprep.mubr.bf16.mxu0 %v2624
        %3029 = vmatmul.mubr.bf16.gmra.mxu0 %v2191
        %v3030 = vpop.f32.mrf.mxu0
        %v3031 = vadd.f32 %v2758, %v3030
        %v3032 = vpop.f32.mrf.mxu0
        %v3033 = vadd.f32 %v2760, %v3032
        %v3034 = vpop.f32.mrf.mxu0
        %v3035 = vadd.f32 %v2762, %v3034
        %v3036 = vpop.f32.mrf.mxu0
        %v3037 = vadd.f32 %v2764, %v3036
        %3038 = vmatprep.mubr.bf16.mxu0 %v2627
        %3039 = vmatmul.mubr.bf16.gmra.mxu0 %v2195
        %v3040 = vpop.f32.mrf.mxu0
        %v3041 = vadd.f32 %v2768, %v3040
        %v3042 = vpop.f32.mrf.mxu0
        %v3043 = vadd.f32 %v2770, %v3042
        %v3044 = vpop.f32.mrf.mxu0
        %v3045 = vadd.f32 %v2772, %v3044
        %v3046 = vpop.f32.mrf.mxu0
        %v3047 = vadd.f32 %v2774, %v3046
        %3048 = vmatprep.mubr.bf16.mxu0 %v2630
        %3049 = vmatmul.mubr.bf16.gmra.mxu0 %v2199
        %v3050 = vpop.f32.mrf.mxu0
        %v3051 = vadd.f32 %v2778, %v3050
        %v3052 = vpop.f32.mrf.mxu0
        %v3053 = vadd.f32 %v2780, %v3052
        %v3054 = vpop.f32.mrf.mxu0
        %v3055 = vadd.f32 %v2782, %v3054
        %v3056 = vpop.f32.mrf.mxu0
        %v3057 = vadd.f32 %v2784, %v3056
        %3058 = vmatprep.mubr.bf16.mxu0 %v2633
        %3059 = vmatmul.mubr.bf16.gmra.mxu0 %v2203
        %v3060 = vpop.f32.mrf.mxu0
        %v3061 = vadd.f32 %v2788, %v3060
        %v3062 = vpop.f32.mrf.mxu0
        %v3063 = vadd.f32 %v2790, %v3062
        %v3064 = vpop.f32.mrf.mxu0
        %v3065 = vadd.f32 %v2792, %v3064
        %v3066 = vpop.f32.mrf.mxu0
        %v3067 = vadd.f32 %v2794, %v3066
        %3068 = vmatprep.mubr.bf16.mxu0 %v2636
        %3069 = vmatmul.mubr.bf16.gmra.mxu0 %v2207
        %v3070 = vpop.f32.mrf.mxu0
        %v3071 = vadd.f32 %v2798, %v3070
        %v3072 = vpop.f32.mrf.mxu0
        %v3073 = vadd.f32 %v2800, %v3072
        %v3074 = vpop.f32.mrf.mxu0
        %v3075 = vadd.f32 %v2802, %v3074
        %v3076 = vpop.f32.mrf.mxu0
        %v3077 = vadd.f32 %v2804, %v3076
        %3078 = vmatprep.mubr.bf16.mxu0 %v2639
        %3079 = vmatmul.mubr.bf16.gmra.mxu0 %v2211
        %v3080 = vpop.f32.mrf.mxu0
        %v3081 = vadd.f32 %v2808, %v3080
        %v3082 = vpop.f32.mrf.mxu0
        %v3083 = vadd.f32 %v2810, %v3082
        %v3084 = vpop.f32.mrf.mxu0
        %v3085 = vadd.f32 %v2812, %v3084
        %v3086 = vpop.f32.mrf.mxu0
        %v3087 = vadd.f32 %v2814, %v3086
        %3088 = vmatprep.mubr.bf16.mxu0 %v2642
        %3089 = vmatmul.mubr.bf16.gmra.mxu0 %v2215
        %v3090 = vpop.f32.mrf.mxu0
        %v3091 = vadd.f32 %v2818, %v3090
        %v3092 = vpop.f32.mrf.mxu0
        %v3093 = vadd.f32 %v2820, %v3092
        %v3094 = vpop.f32.mrf.mxu0
        %v3095 = vadd.f32 %v2822, %v3094
        %v3096 = vpop.f32.mrf.mxu0
        %v3097 = vadd.f32 %v2824, %v3096
        %3098 = vmatprep.mubr.bf16.mxu0 %v2645
        %3099 = vmatmul.mubr.bf16.gmra.mxu0 %v2219
        %v3100 = vpop.f32.mrf.mxu0
        %v3101 = vadd.f32 %v2828, %v3100
        %v3102 = vpop.f32.mrf.mxu0
        %v3103 = vadd.f32 %v2830, %v3102
        %v3104 = vpop.f32.mrf.mxu0
        %v3105 = vadd.f32 %v2832, %v3104
        %v3106 = vpop.f32.mrf.mxu0
        %v3107 = vadd.f32 %v2834, %v3106
        %3108 = vmatprep.mubr.bf16.mxu0 %v2648
        %3109 = vmatmul.mubr.bf16.gmra.mxu0 %v2223
        %v3110 = vpop.f32.mrf.mxu0
        %v3111 = vadd.f32 %v2838, %v3110
        %v3112 = vpop.f32.mrf.mxu0
        %v3113 = vadd.f32 %v2840, %v3112
        %v3114 = vpop.f32.mrf.mxu0
        %v3115 = vadd.f32 %v2842, %v3114
        %v3116 = vpop.f32.mrf.mxu0
        %v3117 = vadd.f32 %v2844, %v3116
        %3118 = vmatprep.mubr.bf16.mxu0 %v2651
        %3119 = vmatmul.mubr.bf16.gmra.mxu0 %v2227
        %v3120 = vpop.f32.mrf.mxu0
        %v3121 = vadd.f32 %v2848, %v3120
        %v3122 = vpop.f32.mrf.mxu0
        %v3123 = vadd.f32 %v2850, %v3122
        %v3124 = vpop.f32.mrf.mxu0
        %v3125 = vadd.f32 %v2852, %v3124
        %v3126 = vpop.f32.mrf.mxu0
        %v3127 = vadd.f32 %v2854, %v3126
        %3128 = vmatprep.mubr.bf16.mxu0 %v2654
        %3129 = vmatmul.mubr.bf16.gmra.mxu0 %v2231
        %v3130 = vpop.f32.mrf.mxu0
        %v3131 = vadd.f32 %v2858, %v3130
        %v3132 = vpop.f32.mrf.mxu0
        %v3133 = vadd.f32 %v2860, %v3132
        %v3134 = vpop.f32.mrf.mxu0
        %v3135 = vadd.f32 %v2862, %v3134
        %v3136 = vpop.f32.mrf.mxu0
        %v3137 = vadd.f32 %v2864, %v3136
        %3138 = vmatprep.mubr.bf16.mxu0 %v2657
        %3139 = vmatmul.mubr.bf16.gmra.mxu0 %v2235
        %v3140 = vpop.f32.mrf.mxu0
        %v3141 = vadd.f32 %v2868, %v3140
        %v3142 = vpop.f32.mrf.mxu0
        %v3143 = vadd.f32 %v2870, %v3142
        %v3144 = vpop.f32.mrf.mxu0
        %v3145 = vadd.f32 %v2872, %v3144
        %v3146 = vpop.f32.mrf.mxu0
        %v3147 = vadd.f32 %v2874, %v3146
        %3148 = vmatprep.mubr.bf16.mxu0 %v2660
        %3149 = vmatmul.mubr.bf16.gmra.mxu0 %v2239
        %v3150 = vpop.f32.mrf.mxu0
        %v3151 = vadd.f32 %v2878, %v3150
        %v3152 = vpop.f32.mrf.mxu0
        %v3153 = vadd.f32 %v2880, %v3152
        %v3154 = vpop.f32.mrf.mxu0
        %v3155 = vadd.f32 %v2882, %v3154
        %v3156 = vpop.f32.mrf.mxu0
        %v3157 = vadd.f32 %v2884, %v3156
        %3158 = vmatprep.mubr.bf16.mxu0 %v2663
        %3159 = vmatmul.mubr.bf16.gmra.mxu0 %v2243
        %v3160 = vpop.f32.mrf.mxu0
        %v3161 = vadd.f32 %v2888, %v3160
        %v3162 = vpop.f32.mrf.mxu0
        %v3163 = vadd.f32 %v2890, %v3162
        %v3164 = vpop.f32.mrf.mxu0
        %v3165 = vadd.f32 %v2892, %v3164
        %v3166 = vpop.f32.mrf.mxu0
        %v3167 = vadd.f32 %v2894, %v3166
        %3168 = vmatprep.mubr.bf16.mxu0 %v2666
        %3169 = vmatmul.mubr.bf16.gmra.mxu0 %v2247
        %v3170 = vpop.f32.mrf.mxu0
        %v3171 = vadd.f32 %v2898, %v3170
        %v3172 = vpop.f32.mrf.mxu0
        %v3173 = vadd.f32 %v2900, %v3172
        %v3174 = vpop.f32.mrf.mxu0
        %v3175 = vadd.f32 %v2902, %v3174
        %v3176 = vpop.f32.mrf.mxu0
        %v3177 = vadd.f32 %v2904, %v3176
        %3178 = vmatprep.mubr.bf16.mxu0 %v2669
        %3179 = vmatmul.mubr.bf16.gmra.mxu0 %v2251
        %v3180 = vpop.f32.mrf.mxu0
        %v3181 = vadd.f32 %v2908, %v3180
        %v3182 = vpop.f32.mrf.mxu0
        %v3183 = vadd.f32 %v2910, %v3182
        %v3184 = vpop.f32.mrf.mxu0
        %v3185 = vadd.f32 %v2912, %v3184
        %v3186 = vpop.f32.mrf.mxu0
        %v3187 = vadd.f32 %v2914, %v3186
        %3188 = vmatprep.mubr.bf16.mxu0 %v2672
        %3189 = vmatmul.mubr.bf16.gmra.mxu0 %v2255
        %v3190 = vpop.f32.mrf.mxu0
        %v3191 = vadd.f32 %v2918, %v3190
        %v3192 = vpop.f32.mrf.mxu0
        %v3193 = vadd.f32 %v2920, %v3192
        %v3194 = vpop.f32.mrf.mxu0
        %v3195 = vadd.f32 %v2922, %v3194
        %v3196 = vpop.f32.mrf.mxu0
        %v3197 = vadd.f32 %v2924, %v3196
        %3198 = vmatprep.mubr.bf16.mxu0 %v2675
        %3199 = vmatmul.mubr.bf16.gmra.mxu0 %v2259
        %v3200 = vpop.f32.mrf.mxu0
        %v3201 = vadd.f32 %v2928, %v3200
        %v3202 = vpop.f32.mrf.mxu0
        %v3203 = vadd.f32 %v2930, %v3202
        %v3204 = vpop.f32.mrf.mxu0
        %v3205 = vadd.f32 %v2932, %v3204
        %v3206 = vpop.f32.mrf.mxu0
        %v3207 = vadd.f32 %v2934, %v3206
        %3208 = vmatprep.mubr.bf16.mxu0 %v2678
        %3209 = vmatmul.mubr.bf16.gmra.mxu0 %v2263
        %v3210 = vpop.f32.mrf.mxu0
        %v3211 = vadd.f32 %v2938, %v3210
        %v3212 = vpop.f32.mrf.mxu0
        %v3213 = vadd.f32 %v2940, %v3212
        %v3214 = vpop.f32.mrf.mxu0
        %v3215 = vadd.f32 %v2942, %v3214
        %v3216 = vpop.f32.mrf.mxu0
        %v3217 = vadd.f32 %v2944, %v3216
        %3218 = vmatprep.mubr.bf16.mxu0 %v2681
        %3219 = vmatmul.mubr.bf16.gmra.mxu0 %v2267
        %v3220 = vpop.f32.mrf.mxu0
        %v3221 = vadd.f32 %v2948, %v3220
        %v3222 = vpop.f32.mrf.mxu0
        %v3223 = vadd.f32 %v2950, %v3222
        %v3224 = vpop.f32.mrf.mxu0
        %v3225 = vadd.f32 %v2952, %v3224
        %v3226 = vpop.f32.mrf.mxu0
        %v3227 = vadd.f32 %v2954, %v3226
        %3228 = vdwg.mxu0
        %v3229 = vld [vmem:[%s224 + $0x20] sm:$0xff]
        %v3230 = vld [vmem:[%s224 + $0x28] sm:$0xff]
        %v3231 = vld [vmem:[%s224 + $0x50] sm:$0xff]
        %v3232 = vld [vmem:[%s224 + $0x58] sm:$0xff]
        %v3233 = vld [vmem:[%s224 + $0x80] sm:$0xff]
        %v3234 = vld [vmem:[%s224 + $0x88] sm:$0xff]
        %v3235 = vld [vmem:[%s224 + $0xb0] sm:$0xff]
        %v3236 = vld [vmem:[%s224 + $0xb8] sm:$0xff]
        %v3237 = vld [vmem:[%s224 + $0xe0] sm:$0xff]
        %v3238 = vld [vmem:[%s224 + $0xe8] sm:$0xff]
        %v3239 = vld [vmem:[%s224 + $0x110] sm:$0xff]
        %v3240 = vld [vmem:[%s224 + $0x118] sm:$0xff]
        %v3241 = vld [vmem:[%s224 + $0x140] sm:$0xff]
        %v3242 = vld [vmem:[%s224 + $0x148] sm:$0xff]
        %v3243 = vld [vmem:[%s224 + $0x170] sm:$0xff]
        %v3244 = vld [vmem:[%s224 + $0x178] sm:$0xff]
        %v3245 = vld [vmem:[%s224 + $0x1a0] sm:$0xff]
        %v3246 = vld [vmem:[%s224 + $0x1a8] sm:$0xff]
        %v3247 = vld [vmem:[%s224 + $0x1d0] sm:$0xff]
        %v3248 = vld [vmem:[%s224 + $0x1d8] sm:$0xff]
        %v3249 = vld [vmem:[%s224 + $0x200] sm:$0xff]
        %v3250 = vld [vmem:[%s224 + $0x208] sm:$0xff]
        %v3251 = vld [vmem:[%s224 + $0x230] sm:$0xff]
        %v3252 = vld [vmem:[%s224 + $0x238] sm:$0xff]
        %v3253 = vld [vmem:[%s224 + $0x260] sm:$0xff]
        %v3254 = vld [vmem:[%s224 + $0x268] sm:$0xff]
        %v3255 = vld [vmem:[%s224 + $0x290] sm:$0xff]
        %v3256 = vld [vmem:[%s224 + $0x298] sm:$0xff]
        %v3257 = vld [vmem:[%s224 + $0x2c0] sm:$0xff]
        %v3258 = vld [vmem:[%s224 + $0x2c8] sm:$0xff]
        %v3259 = vld [vmem:[%s224 + $0x2f0] sm:$0xff]
        %v3260 = vld [vmem:[%s224 + $0x2f8] sm:$0xff]
        %v3261 = vld [vmem:[%s224 + $0x320] sm:$0xff]
        %v3262 = vld [vmem:[%s224 + $0x328] sm:$0xff]
        %v3263 = vld [vmem:[%s224 + $0x350] sm:$0xff]
        %v3264 = vld [vmem:[%s224 + $0x358] sm:$0xff]
        %v3265 = vld [vmem:[%s224 + $0x380] sm:$0xff]
        %v3266 = vld [vmem:[%s224 + $0x388] sm:$0xff]
        %v3267 = vld [vmem:[%s224 + $0x3b0] sm:$0xff]
        %v3268 = vld [vmem:[%s224 + $0x3b8] sm:$0xff]
        %v3269 = vld [vmem:[%s224 + $0x3e0] sm:$0xff]
        %v3270 = vld [vmem:[%s224 + $0x3e8] sm:$0xff]
        %v3271 = vld [vmem:[%s224 + $0x410] sm:$0xff]
        %v3272 = vld [vmem:[%s224 + $0x418] sm:$0xff]
        %v3273 = vld [vmem:[%s224 + $0x440] sm:$0xff]
        %v3274 = vld [vmem:[%s224 + $0x448] sm:$0xff]
        %v3275 = vld [vmem:[%s224 + $0x470] sm:$0xff]
        %v3276 = vld [vmem:[%s224 + $0x478] sm:$0xff]
        %v3277 = vld [vmem:[%s224 + $0x4a0] sm:$0xff]
        %v3278 = vld [vmem:[%s224 + $0x4a8] sm:$0xff]
        %v3279 = vld [vmem:[%s224 + $0x4d0] sm:$0xff]
        %v3280 = vld [vmem:[%s224 + $0x4d8] sm:$0xff]
        %v3281 = vld [vmem:[%s224 + $0x500] sm:$0xff]
        %v3282 = vld [vmem:[%s224 + $0x508] sm:$0xff]
        %v3283 = vld [vmem:[%s224 + $0x530] sm:$0xff]
        %v3284 = vld [vmem:[%s224 + $0x538] sm:$0xff]
        %v3285 = vld [vmem:[%s224 + $0x560] sm:$0xff]
        %v3286 = vld [vmem:[%s224 + $0x568] sm:$0xff]
        %v3287 = vld [vmem:[%s224 + $0x590] sm:$0xff]
        %v3288 = vld [vmem:[%s224 + $0x598] sm:$0xff]
        %v3289 = vld [vmem:[%s224 + $0x5c0] sm:$0xff]
        %v3290 = vld [vmem:[%s224 + $0x5c8] sm:$0xff]
        %v3291 = vld [vmem:[%s224 + $0x5f0] sm:$0xff]
        %v3292 = vld [vmem:[%s224 + $0x5f8] sm:$0xff]
        %v3293 = vld [vmem:[%s224 + $0x620] sm:$0xff]
        %v3294 = vld [vmem:[%s224 + $0x628] sm:$0xff]
        %v3295 = vld [vmem:[%s224 + $0x650] sm:$0xff]
        %v3296 = vld [vmem:[%s224 + $0x658] sm:$0xff]
        %v3297 = vld [vmem:[%s224 + $0x680] sm:$0xff]
        %v3298 = vld [vmem:[%s224 + $0x688] sm:$0xff]
        %v3299 = vld [vmem:[%s224 + $0x6b0] sm:$0xff]
        %v3300 = vld [vmem:[%s224 + $0x6b8] sm:$0xff]
        %v3301 = vld [vmem:[%s224 + $0x6e0] sm:$0xff]
        %v3302 = vld [vmem:[%s224 + $0x6e8] sm:$0xff]
        %v3303 = vld [vmem:[%s224 + $0x710] sm:$0xff]
        %v3304 = vld [vmem:[%s224 + $0x718] sm:$0xff]
        %v3305 = vld [vmem:[%s224 + $0x740] sm:$0xff]
        %v3306 = vld [vmem:[%s224 + $0x748] sm:$0xff]
        %v3307 = vld [vmem:[%s224 + $0x770] sm:$0xff]
        %v3308 = vld [vmem:[%s224 + $0x778] sm:$0xff]
        %v3309 = vld [vmem:[%s224 + $0x7a0] sm:$0xff]
        %v3310 = vld [vmem:[%s224 + $0x7a8] sm:$0xff]
        %v3311 = vld [vmem:[%s224 + $0x7d0] sm:$0xff]
        %v3312 = vld [vmem:[%s224 + $0x7d8] sm:$0xff]
        %v3313 = vld [vmem:[%s224 + $0x800] sm:$0xff]
        %v3314 = vld [vmem:[%s224 + $0x808] sm:$0xff]
        %v3315 = vld [vmem:[%s224 + $0x830] sm:$0xff]
        %v3316 = vld [vmem:[%s224 + $0x838] sm:$0xff]
        %v3317 = vld [vmem:[%s224 + $0x860] sm:$0xff]
        %v3318 = vld [vmem:[%s224 + $0x868] sm:$0xff]
        %v3319 = vld [vmem:[%s224 + $0x890] sm:$0xff]
        %v3320 = vld [vmem:[%s224 + $0x898] sm:$0xff]
        %v3321 = vld [vmem:[%s224 + $0x8c0] sm:$0xff]
        %v3322 = vld [vmem:[%s224 + $0x8c8] sm:$0xff]
        %v3323 = vld [vmem:[%s224 + $0x8f0] sm:$0xff]
        %v3324 = vld [vmem:[%s224 + $0x8f8] sm:$0xff]
        %s3325 = scalar_lea.vmem %s1, 864
        %v3326 = vld [vmem:[%s3325] sm:$0xff]
        %v3327 = vld [vmem:[%s3325 + $0x8] sm:$0xff]
        %v3328 = vld [vmem:[%s3325 + $0x10] sm:$0xff]
        %v3329 = vld [vmem:[%s3325 + $0x18] sm:$0xff]
        %v3330 = vld [vmem:[%s3325 + $0x20] sm:$0xff]
        %v3331 = vld [vmem:[%s3325 + $0x28] sm:$0xff]
        %v3332 = vld [vmem:[%s3325 + $0x30] sm:$0xff]
        %v3333 = vld [vmem:[%s3325 + $0x38] sm:$0xff]
        %v3334 = vld [vmem:[%s3325 + $0x40] sm:$0xff]
        %v3335 = vld [vmem:[%s3325 + $0x48] sm:$0xff]
        %v3336 = vld [vmem:[%s3325 + $0x50] sm:$0xff]
        %v3337 = vld [vmem:[%s3325 + $0x58] sm:$0xff]
        %v3338 = vld [vmem:[%s3325 + $0x60] sm:$0xff]
        %v3339 = vld [vmem:[%s3325 + $0x68] sm:$0xff]
        %v3340 = vld [vmem:[%s3325 + $0x70] sm:$0xff]
        %v3341 = vld [vmem:[%s3325 + $0x78] sm:$0xff]
        %v3342 = vld [vmem:[%s3325 + $0x80] sm:$0xff]
        %v3343 = vld [vmem:[%s3325 + $0x88] sm:$0xff]
        %v3344 = vld [vmem:[%s3325 + $0x90] sm:$0xff]
        %v3345 = vld [vmem:[%s3325 + $0x98] sm:$0xff]
        %v3346 = vld [vmem:[%s3325 + $0xa0] sm:$0xff]
        %v3347 = vld [vmem:[%s3325 + $0xa8] sm:$0xff]
        %v3348 = vld [vmem:[%s3325 + $0xb0] sm:$0xff]
        %v3349 = vld [vmem:[%s3325 + $0xb8] sm:$0xff]
        %v3350 = vld [vmem:[%s3325 + $0xc0] sm:$0xff]
        %v3351 = vld [vmem:[%s3325 + $0xc8] sm:$0xff]
        %v3352 = vld [vmem:[%s3325 + $0xd0] sm:$0xff]
        %v3353 = vld [vmem:[%s3325 + $0xd8] sm:$0xff]
        %v3354 = vld [vmem:[%s3325 + $0xe0] sm:$0xff]
        %v3355 = vld [vmem:[%s3325 + $0xe8] sm:$0xff]
        %v3356 = vld [vmem:[%s3325 + $0xf0] sm:$0xff]
        %v3357 = vld [vmem:[%s3325 + $0xf8] sm:$0xff]
        %v3358 = vld [vmem:[%s3325 + $0x100] sm:$0xff]
        %v3359 = vld [vmem:[%s3325 + $0x108] sm:$0xff]
        %v3360 = vld [vmem:[%s3325 + $0x110] sm:$0xff]
        %v3361 = vld [vmem:[%s3325 + $0x118] sm:$0xff]
        %v3362 = vld [vmem:[%s3325 + $0x120] sm:$0xff]
        %v3363 = vld [vmem:[%s3325 + $0x128] sm:$0xff]
        %v3364 = vld [vmem:[%s3325 + $0x130] sm:$0xff]
        %v3365 = vld [vmem:[%s3325 + $0x138] sm:$0xff]
        %v3366 = vld [vmem:[%s3325 + $0x140] sm:$0xff]
        %v3367 = vld [vmem:[%s3325 + $0x148] sm:$0xff]
        %v3368 = vld [vmem:[%s3325 + $0x150] sm:$0xff]
        %v3369 = vld [vmem:[%s3325 + $0x158] sm:$0xff]
        %v3370 = vld [vmem:[%s3325 + $0x160] sm:$0xff]
        %v3371 = vld [vmem:[%s3325 + $0x168] sm:$0xff]
        %v3372 = vld [vmem:[%s3325 + $0x170] sm:$0xff]
        %v3373 = vld [vmem:[%s3325 + $0x178] sm:$0xff]
        %v3374 = vld [vmem:[%s3325 + $0x180] sm:$0xff]
        %v3375 = vld [vmem:[%s3325 + $0x188] sm:$0xff]
        %v3376 = vld [vmem:[%s3325 + $0x190] sm:$0xff]
        %v3377 = vld [vmem:[%s3325 + $0x198] sm:$0xff]
        %v3378 = vld [vmem:[%s3325 + $0x1a0] sm:$0xff]
        %v3379 = vld [vmem:[%s3325 + $0x1a8] sm:$0xff]
        %v3476 = vunpack.c.l.b16 %v3229
        %v3477 = vunpack.c.h.b16 %v3229
        %v3478 = vunpack.c.l.b16 %v3230
        %v3479 = vunpack.c.h.b16 %v3230
        %v3480 = vunpack.c.l.b16 %v3231
        %v3481 = vunpack.c.h.b16 %v3231
        %v3482 = vunpack.c.l.b16 %v3232
        %v3483 = vunpack.c.h.b16 %v3232
        %v3484 = vunpack.c.l.b16 %v3233
        %v3485 = vunpack.c.h.b16 %v3233
        %v3486 = vunpack.c.l.b16 %v3234
        %v3487 = vunpack.c.h.b16 %v3234
        %v3488 = vunpack.c.l.b16 %v3235
        %v3489 = vunpack.c.h.b16 %v3235
        %v3490 = vunpack.c.l.b16 %v3236
        %v3491 = vunpack.c.h.b16 %v3236
        %v3492 = vunpack.c.l.b16 %v3237
        %v3493 = vunpack.c.h.b16 %v3237
        %v3494 = vunpack.c.l.b16 %v3238
        %v3495 = vunpack.c.h.b16 %v3238
        %v3496 = vunpack.c.l.b16 %v3239
        %v3497 = vunpack.c.h.b16 %v3239
        %v3498 = vunpack.c.l.b16 %v3240
        %v3499 = vunpack.c.h.b16 %v3240
        %v3500 = vunpack.c.l.b16 %v3241
        %v3501 = vunpack.c.h.b16 %v3241
        %v3502 = vunpack.c.l.b16 %v3242
        %v3503 = vunpack.c.h.b16 %v3242
        %v3504 = vunpack.c.l.b16 %v3243
        %v3505 = vunpack.c.h.b16 %v3243
        %v3506 = vunpack.c.l.b16 %v3244
        %v3507 = vunpack.c.h.b16 %v3244
        %v3508 = vunpack.c.l.b16 %v3245
        %v3509 = vunpack.c.h.b16 %v3245
        %v3510 = vunpack.c.l.b16 %v3246
        %v3511 = vunpack.c.h.b16 %v3246
        %v3512 = vunpack.c.l.b16 %v3247
        %v3513 = vunpack.c.h.b16 %v3247
        %v3514 = vunpack.c.l.b16 %v3248
        %v3515 = vunpack.c.h.b16 %v3248
        %v3516 = vunpack.c.l.b16 %v3249
        %v3517 = vunpack.c.h.b16 %v3249
        %v3518 = vunpack.c.l.b16 %v3250
        %v3519 = vunpack.c.h.b16 %v3250
        %v3520 = vunpack.c.l.b16 %v3251
        %v3521 = vunpack.c.h.b16 %v3251
        %v3522 = vunpack.c.l.b16 %v3252
        %v3523 = vunpack.c.h.b16 %v3252
        %v3524 = vunpack.c.l.b16 %v3253
        %v3525 = vunpack.c.h.b16 %v3253
        %v3526 = vunpack.c.l.b16 %v3254
        %v3527 = vunpack.c.h.b16 %v3254
        %v3528 = vunpack.c.l.b16 %v3255
        %v3529 = vunpack.c.h.b16 %v3255
        %v3530 = vunpack.c.l.b16 %v3256
        %v3531 = vunpack.c.h.b16 %v3256
        %v3532 = vunpack.c.l.b16 %v3257
        %v3533 = vunpack.c.h.b16 %v3257
        %v3534 = vunpack.c.l.b16 %v3258
        %v3535 = vunpack.c.h.b16 %v3258
        %v3536 = vunpack.c.l.b16 %v3259
        %v3537 = vunpack.c.h.b16 %v3259
        %v3538 = vunpack.c.l.b16 %v3260
        %v3539 = vunpack.c.h.b16 %v3260
        %v3540 = vunpack.c.l.b16 %v3261
        %v3541 = vunpack.c.h.b16 %v3261
        %v3542 = vunpack.c.l.b16 %v3262
        %v3543 = vunpack.c.h.b16 %v3262
        %v3544 = vunpack.c.l.b16 %v3263
        %v3545 = vunpack.c.h.b16 %v3263
        %v3546 = vunpack.c.l.b16 %v3264
        %v3547 = vunpack.c.h.b16 %v3264
        %v3548 = vunpack.c.l.b16 %v3265
        %v3549 = vunpack.c.h.b16 %v3265
        %v3550 = vunpack.c.l.b16 %v3266
        %v3551 = vunpack.c.h.b16 %v3266
        %v3552 = vunpack.c.l.b16 %v3267
        %v3553 = vunpack.c.h.b16 %v3267
        %v3554 = vunpack.c.l.b16 %v3268
        %v3555 = vunpack.c.h.b16 %v3268
        %v3556 = vunpack.c.l.b16 %v3269
        %v3557 = vunpack.c.h.b16 %v3269
        %v3558 = vunpack.c.l.b16 %v3270
        %v3559 = vunpack.c.h.b16 %v3270
        %v3560 = vunpack.c.l.b16 %v3271
        %v3561 = vunpack.c.h.b16 %v3271
        %v3562 = vunpack.c.l.b16 %v3272
        %v3563 = vunpack.c.h.b16 %v3272
        %v3564 = vunpack.c.l.b16 %v3273
        %v3565 = vunpack.c.h.b16 %v3273
        %v3566 = vunpack.c.l.b16 %v3274
        %v3567 = vunpack.c.h.b16 %v3274
        %v3568 = vunpack.c.l.b16 %v3275
        %v3569 = vunpack.c.h.b16 %v3275
        %v3570 = vunpack.c.l.b16 %v3276
        %v3571 = vunpack.c.h.b16 %v3276
        %v3572 = vunpack.c.l.b16 %v3277
        %v3573 = vunpack.c.h.b16 %v3277
        %v3574 = vunpack.c.l.b16 %v3278
        %v3575 = vunpack.c.h.b16 %v3278
        %v3576 = vunpack.c.l.b16 %v3279
        %v3577 = vunpack.c.h.b16 %v3279
        %v3578 = vunpack.c.l.b16 %v3280
        %v3579 = vunpack.c.h.b16 %v3280
        %v3580 = vunpack.c.l.b16 %v3281
        %v3581 = vunpack.c.h.b16 %v3281
        %v3582 = vunpack.c.l.b16 %v3282
        %v3583 = vunpack.c.h.b16 %v3282
        %v3584 = vunpack.c.l.b16 %v3283
        %v3585 = vunpack.c.h.b16 %v3283
        %v3586 = vunpack.c.l.b16 %v3284
        %v3587 = vunpack.c.h.b16 %v3284
        %v3588 = vunpack.c.l.b16 %v3285
        %v3589 = vunpack.c.h.b16 %v3285
        %v3590 = vunpack.c.l.b16 %v3286
        %v3591 = vunpack.c.h.b16 %v3286
        %v3592 = vunpack.c.l.b16 %v3287
        %v3593 = vunpack.c.h.b16 %v3287
        %v3594 = vunpack.c.l.b16 %v3288
        %v3595 = vunpack.c.h.b16 %v3288
        %v3596 = vunpack.c.l.b16 %v3289
        %v3597 = vunpack.c.h.b16 %v3289
        %v3598 = vunpack.c.l.b16 %v3290
        %v3599 = vunpack.c.h.b16 %v3290
        %v3600 = vunpack.c.l.b16 %v3291
        %v3601 = vunpack.c.h.b16 %v3291
        %v3602 = vunpack.c.l.b16 %v3292
        %v3603 = vunpack.c.h.b16 %v3292
        %v3604 = vunpack.c.l.b16 %v3293
        %v3605 = vunpack.c.h.b16 %v3293
        %v3606 = vunpack.c.l.b16 %v3294
        %v3607 = vunpack.c.h.b16 %v3294
        %v3608 = vunpack.c.l.b16 %v3295
        %v3609 = vunpack.c.h.b16 %v3295
        %v3610 = vunpack.c.l.b16 %v3296
        %v3611 = vunpack.c.h.b16 %v3296
        %v3612 = vunpack.c.l.b16 %v3297
        %v3613 = vunpack.c.h.b16 %v3297
        %v3614 = vunpack.c.l.b16 %v3298
        %v3615 = vunpack.c.h.b16 %v3298
        %v3616 = vunpack.c.l.b16 %v3299
        %v3617 = vunpack.c.h.b16 %v3299
        %v3618 = vunpack.c.l.b16 %v3300
        %v3619 = vunpack.c.h.b16 %v3300
        %v3620 = vunpack.c.l.b16 %v3301
        %v3621 = vunpack.c.h.b16 %v3301
        %v3622 = vunpack.c.l.b16 %v3302
        %v3623 = vunpack.c.h.b16 %v3302
        %v3624 = vunpack.c.l.b16 %v3303
        %v3625 = vunpack.c.h.b16 %v3303
        %v3626 = vunpack.c.l.b16 %v3304
        %v3627 = vunpack.c.h.b16 %v3304
        %v3628 = vunpack.c.l.b16 %v3305
        %v3629 = vunpack.c.h.b16 %v3305
        %v3630 = vunpack.c.l.b16 %v3306
        %v3631 = vunpack.c.h.b16 %v3306
        %v3632 = vunpack.c.l.b16 %v3307
        %v3633 = vunpack.c.h.b16 %v3307
        %v3634 = vunpack.c.l.b16 %v3308
        %v3635 = vunpack.c.h.b16 %v3308
        %v3636 = vunpack.c.l.b16 %v3309
        %v3637 = vunpack.c.h.b16 %v3309
        %v3638 = vunpack.c.l.b16 %v3310
        %v3639 = vunpack.c.h.b16 %v3310
        %v3640 = vunpack.c.l.b16 %v3311
        %v3641 = vunpack.c.h.b16 %v3311
        %v3642 = vunpack.c.l.b16 %v3312
        %v3643 = vunpack.c.h.b16 %v3312
        %v3644 = vunpack.c.l.b16 %v3313
        %v3645 = vunpack.c.h.b16 %v3313
        %v3646 = vunpack.c.l.b16 %v3314
        %v3647 = vunpack.c.h.b16 %v3314
        %v3648 = vunpack.c.l.b16 %v3315
        %v3649 = vunpack.c.h.b16 %v3315
        %v3650 = vunpack.c.l.b16 %v3316
        %v3651 = vunpack.c.h.b16 %v3316
        %v3652 = vunpack.c.l.b16 %v3317
        %v3653 = vunpack.c.h.b16 %v3317
        %v3654 = vunpack.c.l.b16 %v3318
        %v3655 = vunpack.c.h.b16 %v3318
        %v3656 = vunpack.c.l.b16 %v3319
        %v3657 = vunpack.c.h.b16 %v3319
        %v3658 = vunpack.c.l.b16 %v3320
        %v3659 = vunpack.c.h.b16 %v3320
        %v3660 = vunpack.c.l.b16 %v3321
        %v3661 = vunpack.c.h.b16 %v3321
        %v3662 = vunpack.c.l.b16 %v3322
        %v3663 = vunpack.c.h.b16 %v3322
        %v3664 = vunpack.c.l.b16 %v3323
        %v3665 = vunpack.c.h.b16 %v3323
        %v3666 = vunpack.c.l.b16 %v3324
        %v3667 = vunpack.c.h.b16 %v3324
        %v3668 = vpack.c.b16 %v3480, %v3476
        %v3669 = vpack.c.b16 %v3481, %v3477
        %v3670 = vpack.c.b16 %v3482, %v3478
        %v3671 = vpack.c.b16 %v3483, %v3479
        %v3672 = vpack.c.b16 %v3488, %v3484
        %v3673 = vpack.c.b16 %v3489, %v3485
        %v3674 = vpack.c.b16 %v3490, %v3486
        %v3675 = vpack.c.b16 %v3491, %v3487
        %v3676 = vpack.c.b16 %v3496, %v3492
        %v3677 = vpack.c.b16 %v3497, %v3493
        %v3678 = vpack.c.b16 %v3498, %v3494
        %v3679 = vpack.c.b16 %v3499, %v3495
        %v3680 = vpack.c.b16 %v3504, %v3500
        %v3681 = vpack.c.b16 %v3505, %v3501
        %v3682 = vpack.c.b16 %v3506, %v3502
        %v3683 = vpack.c.b16 %v3507, %v3503
        %v3684 = vpack.c.b16 %v3512, %v3508
        %v3685 = vpack.c.b16 %v3513, %v3509
        %v3686 = vpack.c.b16 %v3514, %v3510
        %v3687 = vpack.c.b16 %v3515, %v3511
        %v3688 = vpack.c.b16 %v3520, %v3516
        %v3689 = vpack.c.b16 %v3521, %v3517
        %v3690 = vpack.c.b16 %v3522, %v3518
        %v3691 = vpack.c.b16 %v3523, %v3519
        %v3692 = vpack.c.b16 %v3528, %v3524
        %v3693 = vpack.c.b16 %v3529, %v3525
        %v3694 = vpack.c.b16 %v3530, %v3526
        %v3695 = vpack.c.b16 %v3531, %v3527
        %v3696 = vpack.c.b16 %v3536, %v3532
        %v3697 = vpack.c.b16 %v3537, %v3533
        %v3698 = vpack.c.b16 %v3538, %v3534
        %v3699 = vpack.c.b16 %v3539, %v3535
        %v3700 = vpack.c.b16 %v3544, %v3540
        %v3701 = vpack.c.b16 %v3545, %v3541
        %v3702 = vpack.c.b16 %v3546, %v3542
        %v3703 = vpack.c.b16 %v3547, %v3543
        %v3704 = vpack.c.b16 %v3552, %v3548
        %v3705 = vpack.c.b16 %v3553, %v3549
        %v3706 = vpack.c.b16 %v3554, %v3550
        %v3707 = vpack.c.b16 %v3555, %v3551
        %v3708 = vpack.c.b16 %v3560, %v3556
        %v3709 = vpack.c.b16 %v3561, %v3557
        %v3710 = vpack.c.b16 %v3562, %v3558
        %v3711 = vpack.c.b16 %v3563, %v3559
        %v3712 = vpack.c.b16 %v3568, %v3564
        %v3713 = vpack.c.b16 %v3569, %v3565
        %v3714 = vpack.c.b16 %v3570, %v3566
        %v3715 = vpack.c.b16 %v3571, %v3567
        %v3716 = vpack.c.b16 %v3576, %v3572
        %v3717 = vpack.c.b16 %v3577, %v3573
        %v3718 = vpack.c.b16 %v3578, %v3574
        %v3719 = vpack.c.b16 %v3579, %v3575
        %v3720 = vpack.c.b16 %v3584, %v3580
        %v3721 = vpack.c.b16 %v3585, %v3581
        %v3722 = vpack.c.b16 %v3586, %v3582
        %v3723 = vpack.c.b16 %v3587, %v3583
        %v3724 = vpack.c.b16 %v3592, %v3588
        %v3725 = vpack.c.b16 %v3593, %v3589
        %v3726 = vpack.c.b16 %v3594, %v3590
        %v3727 = vpack.c.b16 %v3595, %v3591
        %v3728 = vpack.c.b16 %v3600, %v3596
        %v3729 = vpack.c.b16 %v3601, %v3597
        %v3730 = vpack.c.b16 %v3602, %v3598
        %v3731 = vpack.c.b16 %v3603, %v3599
        %v3732 = vpack.c.b16 %v3608, %v3604
        %v3733 = vpack.c.b16 %v3609, %v3605
        %v3734 = vpack.c.b16 %v3610, %v3606
        %v3735 = vpack.c.b16 %v3611, %v3607
        %v3736 = vpack.c.b16 %v3616, %v3612
        %v3737 = vpack.c.b16 %v3617, %v3613
        %v3738 = vpack.c.b16 %v3618, %v3614
        %v3739 = vpack.c.b16 %v3619, %v3615
        %v3740 = vpack.c.b16 %v3624, %v3620
        %v3741 = vpack.c.b16 %v3625, %v3621
        %v3742 = vpack.c.b16 %v3626, %v3622
        %v3743 = vpack.c.b16 %v3627, %v3623
        %v3744 = vpack.c.b16 %v3632, %v3628
        %v3745 = vpack.c.b16 %v3633, %v3629
        %v3746 = vpack.c.b16 %v3634, %v3630
        %v3747 = vpack.c.b16 %v3635, %v3631
        %v3748 = vpack.c.b16 %v3640, %v3636
        %v3749 = vpack.c.b16 %v3641, %v3637
        %v3750 = vpack.c.b16 %v3642, %v3638
        %v3751 = vpack.c.b16 %v3643, %v3639
        %v3752 = vpack.c.b16 %v3648, %v3644
        %v3753 = vpack.c.b16 %v3649, %v3645
        %v3754 = vpack.c.b16 %v3650, %v3646
        %v3755 = vpack.c.b16 %v3651, %v3647
        %v3756 = vpack.c.b16 %v3656, %v3652
        %v3757 = vpack.c.b16 %v3657, %v3653
        %v3758 = vpack.c.b16 %v3658, %v3654
        %v3759 = vpack.c.b16 %v3659, %v3655
        %v3760 = vpack.c.b16 %v3664, %v3660
        %v3761 = vpack.c.b16 %v3665, %v3661
        %v3762 = vpack.c.b16 %v3666, %v3662
        %v3763 = vpack.c.b16 %v3667, %v3663
        %v3890 = vunpack.c.l.b16 %v3326
        %v3891 = vunpack.c.h.b16 %v3326
        %v3892 = vunpack.c.l.b16 %v3327
        %v3893 = vunpack.c.h.b16 %v3327
        %v3894 = vunpack.c.l.b16 %v3328
        %v3895 = vunpack.c.h.b16 %v3328
        %v3896 = vunpack.c.l.b16 %v3329
        %v3897 = vunpack.c.h.b16 %v3329
        %v3898 = vunpack.c.l.b16 %v3330
        %v3899 = vunpack.c.h.b16 %v3330
        %v3900 = vunpack.c.l.b16 %v3331
        %v3901 = vunpack.c.h.b16 %v3331
        %v3902 = vunpack.c.l.b16 %v3332
        %v3903 = vunpack.c.h.b16 %v3332
        %v3904 = vunpack.c.l.b16 %v3333
        %v3905 = vunpack.c.h.b16 %v3333
        %v3906 = vunpack.c.l.b16 %v3334
        %v3907 = vunpack.c.h.b16 %v3334
        %v3908 = vunpack.c.l.b16 %v3335
        %v3909 = vunpack.c.h.b16 %v3335
        %v3910 = vunpack.c.l.b16 %v3336
        %v3911 = vunpack.c.h.b16 %v3336
        %v3912 = vunpack.c.l.b16 %v3337
        %v3913 = vunpack.c.h.b16 %v3337
        %v3914 = vunpack.c.l.b16 %v3338
        %v3915 = vunpack.c.h.b16 %v3338
        %v3916 = vunpack.c.l.b16 %v3339
        %v3917 = vunpack.c.h.b16 %v3339
        %v3918 = vunpack.c.l.b16 %v3340
        %v3919 = vunpack.c.h.b16 %v3340
        %v3920 = vunpack.c.l.b16 %v3341
        %v3921 = vunpack.c.h.b16 %v3341
        %v3922 = vunpack.c.l.b16 %v3342
        %v3923 = vunpack.c.h.b16 %v3342
        %v3924 = vunpack.c.l.b16 %v3343
        %v3925 = vunpack.c.h.b16 %v3343
        %v3926 = vunpack.c.l.b16 %v3344
        %v3927 = vunpack.c.h.b16 %v3344
        %v3928 = vunpack.c.l.b16 %v3345
        %v3929 = vunpack.c.h.b16 %v3345
        %v3930 = vunpack.c.l.b16 %v3346
        %v3931 = vunpack.c.h.b16 %v3346
        %v3932 = vunpack.c.l.b16 %v3347
        %v3933 = vunpack.c.h.b16 %v3347
        %v3934 = vunpack.c.l.b16 %v3348
        %v3935 = vunpack.c.h.b16 %v3348
        %v3936 = vunpack.c.l.b16 %v3349
        %v3937 = vunpack.c.h.b16 %v3349
        %v3938 = vunpack.c.l.b16 %v3350
        %v3939 = vunpack.c.h.b16 %v3350
        %v3940 = vunpack.c.l.b16 %v3351
        %v3941 = vunpack.c.h.b16 %v3351
        %v3942 = vunpack.c.l.b16 %v3352
        %v3943 = vunpack.c.h.b16 %v3352
        %v3944 = vunpack.c.l.b16 %v3353
        %v3945 = vunpack.c.h.b16 %v3353
        %v3946 = vunpack.c.l.b16 %v3354
        %v3947 = vunpack.c.h.b16 %v3354
        %v3948 = vunpack.c.l.b16 %v3355
        %v3949 = vunpack.c.h.b16 %v3355
        %v3950 = vunpack.c.l.b16 %v3356
        %v3951 = vunpack.c.h.b16 %v3356
        %v3952 = vunpack.c.l.b16 %v3357
        %v3953 = vunpack.c.h.b16 %v3357
        %v3954 = vunpack.c.l.b16 %v3358
        %v3955 = vunpack.c.h.b16 %v3358
        %v3956 = vunpack.c.l.b16 %v3359
        %v3957 = vunpack.c.h.b16 %v3359
        %v3958 = vunpack.c.l.b16 %v3360
        %v3959 = vunpack.c.h.b16 %v3360
        %v3960 = vunpack.c.l.b16 %v3361
        %v3961 = vunpack.c.h.b16 %v3361
        %v3962 = vunpack.c.l.b16 %v3362
        %v3963 = vunpack.c.h.b16 %v3362
        %v3964 = vunpack.c.l.b16 %v3363
        %v3965 = vunpack.c.h.b16 %v3363
        %v3966 = vunpack.c.l.b16 %v3364
        %v3967 = vunpack.c.h.b16 %v3364
        %v3968 = vunpack.c.l.b16 %v3365
        %v3969 = vunpack.c.h.b16 %v3365
        %v3970 = vunpack.c.l.b16 %v3366
        %v3971 = vunpack.c.h.b16 %v3366
        %v3972 = vunpack.c.l.b16 %v3367
        %v3973 = vunpack.c.h.b16 %v3367
        %v3974 = vunpack.c.l.b16 %v3368
        %v3975 = vunpack.c.h.b16 %v3368
        %v3976 = vunpack.c.l.b16 %v3369
        %v3977 = vunpack.c.h.b16 %v3369
        %v3978 = vunpack.c.l.b16 %v3370
        %v3979 = vunpack.c.h.b16 %v3370
        %v3980 = vunpack.c.l.b16 %v3371
        %v3981 = vunpack.c.h.b16 %v3371
        %v3982 = vunpack.c.l.b16 %v3372
        %v3983 = vunpack.c.h.b16 %v3372
        %v3984 = vunpack.c.l.b16 %v3373
        %v3985 = vunpack.c.h.b16 %v3373
        %v3986 = vunpack.c.l.b16 %v3374
        %v3987 = vunpack.c.h.b16 %v3374
        %v3988 = vunpack.c.l.b16 %v3375
        %v3989 = vunpack.c.h.b16 %v3375
        %v3990 = vunpack.c.l.b16 %v3376
        %v3991 = vunpack.c.h.b16 %v3376
        %v3992 = vunpack.c.l.b16 %v3377
        %v3993 = vunpack.c.h.b16 %v3377
        %v3994 = vunpack.c.l.b16 %v3378
        %v3995 = vunpack.c.h.b16 %v3378
        %v3996 = vunpack.c.l.b16 %v3379
        %v3997 = vunpack.c.h.b16 %v3379
        %v3998 = vpack.c.b16 %v3892, %v3890
        %v3999 = vpack.c.b16 %v3893, %v3891
        %v4000 = vpack.c.b16 %v3896, %v3894
        %v4001 = vpack.c.b16 %v3897, %v3895
        %v4002 = vpack.c.b16 %v3900, %v3898
        %v4003 = vpack.c.b16 %v3901, %v3899
        %v4004 = vpack.c.b16 %v3904, %v3902
        %v4005 = vpack.c.b16 %v3905, %v3903
        %v4006 = vpack.c.b16 %v3908, %v3906
        %v4007 = vpack.c.b16 %v3909, %v3907
        %v4008 = vpack.c.b16 %v3912, %v3910
        %v4009 = vpack.c.b16 %v3913, %v3911
        %v4010 = vpack.c.b16 %v3916, %v3914
        %v4011 = vpack.c.b16 %v3917, %v3915
        %v4012 = vpack.c.b16 %v3920, %v3918
        %v4013 = vpack.c.b16 %v3921, %v3919
        %v4014 = vpack.c.b16 %v3924, %v3922
        %v4015 = vpack.c.b16 %v3925, %v3923
        %v4016 = vpack.c.b16 %v3928, %v3926
        %v4017 = vpack.c.b16 %v3929, %v3927
        %v4018 = vpack.c.b16 %v3932, %v3930
        %v4019 = vpack.c.b16 %v3933, %v3931
        %v4020 = vpack.c.b16 %v3936, %v3934
        %v4021 = vpack.c.b16 %v3937, %v3935
        %v4022 = vpack.c.b16 %v3940, %v3938
        %v4023 = vpack.c.b16 %v3941, %v3939
        %v4024 = vpack.c.b16 %v3944, %v3942
        %v4025 = vpack.c.b16 %v3945, %v3943
        %v4026 = vpack.c.b16 %v3948, %v3946
        %v4027 = vpack.c.b16 %v3949, %v3947
        %v4028 = vpack.c.b16 %v3952, %v3950
        %v4029 = vpack.c.b16 %v3953, %v3951
        %v4030 = vpack.c.b16 %v3956, %v3954
        %v4031 = vpack.c.b16 %v3957, %v3955
        %v4032 = vpack.c.b16 %v3960, %v3958
        %v4033 = vpack.c.b16 %v3961, %v3959
        %v4034 = vpack.c.b16 %v3964, %v3962
        %v4035 = vpack.c.b16 %v3965, %v3963
        %v4036 = vpack.c.b16 %v3968, %v3966
        %v4037 = vpack.c.b16 %v3969, %v3967
        %v4038 = vpack.c.b16 %v3972, %v3970
        %v4039 = vpack.c.b16 %v3973, %v3971
        %v4040 = vpack.c.b16 %v3976, %v3974
        %v4041 = vpack.c.b16 %v3977, %v3975
        %v4042 = vpack.c.b16 %v3980, %v3978
        %v4043 = vpack.c.b16 %v3981, %v3979
        %v4044 = vpack.c.b16 %v3984, %v3982
        %v4045 = vpack.c.b16 %v3985, %v3983
        %v4046 = vpack.c.b16 %v3988, %v3986
        %v4047 = vpack.c.b16 %v3989, %v3987
        %v4048 = vpack.c.b16 %v3992, %v3990
        %v4049 = vpack.c.b16 %v3993, %v3991
        %v4050 = vpack.c.b16 %v3996, %v3994
        %v4051 = vpack.c.b16 %v3997, %v3995
        %v4107 = vsel %vm1266, %v3671, 0
        %v4110 = vsel %vm1266, %v3675, 0
        %v4113 = vsel %vm1266, %v3679, 0
        %v4116 = vsel %vm1266, %v3683, 0
        %v4119 = vsel %vm1266, %v3687, 0
        %v4122 = vsel %vm1266, %v3691, 0
        %v4125 = vsel %vm1266, %v3695, 0
        %v4128 = vsel %vm1266, %v3699, 0
        %v4131 = vsel %vm1266, %v3703, 0
        %v4134 = vsel %vm1266, %v3707, 0
        %v4137 = vsel %vm1266, %v3711, 0
        %v4140 = vsel %vm1266, %v3715, 0
        %v4143 = vsel %vm1266, %v3719, 0
        %v4146 = vsel %vm1266, %v3723, 0
        %v4149 = vsel %vm1266, %v3727, 0
        %v4152 = vsel %vm1266, %v3731, 0
        %v4155 = vsel %vm1266, %v3735, 0
        %v4158 = vsel %vm1266, %v3739, 0
        %v4161 = vsel %vm1266, %v3743, 0
        %v4164 = vsel %vm1266, %v3747, 0
        %v4167 = vsel %vm1266, %v3751, 0
        %v4170 = vsel %vm1266, %v3755, 0
        %v4173 = vsel %vm1266, %v3759, 0
        %v4176 = vsel %vm1266, %v3763, 0
        %4178 = vmatprep.subr.bf16.mxu0 %v4013
        %4179 = vmatpush1.bf16.msra.mxu0 %v4012
        %4180 = vmatprep.subr.bf16.mxu0 %v4011
        %4181 = vmatpush1.bf16.msra.mxu0 %v4010
        %4182 = vmatprep.subr.bf16.mxu0 %v4009
        %4183 = vmatpush1.bf16.msra.mxu0 %v4008
        %4184 = vmatprep.subr.bf16.mxu0 %v4007
        %4185 = vmatpush1.bf16.msra.mxu0 %v4006
        %4186 = vmatprep.subr.bf16.mxu0 %v4005
        %4187 = vmatpush1.bf16.msra.mxu0 %v4004
        %4188 = vmatprep.subr.bf16.mxu0 %v4003
        %4189 = vmatpush1.bf16.msra.mxu0 %v4002
        %4190 = vmatprep.subr.bf16.mxu0 %v4001
        %4191 = vmatpush1.bf16.msra.mxu0 %v4000
        %4192 = vmatprep.subr.bf16.mxu0 %v3999
        %4193 = vmatpush1.bf16.msra.mxu0 %v3998
        %4194 = vmatprep.subr.bf16.mxu0 %v4029
        %4195 = vmatpush2.bf16.msra.mxu0 %v4028
        %4196 = vmatprep.subr.bf16.mxu0 %v4027
        %4197 = vmatpush2.bf16.msra.mxu0 %v4026
        %4198 = vmatprep.subr.bf16.mxu0 %v4025
        %4199 = vmatpush2.bf16.msra.mxu0 %v4024
        %4200 = vmatprep.subr.bf16.mxu0 %v4023
        %4201 = vmatpush2.bf16.msra.mxu0 %v4022
        %4202 = vmatprep.subr.bf16.mxu0 %v4021
        %4203 = vmatpush2.bf16.msra.mxu0 %v4020
        %4204 = vmatprep.subr.bf16.mxu0 %v4019
        %4205 = vmatpush2.bf16.msra.mxu0 %v4018
        %4206 = vmatprep.subr.bf16.mxu0 %v4017
        %4207 = vmatpush2.bf16.msra.mxu0 %v4016
        %4208 = vmatprep.subr.bf16.mxu0 %v4015
        %4209 = vmatpush2.bf16.msra.mxu0 %v4014
        %4210 = vmatprep.mubr.bf16.mxu0 %v3669
        %4211 = vmatmul.mubr.bf16.gmra.mxu0 %v3668
        %v4212 = vpop.f32.mrf.mxu0
        %v4213 = vadd.f32 0.0, %v4212
        %v4214 = vpop.f32.mrf.mxu0
        %v4215 = vadd.f32 0.0, %v4214
        %v4216 = vpop.f32.mrf.mxu0
        %v4217 = vadd.f32 0.0, %v4216
        %v4218 = vpop.f32.mrf.mxu0
        %v4219 = vadd.f32 0.0, %v4218
        %4220 = vmatprep.mubr.bf16.mxu0 %v3673
        %4221 = vmatmul.mubr.bf16.gmra.mxu0 %v3672
        %v4222 = vpop.f32.mrf.mxu0
        %v4223 = vadd.f32 0.0, %v4222
        %v4224 = vpop.f32.mrf.mxu0
        %v4225 = vadd.f32 0.0, %v4224
        %v4226 = vpop.f32.mrf.mxu0
        %v4227 = vadd.f32 0.0, %v4226
        %v4228 = vpop.f32.mrf.mxu0
        %v4229 = vadd.f32 0.0, %v4228
        %4230 = vmatprep.mubr.bf16.mxu0 %v3677
        %4231 = vmatmul.mubr.bf16.gmra.mxu0 %v3676
        %v4232 = vpop.f32.mrf.mxu0
        %v4233 = vadd.f32 0.0, %v4232
        %v4234 = vpop.f32.mrf.mxu0
        %v4235 = vadd.f32 0.0, %v4234
        %v4236 = vpop.f32.mrf.mxu0
        %v4237 = vadd.f32 0.0, %v4236
        %v4238 = vpop.f32.mrf.mxu0
        %v4239 = vadd.f32 0.0, %v4238
        %4240 = vmatprep.mubr.bf16.mxu0 %v3681
        %4241 = vmatmul.mubr.bf16.gmra.mxu0 %v3680
        %v4242 = vpop.f32.mrf.mxu0
        %v4243 = vadd.f32 0.0, %v4242
        %v4244 = vpop.f32.mrf.mxu0
        %v4245 = vadd.f32 0.0, %v4244
        %v4246 = vpop.f32.mrf.mxu0
        %v4247 = vadd.f32 0.0, %v4246
        %v4248 = vpop.f32.mrf.mxu0
        %v4249 = vadd.f32 0.0, %v4248
        %4250 = vmatprep.mubr.bf16.mxu0 %v3685
        %4251 = vmatmul.mubr.bf16.gmra.mxu0 %v3684
        %v4252 = vpop.f32.mrf.mxu0
        %v4253 = vadd.f32 0.0, %v4252
        %v4254 = vpop.f32.mrf.mxu0
        %v4255 = vadd.f32 0.0, %v4254
        %v4256 = vpop.f32.mrf.mxu0
        %v4257 = vadd.f32 0.0, %v4256
        %v4258 = vpop.f32.mrf.mxu0
        %v4259 = vadd.f32 0.0, %v4258
        %4260 = vmatprep.mubr.bf16.mxu0 %v3689
        %4261 = vmatmul.mubr.bf16.gmra.mxu0 %v3688
        %v4262 = vpop.f32.mrf.mxu0
        %v4263 = vadd.f32 0.0, %v4262
        %v4264 = vpop.f32.mrf.mxu0
        %v4265 = vadd.f32 0.0, %v4264
        %v4266 = vpop.f32.mrf.mxu0
        %v4267 = vadd.f32 0.0, %v4266
        %v4268 = vpop.f32.mrf.mxu0
        %v4269 = vadd.f32 0.0, %v4268
        %4270 = vmatprep.mubr.bf16.mxu0 %v3693
        %4271 = vmatmul.mubr.bf16.gmra.mxu0 %v3692
        %v4272 = vpop.f32.mrf.mxu0
        %v4273 = vadd.f32 0.0, %v4272
        %v4274 = vpop.f32.mrf.mxu0
        %v4275 = vadd.f32 0.0, %v4274
        %v4276 = vpop.f32.mrf.mxu0
        %v4277 = vadd.f32 0.0, %v4276
        %v4278 = vpop.f32.mrf.mxu0
        %v4279 = vadd.f32 0.0, %v4278
        %4280 = vmatprep.mubr.bf16.mxu0 %v3697
        %4281 = vmatmul.mubr.bf16.gmra.mxu0 %v3696
        %v4282 = vpop.f32.mrf.mxu0
        %v4283 = vadd.f32 0.0, %v4282
        %v4284 = vpop.f32.mrf.mxu0
        %v4285 = vadd.f32 0.0, %v4284
        %v4286 = vpop.f32.mrf.mxu0
        %v4287 = vadd.f32 0.0, %v4286
        %v4288 = vpop.f32.mrf.mxu0
        %v4289 = vadd.f32 0.0, %v4288
        %4290 = vmatprep.mubr.bf16.mxu0 %v3701
        %4291 = vmatmul.mubr.bf16.gmra.mxu0 %v3700
        %v4292 = vpop.f32.mrf.mxu0
        %v4293 = vadd.f32 0.0, %v4292
        %v4294 = vpop.f32.mrf.mxu0
        %v4295 = vadd.f32 0.0, %v4294
        %v4296 = vpop.f32.mrf.mxu0
        %v4297 = vadd.f32 0.0, %v4296
        %v4298 = vpop.f32.mrf.mxu0
        %v4299 = vadd.f32 0.0, %v4298
        %4300 = vmatprep.mubr.bf16.mxu0 %v3705
        %4301 = vmatmul.mubr.bf16.gmra.mxu0 %v3704
        %v4302 = vpop.f32.mrf.mxu0
        %v4303 = vadd.f32 0.0, %v4302
        %v4304 = vpop.f32.mrf.mxu0
        %v4305 = vadd.f32 0.0, %v4304
        %v4306 = vpop.f32.mrf.mxu0
        %v4307 = vadd.f32 0.0, %v4306
        %v4308 = vpop.f32.mrf.mxu0
        %v4309 = vadd.f32 0.0, %v4308
        %4310 = vmatprep.mubr.bf16.mxu0 %v3709
        %4311 = vmatmul.mubr.bf16.gmra.mxu0 %v3708
        %v4312 = vpop.f32.mrf.mxu0
        %v4313 = vadd.f32 0.0, %v4312
        %v4314 = vpop.f32.mrf.mxu0
        %v4315 = vadd.f32 0.0, %v4314
        %v4316 = vpop.f32.mrf.mxu0
        %v4317 = vadd.f32 0.0, %v4316
        %v4318 = vpop.f32.mrf.mxu0
        %v4319 = vadd.f32 0.0, %v4318
        %4320 = vmatprep.mubr.bf16.mxu0 %v3713
        %4321 = vmatmul.mubr.bf16.gmra.mxu0 %v3712
        %v4322 = vpop.f32.mrf.mxu0
        %v4323 = vadd.f32 0.0, %v4322
        %v4324 = vpop.f32.mrf.mxu0
        %v4325 = vadd.f32 0.0, %v4324
        %v4326 = vpop.f32.mrf.mxu0
        %v4327 = vadd.f32 0.0, %v4326
        %v4328 = vpop.f32.mrf.mxu0
        %v4329 = vadd.f32 0.0, %v4328
        %4330 = vmatprep.mubr.bf16.mxu0 %v3717
        %4331 = vmatmul.mubr.bf16.gmra.mxu0 %v3716
        %v4332 = vpop.f32.mrf.mxu0
        %v4333 = vadd.f32 0.0, %v4332
        %v4334 = vpop.f32.mrf.mxu0
        %v4335 = vadd.f32 0.0, %v4334
        %v4336 = vpop.f32.mrf.mxu0
        %v4337 = vadd.f32 0.0, %v4336
        %v4338 = vpop.f32.mrf.mxu0
        %v4339 = vadd.f32 0.0, %v4338
        %4340 = vmatprep.mubr.bf16.mxu0 %v3721
        %4341 = vmatmul.mubr.bf16.gmra.mxu0 %v3720
        %v4342 = vpop.f32.mrf.mxu0
        %v4343 = vadd.f32 0.0, %v4342
        %v4344 = vpop.f32.mrf.mxu0
        %v4345 = vadd.f32 0.0, %v4344
        %v4346 = vpop.f32.mrf.mxu0
        %v4347 = vadd.f32 0.0, %v4346
        %v4348 = vpop.f32.mrf.mxu0
        %v4349 = vadd.f32 0.0, %v4348
        %4350 = vmatprep.mubr.bf16.mxu0 %v3725
        %4351 = vmatmul.mubr.bf16.gmra.mxu0 %v3724
        %v4352 = vpop.f32.mrf.mxu0
        %v4353 = vadd.f32 0.0, %v4352
        %v4354 = vpop.f32.mrf.mxu0
        %v4355 = vadd.f32 0.0, %v4354
        %v4356 = vpop.f32.mrf.mxu0
        %v4357 = vadd.f32 0.0, %v4356
        %v4358 = vpop.f32.mrf.mxu0
        %v4359 = vadd.f32 0.0, %v4358
        %4360 = vmatprep.mubr.bf16.mxu0 %v3729
        %4361 = vmatmul.mubr.bf16.gmra.mxu0 %v3728
        %v4362 = vpop.f32.mrf.mxu0
        %v4363 = vadd.f32 0.0, %v4362
        %v4364 = vpop.f32.mrf.mxu0
        %v4365 = vadd.f32 0.0, %v4364
        %v4366 = vpop.f32.mrf.mxu0
        %v4367 = vadd.f32 0.0, %v4366
        %v4368 = vpop.f32.mrf.mxu0
        %v4369 = vadd.f32 0.0, %v4368
        %4370 = vmatprep.mubr.bf16.mxu0 %v3733
        %4371 = vmatmul.mubr.bf16.gmra.mxu0 %v3732
        %v4372 = vpop.f32.mrf.mxu0
        %v4373 = vadd.f32 0.0, %v4372
        %v4374 = vpop.f32.mrf.mxu0
        %v4375 = vadd.f32 0.0, %v4374
        %v4376 = vpop.f32.mrf.mxu0
        %v4377 = vadd.f32 0.0, %v4376
        %v4378 = vpop.f32.mrf.mxu0
        %v4379 = vadd.f32 0.0, %v4378
        %4380 = vmatprep.mubr.bf16.mxu0 %v3737
        %4381 = vmatmul.mubr.bf16.gmra.mxu0 %v3736
        %v4382 = vpop.f32.mrf.mxu0
        %v4383 = vadd.f32 0.0, %v4382
        %v4384 = vpop.f32.mrf.mxu0
        %v4385 = vadd.f32 0.0, %v4384
        %v4386 = vpop.f32.mrf.mxu0
        %v4387 = vadd.f32 0.0, %v4386
        %v4388 = vpop.f32.mrf.mxu0
        %v4389 = vadd.f32 0.0, %v4388
        %4390 = vmatprep.mubr.bf16.mxu0 %v3741
        %4391 = vmatmul.mubr.bf16.gmra.mxu0 %v3740
        %v4392 = vpop.f32.mrf.mxu0
        %v4393 = vadd.f32 0.0, %v4392
        %v4394 = vpop.f32.mrf.mxu0
        %v4395 = vadd.f32 0.0, %v4394
        %v4396 = vpop.f32.mrf.mxu0
        %v4397 = vadd.f32 0.0, %v4396
        %v4398 = vpop.f32.mrf.mxu0
        %v4399 = vadd.f32 0.0, %v4398
        %4400 = vmatprep.mubr.bf16.mxu0 %v3745
        %4401 = vmatmul.mubr.bf16.gmra.mxu0 %v3744
        %v4402 = vpop.f32.mrf.mxu0
        %v4403 = vadd.f32 0.0, %v4402
        %v4404 = vpop.f32.mrf.mxu0
        %v4405 = vadd.f32 0.0, %v4404
        %v4406 = vpop.f32.mrf.mxu0
        %v4407 = vadd.f32 0.0, %v4406
        %v4408 = vpop.f32.mrf.mxu0
        %v4409 = vadd.f32 0.0, %v4408
        %4410 = vmatprep.mubr.bf16.mxu0 %v3749
        %4411 = vmatmul.mubr.bf16.gmra.mxu0 %v3748
        %v4412 = vpop.f32.mrf.mxu0
        %v4413 = vadd.f32 0.0, %v4412
        %v4414 = vpop.f32.mrf.mxu0
        %v4415 = vadd.f32 0.0, %v4414
        %v4416 = vpop.f32.mrf.mxu0
        %v4417 = vadd.f32 0.0, %v4416
        %v4418 = vpop.f32.mrf.mxu0
        %v4419 = vadd.f32 0.0, %v4418
        %4420 = vmatprep.mubr.bf16.mxu0 %v3753
        %4421 = vmatmul.mubr.bf16.gmra.mxu0 %v3752
        %v4422 = vpop.f32.mrf.mxu0
        %v4423 = vadd.f32 0.0, %v4422
        %v4424 = vpop.f32.mrf.mxu0
        %v4425 = vadd.f32 0.0, %v4424
        %v4426 = vpop.f32.mrf.mxu0
        %v4427 = vadd.f32 0.0, %v4426
        %v4428 = vpop.f32.mrf.mxu0
        %v4429 = vadd.f32 0.0, %v4428
        %4430 = vmatprep.mubr.bf16.mxu0 %v3757
        %4431 = vmatmul.mubr.bf16.gmra.mxu0 %v3756
        %v4432 = vpop.f32.mrf.mxu0
        %v4433 = vadd.f32 0.0, %v4432
        %v4434 = vpop.f32.mrf.mxu0
        %v4435 = vadd.f32 0.0, %v4434
        %v4436 = vpop.f32.mrf.mxu0
        %v4437 = vadd.f32 0.0, %v4436
        %v4438 = vpop.f32.mrf.mxu0
        %v4439 = vadd.f32 0.0, %v4438
        %4440 = vmatprep.mubr.bf16.mxu0 %v3761
        %4441 = vmatmul.mubr.bf16.gmra.mxu0 %v3760
        %v4442 = vpop.f32.mrf.mxu0
        %v4443 = vadd.f32 0.0, %v4442
        %v4444 = vpop.f32.mrf.mxu0
        %v4445 = vadd.f32 0.0, %v4444
        %v4446 = vpop.f32.mrf.mxu0
        %v4447 = vadd.f32 0.0, %v4446
        %v4448 = vpop.f32.mrf.mxu0
        %v4449 = vadd.f32 0.0, %v4448
        %4450 = vdwg.mxu0
        %4451 = vmatprep.subr.bf16.mxu0 %v4045
        %4452 = vmatpush1.bf16.msra.mxu0 %v4044
        %4453 = vmatprep.subr.bf16.mxu0 %v4043
        %4454 = vmatpush1.bf16.msra.mxu0 %v4042
        %4455 = vmatprep.subr.bf16.mxu0 %v4041
        %4456 = vmatpush1.bf16.msra.mxu0 %v4040
        %4457 = vmatprep.subr.bf16.mxu0 %v4039
        %4458 = vmatpush1.bf16.msra.mxu0 %v4038
        %4459 = vmatprep.subr.bf16.mxu0 %v4037
        %4460 = vmatpush1.bf16.msra.mxu0 %v4036
        %4461 = vmatprep.subr.bf16.mxu0 %v4035
        %4462 = vmatpush1.bf16.msra.mxu0 %v4034
        %4463 = vmatprep.subr.bf16.mxu0 %v4033
        %4464 = vmatpush1.bf16.msra.mxu0 %v4032
        %4465 = vmatprep.subr.bf16.mxu0 %v4031
        %4466 = vmatpush1.bf16.msra.mxu0 %v4030
        %4467 = vmatprep.subr.bf16.mxu0 0
        %4468 = vmatpush2.bf16.msra.mxu0 0
        %4469 = vmatprep.subr.bf16.mxu0 0
        %4470 = vmatpush2.bf16.msra.mxu0 0
        %4471 = vmatprep.subr.bf16.mxu0 0
        %4472 = vmatpush2.bf16.msra.mxu0 0
        %4473 = vmatprep.subr.bf16.mxu0 0
        %4474 = vmatpush2.bf16.msra.mxu0 0
        %4475 = vmatprep.subr.bf16.mxu0 0
        %4476 = vmatpush2.bf16.msra.mxu0 0
        %4477 = vmatprep.subr.bf16.mxu0 %v4051
        %4478 = vmatpush2.bf16.msra.mxu0 %v4050
        %4479 = vmatprep.subr.bf16.mxu0 %v4049
        %4480 = vmatpush2.bf16.msra.mxu0 %v4048
        %4481 = vmatprep.subr.bf16.mxu0 %v4047
        %4482 = vmatpush2.bf16.msra.mxu0 %v4046
        %4483 = vmatprep.mubr.bf16.mxu0 %v4107
        %4484 = vmatmul.mubr.bf16.gmra.mxu0 %v3670
        %v4485 = vpop.f32.mrf.mxu0
        %v4486 = vadd.f32 %v4213, %v4485
        %v4487 = vpop.f32.mrf.mxu0
        %v4488 = vadd.f32 %v4215, %v4487
        %v4489 = vpop.f32.mrf.mxu0
        %v4490 = vadd.f32 %v4217, %v4489
        %v4491 = vpop.f32.mrf.mxu0
        %v4492 = vadd.f32 %v4219, %v4491
        %4493 = vmatprep.mubr.bf16.mxu0 %v4110
        %4494 = vmatmul.mubr.bf16.gmra.mxu0 %v3674
        %v4495 = vpop.f32.mrf.mxu0
        %v4496 = vadd.f32 %v4223, %v4495
        %v4497 = vpop.f32.mrf.mxu0
        %v4498 = vadd.f32 %v4225, %v4497
        %v4499 = vpop.f32.mrf.mxu0
        %v4500 = vadd.f32 %v4227, %v4499
        %v4501 = vpop.f32.mrf.mxu0
        %v4502 = vadd.f32 %v4229, %v4501
        %4503 = vmatprep.mubr.bf16.mxu0 %v4113
        %4504 = vmatmul.mubr.bf16.gmra.mxu0 %v3678
        %v4505 = vpop.f32.mrf.mxu0
        %v4506 = vadd.f32 %v4233, %v4505
        %v4507 = vpop.f32.mrf.mxu0
        %v4508 = vadd.f32 %v4235, %v4507
        %v4509 = vpop.f32.mrf.mxu0
        %v4510 = vadd.f32 %v4237, %v4509
        %v4511 = vpop.f32.mrf.mxu0
        %v4512 = vadd.f32 %v4239, %v4511
        %4513 = vmatprep.mubr.bf16.mxu0 %v4116
        %4514 = vmatmul.mubr.bf16.gmra.mxu0 %v3682
        %v4515 = vpop.f32.mrf.mxu0
        %v4516 = vadd.f32 %v4243, %v4515
        %v4517 = vpop.f32.mrf.mxu0
        %v4518 = vadd.f32 %v4245, %v4517
        %v4519 = vpop.f32.mrf.mxu0
        %v4520 = vadd.f32 %v4247, %v4519
        %v4521 = vpop.f32.mrf.mxu0
        %v4522 = vadd.f32 %v4249, %v4521
        %4523 = vmatprep.mubr.bf16.mxu0 %v4119
        %4524 = vmatmul.mubr.bf16.gmra.mxu0 %v3686
        %v4525 = vpop.f32.mrf.mxu0
        %v4526 = vadd.f32 %v4253, %v4525
        %v4527 = vpop.f32.mrf.mxu0
        %v4528 = vadd.f32 %v4255, %v4527
        %v4529 = vpop.f32.mrf.mxu0
        %v4530 = vadd.f32 %v4257, %v4529
        %v4531 = vpop.f32.mrf.mxu0
        %v4532 = vadd.f32 %v4259, %v4531
        %4533 = vmatprep.mubr.bf16.mxu0 %v4122
        %4534 = vmatmul.mubr.bf16.gmra.mxu0 %v3690
        %v4535 = vpop.f32.mrf.mxu0
        %v4536 = vadd.f32 %v4263, %v4535
        %v4537 = vpop.f32.mrf.mxu0
        %v4538 = vadd.f32 %v4265, %v4537
        %v4539 = vpop.f32.mrf.mxu0
        %v4540 = vadd.f32 %v4267, %v4539
        %v4541 = vpop.f32.mrf.mxu0
        %v4542 = vadd.f32 %v4269, %v4541
        %4543 = vmatprep.mubr.bf16.mxu0 %v4125
        %4544 = vmatmul.mubr.bf16.gmra.mxu0 %v3694
        %v4545 = vpop.f32.mrf.mxu0
        %v4546 = vadd.f32 %v4273, %v4545
        %v4547 = vpop.f32.mrf.mxu0
        %v4548 = vadd.f32 %v4275, %v4547
        %v4549 = vpop.f32.mrf.mxu0
        %v4550 = vadd.f32 %v4277, %v4549
        %v4551 = vpop.f32.mrf.mxu0
        %v4552 = vadd.f32 %v4279, %v4551
        %4553 = vmatprep.mubr.bf16.mxu0 %v4128
        %4554 = vmatmul.mubr.bf16.gmra.mxu0 %v3698
        %v4555 = vpop.f32.mrf.mxu0
        %v4556 = vadd.f32 %v4283, %v4555
        %v4557 = vpop.f32.mrf.mxu0
        %v4558 = vadd.f32 %v4285, %v4557
        %v4559 = vpop.f32.mrf.mxu0
        %v4560 = vadd.f32 %v4287, %v4559
        %v4561 = vpop.f32.mrf.mxu0
        %v4562 = vadd.f32 %v4289, %v4561
        %4563 = vmatprep.mubr.bf16.mxu0 %v4131
        %4564 = vmatmul.mubr.bf16.gmra.mxu0 %v3702
        %v4565 = vpop.f32.mrf.mxu0
        %v4566 = vadd.f32 %v4293, %v4565
        %v4567 = vpop.f32.mrf.mxu0
        %v4568 = vadd.f32 %v4295, %v4567
        %v4569 = vpop.f32.mrf.mxu0
        %v4570 = vadd.f32 %v4297, %v4569
        %v4571 = vpop.f32.mrf.mxu0
        %v4572 = vadd.f32 %v4299, %v4571
        %4573 = vmatprep.mubr.bf16.mxu0 %v4134
        %4574 = vmatmul.mubr.bf16.gmra.mxu0 %v3706
        %v4575 = vpop.f32.mrf.mxu0
        %v4576 = vadd.f32 %v4303, %v4575
        %v4577 = vpop.f32.mrf.mxu0
        %v4578 = vadd.f32 %v4305, %v4577
        %v4579 = vpop.f32.mrf.mxu0
        %v4580 = vadd.f32 %v4307, %v4579
        %v4581 = vpop.f32.mrf.mxu0
        %v4582 = vadd.f32 %v4309, %v4581
        %4583 = vmatprep.mubr.bf16.mxu0 %v4137
        %4584 = vmatmul.mubr.bf16.gmra.mxu0 %v3710
        %v4585 = vpop.f32.mrf.mxu0
        %v4586 = vadd.f32 %v4313, %v4585
        %v4587 = vpop.f32.mrf.mxu0
        %v4588 = vadd.f32 %v4315, %v4587
        %v4589 = vpop.f32.mrf.mxu0
        %v4590 = vadd.f32 %v4317, %v4589
        %v4591 = vpop.f32.mrf.mxu0
        %v4592 = vadd.f32 %v4319, %v4591
        %4593 = vmatprep.mubr.bf16.mxu0 %v4140
        %4594 = vmatmul.mubr.bf16.gmra.mxu0 %v3714
        %v4595 = vpop.f32.mrf.mxu0
        %v4596 = vadd.f32 %v4323, %v4595
        %v4597 = vpop.f32.mrf.mxu0
        %v4598 = vadd.f32 %v4325, %v4597
        %v4599 = vpop.f32.mrf.mxu0
        %v4600 = vadd.f32 %v4327, %v4599
        %v4601 = vpop.f32.mrf.mxu0
        %v4602 = vadd.f32 %v4329, %v4601
        %4603 = vmatprep.mubr.bf16.mxu0 %v4143
        %4604 = vmatmul.mubr.bf16.gmra.mxu0 %v3718
        %v4605 = vpop.f32.mrf.mxu0
        %v4606 = vadd.f32 %v4333, %v4605
        %v4607 = vpop.f32.mrf.mxu0
        %v4608 = vadd.f32 %v4335, %v4607
        %v4609 = vpop.f32.mrf.mxu0
        %v4610 = vadd.f32 %v4337, %v4609
        %v4611 = vpop.f32.mrf.mxu0
        %v4612 = vadd.f32 %v4339, %v4611
        %4613 = vmatprep.mubr.bf16.mxu0 %v4146
        %4614 = vmatmul.mubr.bf16.gmra.mxu0 %v3722
        %v4615 = vpop.f32.mrf.mxu0
        %v4616 = vadd.f32 %v4343, %v4615
        %v4617 = vpop.f32.mrf.mxu0
        %v4618 = vadd.f32 %v4345, %v4617
        %v4619 = vpop.f32.mrf.mxu0
        %v4620 = vadd.f32 %v4347, %v4619
        %v4621 = vpop.f32.mrf.mxu0
        %v4622 = vadd.f32 %v4349, %v4621
        %4623 = vmatprep.mubr.bf16.mxu0 %v4149
        %4624 = vmatmul.mubr.bf16.gmra.mxu0 %v3726
        %v4625 = vpop.f32.mrf.mxu0
        %v4626 = vadd.f32 %v4353, %v4625
        %v4627 = vpop.f32.mrf.mxu0
        %v4628 = vadd.f32 %v4355, %v4627
        %v4629 = vpop.f32.mrf.mxu0
        %v4630 = vadd.f32 %v4357, %v4629
        %v4631 = vpop.f32.mrf.mxu0
        %v4632 = vadd.f32 %v4359, %v4631
        %4633 = vmatprep.mubr.bf16.mxu0 %v4152
        %4634 = vmatmul.mubr.bf16.gmra.mxu0 %v3730
        %v4635 = vpop.f32.mrf.mxu0
        %v4636 = vadd.f32 %v4363, %v4635
        %v4637 = vpop.f32.mrf.mxu0
        %v4638 = vadd.f32 %v4365, %v4637
        %v4639 = vpop.f32.mrf.mxu0
        %v4640 = vadd.f32 %v4367, %v4639
        %v4641 = vpop.f32.mrf.mxu0
        %v4642 = vadd.f32 %v4369, %v4641
        %4643 = vmatprep.mubr.bf16.mxu0 %v4155
        %4644 = vmatmul.mubr.bf16.gmra.mxu0 %v3734
        %v4645 = vpop.f32.mrf.mxu0
        %v4646 = vadd.f32 %v4373, %v4645
        %v4647 = vpop.f32.mrf.mxu0
        %v4648 = vadd.f32 %v4375, %v4647
        %v4649 = vpop.f32.mrf.mxu0
        %v4650 = vadd.f32 %v4377, %v4649
        %v4651 = vpop.f32.mrf.mxu0
        %v4652 = vadd.f32 %v4379, %v4651
        %4653 = vmatprep.mubr.bf16.mxu0 %v4158
        %4654 = vmatmul.mubr.bf16.gmra.mxu0 %v3738
        %v4655 = vpop.f32.mrf.mxu0
        %v4656 = vadd.f32 %v4383, %v4655
        %v4657 = vpop.f32.mrf.mxu0
        %v4658 = vadd.f32 %v4385, %v4657
        %v4659 = vpop.f32.mrf.mxu0
        %v4660 = vadd.f32 %v4387, %v4659
        %v4661 = vpop.f32.mrf.mxu0
        %v4662 = vadd.f32 %v4389, %v4661
        %4663 = vmatprep.mubr.bf16.mxu0 %v4161
        %4664 = vmatmul.mubr.bf16.gmra.mxu0 %v3742
        %v4665 = vpop.f32.mrf.mxu0
        %v4666 = vadd.f32 %v4393, %v4665
        %v4667 = vpop.f32.mrf.mxu0
        %v4668 = vadd.f32 %v4395, %v4667
        %v4669 = vpop.f32.mrf.mxu0
        %v4670 = vadd.f32 %v4397, %v4669
        %v4671 = vpop.f32.mrf.mxu0
        %v4672 = vadd.f32 %v4399, %v4671
        %4673 = vmatprep.mubr.bf16.mxu0 %v4164
        %4674 = vmatmul.mubr.bf16.gmra.mxu0 %v3746
        %v4675 = vpop.f32.mrf.mxu0
        %v4676 = vadd.f32 %v4403, %v4675
        %v4677 = vpop.f32.mrf.mxu0
        %v4678 = vadd.f32 %v4405, %v4677
        %v4679 = vpop.f32.mrf.mxu0
        %v4680 = vadd.f32 %v4407, %v4679
        %v4681 = vpop.f32.mrf.mxu0
        %v4682 = vadd.f32 %v4409, %v4681
        %4683 = vmatprep.mubr.bf16.mxu0 %v4167
        %4684 = vmatmul.mubr.bf16.gmra.mxu0 %v3750
        %v4685 = vpop.f32.mrf.mxu0
        %v4686 = vadd.f32 %v4413, %v4685
        %v4687 = vpop.f32.mrf.mxu0
        %v4688 = vadd.f32 %v4415, %v4687
        %v4689 = vpop.f32.mrf.mxu0
        %v4690 = vadd.f32 %v4417, %v4689
        %v4691 = vpop.f32.mrf.mxu0
        %v4692 = vadd.f32 %v4419, %v4691
        %4693 = vmatprep.mubr.bf16.mxu0 %v4170
        %4694 = vmatmul.mubr.bf16.gmra.mxu0 %v3754
        %v4695 = vpop.f32.mrf.mxu0
        %v4696 = vadd.f32 %v4423, %v4695
        %v4697 = vpop.f32.mrf.mxu0
        %v4698 = vadd.f32 %v4425, %v4697
        %v4699 = vpop.f32.mrf.mxu0
        %v4700 = vadd.f32 %v4427, %v4699
        %v4701 = vpop.f32.mrf.mxu0
        %v4702 = vadd.f32 %v4429, %v4701
        %4703 = vmatprep.mubr.bf16.mxu0 %v4173
        %4704 = vmatmul.mubr.bf16.gmra.mxu0 %v3758
        %v4705 = vpop.f32.mrf.mxu0
        %v4706 = vadd.f32 %v4433, %v4705
        %v4707 = vpop.f32.mrf.mxu0
        %v4708 = vadd.f32 %v4435, %v4707
        %v4709 = vpop.f32.mrf.mxu0
        %v4710 = vadd.f32 %v4437, %v4709
        %v4711 = vpop.f32.mrf.mxu0
        %v4712 = vadd.f32 %v4439, %v4711
        %4713 = vmatprep.mubr.bf16.mxu0 %v4176
        %4714 = vmatmul.mubr.bf16.gmra.mxu0 %v3762
        %v4715 = vpop.f32.mrf.mxu0
        %v4716 = vadd.f32 %v4443, %v4715
        %v4717 = vpop.f32.mrf.mxu0
        %v4718 = vadd.f32 %v4445, %v4717
        %v4719 = vpop.f32.mrf.mxu0
        %v4720 = vadd.f32 %v4447, %v4719
        %v4721 = vpop.f32.mrf.mxu0
        %v4722 = vadd.f32 %v4449, %v4721
        %4723 = vdwg.mxu0
        %v4724 = vadd.f32 %v2991, %v4486
        %v4725 = vadd.f32 %v2993, %v4488
        %v4726 = vadd.f32 %v2995, %v4490
        %v4727 = vadd.f32 %v2997, %v4492
        %v4728 = vadd.f32 %v3001, %v4496
        %v4729 = vadd.f32 %v3003, %v4498
        %v4730 = vadd.f32 %v3005, %v4500
        %v4731 = vadd.f32 %v3007, %v4502
        %v4732 = vadd.f32 %v3011, %v4506
        %v4733 = vadd.f32 %v3013, %v4508
        %v4734 = vadd.f32 %v3015, %v4510
        %v4735 = vadd.f32 %v3017, %v4512
        %v4736 = vadd.f32 %v3021, %v4516
        %v4737 = vadd.f32 %v3023, %v4518
        %v4738 = vadd.f32 %v3025, %v4520
        %v4739 = vadd.f32 %v3027, %v4522
        %v4740 = vadd.f32 %v3031, %v4526
        %v4741 = vadd.f32 %v3033, %v4528
        %v4742 = vadd.f32 %v3035, %v4530
        %v4743 = vadd.f32 %v3037, %v4532
        %v4744 = vadd.f32 %v3041, %v4536
        %v4745 = vadd.f32 %v3043, %v4538
        %v4746 = vadd.f32 %v3045, %v4540
        %v4747 = vadd.f32 %v3047, %v4542
        %v4748 = vadd.f32 %v3051, %v4546
        %v4749 = vadd.f32 %v3053, %v4548
        %v4750 = vadd.f32 %v3055, %v4550
        %v4751 = vadd.f32 %v3057, %v4552
        %v4752 = vadd.f32 %v3061, %v4556
        %v4753 = vadd.f32 %v3063, %v4558
        %v4754 = vadd.f32 %v3065, %v4560
        %v4755 = vadd.f32 %v3067, %v4562
        %v4756 = vadd.f32 %v3071, %v4566
        %v4757 = vadd.f32 %v3073, %v4568
        %v4758 = vadd.f32 %v3075, %v4570
        %v4759 = vadd.f32 %v3077, %v4572
        %v4760 = vadd.f32 %v3081, %v4576
        %v4761 = vadd.f32 %v3083, %v4578
        %v4762 = vadd.f32 %v3085, %v4580
        %v4763 = vadd.f32 %v3087, %v4582
        %v4764 = vadd.f32 %v3091, %v4586
        %v4765 = vadd.f32 %v3093, %v4588
        %v4766 = vadd.f32 %v3095, %v4590
        %v4767 = vadd.f32 %v3097, %v4592
        %v4768 = vadd.f32 %v3101, %v4596
        %v4769 = vadd.f32 %v3103, %v4598
        %v4770 = vadd.f32 %v3105, %v4600
        %v4771 = vadd.f32 %v3107, %v4602
        %v4772 = vadd.f32 %v3111, %v4606
        %v4773 = vadd.f32 %v3113, %v4608
        %v4774 = vadd.f32 %v3115, %v4610
        %v4775 = vadd.f32 %v3117, %v4612
        %v4776 = vadd.f32 %v3121, %v4616
        %v4777 = vadd.f32 %v3123, %v4618
        %v4778 = vadd.f32 %v3125, %v4620
        %v4779 = vadd.f32 %v3127, %v4622
        %v4780 = vadd.f32 %v3131, %v4626
        %v4781 = vadd.f32 %v3133, %v4628
        %v4782 = vadd.f32 %v3135, %v4630
        %v4783 = vadd.f32 %v3137, %v4632
        %v4784 = vadd.f32 %v3141, %v4636
        %v4785 = vadd.f32 %v3143, %v4638
        %v4786 = vadd.f32 %v3145, %v4640
        %v4787 = vadd.f32 %v3147, %v4642
        %v4788 = vadd.f32 %v3151, %v4646
        %v4789 = vadd.f32 %v3153, %v4648
        %v4790 = vadd.f32 %v3155, %v4650
        %v4791 = vadd.f32 %v3157, %v4652
        %v4792 = vadd.f32 %v3161, %v4656
        %v4793 = vadd.f32 %v3163, %v4658
        %v4794 = vadd.f32 %v3165, %v4660
        %v4795 = vadd.f32 %v3167, %v4662
        %v4796 = vadd.f32 %v3171, %v4666
        %v4797 = vadd.f32 %v3173, %v4668
        %v4798 = vadd.f32 %v3175, %v4670
        %v4799 = vadd.f32 %v3177, %v4672
        %v4800 = vadd.f32 %v3181, %v4676
        %v4801 = vadd.f32 %v3183, %v4678
        %v4802 = vadd.f32 %v3185, %v4680
        %v4803 = vadd.f32 %v3187, %v4682
        %v4804 = vadd.f32 %v3191, %v4686
        %v4805 = vadd.f32 %v3193, %v4688
        %v4806 = vadd.f32 %v3195, %v4690
        %v4807 = vadd.f32 %v3197, %v4692
        %v4808 = vadd.f32 %v3201, %v4696
        %v4809 = vadd.f32 %v3203, %v4698
        %v4810 = vadd.f32 %v3205, %v4700
        %v4811 = vadd.f32 %v3207, %v4702
        %v4812 = vadd.f32 %v3211, %v4706
        %v4813 = vadd.f32 %v3213, %v4708
        %v4814 = vadd.f32 %v3215, %v4710
        %v4815 = vadd.f32 %v3217, %v4712
        %v4816 = vadd.f32 %v3221, %v4716
        %v4817 = vadd.f32 %v3223, %v4718
        %v4818 = vadd.f32 %v3225, %v4720
        %v4819 = vadd.f32 %v3227, %v4722
        %v4820 = vld [vmem:[%s2] sm:$0x3]
        %v4822 = vlaneseq
        %v4823 = vshrl.u32 %v4822, 7
        %v4824 = vsub.s32 0, %v4823
        %v4825 = vrot.slane %v4820, %v4824
        %v4826 = vlaneseq
        %v4827 = vshrl.u32 %v4826, 7
        %v4828 = vsub.s32 1, %v4827
        %v4829 = vrot.slane %v4820, %v4828
        %v4832 = vadd.f32 %v4724, %v4825
        %v4833 = vadd.f32 %v4725, %v4829
        %v4834 = vadd.f32 %v4726, %v4825
        %v4835 = vadd.f32 %v4727, %v4829
        %v4836 = vadd.f32 %v4728, %v4825
        %v4837 = vadd.f32 %v4729, %v4829
        %v4838 = vadd.f32 %v4730, %v4825
        %v4839 = vadd.f32 %v4731, %v4829
        %v4840 = vadd.f32 %v4732, %v4825
        %v4841 = vadd.f32 %v4733, %v4829
        %v4842 = vadd.f32 %v4734, %v4825
        %v4843 = vadd.f32 %v4735, %v4829
        %v4844 = vadd.f32 %v4736, %v4825
        %v4845 = vadd.f32 %v4737, %v4829
        %v4846 = vadd.f32 %v4738, %v4825
        %v4847 = vadd.f32 %v4739, %v4829
        %v4848 = vadd.f32 %v4740, %v4825
        %v4849 = vadd.f32 %v4741, %v4829
        %v4850 = vadd.f32 %v4742, %v4825
        %v4851 = vadd.f32 %v4743, %v4829
        %v4852 = vadd.f32 %v4744, %v4825
        %v4853 = vadd.f32 %v4745, %v4829
        %v4854 = vadd.f32 %v4746, %v4825
        %v4855 = vadd.f32 %v4747, %v4829
        %v4856 = vadd.f32 %v4748, %v4825
        %v4857 = vadd.f32 %v4749, %v4829
        %v4858 = vadd.f32 %v4750, %v4825
        %v4859 = vadd.f32 %v4751, %v4829
        %v4860 = vadd.f32 %v4752, %v4825
        %v4861 = vadd.f32 %v4753, %v4829
        %v4862 = vadd.f32 %v4754, %v4825
        %v4863 = vadd.f32 %v4755, %v4829
        %v4864 = vadd.f32 %v4756, %v4825
        %v4865 = vadd.f32 %v4757, %v4829
        %v4866 = vadd.f32 %v4758, %v4825
        %v4867 = vadd.f32 %v4759, %v4829
        %v4868 = vadd.f32 %v4760, %v4825
        %v4869 = vadd.f32 %v4761, %v4829
        %v4870 = vadd.f32 %v4762, %v4825
        %v4871 = vadd.f32 %v4763, %v4829
        %v4872 = vadd.f32 %v4764, %v4825
        %v4873 = vadd.f32 %v4765, %v4829
        %v4874 = vadd.f32 %v4766, %v4825
        %v4875 = vadd.f32 %v4767, %v4829
        %v4876 = vadd.f32 %v4768, %v4825
        %v4877 = vadd.f32 %v4769, %v4829
        %v4878 = vadd.f32 %v4770, %v4825
        %v4879 = vadd.f32 %v4771, %v4829
        %v4880 = vadd.f32 %v4772, %v4825
        %v4881 = vadd.f32 %v4773, %v4829
        %v4882 = vadd.f32 %v4774, %v4825
        %v4883 = vadd.f32 %v4775, %v4829
        %v4884 = vadd.f32 %v4776, %v4825
        %v4885 = vadd.f32 %v4777, %v4829
        %v4886 = vadd.f32 %v4778, %v4825
        %v4887 = vadd.f32 %v4779, %v4829
        %v4888 = vadd.f32 %v4780, %v4825
        %v4889 = vadd.f32 %v4781, %v4829
        %v4890 = vadd.f32 %v4782, %v4825
        %v4891 = vadd.f32 %v4783, %v4829
        %v4892 = vadd.f32 %v4784, %v4825
        %v4893 = vadd.f32 %v4785, %v4829
        %v4894 = vadd.f32 %v4786, %v4825
        %v4895 = vadd.f32 %v4787, %v4829
        %v4896 = vadd.f32 %v4788, %v4825
        %v4897 = vadd.f32 %v4789, %v4829
        %v4898 = vadd.f32 %v4790, %v4825
        %v4899 = vadd.f32 %v4791, %v4829
        %v4900 = vadd.f32 %v4792, %v4825
        %v4901 = vadd.f32 %v4793, %v4829
        %v4902 = vadd.f32 %v4794, %v4825
        %v4903 = vadd.f32 %v4795, %v4829
        %v4904 = vadd.f32 %v4796, %v4825
        %v4905 = vadd.f32 %v4797, %v4829
        %v4906 = vadd.f32 %v4798, %v4825
        %v4907 = vadd.f32 %v4799, %v4829
        %v4908 = vadd.f32 %v4800, %v4825
        %v4909 = vadd.f32 %v4801, %v4829
        %v4910 = vadd.f32 %v4802, %v4825
        %v4911 = vadd.f32 %v4803, %v4829
        %v4912 = vadd.f32 %v4804, %v4825
        %v4913 = vadd.f32 %v4805, %v4829
        %v4914 = vadd.f32 %v4806, %v4825
        %v4915 = vadd.f32 %v4807, %v4829
        %v4916 = vadd.f32 %v4808, %v4825
        %v4917 = vadd.f32 %v4809, %v4829
        %v4918 = vadd.f32 %v4810, %v4825
        %v4919 = vadd.f32 %v4811, %v4829
        %v4920 = vadd.f32 %v4812, %v4825
        %v4921 = vadd.f32 %v4813, %v4829
        %v4922 = vadd.f32 %v4814, %v4825
        %v4923 = vadd.f32 %v4815, %v4829
        %v4924 = vadd.f32 %v4816, %v4825
        %v4925 = vadd.f32 %v4817, %v4829
        %v4926 = vadd.f32 %v4818, %v4825
        %v4927 = vadd.f32 %v4819, %v4829
        %4928 = vst [vmem:[%s208] sm:$0xff] %v4832
        %vm4929 = vcmask 130048
        %4930 = vst.msk [vmem:[%s208 + $0x8] sm:$0xff] %vm4929, %v4833
        %4931 = vst [vmem:[%s208 + $0x10] sm:$0xff] %v4834
        %4932 = vst.msk [vmem:[%s208 + $0x18] sm:$0xff] %vm4929, %v4835
        %4933 = vst [vmem:[%s208 + $0x20] sm:$0xff] %v4836
        %4934 = vst.msk [vmem:[%s208 + $0x28] sm:$0xff] %vm4929, %v4837
        %4935 = vst [vmem:[%s208 + $0x30] sm:$0xff] %v4838
        %4936 = vst.msk [vmem:[%s208 + $0x38] sm:$0xff] %vm4929, %v4839
        %4937 = vst [vmem:[%s208 + $0x40] sm:$0xff] %v4840
        %4938 = vst.msk [vmem:[%s208 + $0x48] sm:$0xff] %vm4929, %v4841
        %4939 = vst [vmem:[%s208 + $0x50] sm:$0xff] %v4842
        %4940 = vst.msk [vmem:[%s208 + $0x58] sm:$0xff] %vm4929, %v4843
        %4941 = vst [vmem:[%s208 + $0x60] sm:$0xff] %v4844
        %4942 = vst.msk [vmem:[%s208 + $0x68] sm:$0xff] %vm4929, %v4845
        %4943 = vst [vmem:[%s208 + $0x70] sm:$0xff] %v4846
        %4944 = vst.msk [vmem:[%s208 + $0x78] sm:$0xff] %vm4929, %v4847
        %4945 = vst [vmem:[%s208 + $0x80] sm:$0xff] %v4848
        %4946 = vst.msk [vmem:[%s208 + $0x88] sm:$0xff] %vm4929, %v4849
        %4947 = vst [vmem:[%s208 + $0x90] sm:$0xff] %v4850
        %4948 = vst.msk [vmem:[%s208 + $0x98] sm:$0xff] %vm4929, %v4851
        %4949 = vst [vmem:[%s208 + $0xa0] sm:$0xff] %v4852
        %4950 = vst.msk [vmem:[%s208 + $0xa8] sm:$0xff] %vm4929, %v4853
        %4951 = vst [vmem:[%s208 + $0xb0] sm:$0xff] %v4854
        %4952 = vst.msk [vmem:[%s208 + $0xb8] sm:$0xff] %vm4929, %v4855
        %4953 = vst [vmem:[%s208 + $0xc0] sm:$0xff] %v4856
        %4954 = vst.msk [vmem:[%s208 + $0xc8] sm:$0xff] %vm4929, %v4857
        %4955 = vst [vmem:[%s208 + $0xd0] sm:$0xff] %v4858
        %4956 = vst.msk [vmem:[%s208 + $0xd8] sm:$0xff] %vm4929, %v4859
        %4957 = vst [vmem:[%s208 + $0xe0] sm:$0xff] %v4860
        %4958 = vst.msk [vmem:[%s208 + $0xe8] sm:$0xff] %vm4929, %v4861
        %4959 = vst [vmem:[%s208 + $0xf0] sm:$0xff] %v4862
        %4960 = vst.msk [vmem:[%s208 + $0xf8] sm:$0xff] %vm4929, %v4863
        %4961 = vst [vmem:[%s208 + $0x100] sm:$0xff] %v4864
        %4962 = vst.msk [vmem:[%s208 + $0x108] sm:$0xff] %vm4929, %v4865
        %4963 = vst [vmem:[%s208 + $0x110] sm:$0xff] %v4866
        %4964 = vst.msk [vmem:[%s208 + $0x118] sm:$0xff] %vm4929, %v4867
        %4965 = vst [vmem:[%s208 + $0x120] sm:$0xff] %v4868
        %4966 = vst.msk [vmem:[%s208 + $0x128] sm:$0xff] %vm4929, %v4869
        %4967 = vst [vmem:[%s208 + $0x130] sm:$0xff] %v4870
        %4968 = vst.msk [vmem:[%s208 + $0x138] sm:$0xff] %vm4929, %v4871
        %4969 = vst [vmem:[%s208 + $0x140] sm:$0xff] %v4872
        %4970 = vst.msk [vmem:[%s208 + $0x148] sm:$0xff] %vm4929, %v4873
        %4971 = vst [vmem:[%s208 + $0x150] sm:$0xff] %v4874
        %4972 = vst.msk [vmem:[%s208 + $0x158] sm:$0xff] %vm4929, %v4875
        %4973 = vst [vmem:[%s208 + $0x160] sm:$0xff] %v4876
        %4974 = vst.msk [vmem:[%s208 + $0x168] sm:$0xff] %vm4929, %v4877
        %4975 = vst [vmem:[%s208 + $0x170] sm:$0xff] %v4878
        %4976 = vst.msk [vmem:[%s208 + $0x178] sm:$0xff] %vm4929, %v4879
        %4977 = vst [vmem:[%s208 + $0x180] sm:$0xff] %v4880
        %4978 = vst.msk [vmem:[%s208 + $0x188] sm:$0xff] %vm4929, %v4881
        %4979 = vst [vmem:[%s208 + $0x190] sm:$0xff] %v4882
        %4980 = vst.msk [vmem:[%s208 + $0x198] sm:$0xff] %vm4929, %v4883
        %4981 = vst [vmem:[%s208 + $0x1a0] sm:$0xff] %v4884
        %4982 = vst.msk [vmem:[%s208 + $0x1a8] sm:$0xff] %vm4929, %v4885
        %4983 = vst [vmem:[%s208 + $0x1b0] sm:$0xff] %v4886
        %4984 = vst.msk [vmem:[%s208 + $0x1b8] sm:$0xff] %vm4929, %v4887
        %4985 = vst [vmem:[%s208 + $0x1c0] sm:$0xff] %v4888
        %4986 = vst.msk [vmem:[%s208 + $0x1c8] sm:$0xff] %vm4929, %v4889
        %4987 = vst [vmem:[%s208 + $0x1d0] sm:$0xff] %v4890
        %4988 = vst.msk [vmem:[%s208 + $0x1d8] sm:$0xff] %vm4929, %v4891
        %4989 = vst [vmem:[%s208 + $0x1e0] sm:$0xff] %v4892
        %4990 = vst.msk [vmem:[%s208 + $0x1e8] sm:$0xff] %vm4929, %v4893
        %4991 = vst [vmem:[%s208 + $0x1f0] sm:$0xff] %v4894
        %4992 = vst.msk [vmem:[%s208 + $0x1f8] sm:$0xff] %vm4929, %v4895
        %4993 = vst [vmem:[%s208 + $0x200] sm:$0xff] %v4896
        %4994 = vst.msk [vmem:[%s208 + $0x208] sm:$0xff] %vm4929, %v4897
        %4995 = vst [vmem:[%s208 + $0x210] sm:$0xff] %v4898
        %4996 = vst.msk [vmem:[%s208 + $0x218] sm:$0xff] %vm4929, %v4899
        %4997 = vst [vmem:[%s208 + $0x220] sm:$0xff] %v4900
        %4998 = vst.msk [vmem:[%s208 + $0x228] sm:$0xff] %vm4929, %v4901
        %4999 = vst [vmem:[%s208 + $0x230] sm:$0xff] %v4902
        %5000 = vst.msk [vmem:[%s208 + $0x238] sm:$0xff] %vm4929, %v4903
        %5001 = vst [vmem:[%s208 + $0x240] sm:$0xff] %v4904
        %5002 = vst.msk [vmem:[%s208 + $0x248] sm:$0xff] %vm4929, %v4905
        %5003 = vst [vmem:[%s208 + $0x250] sm:$0xff] %v4906
        %5004 = vst.msk [vmem:[%s208 + $0x258] sm:$0xff] %vm4929, %v4907
        %5005 = vst [vmem:[%s208 + $0x260] sm:$0xff] %v4908
        %5006 = vst.msk [vmem:[%s208 + $0x268] sm:$0xff] %vm4929, %v4909
        %5007 = vst [vmem:[%s208 + $0x270] sm:$0xff] %v4910
        %5008 = vst.msk [vmem:[%s208 + $0x278] sm:$0xff] %vm4929, %v4911
        %5009 = vst [vmem:[%s208 + $0x280] sm:$0xff] %v4912
        %5010 = vst.msk [vmem:[%s208 + $0x288] sm:$0xff] %vm4929, %v4913
        %5011 = vst [vmem:[%s208 + $0x290] sm:$0xff] %v4914
        %5012 = vst.msk [vmem:[%s208 + $0x298] sm:$0xff] %vm4929, %v4915
        %5013 = vst [vmem:[%s208 + $0x2a0] sm:$0xff] %v4916
        %5014 = vst.msk [vmem:[%s208 + $0x2a8] sm:$0xff] %vm4929, %v4917
        %5015 = vst [vmem:[%s208 + $0x2b0] sm:$0xff] %v4918
        %5016 = vst.msk [vmem:[%s208 + $0x2b8] sm:$0xff] %vm4929, %v4919
        %5017 = vst [vmem:[%s208 + $0x2c0] sm:$0xff] %v4920
        %5018 = vst.msk [vmem:[%s208 + $0x2c8] sm:$0xff] %vm4929, %v4921
        %5019 = vst [vmem:[%s208 + $0x2d0] sm:$0xff] %v4922
        %5020 = vst.msk [vmem:[%s208 + $0x2d8] sm:$0xff] %vm4929, %v4923
        %5021 = vst [vmem:[%s208 + $0x2e0] sm:$0xff] %v4924
        %5022 = vst.msk [vmem:[%s208 + $0x2e8] sm:$0xff] %vm4929, %v4925
        %5023 = vst [vmem:[%s208 + $0x2f0] sm:$0xff] %v4926
        %5024 = vst.msk [vmem:[%s208 + $0x2f8] sm:$0xff] %vm4929, %v4927
        %s5025 = sand.u32 %s109, 1
        %s5026 = scalar_lea.sflag [#allocation3], %s5025
        %s5027 = sand.u32 %s109, 1
        %s5028 = smul.addr %s5027, 768
        %s5029 = scalar_lea.vmem [#allocation2], %s5028
        // Predicated region
        $region33: #{_conv1_jit.1} parent=31 // pred_check
          %p5030 = pneg %p119
        $region34: #{_conv1_jit.1} parent=31 // pred_check_branch
          %5032 = sbr.rel (%p5030) target = $region36
        $region35: #{_conv1_jit.1} parent=31 // pred_region
          %s5033 = smul.u32 48, %s22
          %s5034 = ssub.s32 56, %s5033
          %p5035 = scmp.lt.s32.totalorder %s5034, 48
          %s5036 = scalar_select %p5035, %s5034, 48
          %s5037 = smul.u32 128, %s5036
          %s5038 = smul.u32 %s5037, 2
          %s5040 = ssub.s32 12288, %s5038
          %5041 = vsyncadd %s5026, %s5040
          %p5042 = scmp.ne.s32.totalorder 0, %s5038
          %s5043 = smul.addr %s5033, 2
          %s5044 = smul.addr %s21, 112
          %s5045 = sadd.s32 %s5043, %s5044
          %s5046 = smul.addr %s5045, 128
          %s5047 = scalar_lea.hbm %s3, %s5046
          %s5048 = smul.u32 16, %s5036
          %s5049 = sshll.u32 %s5029, 4
          %s5050 = int_to_ptr.vmem [resolvable:$true] %s5049
          %s5051 = sshll.u32 %s5048, 4
          %5055 = dma.vmem_to_hbm [thread:$0]  (%p5042), %s5050, %s5051, %s5047, %s5026, 256, 256, 16
        $region36: #{_conv1_jit.1} parent=31 // pred_fallthru
          _
      $region32: #{_conv1_jit.1} parent=5 // pred_fallthru
        _
      %p5056 = scmp.le.s32.totalorder 2, %s12
      // Predicated region
      $region37: #{_conv1_jit.1} parent=5 // pred_check
        %p5057 = pneg %p5056
      $region38: #{_conv1_jit.1} parent=5 // pred_check_branch
        %5059 = sbr.rel (%p5057) target = $region40
      $region39: #{_conv1_jit.1} parent=5 // pred_region
        %s5060 = ssub.s32 %s12, 2
        // Predicated region
        $region41: #{_conv1_jit.1} parent=39 // pred_check
          %p5061 = pneg %p125
        $region42: #{_conv1_jit.1} parent=39 // pred_check_branch
          %5063 = sbr.rel (%p5061) target = $region44
        $region43: #{_conv1_jit.1} parent=39 // pred_region
          %s5064 = sand.u32 %s110, 1
          %s5065 = scalar_lea.sflag [#allocation3], %s5064
          %s5066 = sand.u32 %s110, 1
          %s5067 = smul.addr %s5066, 768
          %s5068 = scalar_lea.vmem [#allocation2], %s5067
          %5069 = dma.done %s5065, 12288
        $region44: #{_conv1_jit.1} parent=39 // pred_fallthru
          _
      $region40: #{_conv1_jit.1} parent=5 // pred_fallthru
        _
    $region6: #{_conv1_jit.1} parent=1 // loop_footer
      %s16 = sadd.s32 1, %s12
    $region7: #{_conv1_jit.1} parent=1 // loop_footer_branch
      %11 = sbr.rel target = $region3
    $region8: #{_conv1_jit.1} parent=1 // loop_exit
      _
    %5070 = vsyncpa [#allocation3], 1
    %s5071 = scalar_lea.sflag [#allocation3], 1
    %5072 = vsyncpa %s5071, 1

</llo_original>
